<compile_context>
chip_gen: v7x
topology: tpu7x:2x2x1
jax: 0.10.0
libtpu: 0.0.40
codegen_flags: <defaults>
</compile_context>

<pallas_src>
import math
import numpy as np

import jax
import jax.numpy as jnp
from jax import lax
from jax.experimental import pallas as pl
from jax.experimental.pallas import tpu as pltpu


# ----------------------------- fused Pallas kernel ------------------------------

def _make_fused_kernel(shifts, pad, nvox_g, cin, hc, cout, k1p, k3p):
    """shifts: 27 static flat-voxel offsets; pad: static halo width (>= max |shift|)."""
    n_taps = len(shifts)

    def kernel(x_ref, w1_ref, b1_ref, w2_ref, b2_ref, w3_ref, b3_ref, m_ref,
               o_ref, stk1_ref, stk3_ref):
        f32, bf16 = jnp.float32, jnp.bfloat16

        # Padded K rows of the stacked operands must be finite: their weight columns are
        # zero, but scratch is uninitialized and NaN * 0 = NaN. Zero them every step
        # (cheap, and safe under megacore grid sharding where program_id==0 may never
        # run on a given core).
        if k1p > n_taps * cin:
            stk1_ref[n_taps * cin:, :] = jnp.zeros((k1p - n_taps * cin, nvox_g), bf16)
        if k3p > n_taps * hc:
            stk3_ref[n_taps * hc:, :] = jnp.zeros((k3p - n_taps * hc, nvox_g), bf16)

        def build_stack(apad, stk_ref, c):
            # apad: (c, nvox_g + 2*pad) f32. Write the 27 masked, shifted taps as row
            # blocks of the stacked matmul operand. Static lane slices (unrolled loop);
            # mask-multiply in f32, bf16 only at the store.
            for t, s in enumerate(shifts):
                tap = apad[:, pad + s: pad + s + nvox_g] * m_ref[t:t + 1, :]
                stk_ref[t * c:(t + 1) * c, :] = tap.astype(bf16)

        # conv1: 3x3x3, cin -> hc, ReLU   (one stacked matmul, K = 27*cin)
        x = x_ref[0]                                              # (cin, nvox_g) f32
        zx = jnp.zeros((cin, pad), f32)
        build_stack(jnp.concatenate([zx, x, zx], axis=1), stk1_ref, cin)
        h1 = jnp.dot(w1_ref[...], stk1_ref[...], preferred_element_type=f32)
        h1 = jnp.maximum(h1 + b1_ref[...], 0.0)                   # (hc, nvox_g) f32

        # conv2: 1x1x1, hc -> hc, ReLU   (plain matmul, stays in VMEM)
        h2 = jnp.dot(w2_ref[...], h1.astype(bf16), preferred_element_type=f32)
        h2 = jnp.maximum(h2 + b2_ref[...], 0.0)                   # (hc, nvox_g) f32

        # conv3: 3x3x3, hc -> cout (no activation)   (one stacked matmul, K = 27*hc)
        zh = jnp.zeros((hc, pad), f32)
        build_stack(jnp.concatenate([zh, h2, zh], axis=1), stk3_ref, hc)
        y = jnp.dot(w3_ref[...], stk3_ref[...], preferred_element_type=f32) + b3_ref[...]
        o_ref[0] = y.astype(o_ref.dtype)                          # lane-dense NCDHW store

    return kernel


# ------------------------------- helpers ---------------------------------------

def _tap_shifts_and_masks_np(d, h, w):
    """Static flat-voxel shifts + {0,1} masks (host numpy constants) for the 27 taps of a
    same-padded 3x3x3 conv."""
    nvox = d * h * w
    v = np.arange(nvox)
    di, hi, wi = v // (h * w), (v // w) % h, v % w
    shifts, masks = [], []
    for kd in (-1, 0, 1):
        for kh in (-1, 0, 1):
            for kw in (-1, 0, 1):
                shifts.append(kd * h * w + kh * w + kw)
                masks.append((di + kd >= 0) & (di + kd < d) &
                             (hi + kh >= 0) & (hi + kh < h) &
                             (wi + kw >= 0) & (wi + kw < w))
    return tuple(shifts), np.stack(masks).astype(np.float32)      # (27, nvox)


# ------------------------------- JAX wrapper -----------------------------------

@jax.jit
def convnet_forward(x_ncdhw, params):
    """Forward pass matching ConvNet.forward. x_ncdhw: (N, Cin, D, H, W) float32."""
    w1, b1, w2, b2, w3, b3 = params
    n, cin, D, H, W = x_ncdhw.shape
    hc = w1.shape[0]
    cout = w3.shape[0]
    nvox = D * H * W

    # Batch grouping: fold G samples into the lane (voxel) axis per grid step.
    # Keep >= 2 grid steps so both v7x TensorCores get work; on single-TC v5e/v6e a
    # caller could collapse further (n_groups = 1) to shave per-step overhead.
    if n >= 2 and n % 2 == 0:
        n_groups = 2
    else:
        n_groups = max(n, 1)
    G = n // n_groups
    nvox_g = G * nvox

    # Halo width along the flattened voxel axis; >= max |shift| = H*W + W + 1, rounded
    # up to a lane tile (128) so the concatenation boundaries stay aligned.
    pad = ((H * W + W + 1 + 127) // 128) * 128

    shifts, masks = _tap_shifts_and_masks_np(D, H, W)             # host constants
    masks_g = jnp.asarray(np.tile(masks, (1, G)))                 # (27, nvox_g) f32

    k1, k3 = 27 * cin, 27 * hc
    k1p = ((k1 + 15) // 16) * 16                                  # bf16 sublane-tile multiple
    k3p = ((k3 + 15) // 16) * 16

    # Activations: channels-first, G samples folded into the lane axis, f32 all the way
    # to the kernel (cast to bf16 in-kernel at operand build).
    xg = (x_ncdhw.reshape(n_groups, G, cin, nvox)
          .transpose(0, 2, 1, 3).reshape(n_groups, cin, nvox_g))

    # Stacked tap weights: (C_out, 27*C_in), column order = tap-major then input channel
    # (matches the operand row order built in-kernel); zero-padded to the aligned K.
    w1s = jnp.transpose(w1, (0, 2, 3, 4, 1)).reshape(hc, k1)
    w1s = jnp.pad(w1s, ((0, 0), (0, k1p - k1))).astype(jnp.bfloat16)
    w2m = w2.reshape(hc, hc).astype(jnp.bfloat16)
    w3s = jnp.transpose(w3, (0, 2, 3, 4, 1)).reshape(cout, k3)
    w3s = jnp.pad(w3s, ((0, 0), (0, k3p - k3))).astype(jnp.bfloat16)
    b1c = b1.reshape(hc, 1).astype(jnp.float32)
    b2c = b2.reshape(hc, 1).astype(jnp.float32)
    b3c = b3.reshape(cout, 1).astype(jnp.float32)

    kernel = _make_fused_kernel(shifts, pad, nvox_g, cin, hc, cout, k1p, k3p)

    flops = 2 * n * nvox * (27 * cin * hc + hc * hc + 27 * hc * cout)
    bytes_accessed = (xg.size * 4 + n * cout * nvox * 4 + masks_g.size * 4 +
                      (w1s.size + w2m.size + w3s.size) * 2 +
                      (b1c.size + b2c.size + b3c.size) * 4)

    out = pl.pallas_call(
        kernel,
        out_shape=jax.ShapeDtypeStruct((n_groups, cout, nvox_g), jnp.float32),
        grid=(n_groups,),
        in_specs=[
            pl.BlockSpec((1, cin, nvox_g), lambda i: (i, 0, 0)),   # activations (f32)
            pl.BlockSpec((hc, k1p), lambda i: (0, 0)),             # stacked w1 taps
            pl.BlockSpec((hc, 1), lambda i: (0, 0)),               # b1
            pl.BlockSpec((hc, hc), lambda i: (0, 0)),              # w2
            pl.BlockSpec((hc, 1), lambda i: (0, 0)),               # b2
            pl.BlockSpec((cout, k3p), lambda i: (0, 0)),           # stacked w3 taps
            pl.BlockSpec((cout, 1), lambda i: (0, 0)),             # b3
            pl.BlockSpec((27, nvox_g), lambda i: (0, 0)),          # boundary masks (f32)
        ],
        out_specs=pl.BlockSpec((1, cout, nvox_g), lambda i: (i, 0, 0)),
        scratch_shapes=[
            pltpu.VMEM((k1p, nvox_g), jnp.bfloat16),               # stacked conv1 operand
            pltpu.VMEM((k3p, nvox_g), jnp.bfloat16),               # stacked conv3 operand
        ],
        compiler_params=pltpu.CompilerParams(dimension_semantics=("parallel",)),
        cost_estimate=pl.CostEstimate(flops=int(flops), transcendentals=0,
                                      bytes_accessed=int(bytes_accessed)),
    )(xg, w1s, b1c, w2m, b2c, w3s, b3c, masks_g)

    # (n_groups, cout, G*nvox) -> (N, Cout, D, H, W); lanes are already per-sample NCDHW.
    return (out.reshape(n_groups, cout, G, nvox)
            .transpose(0, 2, 1, 3).reshape(n, cout, D, H, W))


# ---------------------------- reference (XLA, f32) --------------------------------

def _ref_forward(x, params):
    w1, b1, w2, b2, w3, b3 = params

    def conv(xi, wi, bi, pad):
        y = lax.conv_general_dilated(
            xi, wi, window_strides=(1, 1, 1), padding=[(pad, pad)] * 3,
            dimension_numbers=("NCDHW", "OIDHW", "NCDHW"))
        return y + bi.reshape(1, -1, 1, 1, 1)

    h = jax.nn.relu(conv(x, w1, b1, 1))
    h = jax.nn.relu(conv(h, w2, b2, 0))
    return conv(h, w3, b3, 1)


# --------------------------------- main ---------------------------------------

def _init_params(key, in_channels, out_channels, hidden_channels):
    """Deterministic init mimicking PyTorch Conv3d defaults (uniform +- 1/sqrt(fan_in))."""
    ks = jax.random.split(key, 6)

    def u(k, shape, fan_in):
        bound = 1.0 / math.sqrt(fan_in)
        return jax.random.uniform(k, shape, jnp.float32, -bound, bound)

    w1 = u(ks[0], (hidden_channels, in_channels, 3, 3, 3), in_channels * 27)
    b1 = u(ks[1], (hidden_channels,), in_channels * 27)
    w2 = u(ks[2], (hidden_channels, hidden_channels, 1, 1, 1), hidden_channels)
    b2 = u(ks[3], (hidden_channels,), hidden_channels)
    w3 = u(ks[4], (out_channels, hidden_channels, 3, 3, 3), hidden_channels * 27)
    b3 = u(ks[5], (out_channels,), hidden_channels * 27)
    return (w1, b1, w2, b2, w3, b3)


if __name__ == "__main__":
    # batch=4 exercises the batch-folding path (2 grid steps x 2 samples folded into lanes).
    batch, in_channels, out_channels, hidden_channels = 4, 4, 4, 32
    D = H = W = 8

    key = jax.random.PRNGKey(0)
    kx, kp = jax.random.split(key)
    x = jax.random.normal(kx, (batch, in_channels, D, H, W), jnp.float32)
    params = _init_params(kp, in_channels, out_channels, hidden_channels)

    y = jax.block_until_ready(convnet_forward(x, params))
    assert y.shape == (batch, out_channels, D, H, W), y.shape

    y_ref = jax.block_until_ready(_ref_forward(x, params))
    # bf16 matmul operands with f32 accumulation -> slightly looser tolerance than pure f32.
    max_err = float(jnp.max(jnp.abs(y - y_ref)))
    assert jnp.allclose(y, y_ref, atol=3e-2, rtol=3e-2), max_err

    print("KERNEL_OK")
</pallas_src>

<mosaic_0001>
module attributes {stable_mosaic.version = 11 : i64} {
  func.func @kernel(%arg0: i32, %arg1: memref<1x4x1024xf32, #tpu.memory_space<vmem>>, %arg2: memref<32x112xbf16, #tpu.memory_space<vmem>>, %arg3: memref<32x1xf32, #tpu.memory_space<vmem>>, %arg4: memref<32x32xbf16, #tpu.memory_space<vmem>>, %arg5: memref<32x1xf32, #tpu.memory_space<vmem>>, %arg6: memref<4x864xbf16, #tpu.memory_space<vmem>>, %arg7: memref<4x1xf32, #tpu.memory_space<vmem>>, %arg8: memref<27x1024xf32, #tpu.memory_space<vmem>>, %arg9: memref<1x4x1024xf32, #tpu.memory_space<vmem>>, %arg10: memref<112x1024xbf16, #tpu.memory_space<vmem>>, %arg11: memref<864x1024xbf16, #tpu.memory_space<vmem>>) attributes {dimension_semantics = [#tpu.dimension_semantics<parallel>], iteration_bounds = array<i64: 2>, scalar_prefetch = 0 : i64, scratch_operands = 2 : i64, tpu.core_type = #tpu.core_type<tc>, window_params = [{transform_indices = @transform_0, window_bounds = array<i64: 1, 4, 1024>}, {pipeline_mode = #tpu.pipeline_mode<synchronous>, transform_indices = @transform_1, window_bounds = array<i64: 32, 112>}, {pipeline_mode = #tpu.pipeline_mode<synchronous>, transform_indices = @transform_2, window_bounds = array<i64: 32, 1>}, {pipeline_mode = #tpu.pipeline_mode<synchronous>, transform_indices = @transform_3, window_bounds = array<i64: 32, 32>}, {pipeline_mode = #tpu.pipeline_mode<synchronous>, transform_indices = @transform_4, window_bounds = array<i64: 32, 1>}, {pipeline_mode = #tpu.pipeline_mode<synchronous>, transform_indices = @transform_5, window_bounds = array<i64: 4, 864>}, {pipeline_mode = #tpu.pipeline_mode<synchronous>, transform_indices = @transform_6, window_bounds = array<i64: 4, 1>}, {pipeline_mode = #tpu.pipeline_mode<synchronous>, transform_indices = @transform_7, window_bounds = array<i64: 27, 1024>}, {transform_indices = @transform_8, window_bounds = array<i64: 1, 4, 1024>}]} {
    %cst = arith.constant 0.000000e+00 : bf16
    %0 = vector.broadcast %cst : bf16 to vector<4x1024xbf16>
    %c108 = arith.constant 108 : index
    %c0 = arith.constant 0 : index
    %1 = vector.load %arg10[%c108, %c0] : memref<112x1024xbf16, #tpu.memory_space<vmem>>, vector<4x1024xbf16>
    tpu.vector_store %arg10[%c108, %c0], %0 {strides = array<i32>} : memref<112x1024xbf16, #tpu.memory_space<vmem>>, vector<4x1024xbf16>,
    %c0_0 = arith.constant 0 : index
    %c0_1 = arith.constant 0 : index
    %c0_2 = arith.constant 0 : index
    %2 = vector.load %arg1[%c0_0, %c0_1, %c0_2] : memref<1x4x1024xf32, #tpu.memory_space<vmem>>, vector<1x4x1024xf32>
    %3 = vector.shape_cast %2 : vector<1x4x1024xf32> to vector<4x1024xf32>
    %cst_3 = arith.constant 0.000000e+00 : f32
    %4 = vector.broadcast %cst_3 : f32 to vector<4x128xf32>
    %5 = tpu.concatenate %4, %3, %4 in 1 : vector<4x128xf32>, vector<4x1024xf32>, vector<4x128xf32> -> vector<4x1280xf32>
    %6 = vector.extract_strided_slice %5 {offsets = [0, 55], sizes = [4, 1024], strides = [1, 1]} : vector<4x1280xf32> to vector<4x1024xf32>
    %c0_4 = arith.constant 0 : index
    %c0_5 = arith.constant 0 : index
    %7 = vector.load %arg8[%c0_4, %c0_5] : memref<27x1024xf32, #tpu.memory_space<vmem>>, vector<1x1024xf32>
    %8 = vector.broadcast %7 : vector<1x1024xf32> to vector<4x1024xf32>
    %9 = arith.mulf %6, %8 : vector<4x1024xf32>
    %10 = arith.truncf %9 : vector<4x1024xf32> to vector<4x1024xbf16>
    %c0_6 = arith.constant 0 : index
    %c0_7 = arith.constant 0 : index
    %11 = vector.load %arg10[%c0_6, %c0_7] : memref<112x1024xbf16, #tpu.memory_space<vmem>>, vector<4x1024xbf16>
    tpu.vector_store %arg10[%c0_6, %c0_7], %10 {strides = array<i32>} : memref<112x1024xbf16, #tpu.memory_space<vmem>>, vector<4x1024xbf16>,
    %12 = vector.extract_strided_slice %5 {offsets = [0, 56], sizes = [4, 1024], strides = [1, 1]} : vector<4x1280xf32> to vector<4x1024xf32>
    %c1 = arith.constant 1 : index
    %c0_8 = arith.constant 0 : index
    %13 = vector.load %arg8[%c1, %c0_8] : memref<27x1024xf32, #tpu.memory_space<vmem>>, vector<1x1024xf32>
    %14 = vector.broadcast %13 : vector<1x1024xf32> to vector<4x1024xf32>
    %15 = arith.mulf %12, %14 : vector<4x1024xf32>
    %16 = arith.truncf %15 : vector<4x1024xf32> to vector<4x1024xbf16>
    %c4 = arith.constant 4 : index
    %c0_9 = arith.constant 0 : index
    %17 = vector.load %arg10[%c4, %c0_9] : memref<112x1024xbf16, #tpu.memory_space<vmem>>, vector<4x1024xbf16>
    tpu.vector_store %arg10[%c4, %c0_9], %16 {strides = array<i32>} : memref<112x1024xbf16, #tpu.memory_space<vmem>>, vector<4x1024xbf16>,
    %18 = vector.extract_strided_slice %5 {offsets = [0, 57], sizes = [4, 1024], strides = [1, 1]} : vector<4x1280xf32> to vector<4x1024xf32>
    %c2 = arith.constant 2 : index
    %c0_10 = arith.constant 0 : index
    %19 = vector.load %arg8[%c2, %c0_10] : memref<27x1024xf32, #tpu.memory_space<vmem>>, vector<1x1024xf32>
    %20 = vector.broadcast %19 : vector<1x1024xf32> to vector<4x1024xf32>
    %21 = arith.mulf %18, %20 : vector<4x1024xf32>
    %22 = arith.truncf %21 : vector<4x1024xf32> to vector<4x1024xbf16>
    %c8 = arith.constant 8 : index
    %c0_11 = arith.constant 0 : index
    %23 = vector.load %arg10[%c8, %c0_11] : memref<112x1024xbf16, #tpu.memory_space<vmem>>, vector<4x1024xbf16>
    tpu.vector_store %arg10[%c8, %c0_11], %22 {strides = array<i32>} : memref<112x1024xbf16, #tpu.memory_space<vmem>>, vector<4x1024xbf16>,
    %24 = vector.extract_strided_slice %5 {offsets = [0, 63], sizes = [4, 1024], strides = [1, 1]} : vector<4x1280xf32> to vector<4x1024xf32>
    %c3 = arith.constant 3 : index
    %c0_12 = arith.constant 0 : index
    %25 = vector.load %arg8[%c3, %c0_12] : memref<27x1024xf32, #tpu.memory_space<vmem>>, vector<1x1024xf32>
    %26 = vector.broadcast %25 : vector<1x1024xf32> to vector<4x1024xf32>
    %27 = arith.mulf %24, %26 : vector<4x1024xf32>
    %28 = arith.truncf %27 : vector<4x1024xf32> to vector<4x1024xbf16>
    %c12 = arith.constant 12 : index
    %c0_13 = arith.constant 0 : index
    %29 = vector.load %arg10[%c12, %c0_13] : memref<112x1024xbf16, #tpu.memory_space<vmem>>, vector<4x1024xbf16>
    tpu.vector_store %arg10[%c12, %c0_13], %28 {strides = array<i32>} : memref<112x1024xbf16, #tpu.memory_space<vmem>>, vector<4x1024xbf16>,
    %30 = vector.extract_strided_slice %5 {offsets = [0, 64], sizes = [4, 1024], strides = [1, 1]} : vector<4x1280xf32> to vector<4x1024xf32>
    %c4_14 = arith.constant 4 : index
    %c0_15 = arith.constant 0 : index
    %31 = vector.load %arg8[%c4_14, %c0_15] : memref<27x1024xf32, #tpu.memory_space<vmem>>, vector<1x1024xf32>
    %32 = vector.broadcast %31 : vector<1x1024xf32> to vector<4x1024xf32>
    %33 = arith.mulf %30, %32 : vector<4x1024xf32>
    %34 = arith.truncf %33 : vector<4x1024xf32> to vector<4x1024xbf16>
    %c16 = arith.constant 16 : index
    %c0_16 = arith.constant 0 : index
    %35 = vector.load %arg10[%c16, %c0_16] : memref<112x1024xbf16, #tpu.memory_space<vmem>>, vector<4x1024xbf16>
    tpu.vector_store %arg10[%c16, %c0_16], %34 {strides = array<i32>} : memref<112x1024xbf16, #tpu.memory_space<vmem>>, vector<4x1024xbf16>,
    %36 = vector.extract_strided_slice %5 {offsets = [0, 65], sizes = [4, 1024], strides = [1, 1]} : vector<4x1280xf32> to vector<4x1024xf32>
    %c5 = arith.constant 5 : index
    %c0_17 = arith.constant 0 : index
    %37 = vector.load %arg8[%c5, %c0_17] : memref<27x1024xf32, #tpu.memory_space<vmem>>, vector<1x1024xf32>
    %38 = vector.broadcast %37 : vector<1x1024xf32> to vector<4x1024xf32>
    %39 = arith.mulf %36, %38 : vector<4x1024xf32>
    %40 = arith.truncf %39 : vector<4x1024xf32> to vector<4x1024xbf16>
    %c20 = arith.constant 20 : index
    %c0_18 = arith.constant 0 : index
    %41 = vector.load %arg10[%c20, %c0_18] : memref<112x1024xbf16, #tpu.memory_space<vmem>>, vector<4x1024xbf16>
    tpu.vector_store %arg10[%c20, %c0_18], %40 {strides = array<i32>} : memref<112x1024xbf16, #tpu.memory_space<vmem>>, vector<4x1024xbf16>,
    %42 = vector.extract_strided_slice %5 {offsets = [0, 71], sizes = [4, 1024], strides = [1, 1]} : vector<4x1280xf32> to vector<4x1024xf32>
    %c6 = arith.constant 6 : index
    %c0_19 = arith.constant 0 : index
    %43 = vector.load %arg8[%c6, %c0_19] : memref<27x1024xf32, #tpu.memory_space<vmem>>, vector<1x1024xf32>
    %44 = vector.broadcast %43 : vector<1x1024xf32> to vector<4x1024xf32>
    %45 = arith.mulf %42, %44 : vector<4x1024xf32>
    %46 = arith.truncf %45 : vector<4x1024xf32> to vector<4x1024xbf16>
    %c24 = arith.constant 24 : index
    %c0_20 = arith.constant 0 : index
    %47 = vector.load %arg10[%c24, %c0_20] : memref<112x1024xbf16, #tpu.memory_space<vmem>>, vector<4x1024xbf16>
    tpu.vector_store %arg10[%c24, %c0_20], %46 {strides = array<i32>} : memref<112x1024xbf16, #tpu.memory_space<vmem>>, vector<4x1024xbf16>,
    %48 = vector.extract_strided_slice %5 {offsets = [0, 72], sizes = [4, 1024], strides = [1, 1]} : vector<4x1280xf32> to vector<4x1024xf32>
    %c7 = arith.constant 7 : index
    %c0_21 = arith.constant 0 : index
    %49 = vector.load %arg8[%c7, %c0_21] : memref<27x1024xf32, #tpu.memory_space<vmem>>, vector<1x1024xf32>
    %50 = vector.broadcast %49 : vector<1x1024xf32> to vector<4x1024xf32>
    %51 = arith.mulf %48, %50 : vector<4x1024xf32>
    %52 = arith.truncf %51 : vector<4x1024xf32> to vector<4x1024xbf16>
    %c28 = arith.constant 28 : index
    %c0_22 = arith.constant 0 : index
    %53 = vector.load %arg10[%c28, %c0_22] : memref<112x1024xbf16, #tpu.memory_space<vmem>>, vector<4x1024xbf16>
    tpu.vector_store %arg10[%c28, %c0_22], %52 {strides = array<i32>} : memref<112x1024xbf16, #tpu.memory_space<vmem>>, vector<4x1024xbf16>,
    %54 = vector.extract_strided_slice %5 {offsets = [0, 73], sizes = [4, 1024], strides = [1, 1]} : vector<4x1280xf32> to vector<4x1024xf32>
    %c8_23 = arith.constant 8 : index
    %c0_24 = arith.constant 0 : index
    %55 = vector.load %arg8[%c8_23, %c0_24] : memref<27x1024xf32, #tpu.memory_space<vmem>>, vector<1x1024xf32>
    %56 = vector.broadcast %55 : vector<1x1024xf32> to vector<4x1024xf32>
    %57 = arith.mulf %54, %56 : vector<4x1024xf32>
    %58 = arith.truncf %57 : vector<4x1024xf32> to vector<4x1024xbf16>
    %c32 = arith.constant 32 : index
    %c0_25 = arith.constant 0 : index
    %59 = vector.load %arg10[%c32, %c0_25] : memref<112x1024xbf16, #tpu.memory_space<vmem>>, vector<4x1024xbf16>
    tpu.vector_store %arg10[%c32, %c0_25], %58 {strides = array<i32>} : memref<112x1024xbf16, #tpu.memory_space<vmem>>, vector<4x1024xbf16>,
    %60 = vector.extract_strided_slice %5 {offsets = [0, 119], sizes = [4, 1024], strides = [1, 1]} : vector<4x1280xf32> to vector<4x1024xf32>
    %c9 = arith.constant 9 : index
    %c0_26 = arith.constant 0 : index
    %61 = vector.load %arg8[%c9, %c0_26] : memref<27x1024xf32, #tpu.memory_space<vmem>>, vector<1x1024xf32>
    %62 = vector.broadcast %61 : vector<1x1024xf32> to vector<4x1024xf32>
    %63 = arith.mulf %60, %62 : vector<4x1024xf32>
    %64 = arith.truncf %63 : vector<4x1024xf32> to vector<4x1024xbf16>
    %c36 = arith.constant 36 : index
    %c0_27 = arith.constant 0 : index
    %65 = vector.load %arg10[%c36, %c0_27] : memref<112x1024xbf16, #tpu.memory_space<vmem>>, vector<4x1024xbf16>
    tpu.vector_store %arg10[%c36, %c0_27], %64 {strides = array<i32>} : memref<112x1024xbf16, #tpu.memory_space<vmem>>, vector<4x1024xbf16>,
    %66 = vector.extract_strided_slice %5 {offsets = [0, 120], sizes = [4, 1024], strides = [1, 1]} : vector<4x1280xf32> to vector<4x1024xf32>
    %c10 = arith.constant 10 : index
    %c0_28 = arith.constant 0 : index
    %67 = vector.load %arg8[%c10, %c0_28] : memref<27x1024xf32, #tpu.memory_space<vmem>>, vector<1x1024xf32>
    %68 = vector.broadcast %67 : vector<1x1024xf32> to vector<4x1024xf32>
    %69 = arith.mulf %66, %68 : vector<4x1024xf32>
    %70 = arith.truncf %69 : vector<4x1024xf32> to vector<4x1024xbf16>
    %c40 = arith.constant 40 : index
    %c0_29 = arith.constant 0 : index
    %71 = vector.load %arg10[%c40, %c0_29] : memref<112x1024xbf16, #tpu.memory_space<vmem>>, vector<4x1024xbf16>
    tpu.vector_store %arg10[%c40, %c0_29], %70 {strides = array<i32>} : memref<112x1024xbf16, #tpu.memory_space<vmem>>, vector<4x1024xbf16>,
    %72 = vector.extract_strided_slice %5 {offsets = [0, 121], sizes = [4, 1024], strides = [1, 1]} : vector<4x1280xf32> to vector<4x1024xf32>
    %c11 = arith.constant 11 : index
    %c0_30 = arith.constant 0 : index
    %73 = vector.load %arg8[%c11, %c0_30] : memref<27x1024xf32, #tpu.memory_space<vmem>>, vector<1x1024xf32>
    %74 = vector.broadcast %73 : vector<1x1024xf32> to vector<4x1024xf32>
    %75 = arith.mulf %72, %74 : vector<4x1024xf32>
    %76 = arith.truncf %75 : vector<4x1024xf32> to vector<4x1024xbf16>
    %c44 = arith.constant 44 : index
    %c0_31 = arith.constant 0 : index
    %77 = vector.load %arg10[%c44, %c0_31] : memref<112x1024xbf16, #tpu.memory_space<vmem>>, vector<4x1024xbf16>
    tpu.vector_store %arg10[%c44, %c0_31], %76 {strides = array<i32>} : memref<112x1024xbf16, #tpu.memory_space<vmem>>, vector<4x1024xbf16>,
    %78 = vector.extract_strided_slice %5 {offsets = [0, 127], sizes = [4, 1024], strides = [1, 1]} : vector<4x1280xf32> to vector<4x1024xf32>
    %c12_32 = arith.constant 12 : index
    %c0_33 = arith.constant 0 : index
    %79 = vector.load %arg8[%c12_32, %c0_33] : memref<27x1024xf32, #tpu.memory_space<vmem>>, vector<1x1024xf32>
    %80 = vector.broadcast %79 : vector<1x1024xf32> to vector<4x1024xf32>
    %81 = arith.mulf %78, %80 : vector<4x1024xf32>
    %82 = arith.truncf %81 : vector<4x1024xf32> to vector<4x1024xbf16>
    %c48 = arith.constant 48 : index
    %c0_34 = arith.constant 0 : index
    %83 = vector.load %arg10[%c48, %c0_34] : memref<112x1024xbf16, #tpu.memory_space<vmem>>, vector<4x1024xbf16>
    tpu.vector_store %arg10[%c48, %c0_34], %82 {strides = array<i32>} : memref<112x1024xbf16, #tpu.memory_space<vmem>>, vector<4x1024xbf16>,
    %84 = vector.extract_strided_slice %5 {offsets = [0, 128], sizes = [4, 1024], strides = [1, 1]} : vector<4x1280xf32> to vector<4x1024xf32>
    %c13 = arith.constant 13 : index
    %c0_35 = arith.constant 0 : index
    %85 = vector.load %arg8[%c13, %c0_35] : memref<27x1024xf32, #tpu.memory_space<vmem>>, vector<1x1024xf32>
    %86 = vector.broadcast %85 : vector<1x1024xf32> to vector<4x1024xf32>
    %87 = arith.mulf %84, %86 : vector<4x1024xf32>
    %88 = arith.truncf %87 : vector<4x1024xf32> to vector<4x1024xbf16>
    %c52 = arith.constant 52 : index
    %c0_36 = arith.constant 0 : index
    %89 = vector.load %arg10[%c52, %c0_36] : memref<112x1024xbf16, #tpu.memory_space<vmem>>, vector<4x1024xbf16>
    tpu.vector_store %arg10[%c52, %c0_36], %88 {strides = array<i32>} : memref<112x1024xbf16, #tpu.memory_space<vmem>>, vector<4x1024xbf16>,
    %90 = vector.extract_strided_slice %5 {offsets = [0, 129], sizes = [4, 1024], strides = [1, 1]} : vector<4x1280xf32> to vector<4x1024xf32>
    %c14 = arith.constant 14 : index
    %c0_37 = arith.constant 0 : index
    %91 = vector.load %arg8[%c14, %c0_37] : memref<27x1024xf32, #tpu.memory_space<vmem>>, vector<1x1024xf32>
    %92 = vector.broadcast %91 : vector<1x1024xf32> to vector<4x1024xf32>
    %93 = arith.mulf %90, %92 : vector<4x1024xf32>
    %94 = arith.truncf %93 : vector<4x1024xf32> to vector<4x1024xbf16>
    %c56 = arith.constant 56 : index
    %c0_38 = arith.constant 0 : index
    %95 = vector.load %arg10[%c56, %c0_38] : memref<112x1024xbf16, #tpu.memory_space<vmem>>, vector<4x1024xbf16>
    tpu.vector_store %arg10[%c56, %c0_38], %94 {strides = array<i32>} : memref<112x1024xbf16, #tpu.memory_space<vmem>>, vector<4x1024xbf16>,
    %96 = vector.extract_strided_slice %5 {offsets = [0, 135], sizes = [4, 1024], strides = [1, 1]} : vector<4x1280xf32> to vector<4x1024xf32>
    %c15 = arith.constant 15 : index
    %c0_39 = arith.constant 0 : index
    %97 = vector.load %arg8[%c15, %c0_39] : memref<27x1024xf32, #tpu.memory_space<vmem>>, vector<1x1024xf32>
    %98 = vector.broadcast %97 : vector<1x1024xf32> to vector<4x1024xf32>
    %99 = arith.mulf %96, %98 : vector<4x1024xf32>
    %100 = arith.truncf %99 : vector<4x1024xf32> to vector<4x1024xbf16>
    %c60 = arith.constant 60 : index
    %c0_40 = arith.constant 0 : index
    %101 = vector.load %arg10[%c60, %c0_40] : memref<112x1024xbf16, #tpu.memory_space<vmem>>, vector<4x1024xbf16>
    tpu.vector_store %arg10[%c60, %c0_40], %100 {strides = array<i32>} : memref<112x1024xbf16, #tpu.memory_space<vmem>>, vector<4x1024xbf16>,
    %102 = vector.extract_strided_slice %5 {offsets = [0, 136], sizes = [4, 1024], strides = [1, 1]} : vector<4x1280xf32> to vector<4x1024xf32>
    %c16_41 = arith.constant 16 : index
    %c0_42 = arith.constant 0 : index
    %103 = vector.load %arg8[%c16_41, %c0_42] : memref<27x1024xf32, #tpu.memory_space<vmem>>, vector<1x1024xf32>
    %104 = vector.broadcast %103 : vector<1x1024xf32> to vector<4x1024xf32>
    %105 = arith.mulf %102, %104 : vector<4x1024xf32>
    %106 = arith.truncf %105 : vector<4x1024xf32> to vector<4x1024xbf16>
    %c64 = arith.constant 64 : index
    %c0_43 = arith.constant 0 : index
    %107 = vector.load %arg10[%c64, %c0_43] : memref<112x1024xbf16, #tpu.memory_space<vmem>>, vector<4x1024xbf16>
    tpu.vector_store %arg10[%c64, %c0_43], %106 {strides = array<i32>} : memref<112x1024xbf16, #tpu.memory_space<vmem>>, vector<4x1024xbf16>,
    %108 = vector.extract_strided_slice %5 {offsets = [0, 137], sizes = [4, 1024], strides = [1, 1]} : vector<4x1280xf32> to vector<4x1024xf32>
    %c17 = arith.constant 17 : index
    %c0_44 = arith.constant 0 : index
    %109 = vector.load %arg8[%c17, %c0_44] : memref<27x1024xf32, #tpu.memory_space<vmem>>, vector<1x1024xf32>
    %110 = vector.broadcast %109 : vector<1x1024xf32> to vector<4x1024xf32>
    %111 = arith.mulf %108, %110 : vector<4x1024xf32>
    %112 = arith.truncf %111 : vector<4x1024xf32> to vector<4x1024xbf16>
    %c68 = arith.constant 68 : index
    %c0_45 = arith.constant 0 : index
    %113 = vector.load %arg10[%c68, %c0_45] : memref<112x1024xbf16, #tpu.memory_space<vmem>>, vector<4x1024xbf16>
    tpu.vector_store %arg10[%c68, %c0_45], %112 {strides = array<i32>} : memref<112x1024xbf16, #tpu.memory_space<vmem>>, vector<4x1024xbf16>,
    %114 = vector.extract_strided_slice %5 {offsets = [0, 183], sizes = [4, 1024], strides = [1, 1]} : vector<4x1280xf32> to vector<4x1024xf32>
    %c18 = arith.constant 18 : index
    %c0_46 = arith.constant 0 : index
    %115 = vector.load %arg8[%c18, %c0_46] : memref<27x1024xf32, #tpu.memory_space<vmem>>, vector<1x1024xf32>
    %116 = vector.broadcast %115 : vector<1x1024xf32> to vector<4x1024xf32>
    %117 = arith.mulf %114, %116 : vector<4x1024xf32>
    %118 = arith.truncf %117 : vector<4x1024xf32> to vector<4x1024xbf16>
    %c72 = arith.constant 72 : index
    %c0_47 = arith.constant 0 : index
    %119 = vector.load %arg10[%c72, %c0_47] : memref<112x1024xbf16, #tpu.memory_space<vmem>>, vector<4x1024xbf16>
    tpu.vector_store %arg10[%c72, %c0_47], %118 {strides = array<i32>} : memref<112x1024xbf16, #tpu.memory_space<vmem>>, vector<4x1024xbf16>,
    %120 = vector.extract_strided_slice %5 {offsets = [0, 184], sizes = [4, 1024], strides = [1, 1]} : vector<4x1280xf32> to vector<4x1024xf32>
    %c19 = arith.constant 19 : index
    %c0_48 = arith.constant 0 : index
    %121 = vector.load %arg8[%c19, %c0_48] : memref<27x1024xf32, #tpu.memory_space<vmem>>, vector<1x1024xf32>
    %122 = vector.broadcast %121 : vector<1x1024xf32> to vector<4x1024xf32>
    %123 = arith.mulf %120, %122 : vector<4x1024xf32>
    %124 = arith.truncf %123 : vector<4x1024xf32> to vector<4x1024xbf16>
    %c76 = arith.constant 76 : index
    %c0_49 = arith.constant 0 : index
    %125 = vector.load %arg10[%c76, %c0_49] : memref<112x1024xbf16, #tpu.memory_space<vmem>>, vector<4x1024xbf16>
    tpu.vector_store %arg10[%c76, %c0_49], %124 {strides = array<i32>} : memref<112x1024xbf16, #tpu.memory_space<vmem>>, vector<4x1024xbf16>,
    %126 = vector.extract_strided_slice %5 {offsets = [0, 185], sizes = [4, 1024], strides = [1, 1]} : vector<4x1280xf32> to vector<4x1024xf32>
    %c20_50 = arith.constant 20 : index
    %c0_51 = arith.constant 0 : index
    %127 = vector.load %arg8[%c20_50, %c0_51] : memref<27x1024xf32, #tpu.memory_space<vmem>>, vector<1x1024xf32>
    %128 = vector.broadcast %127 : vector<1x1024xf32> to vector<4x1024xf32>
    %129 = arith.mulf %126, %128 : vector<4x1024xf32>
    %130 = arith.truncf %129 : vector<4x1024xf32> to vector<4x1024xbf16>
    %c80 = arith.constant 80 : index
    %c0_52 = arith.constant 0 : index
    %131 = vector.load %arg10[%c80, %c0_52] : memref<112x1024xbf16, #tpu.memory_space<vmem>>, vector<4x1024xbf16>
    tpu.vector_store %arg10[%c80, %c0_52], %130 {strides = array<i32>} : memref<112x1024xbf16, #tpu.memory_space<vmem>>, vector<4x1024xbf16>,
    %132 = vector.extract_strided_slice %5 {offsets = [0, 191], sizes = [4, 1024], strides = [1, 1]} : vector<4x1280xf32> to vector<4x1024xf32>
    %c21 = arith.constant 21 : index
    %c0_53 = arith.constant 0 : index
    %133 = vector.load %arg8[%c21, %c0_53] : memref<27x1024xf32, #tpu.memory_space<vmem>>, vector<1x1024xf32>
    %134 = vector.broadcast %133 : vector<1x1024xf32> to vector<4x1024xf32>
    %135 = arith.mulf %132, %134 : vector<4x1024xf32>
    %136 = arith.truncf %135 : vector<4x1024xf32> to vector<4x1024xbf16>
    %c84 = arith.constant 84 : index
    %c0_54 = arith.constant 0 : index
    %137 = vector.load %arg10[%c84, %c0_54] : memref<112x1024xbf16, #tpu.memory_space<vmem>>, vector<4x1024xbf16>
    tpu.vector_store %arg10[%c84, %c0_54], %136 {strides = array<i32>} : memref<112x1024xbf16, #tpu.memory_space<vmem>>, vector<4x1024xbf16>,
    %138 = vector.extract_strided_slice %5 {offsets = [0, 192], sizes = [4, 1024], strides = [1, 1]} : vector<4x1280xf32> to vector<4x1024xf32>
    %c22 = arith.constant 22 : index
    %c0_55 = arith.constant 0 : index
    %139 = vector.load %arg8[%c22, %c0_55] : memref<27x1024xf32, #tpu.memory_space<vmem>>, vector<1x1024xf32>
    %140 = vector.broadcast %139 : vector<1x1024xf32> to vector<4x1024xf32>
    %141 = arith.mulf %138, %140 : vector<4x1024xf32>
    %142 = arith.truncf %141 : vector<4x1024xf32> to vector<4x1024xbf16>
    %c88 = arith.constant 88 : index
    %c0_56 = arith.constant 0 : index
    %143 = vector.load %arg10[%c88, %c0_56] : memref<112x1024xbf16, #tpu.memory_space<vmem>>, vector<4x1024xbf16>
    tpu.vector_store %arg10[%c88, %c0_56], %142 {strides = array<i32>} : memref<112x1024xbf16, #tpu.memory_space<vmem>>, vector<4x1024xbf16>,
    %144 = vector.extract_strided_slice %5 {offsets = [0, 193], sizes = [4, 1024], strides = [1, 1]} : vector<4x1280xf32> to vector<4x1024xf32>
    %c23 = arith.constant 23 : index
    %c0_57 = arith.constant 0 : index
    %145 = vector.load %arg8[%c23, %c0_57] : memref<27x1024xf32, #tpu.memory_space<vmem>>, vector<1x1024xf32>
    %146 = vector.broadcast %145 : vector<1x1024xf32> to vector<4x1024xf32>
    %147 = arith.mulf %144, %146 : vector<4x1024xf32>
    %148 = arith.truncf %147 : vector<4x1024xf32> to vector<4x1024xbf16>
    %c92 = arith.constant 92 : index
    %c0_58 = arith.constant 0 : index
    %149 = vector.load %arg10[%c92, %c0_58] : memref<112x1024xbf16, #tpu.memory_space<vmem>>, vector<4x1024xbf16>
    tpu.vector_store %arg10[%c92, %c0_58], %148 {strides = array<i32>} : memref<112x1024xbf16, #tpu.memory_space<vmem>>, vector<4x1024xbf16>,
    %150 = vector.extract_strided_slice %5 {offsets = [0, 199], sizes = [4, 1024], strides = [1, 1]} : vector<4x1280xf32> to vector<4x1024xf32>
    %c24_59 = arith.constant 24 : index
    %c0_60 = arith.constant 0 : index
    %151 = vector.load %arg8[%c24_59, %c0_60] : memref<27x1024xf32, #tpu.memory_space<vmem>>, vector<1x1024xf32>
    %152 = vector.broadcast %151 : vector<1x1024xf32> to vector<4x1024xf32>
    %153 = arith.mulf %150, %152 : vector<4x1024xf32>
    %154 = arith.truncf %153 : vector<4x1024xf32> to vector<4x1024xbf16>
    %c96 = arith.constant 96 : index
    %c0_61 = arith.constant 0 : index
    %155 = vector.load %arg10[%c96, %c0_61] : memref<112x1024xbf16, #tpu.memory_space<vmem>>, vector<4x1024xbf16>
    tpu.vector_store %arg10[%c96, %c0_61], %154 {strides = array<i32>} : memref<112x1024xbf16, #tpu.memory_space<vmem>>, vector<4x1024xbf16>,
    %156 = vector.extract_strided_slice %5 {offsets = [0, 200], sizes = [4, 1024], strides = [1, 1]} : vector<4x1280xf32> to vector<4x1024xf32>
    %c25 = arith.constant 25 : index
    %c0_62 = arith.constant 0 : index
    %157 = vector.load %arg8[%c25, %c0_62] : memref<27x1024xf32, #tpu.memory_space<vmem>>, vector<1x1024xf32>
    %158 = vector.broadcast %157 : vector<1x1024xf32> to vector<4x1024xf32>
    %159 = arith.mulf %156, %158 : vector<4x1024xf32>
    %160 = arith.truncf %159 : vector<4x1024xf32> to vector<4x1024xbf16>
    %c100 = arith.constant 100 : index
    %c0_63 = arith.constant 0 : index
    %161 = vector.load %arg10[%c100, %c0_63] : memref<112x1024xbf16, #tpu.memory_space<vmem>>, vector<4x1024xbf16>
    tpu.vector_store %arg10[%c100, %c0_63], %160 {strides = array<i32>} : memref<112x1024xbf16, #tpu.memory_space<vmem>>, vector<4x1024xbf16>,
    %162 = vector.extract_strided_slice %5 {offsets = [0, 201], sizes = [4, 1024], strides = [1, 1]} : vector<4x1280xf32> to vector<4x1024xf32>
    %c26 = arith.constant 26 : index
    %c0_64 = arith.constant 0 : index
    %163 = vector.load %arg8[%c26, %c0_64] : memref<27x1024xf32, #tpu.memory_space<vmem>>, vector<1x1024xf32>
    %164 = vector.broadcast %163 : vector<1x1024xf32> to vector<4x1024xf32>
    %165 = arith.mulf %162, %164 : vector<4x1024xf32>
    %166 = arith.truncf %165 : vector<4x1024xf32> to vector<4x1024xbf16>
    %c104 = arith.constant 104 : index
    %c0_65 = arith.constant 0 : index
    %167 = vector.load %arg10[%c104, %c0_65] : memref<112x1024xbf16, #tpu.memory_space<vmem>>, vector<4x1024xbf16>
    tpu.vector_store %arg10[%c104, %c0_65], %166 {strides = array<i32>} : memref<112x1024xbf16, #tpu.memory_space<vmem>>, vector<4x1024xbf16>,
    %c0_66 = arith.constant 0 : index
    %c0_67 = arith.constant 0 : index
    %168 = vector.load %arg2[%c0_66, %c0_67] : memref<32x112xbf16, #tpu.memory_space<vmem>>, vector<32x112xbf16>
    %c0_68 = arith.constant 0 : index
    %c0_69 = arith.constant 0 : index
    %169 = vector.load %arg10[%c0_68, %c0_69] : memref<112x1024xbf16, #tpu.memory_space<vmem>>, vector<112x1024xbf16>
    %cst_70 = arith.constant dense<0.000000e+00> : vector<32x1024xf32>
    %170 = tpu.matmul %168, %169, %cst_70 {dimension_numbers = #tpu.dot_dimension_numbers<[1], [0], [0], [1], [0, 0, 1, 1], [], []>} : vector<32x112xbf16>, vector<112x1024xbf16>, vector<32x1024xf32> -> vector<32x1024xf32>
    %c0_71 = arith.constant 0 : index
    %c0_72 = arith.constant 0 : index
    %171 = vector.load %arg3[%c0_71, %c0_72] : memref<32x1xf32, #tpu.memory_space<vmem>>, vector<32x1xf32>
    %172 = vector.broadcast %171 : vector<32x1xf32> to vector<32x1024xf32>
    %173 = arith.addf %170, %172 : vector<32x1024xf32>
    %cst_73 = arith.constant 0.000000e+00 : f32
    %174 = vector.broadcast %cst_73 : f32 to vector<32x1024xf32>
    %175 = arith.maximumf %173, %174 : vector<32x1024xf32>
    %c0_74 = arith.constant 0 : index
    %c0_75 = arith.constant 0 : index
    %176 = vector.load %arg4[%c0_74, %c0_75] : memref<32x32xbf16, #tpu.memory_space<vmem>>, vector<32x32xbf16>
    %177 = arith.truncf %175 : vector<32x1024xf32> to vector<32x1024xbf16>
    %cst_76 = arith.constant dense<0.000000e+00> : vector<32x1024xf32>
    %178 = tpu.matmul %176, %177, %cst_76 {dimension_numbers = #tpu.dot_dimension_numbers<[1], [0], [0], [1], [0, 0, 1, 1], [], []>} : vector<32x32xbf16>, vector<32x1024xbf16>, vector<32x1024xf32> -> vector<32x1024xf32>
    %c0_77 = arith.constant 0 : index
    %c0_78 = arith.constant 0 : index
    %179 = vector.load %arg5[%c0_77, %c0_78] : memref<32x1xf32, #tpu.memory_space<vmem>>, vector<32x1xf32>
    %180 = vector.broadcast %179 : vector<32x1xf32> to vector<32x1024xf32>
    %181 = arith.addf %178, %180 : vector<32x1024xf32>
    %cst_79 = arith.constant 0.000000e+00 : f32
    %182 = vector.broadcast %cst_79 : f32 to vector<32x1024xf32>
    %183 = arith.maximumf %181, %182 : vector<32x1024xf32>
    %cst_80 = arith.constant 0.000000e+00 : f32
    %184 = vector.broadcast %cst_80 : f32 to vector<32x128xf32>
    %185 = tpu.concatenate %184, %183, %184 in 1 : vector<32x128xf32>, vector<32x1024xf32>, vector<32x128xf32> -> vector<32x1280xf32>
    %186 = vector.extract_strided_slice %185 {offsets = [0, 55], sizes = [32, 1024], strides = [1, 1]} : vector<32x1280xf32> to vector<32x1024xf32>
    %c0_81 = arith.constant 0 : index
    %c0_82 = arith.constant 0 : index
    %187 = vector.load %arg8[%c0_81, %c0_82] : memref<27x1024xf32, #tpu.memory_space<vmem>>, vector<1x1024xf32>
    %188 = vector.broadcast %187 : vector<1x1024xf32> to vector<32x1024xf32>
    %189 = arith.mulf %186, %188 : vector<32x1024xf32>
    %190 = arith.truncf %189 : vector<32x1024xf32> to vector<32x1024xbf16>
    %c0_83 = arith.constant 0 : index
    %c0_84 = arith.constant 0 : index
    %191 = vector.load %arg11[%c0_83, %c0_84] : memref<864x1024xbf16, #tpu.memory_space<vmem>>, vector<32x1024xbf16>
    tpu.vector_store %arg11[%c0_83, %c0_84], %190 {strides = array<i32>} : memref<864x1024xbf16, #tpu.memory_space<vmem>>, vector<32x1024xbf16>,
    %192 = vector.extract_strided_slice %185 {offsets = [0, 56], sizes = [32, 1024], strides = [1, 1]} : vector<32x1280xf32> to vector<32x1024xf32>
    %c1_85 = arith.constant 1 : index
    %c0_86 = arith.constant 0 : index
    %193 = vector.load %arg8[%c1_85, %c0_86] : memref<27x1024xf32, #tpu.memory_space<vmem>>, vector<1x1024xf32>
    %194 = vector.broadcast %193 : vector<1x1024xf32> to vector<32x1024xf32>
    %195 = arith.mulf %192, %194 : vector<32x1024xf32>
    %196 = arith.truncf %195 : vector<32x1024xf32> to vector<32x1024xbf16>
    %c32_87 = arith.constant 32 : index
    %c0_88 = arith.constant 0 : index
    %197 = vector.load %arg11[%c32_87, %c0_88] : memref<864x1024xbf16, #tpu.memory_space<vmem>>, vector<32x1024xbf16>
    tpu.vector_store %arg11[%c32_87, %c0_88], %196 {strides = array<i32>} : memref<864x1024xbf16, #tpu.memory_space<vmem>>, vector<32x1024xbf16>,
    %198 = vector.extract_strided_slice %185 {offsets = [0, 57], sizes = [32, 1024], strides = [1, 1]} : vector<32x1280xf32> to vector<32x1024xf32>
    %c2_89 = arith.constant 2 : index
    %c0_90 = arith.constant 0 : index
    %199 = vector.load %arg8[%c2_89, %c0_90] : memref<27x1024xf32, #tpu.memory_space<vmem>>, vector<1x1024xf32>
    %200 = vector.broadcast %199 : vector<1x1024xf32> to vector<32x1024xf32>
    %201 = arith.mulf %198, %200 : vector<32x1024xf32>
    %202 = arith.truncf %201 : vector<32x1024xf32> to vector<32x1024xbf16>
    %c64_91 = arith.constant 64 : index
    %c0_92 = arith.constant 0 : index
    %203 = vector.load %arg11[%c64_91, %c0_92] : memref<864x1024xbf16, #tpu.memory_space<vmem>>, vector<32x1024xbf16>
    tpu.vector_store %arg11[%c64_91, %c0_92], %202 {strides = array<i32>} : memref<864x1024xbf16, #tpu.memory_space<vmem>>, vector<32x1024xbf16>,
    %204 = vector.extract_strided_slice %185 {offsets = [0, 63], sizes = [32, 1024], strides = [1, 1]} : vector<32x1280xf32> to vector<32x1024xf32>
    %c3_93 = arith.constant 3 : index
    %c0_94 = arith.constant 0 : index
    %205 = vector.load %arg8[%c3_93, %c0_94] : memref<27x1024xf32, #tpu.memory_space<vmem>>, vector<1x1024xf32>
    %206 = vector.broadcast %205 : vector<1x1024xf32> to vector<32x1024xf32>
    %207 = arith.mulf %204, %206 : vector<32x1024xf32>
    %208 = arith.truncf %207 : vector<32x1024xf32> to vector<32x1024xbf16>
    %c96_95 = arith.constant 96 : index
    %c0_96 = arith.constant 0 : index
    %209 = vector.load %arg11[%c96_95, %c0_96] : memref<864x1024xbf16, #tpu.memory_space<vmem>>, vector<32x1024xbf16>
    tpu.vector_store %arg11[%c96_95, %c0_96], %208 {strides = array<i32>} : memref<864x1024xbf16, #tpu.memory_space<vmem>>, vector<32x1024xbf16>,
    %210 = vector.extract_strided_slice %185 {offsets = [0, 64], sizes = [32, 1024], strides = [1, 1]} : vector<32x1280xf32> to vector<32x1024xf32>
    %c4_97 = arith.constant 4 : index
    %c0_98 = arith.constant 0 : index
    %211 = vector.load %arg8[%c4_97, %c0_98] : memref<27x1024xf32, #tpu.memory_space<vmem>>, vector<1x1024xf32>
    %212 = vector.broadcast %211 : vector<1x1024xf32> to vector<32x1024xf32>
    %213 = arith.mulf %210, %212 : vector<32x1024xf32>
    %214 = arith.truncf %213 : vector<32x1024xf32> to vector<32x1024xbf16>
    %c128 = arith.constant 128 : index
    %c0_99 = arith.constant 0 : index
    %215 = vector.load %arg11[%c128, %c0_99] : memref<864x1024xbf16, #tpu.memory_space<vmem>>, vector<32x1024xbf16>
    tpu.vector_store %arg11[%c128, %c0_99], %214 {strides = array<i32>} : memref<864x1024xbf16, #tpu.memory_space<vmem>>, vector<32x1024xbf16>,
    %216 = vector.extract_strided_slice %185 {offsets = [0, 65], sizes = [32, 1024], strides = [1, 1]} : vector<32x1280xf32> to vector<32x1024xf32>
    %c5_100 = arith.constant 5 : index
    %c0_101 = arith.constant 0 : index
    %217 = vector.load %arg8[%c5_100, %c0_101] : memref<27x1024xf32, #tpu.memory_space<vmem>>, vector<1x1024xf32>
    %218 = vector.broadcast %217 : vector<1x1024xf32> to vector<32x1024xf32>
    %219 = arith.mulf %216, %218 : vector<32x1024xf32>
    %220 = arith.truncf %219 : vector<32x1024xf32> to vector<32x1024xbf16>
    %c160 = arith.constant 160 : index
    %c0_102 = arith.constant 0 : index
    %221 = vector.load %arg11[%c160, %c0_102] : memref<864x1024xbf16, #tpu.memory_space<vmem>>, vector<32x1024xbf16>
    tpu.vector_store %arg11[%c160, %c0_102], %220 {strides = array<i32>} : memref<864x1024xbf16, #tpu.memory_space<vmem>>, vector<32x1024xbf16>,
    %222 = vector.extract_strided_slice %185 {offsets = [0, 71], sizes = [32, 1024], strides = [1, 1]} : vector<32x1280xf32> to vector<32x1024xf32>
    %c6_103 = arith.constant 6 : index
    %c0_104 = arith.constant 0 : index
    %223 = vector.load %arg8[%c6_103, %c0_104] : memref<27x1024xf32, #tpu.memory_space<vmem>>, vector<1x1024xf32>
    %224 = vector.broadcast %223 : vector<1x1024xf32> to vector<32x1024xf32>
    %225 = arith.mulf %222, %224 : vector<32x1024xf32>
    %226 = arith.truncf %225 : vector<32x1024xf32> to vector<32x1024xbf16>
    %c192 = arith.constant 192 : index
    %c0_105 = arith.constant 0 : index
    %227 = vector.load %arg11[%c192, %c0_105] : memref<864x1024xbf16, #tpu.memory_space<vmem>>, vector<32x1024xbf16>
    tpu.vector_store %arg11[%c192, %c0_105], %226 {strides = array<i32>} : memref<864x1024xbf16, #tpu.memory_space<vmem>>, vector<32x1024xbf16>,
    %228 = vector.extract_strided_slice %185 {offsets = [0, 72], sizes = [32, 1024], strides = [1, 1]} : vector<32x1280xf32> to vector<32x1024xf32>
    %c7_106 = arith.constant 7 : index
    %c0_107 = arith.constant 0 : index
    %229 = vector.load %arg8[%c7_106, %c0_107] : memref<27x1024xf32, #tpu.memory_space<vmem>>, vector<1x1024xf32>
    %230 = vector.broadcast %229 : vector<1x1024xf32> to vector<32x1024xf32>
    %231 = arith.mulf %228, %230 : vector<32x1024xf32>
    %232 = arith.truncf %231 : vector<32x1024xf32> to vector<32x1024xbf16>
    %c224 = arith.constant 224 : index
    %c0_108 = arith.constant 0 : index
    %233 = vector.load %arg11[%c224, %c0_108] : memref<864x1024xbf16, #tpu.memory_space<vmem>>, vector<32x1024xbf16>
    tpu.vector_store %arg11[%c224, %c0_108], %232 {strides = array<i32>} : memref<864x1024xbf16, #tpu.memory_space<vmem>>, vector<32x1024xbf16>,
    %234 = vector.extract_strided_slice %185 {offsets = [0, 73], sizes = [32, 1024], strides = [1, 1]} : vector<32x1280xf32> to vector<32x1024xf32>
    %c8_109 = arith.constant 8 : index
    %c0_110 = arith.constant 0 : index
    %235 = vector.load %arg8[%c8_109, %c0_110] : memref<27x1024xf32, #tpu.memory_space<vmem>>, vector<1x1024xf32>
    %236 = vector.broadcast %235 : vector<1x1024xf32> to vector<32x1024xf32>
    %237 = arith.mulf %234, %236 : vector<32x1024xf32>
    %238 = arith.truncf %237 : vector<32x1024xf32> to vector<32x1024xbf16>
    %c256 = arith.constant 256 : index
    %c0_111 = arith.constant 0 : index
    %239 = vector.load %arg11[%c256, %c0_111] : memref<864x1024xbf16, #tpu.memory_space<vmem>>, vector<32x1024xbf16>
    tpu.vector_store %arg11[%c256, %c0_111], %238 {strides = array<i32>} : memref<864x1024xbf16, #tpu.memory_space<vmem>>, vector<32x1024xbf16>,
    %240 = vector.extract_strided_slice %185 {offsets = [0, 119], sizes = [32, 1024], strides = [1, 1]} : vector<32x1280xf32> to vector<32x1024xf32>
    %c9_112 = arith.constant 9 : index
    %c0_113 = arith.constant 0 : index
    %241 = vector.load %arg8[%c9_112, %c0_113] : memref<27x1024xf32, #tpu.memory_space<vmem>>, vector<1x1024xf32>
    %242 = vector.broadcast %241 : vector<1x1024xf32> to vector<32x1024xf32>
    %243 = arith.mulf %240, %242 : vector<32x1024xf32>
    %244 = arith.truncf %243 : vector<32x1024xf32> to vector<32x1024xbf16>
    %c288 = arith.constant 288 : index
    %c0_114 = arith.constant 0 : index
    %245 = vector.load %arg11[%c288, %c0_114] : memref<864x1024xbf16, #tpu.memory_space<vmem>>, vector<32x1024xbf16>
    tpu.vector_store %arg11[%c288, %c0_114], %244 {strides = array<i32>} : memref<864x1024xbf16, #tpu.memory_space<vmem>>, vector<32x1024xbf16>,
    %246 = vector.extract_strided_slice %185 {offsets = [0, 120], sizes = [32, 1024], strides = [1, 1]} : vector<32x1280xf32> to vector<32x1024xf32>
    %c10_115 = arith.constant 10 : index
    %c0_116 = arith.constant 0 : index
    %247 = vector.load %arg8[%c10_115, %c0_116] : memref<27x1024xf32, #tpu.memory_space<vmem>>, vector<1x1024xf32>
    %248 = vector.broadcast %247 : vector<1x1024xf32> to vector<32x1024xf32>
    %249 = arith.mulf %246, %248 : vector<32x1024xf32>
    %250 = arith.truncf %249 : vector<32x1024xf32> to vector<32x1024xbf16>
    %c320 = arith.constant 320 : index
    %c0_117 = arith.constant 0 : index
    %251 = vector.load %arg11[%c320, %c0_117] : memref<864x1024xbf16, #tpu.memory_space<vmem>>, vector<32x1024xbf16>
    tpu.vector_store %arg11[%c320, %c0_117], %250 {strides = array<i32>} : memref<864x1024xbf16, #tpu.memory_space<vmem>>, vector<32x1024xbf16>,
    %252 = vector.extract_strided_slice %185 {offsets = [0, 121], sizes = [32, 1024], strides = [1, 1]} : vector<32x1280xf32> to vector<32x1024xf32>
    %c11_118 = arith.constant 11 : index
    %c0_119 = arith.constant 0 : index
    %253 = vector.load %arg8[%c11_118, %c0_119] : memref<27x1024xf32, #tpu.memory_space<vmem>>, vector<1x1024xf32>
    %254 = vector.broadcast %253 : vector<1x1024xf32> to vector<32x1024xf32>
    %255 = arith.mulf %252, %254 : vector<32x1024xf32>
    %256 = arith.truncf %255 : vector<32x1024xf32> to vector<32x1024xbf16>
    %c352 = arith.constant 352 : index
    %c0_120 = arith.constant 0 : index
    %257 = vector.load %arg11[%c352, %c0_120] : memref<864x1024xbf16, #tpu.memory_space<vmem>>, vector<32x1024xbf16>
    tpu.vector_store %arg11[%c352, %c0_120], %256 {strides = array<i32>} : memref<864x1024xbf16, #tpu.memory_space<vmem>>, vector<32x1024xbf16>,
    %258 = vector.extract_strided_slice %185 {offsets = [0, 127], sizes = [32, 1024], strides = [1, 1]} : vector<32x1280xf32> to vector<32x1024xf32>
    %c12_121 = arith.constant 12 : index
    %c0_122 = arith.constant 0 : index
    %259 = vector.load %arg8[%c12_121, %c0_122] : memref<27x1024xf32, #tpu.memory_space<vmem>>, vector<1x1024xf32>
    %260 = vector.broadcast %259 : vector<1x1024xf32> to vector<32x1024xf32>
    %261 = arith.mulf %258, %260 : vector<32x1024xf32>
    %262 = arith.truncf %261 : vector<32x1024xf32> to vector<32x1024xbf16>
    %c384 = arith.constant 384 : index
    %c0_123 = arith.constant 0 : index
    %263 = vector.load %arg11[%c384, %c0_123] : memref<864x1024xbf16, #tpu.memory_space<vmem>>, vector<32x1024xbf16>
    tpu.vector_store %arg11[%c384, %c0_123], %262 {strides = array<i32>} : memref<864x1024xbf16, #tpu.memory_space<vmem>>, vector<32x1024xbf16>,
    %264 = vector.extract_strided_slice %185 {offsets = [0, 128], sizes = [32, 1024], strides = [1, 1]} : vector<32x1280xf32> to vector<32x1024xf32>
    %c13_124 = arith.constant 13 : index
    %c0_125 = arith.constant 0 : index
    %265 = vector.load %arg8[%c13_124, %c0_125] : memref<27x1024xf32, #tpu.memory_space<vmem>>, vector<1x1024xf32>
    %266 = vector.broadcast %265 : vector<1x1024xf32> to vector<32x1024xf32>
    %267 = arith.mulf %264, %266 : vector<32x1024xf32>
    %268 = arith.truncf %267 : vector<32x1024xf32> to vector<32x1024xbf16>
    %c416 = arith.constant 416 : index
    %c0_126 = arith.constant 0 : index
    %269 = vector.load %arg11[%c416, %c0_126] : memref<864x1024xbf16, #tpu.memory_space<vmem>>, vector<32x1024xbf16>
    tpu.vector_store %arg11[%c416, %c0_126], %268 {strides = array<i32>} : memref<864x1024xbf16, #tpu.memory_space<vmem>>, vector<32x1024xbf16>,
    %270 = vector.extract_strided_slice %185 {offsets = [0, 129], sizes = [32, 1024], strides = [1, 1]} : vector<32x1280xf32> to vector<32x1024xf32>
    %c14_127 = arith.constant 14 : index
    %c0_128 = arith.constant 0 : index
    %271 = vector.load %arg8[%c14_127, %c0_128] : memref<27x1024xf32, #tpu.memory_space<vmem>>, vector<1x1024xf32>
    %272 = vector.broadcast %271 : vector<1x1024xf32> to vector<32x1024xf32>
    %273 = arith.mulf %270, %272 : vector<32x1024xf32>
    %274 = arith.truncf %273 : vector<32x1024xf32> to vector<32x1024xbf16>
    %c448 = arith.constant 448 : index
    %c0_129 = arith.constant 0 : index
    %275 = vector.load %arg11[%c448, %c0_129] : memref<864x1024xbf16, #tpu.memory_space<vmem>>, vector<32x1024xbf16>
    tpu.vector_store %arg11[%c448, %c0_129], %274 {strides = array<i32>} : memref<864x1024xbf16, #tpu.memory_space<vmem>>, vector<32x1024xbf16>,
    %276 = vector.extract_strided_slice %185 {offsets = [0, 135], sizes = [32, 1024], strides = [1, 1]} : vector<32x1280xf32> to vector<32x1024xf32>
    %c15_130 = arith.constant 15 : index
    %c0_131 = arith.constant 0 : index
    %277 = vector.load %arg8[%c15_130, %c0_131] : memref<27x1024xf32, #tpu.memory_space<vmem>>, vector<1x1024xf32>
    %278 = vector.broadcast %277 : vector<1x1024xf32> to vector<32x1024xf32>
    %279 = arith.mulf %276, %278 : vector<32x1024xf32>
    %280 = arith.truncf %279 : vector<32x1024xf32> to vector<32x1024xbf16>
    %c480 = arith.constant 480 : index
    %c0_132 = arith.constant 0 : index
    %281 = vector.load %arg11[%c480, %c0_132] : memref<864x1024xbf16, #tpu.memory_space<vmem>>, vector<32x1024xbf16>
    tpu.vector_store %arg11[%c480, %c0_132], %280 {strides = array<i32>} : memref<864x1024xbf16, #tpu.memory_space<vmem>>, vector<32x1024xbf16>,
    %282 = vector.extract_strided_slice %185 {offsets = [0, 136], sizes = [32, 1024], strides = [1, 1]} : vector<32x1280xf32> to vector<32x1024xf32>
    %c16_133 = arith.constant 16 : index
    %c0_134 = arith.constant 0 : index
    %283 = vector.load %arg8[%c16_133, %c0_134] : memref<27x1024xf32, #tpu.memory_space<vmem>>, vector<1x1024xf32>
    %284 = vector.broadcast %283 : vector<1x1024xf32> to vector<32x1024xf32>
    %285 = arith.mulf %282, %284 : vector<32x1024xf32>
    %286 = arith.truncf %285 : vector<32x1024xf32> to vector<32x1024xbf16>
    %c512 = arith.constant 512 : index
    %c0_135 = arith.constant 0 : index
    %287 = vector.load %arg11[%c512, %c0_135] : memref<864x1024xbf16, #tpu.memory_space<vmem>>, vector<32x1024xbf16>
    tpu.vector_store %arg11[%c512, %c0_135], %286 {strides = array<i32>} : memref<864x1024xbf16, #tpu.memory_space<vmem>>, vector<32x1024xbf16>,
    %288 = vector.extract_strided_slice %185 {offsets = [0, 137], sizes = [32, 1024], strides = [1, 1]} : vector<32x1280xf32> to vector<32x1024xf32>
    %c17_136 = arith.constant 17 : index
    %c0_137 = arith.constant 0 : index
    %289 = vector.load %arg8[%c17_136, %c0_137] : memref<27x1024xf32, #tpu.memory_space<vmem>>, vector<1x1024xf32>
    %290 = vector.broadcast %289 : vector<1x1024xf32> to vector<32x1024xf32>
    %291 = arith.mulf %288, %290 : vector<32x1024xf32>
    %292 = arith.truncf %291 : vector<32x1024xf32> to vector<32x1024xbf16>
    %c544 = arith.constant 544 : index
    %c0_138 = arith.constant 0 : index
    %293 = vector.load %arg11[%c544, %c0_138] : memref<864x1024xbf16, #tpu.memory_space<vmem>>, vector<32x1024xbf16>
    tpu.vector_store %arg11[%c544, %c0_138], %292 {strides = array<i32>} : memref<864x1024xbf16, #tpu.memory_space<vmem>>, vector<32x1024xbf16>,
    %294 = vector.extract_strided_slice %185 {offsets = [0, 183], sizes = [32, 1024], strides = [1, 1]} : vector<32x1280xf32> to vector<32x1024xf32>
    %c18_139 = arith.constant 18 : index
    %c0_140 = arith.constant 0 : index
    %295 = vector.load %arg8[%c18_139, %c0_140] : memref<27x1024xf32, #tpu.memory_space<vmem>>, vector<1x1024xf32>
    %296 = vector.broadcast %295 : vector<1x1024xf32> to vector<32x1024xf32>
    %297 = arith.mulf %294, %296 : vector<32x1024xf32>
    %298 = arith.truncf %297 : vector<32x1024xf32> to vector<32x1024xbf16>
    %c576 = arith.constant 576 : index
    %c0_141 = arith.constant 0 : index
    %299 = vector.load %arg11[%c576, %c0_141] : memref<864x1024xbf16, #tpu.memory_space<vmem>>, vector<32x1024xbf16>
    tpu.vector_store %arg11[%c576, %c0_141], %298 {strides = array<i32>} : memref<864x1024xbf16, #tpu.memory_space<vmem>>, vector<32x1024xbf16>,
    %300 = vector.extract_strided_slice %185 {offsets = [0, 184], sizes = [32, 1024], strides = [1, 1]} : vector<32x1280xf32> to vector<32x1024xf32>
    %c19_142 = arith.constant 19 : index
    %c0_143 = arith.constant 0 : index
    %301 = vector.load %arg8[%c19_142, %c0_143] : memref<27x1024xf32, #tpu.memory_space<vmem>>, vector<1x1024xf32>
    %302 = vector.broadcast %301 : vector<1x1024xf32> to vector<32x1024xf32>
    %303 = arith.mulf %300, %302 : vector<32x1024xf32>
    %304 = arith.truncf %303 : vector<32x1024xf32> to vector<32x1024xbf16>
    %c608 = arith.constant 608 : index
    %c0_144 = arith.constant 0 : index
    %305 = vector.load %arg11[%c608, %c0_144] : memref<864x1024xbf16, #tpu.memory_space<vmem>>, vector<32x1024xbf16>
    tpu.vector_store %arg11[%c608, %c0_144], %304 {strides = array<i32>} : memref<864x1024xbf16, #tpu.memory_space<vmem>>, vector<32x1024xbf16>,
    %306 = vector.extract_strided_slice %185 {offsets = [0, 185], sizes = [32, 1024], strides = [1, 1]} : vector<32x1280xf32> to vector<32x1024xf32>
    %c20_145 = arith.constant 20 : index
    %c0_146 = arith.constant 0 : index
    %307 = vector.load %arg8[%c20_145, %c0_146] : memref<27x1024xf32, #tpu.memory_space<vmem>>, vector<1x1024xf32>
    %308 = vector.broadcast %307 : vector<1x1024xf32> to vector<32x1024xf32>
    %309 = arith.mulf %306, %308 : vector<32x1024xf32>
    %310 = arith.truncf %309 : vector<32x1024xf32> to vector<32x1024xbf16>
    %c640 = arith.constant 640 : index
    %c0_147 = arith.constant 0 : index
    %311 = vector.load %arg11[%c640, %c0_147] : memref<864x1024xbf16, #tpu.memory_space<vmem>>, vector<32x1024xbf16>
    tpu.vector_store %arg11[%c640, %c0_147], %310 {strides = array<i32>} : memref<864x1024xbf16, #tpu.memory_space<vmem>>, vector<32x1024xbf16>,
    %312 = vector.extract_strided_slice %185 {offsets = [0, 191], sizes = [32, 1024], strides = [1, 1]} : vector<32x1280xf32> to vector<32x1024xf32>
    %c21_148 = arith.constant 21 : index
    %c0_149 = arith.constant 0 : index
    %313 = vector.load %arg8[%c21_148, %c0_149] : memref<27x1024xf32, #tpu.memory_space<vmem>>, vector<1x1024xf32>
    %314 = vector.broadcast %313 : vector<1x1024xf32> to vector<32x1024xf32>
    %315 = arith.mulf %312, %314 : vector<32x1024xf32>
    %316 = arith.truncf %315 : vector<32x1024xf32> to vector<32x1024xbf16>
    %c672 = arith.constant 672 : index
    %c0_150 = arith.constant 0 : index
    %317 = vector.load %arg11[%c672, %c0_150] : memref<864x1024xbf16, #tpu.memory_space<vmem>>, vector<32x1024xbf16>
    tpu.vector_store %arg11[%c672, %c0_150], %316 {strides = array<i32>} : memref<864x1024xbf16, #tpu.memory_space<vmem>>, vector<32x1024xbf16>,
    %318 = vector.extract_strided_slice %185 {offsets = [0, 192], sizes = [32, 1024], strides = [1, 1]} : vector<32x1280xf32> to vector<32x1024xf32>
    %c22_151 = arith.constant 22 : index
    %c0_152 = arith.constant 0 : index
    %319 = vector.load %arg8[%c22_151, %c0_152] : memref<27x1024xf32, #tpu.memory_space<vmem>>, vector<1x1024xf32>
    %320 = vector.broadcast %319 : vector<1x1024xf32> to vector<32x1024xf32>
    %321 = arith.mulf %318, %320 : vector<32x1024xf32>
    %322 = arith.truncf %321 : vector<32x1024xf32> to vector<32x1024xbf16>
    %c704 = arith.constant 704 : index
    %c0_153 = arith.constant 0 : index
    %323 = vector.load %arg11[%c704, %c0_153] : memref<864x1024xbf16, #tpu.memory_space<vmem>>, vector<32x1024xbf16>
    tpu.vector_store %arg11[%c704, %c0_153], %322 {strides = array<i32>} : memref<864x1024xbf16, #tpu.memory_space<vmem>>, vector<32x1024xbf16>,
    %324 = vector.extract_strided_slice %185 {offsets = [0, 193], sizes = [32, 1024], strides = [1, 1]} : vector<32x1280xf32> to vector<32x1024xf32>
    %c23_154 = arith.constant 23 : index
    %c0_155 = arith.constant 0 : index
    %325 = vector.load %arg8[%c23_154, %c0_155] : memref<27x1024xf32, #tpu.memory_space<vmem>>, vector<1x1024xf32>
    %326 = vector.broadcast %325 : vector<1x1024xf32> to vector<32x1024xf32>
    %327 = arith.mulf %324, %326 : vector<32x1024xf32>
    %328 = arith.truncf %327 : vector<32x1024xf32> to vector<32x1024xbf16>
    %c736 = arith.constant 736 : index
    %c0_156 = arith.constant 0 : index
    %329 = vector.load %arg11[%c736, %c0_156] : memref<864x1024xbf16, #tpu.memory_space<vmem>>, vector<32x1024xbf16>
    tpu.vector_store %arg11[%c736, %c0_156], %328 {strides = array<i32>} : memref<864x1024xbf16, #tpu.memory_space<vmem>>, vector<32x1024xbf16>,
    %330 = vector.extract_strided_slice %185 {offsets = [0, 199], sizes = [32, 1024], strides = [1, 1]} : vector<32x1280xf32> to vector<32x1024xf32>
    %c24_157 = arith.constant 24 : index
    %c0_158 = arith.constant 0 : index
    %331 = vector.load %arg8[%c24_157, %c0_158] : memref<27x1024xf32, #tpu.memory_space<vmem>>, vector<1x1024xf32>
    %332 = vector.broadcast %331 : vector<1x1024xf32> to vector<32x1024xf32>
    %333 = arith.mulf %330, %332 : vector<32x1024xf32>
    %334 = arith.truncf %333 : vector<32x1024xf32> to vector<32x1024xbf16>
    %c768 = arith.constant 768 : index
    %c0_159 = arith.constant 0 : index
    %335 = vector.load %arg11[%c768, %c0_159] : memref<864x1024xbf16, #tpu.memory_space<vmem>>, vector<32x1024xbf16>
    tpu.vector_store %arg11[%c768, %c0_159], %334 {strides = array<i32>} : memref<864x1024xbf16, #tpu.memory_space<vmem>>, vector<32x1024xbf16>,
    %336 = vector.extract_strided_slice %185 {offsets = [0, 200], sizes = [32, 1024], strides = [1, 1]} : vector<32x1280xf32> to vector<32x1024xf32>
    %c25_160 = arith.constant 25 : index
    %c0_161 = arith.constant 0 : index
    %337 = vector.load %arg8[%c25_160, %c0_161] : memref<27x1024xf32, #tpu.memory_space<vmem>>, vector<1x1024xf32>
    %338 = vector.broadcast %337 : vector<1x1024xf32> to vector<32x1024xf32>
    %339 = arith.mulf %336, %338 : vector<32x1024xf32>
    %340 = arith.truncf %339 : vector<32x1024xf32> to vector<32x1024xbf16>
    %c800 = arith.constant 800 : index
    %c0_162 = arith.constant 0 : index
    %341 = vector.load %arg11[%c800, %c0_162] : memref<864x1024xbf16, #tpu.memory_space<vmem>>, vector<32x1024xbf16>
    tpu.vector_store %arg11[%c800, %c0_162], %340 {strides = array<i32>} : memref<864x1024xbf16, #tpu.memory_space<vmem>>, vector<32x1024xbf16>,
    %342 = vector.extract_strided_slice %185 {offsets = [0, 201], sizes = [32, 1024], strides = [1, 1]} : vector<32x1280xf32> to vector<32x1024xf32>
    %c26_163 = arith.constant 26 : index
    %c0_164 = arith.constant 0 : index
    %343 = vector.load %arg8[%c26_163, %c0_164] : memref<27x1024xf32, #tpu.memory_space<vmem>>, vector<1x1024xf32>
    %344 = vector.broadcast %343 : vector<1x1024xf32> to vector<32x1024xf32>
    %345 = arith.mulf %342, %344 : vector<32x1024xf32>
    %346 = arith.truncf %345 : vector<32x1024xf32> to vector<32x1024xbf16>
    %c832 = arith.constant 832 : index
    %c0_165 = arith.constant 0 : index
    %347 = vector.load %arg11[%c832, %c0_165] : memref<864x1024xbf16, #tpu.memory_space<vmem>>, vector<32x1024xbf16>
    tpu.vector_store %arg11[%c832, %c0_165], %346 {strides = array<i32>} : memref<864x1024xbf16, #tpu.memory_space<vmem>>, vector<32x1024xbf16>,
    %c0_166 = arith.constant 0 : index
    %c0_167 = arith.constant 0 : index
    %348 = vector.load %arg6[%c0_166, %c0_167] : memref<4x864xbf16, #tpu.memory_space<vmem>>, vector<4x864xbf16>
    %c0_168 = arith.constant 0 : index
    %c0_169 = arith.constant 0 : index
    %349 = vector.load %arg11[%c0_168, %c0_169] : memref<864x1024xbf16, #tpu.memory_space<vmem>>, vector<864x1024xbf16>
    %cst_170 = arith.constant dense<0.000000e+00> : vector<4x1024xf32>
    %350 = tpu.matmul %348, %349, %cst_170 {dimension_numbers = #tpu.dot_dimension_numbers<[1], [0], [0], [1], [0, 0, 1, 1], [], []>} : vector<4x864xbf16>, vector<864x1024xbf16>, vector<4x1024xf32> -> vector<4x1024xf32>
    %c0_171 = arith.constant 0 : index
    %c0_172 = arith.constant 0 : index
    %351 = vector.load %arg7[%c0_171, %c0_172] : memref<4x1xf32, #tpu.memory_space<vmem>>, vector<4x1xf32>
    %352 = vector.broadcast %351 : vector<4x1xf32> to vector<4x1024xf32>
    %353 = arith.addf %350, %352 : vector<4x1024xf32>
    %c0_173 = arith.constant 0 : index
    %c0_174 = arith.constant 0 : index
    %c0_175 = arith.constant 0 : index
    %354 = vector.load %arg9[%c0_173, %c0_174, %c0_175] : memref<1x4x1024xf32, #tpu.memory_space<vmem>>, vector<1x4x1024xf32>
    %355 = vector.shape_cast %354 : vector<1x4x1024xf32> to vector<4x1024xf32>
    %356 = vector.shape_cast %353 : vector<4x1024xf32> to vector<1x4x1024xf32>
    tpu.vector_store %arg9[%c0_173, %c0_174, %c0_175], %356 {strides = array<i32>} : memref<1x4x1024xf32, #tpu.memory_space<vmem>>, vector<1x4x1024xf32>,
    return
  }
  func.func @transform_0(%arg0: i32) -> (i32, i32, i32) {
    %c0_i32 = arith.constant 0 : i32
    %c0_i32_0 = arith.constant 0 : i32
    %c0_i32_1 = arith.constant 0 : i32
    return %arg0, %c0_i32, %c0_i32_0 : i32, i32, i32
  }
  func.func @transform_1(%arg0: i32) -> (i32, i32) {
    %c0_i32 = arith.constant 0 : i32
    %c0_i32_0 = arith.constant 0 : i32
    %c0_i32_1 = arith.constant 0 : i32
    return %c0_i32, %c0_i32_0 : i32, i32
  }
  func.func @transform_2(%arg0: i32) -> (i32, i32) {
    %c0_i32 = arith.constant 0 : i32
    %c0_i32_0 = arith.constant 0 : i32
    %c0_i32_1 = arith.constant 0 : i32
    return %c0_i32, %c0_i32_0 : i32, i32
  }
  func.func @transform_3(%arg0: i32) -> (i32, i32) {
    %c0_i32 = arith.constant 0 : i32
    %c0_i32_0 = arith.constant 0 : i32
    %c0_i32_1 = arith.constant 0 : i32
    return %c0_i32, %c0_i32_0 : i32, i32
  }
  func.func @transform_4(%arg0: i32) -> (i32, i32) {
    %c0_i32 = arith.constant 0 : i32
    %c0_i32_0 = arith.constant 0 : i32
    %c0_i32_1 = arith.constant 0 : i32
    return %c0_i32, %c0_i32_0 : i32, i32
  }
  func.func @transform_5(%arg0: i32) -> (i32, i32) {
    %c0_i32 = arith.constant 0 : i32
    %c0_i32_0 = arith.constant 0 : i32
    %c0_i32_1 = arith.constant 0 : i32
    return %c0_i32, %c0_i32_0 : i32, i32
  }
  func.func @transform_6(%arg0: i32) -> (i32, i32) {
    %c0_i32 = arith.constant 0 : i32
    %c0_i32_0 = arith.constant 0 : i32
    %c0_i32_1 = arith.constant 0 : i32
    return %c0_i32, %c0_i32_0 : i32, i32
  }
  func.func @transform_7(%arg0: i32) -> (i32, i32) {
    %c0_i32 = arith.constant 0 : i32
    %c0_i32_0 = arith.constant 0 : i32
    %c0_i32_1 = arith.constant 0 : i32
    return %c0_i32, %c0_i32_0 : i32, i32
  }
  func.func @transform_8(%arg0: i32) -> (i32, i32, i32) {
    %c0_i32 = arith.constant 0 : i32
    %c0_i32_0 = arith.constant 0 : i32
    %c0_i32_1 = arith.constant 0 : i32
    return %arg0, %c0_i32, %c0_i32_0 : i32, i32, i32
  }
}

</mosaic_0001>

<llo_original>
// kernel: convnet_forward.1
$region0: #{convnet_forward.1}
  #allocation0 [shape = 'u32[]', space=smem, size = 0x4, offset = 0x4, fixed_abs, tag = 'smem constant byte address 0x4 - core index']
  #allocation1 [shape = 'u32[144,128]{1,0:T(1,128)}', space=vmem, size = 0x12000, scoped, tag = 'internal scratch']
  #allocation2 [shape = 'bf16[112,1024]{1,0:T(16,128)(2,1)}', space=vmem, size = 0x38000, scoped, tag = 'scratch operand']
  #allocation3 [shape = 'bf16[864,1024]{1,0:T(16,128)(2,1)}', space=vmem, size = 0x1b0000, scoped, tag = 'scratch operand']
  %s0 = inlined_call_operand.vmem [shape: f32[2,4,1024], index: 0, kind: input, shape index: {}]
  %s1 = inlined_call_operand.vmem [shape: bf16[32,112], index: 1, kind: input, shape index: {}]
  %s2 = inlined_call_operand.vmem [shape: f32[32,1], index: 2, kind: input, shape index: {}]
  %s3 = inlined_call_operand.vmem [shape: bf16[32,32], index: 3, kind: input, shape index: {}]
  %s4 = inlined_call_operand.vmem [shape: f32[32,1], index: 4, kind: input, shape index: {}]
  %s5 = inlined_call_operand.vmem [shape: bf16[4,864], index: 5, kind: input, shape index: {}]
  %s6 = inlined_call_operand.vmem [shape: f32[4,1], index: 6, kind: input, shape index: {}]
  %s7 = inlined_call_operand.vmem [shape: f32[27,1024], index: 7, kind: input, shape index: {}]
  %s8 = inlined_call_operand.vmem [shape: f32[2,4,1024], index: 8, kind: output, shape index: {}]
  %s9 = sld [smem:[#allocation0]]
  $region65: #{convnet_forward.1} parent=0
    _
  %s11 = ssub.s32 1, %s9
  %s12 = scalar_select 0, %s11, %s9
  loop: start=0, step=1, limit=4
  $region2: #{convnet_forward.1} parent=0 // loop_pre_header
    _
  $region3: #{convnet_forward.1} parent=0 // loop_header
    %s14 = sphi 0, %s18
    %p15 = scmp.ge.s32.totalorder %s14, 4
    %s24 = sphi 0, %s26
    %s27 = sphi 0, %s24
    %s28 = sphi 0, %s27
    %s44 = sphi 0, %s28
    %s48 = sphi 0, %s48
    %s50 = sphi 0, %s48
    %s51 = sphi 0, %s50
    %s65 = sphi 0, %s51
    %s69 = sphi 0, %s69
    %s71 = sphi 0, %s69
    %s72 = sphi 0, %s71
    %s86 = sphi 0, %s72
    %s90 = sphi 0, %s90
    %s92 = sphi 0, %s90
    %s93 = sphi 0, %s92
    %s107 = sphi 0, %s93
    %s111 = sphi 0, %s111
    %s113 = sphi 0, %s111
    %s114 = sphi 0, %s113
    %s128 = sphi 0, %s114
    %s132 = sphi 0, %s132
    %s134 = sphi 0, %s132
    %s135 = sphi 0, %s134
    %s149 = sphi 0, %s135
    %s153 = sphi 0, %s153
    %s155 = sphi 0, %s153
    %s156 = sphi 0, %s155
    %s170 = sphi 0, %s156
    %s174 = sphi 0, %s174
    %s176 = sphi 0, %s174
    %s177 = sphi 0, %s176
    %s191 = sphi 0, %s177
    %s197 = sphi 0, %s199
    %s200 = sphi 0, %s197
    %s201 = sphi 0, %s200
    %s217 = sphi 0, %s201
  $region4: #{convnet_forward.1} parent=0 // loop_header_branch
    %17 = sbr.rel (%p15) target = $region8
  $region5: #{convnet_forward.1} parent=0 // loop_body
    %s19 = ssub.s32 %s14, 1
    %s20 = ssub.s32 %s14, 2
    %s21 = sadd.s32 %s14, 1
    %s22 = ssub.s32 %s14, %s21
    %p23 = scmp.eq.s32.totalorder %s22, 0
    %s25 = sadd.s32 %s24, 1
    %s26 = scalar_select %p23, %s24, %s25
    %p29 = pneg %p23
    %p30 = scmp.eq.s32.totalorder %s14, 1
    %p31 = por %p29, %p30
    %p32 = scmp.ne.s32.totalorder %s24, %s27
    %p33 = scmp.eq.s32.totalorder %s14, 0
    %p34 = por %p32, %p33
    %p35 = scmp.ne.s32.totalorder %s24, %s27
    %p36 = scmp.eq.s32.totalorder %s19, 1
    %p37 = por %p35, %p36
    %p38 = scmp.ne.s32.totalorder %s27, %s28
    %p39 = scmp.eq.s32.totalorder %s19, 0
    %p40 = por %p38, %p39
    %p41 = scmp.ne.s32.totalorder %s27, %s28
    %p42 = scmp.eq.s32.totalorder %s20, 1
    %p43 = por %p41, %p42
    %p45 = scmp.ne.s32.totalorder %s28, %s44
    %p46 = scmp.eq.s32.totalorder %s20, 0
    %p47 = por %p45, %p46
    %s49 = sadd.s32 %s48, 1
    %p52 = scmp.eq.s32.totalorder %s14, 1
    %p53 = scmp.ne.s32.totalorder %s48, %s50
    %p54 = scmp.eq.s32.totalorder %s14, 0
    %p55 = por %p53, %p54
    %p56 = scmp.ne.s32.totalorder %s48, %s50
    %p57 = scmp.eq.s32.totalorder %s19, 1
    %p58 = por %p56, %p57
    %p59 = scmp.ne.s32.totalorder %s50, %s51
    %p60 = scmp.eq.s32.totalorder %s19, 0
    %p61 = por %p59, %p60
    %p62 = scmp.ne.s32.totalorder %s50, %s51
    %p63 = scmp.eq.s32.totalorder %s20, 1
    %p64 = por %p62, %p63
    %p66 = scmp.ne.s32.totalorder %s51, %s65
    %p67 = scmp.eq.s32.totalorder %s20, 0
    %p68 = por %p66, %p67
    %s70 = sadd.s32 %s69, 1
    %p73 = scmp.eq.s32.totalorder %s14, 1
    %p74 = scmp.ne.s32.totalorder %s69, %s71
    %p75 = scmp.eq.s32.totalorder %s14, 0
    %p76 = por %p74, %p75
    %p77 = scmp.ne.s32.totalorder %s69, %s71
    %p78 = scmp.eq.s32.totalorder %s19, 1
    %p79 = por %p77, %p78
    %p80 = scmp.ne.s32.totalorder %s71, %s72
    %p81 = scmp.eq.s32.totalorder %s19, 0
    %p82 = por %p80, %p81
    %p83 = scmp.ne.s32.totalorder %s71, %s72
    %p84 = scmp.eq.s32.totalorder %s20, 1
    %p85 = por %p83, %p84
    %p87 = scmp.ne.s32.totalorder %s72, %s86
    %p88 = scmp.eq.s32.totalorder %s20, 0
    %p89 = por %p87, %p88
    %s91 = sadd.s32 %s90, 1
    %p94 = scmp.eq.s32.totalorder %s14, 1
    %p95 = scmp.ne.s32.totalorder %s90, %s92
    %p96 = scmp.eq.s32.totalorder %s14, 0
    %p97 = por %p95, %p96
    %p98 = scmp.ne.s32.totalorder %s90, %s92
    %p99 = scmp.eq.s32.totalorder %s19, 1
    %p100 = por %p98, %p99
    %p101 = scmp.ne.s32.totalorder %s92, %s93
    %p102 = scmp.eq.s32.totalorder %s19, 0
    %p103 = por %p101, %p102
    %p104 = scmp.ne.s32.totalorder %s92, %s93
    %p105 = scmp.eq.s32.totalorder %s20, 1
    %p106 = por %p104, %p105
    %p108 = scmp.ne.s32.totalorder %s93, %s107
    %p109 = scmp.eq.s32.totalorder %s20, 0
    %p110 = por %p108, %p109
    %s112 = sadd.s32 %s111, 1
    %p115 = scmp.eq.s32.totalorder %s14, 1
    %p116 = scmp.ne.s32.totalorder %s111, %s113
    %p117 = scmp.eq.s32.totalorder %s14, 0
    %p118 = por %p116, %p117
    %p119 = scmp.ne.s32.totalorder %s111, %s113
    %p120 = scmp.eq.s32.totalorder %s19, 1
    %p121 = por %p119, %p120
    %p122 = scmp.ne.s32.totalorder %s113, %s114
    %p123 = scmp.eq.s32.totalorder %s19, 0
    %p124 = por %p122, %p123
    %p125 = scmp.ne.s32.totalorder %s113, %s114
    %p126 = scmp.eq.s32.totalorder %s20, 1
    %p127 = por %p125, %p126
    %p129 = scmp.ne.s32.totalorder %s114, %s128
    %p130 = scmp.eq.s32.totalorder %s20, 0
    %p131 = por %p129, %p130
    %s133 = sadd.s32 %s132, 1
    %p136 = scmp.eq.s32.totalorder %s14, 1
    %p137 = scmp.ne.s32.totalorder %s132, %s134
    %p138 = scmp.eq.s32.totalorder %s14, 0
    %p139 = por %p137, %p138
    %p140 = scmp.ne.s32.totalorder %s132, %s134
    %p141 = scmp.eq.s32.totalorder %s19, 1
    %p142 = por %p140, %p141
    %p143 = scmp.ne.s32.totalorder %s134, %s135
    %p144 = scmp.eq.s32.totalorder %s19, 0
    %p145 = por %p143, %p144
    %p146 = scmp.ne.s32.totalorder %s134, %s135
    %p147 = scmp.eq.s32.totalorder %s20, 1
    %p148 = por %p146, %p147
    %p150 = scmp.ne.s32.totalorder %s135, %s149
    %p151 = scmp.eq.s32.totalorder %s20, 0
    %p152 = por %p150, %p151
    %s154 = sadd.s32 %s153, 1
    %p157 = scmp.eq.s32.totalorder %s14, 1
    %p158 = scmp.ne.s32.totalorder %s153, %s155
    %p159 = scmp.eq.s32.totalorder %s14, 0
    %p160 = por %p158, %p159
    %p161 = scmp.ne.s32.totalorder %s153, %s155
    %p162 = scmp.eq.s32.totalorder %s19, 1
    %p163 = por %p161, %p162
    %p164 = scmp.ne.s32.totalorder %s155, %s156
    %p165 = scmp.eq.s32.totalorder %s19, 0
    %p166 = por %p164, %p165
    %p167 = scmp.ne.s32.totalorder %s155, %s156
    %p168 = scmp.eq.s32.totalorder %s20, 1
    %p169 = por %p167, %p168
    %p171 = scmp.ne.s32.totalorder %s156, %s170
    %p172 = scmp.eq.s32.totalorder %s20, 0
    %p173 = por %p171, %p172
    %s175 = sadd.s32 %s174, 1
    %p178 = scmp.eq.s32.totalorder %s14, 1
    %p179 = scmp.ne.s32.totalorder %s174, %s176
    %p180 = scmp.eq.s32.totalorder %s14, 0
    %p181 = por %p179, %p180
    %p182 = scmp.ne.s32.totalorder %s174, %s176
    %p183 = scmp.eq.s32.totalorder %s19, 1
    %p184 = por %p182, %p183
    %p185 = scmp.ne.s32.totalorder %s176, %s177
    %p186 = scmp.eq.s32.totalorder %s19, 0
    %p187 = por %p185, %p186
    %p188 = scmp.ne.s32.totalorder %s176, %s177
    %p189 = scmp.eq.s32.totalorder %s20, 1
    %p190 = por %p188, %p189
    %p192 = scmp.ne.s32.totalorder %s177, %s191
    %p193 = scmp.eq.s32.totalorder %s20, 0
    %p194 = por %p192, %p193
    %s195 = ssub.s32 %s14, %s21
    %p196 = scmp.eq.s32.totalorder %s195, 0
    %s198 = sadd.s32 %s197, 1
    %s199 = scalar_select %p196, %s197, %s198
    %p202 = pneg %p196
    %p203 = scmp.eq.s32.totalorder %s14, 1
    %p204 = por %p202, %p203
    %p205 = scmp.ne.s32.totalorder %s197, %s200
    %p206 = scmp.eq.s32.totalorder %s14, 0
    %p207 = por %p205, %p206
    %p208 = scmp.ne.s32.totalorder %s197, %s200
    %p209 = scmp.eq.s32.totalorder %s19, 1
    %p210 = por %p208, %p209
    %p211 = scmp.ne.s32.totalorder %s200, %s201
    %p212 = scmp.eq.s32.totalorder %s19, 0
    %p213 = por %p211, %p212
    %p214 = scmp.ne.s32.totalorder %s200, %s201
    %p215 = scmp.eq.s32.totalorder %s20, 1
    %p216 = por %p214, %p215
    %p218 = scmp.ne.s32.totalorder %s201, %s217
    %p219 = scmp.eq.s32.totalorder %s20, 0
    %p220 = por %p218, %p219
    %p221 = scmp.le.s32.totalorder 1, %s14
    %p222 = scmp.lt.s32.totalorder %s14, 3
    %p223 = pnand %p221, %p222
    %p224 = pneg %p223
    // Predicated region
    $region9: #{convnet_forward.1} parent=5 // pred_check
      _
    $region10: #{convnet_forward.1} parent=5 // pred_check_branch
      %226 = sbr.rel (%p223) target = $region12
    $region11: #{convnet_forward.1} parent=5 // pred_region
      %s227 = ssub.s32 %s14, 1
      // Predicated region
      $region13: #{convnet_forward.1} parent=11 // pred_check
        %p228 = pneg %p61
      $region14: #{convnet_forward.1} parent=11 // pred_check_branch
        %230 = sbr.rel (%p228) target = $region16
      $region15: #{convnet_forward.1} parent=11 // pred_region
        _
      $region16: #{convnet_forward.1} parent=11 // pred_fallthru
        _
      // Predicated region
      $region17: #{convnet_forward.1} parent=11 // pred_check
        %p231 = pneg %p82
      $region18: #{convnet_forward.1} parent=11 // pred_check_branch
        %233 = sbr.rel (%p231) target = $region20
      $region19: #{convnet_forward.1} parent=11 // pred_region
        _
      $region20: #{convnet_forward.1} parent=11 // pred_fallthru
        _
      // Predicated region
      $region21: #{convnet_forward.1} parent=11 // pred_check
        %p234 = pneg %p103
      $region22: #{convnet_forward.1} parent=11 // pred_check_branch
        %236 = sbr.rel (%p234) target = $region24
      $region23: #{convnet_forward.1} parent=11 // pred_region
        _
      $region24: #{convnet_forward.1} parent=11 // pred_fallthru
        _
      // Predicated region
      $region25: #{convnet_forward.1} parent=11 // pred_check
        %p237 = pneg %p124
      $region26: #{convnet_forward.1} parent=11 // pred_check_branch
        %239 = sbr.rel (%p237) target = $region28
      $region27: #{convnet_forward.1} parent=11 // pred_region
        _
      $region28: #{convnet_forward.1} parent=11 // pred_fallthru
        _
      // Predicated region
      $region29: #{convnet_forward.1} parent=11 // pred_check
        %p240 = pneg %p145
      $region30: #{convnet_forward.1} parent=11 // pred_check_branch
        %242 = sbr.rel (%p240) target = $region32
      $region31: #{convnet_forward.1} parent=11 // pred_region
        _
      $region32: #{convnet_forward.1} parent=11 // pred_fallthru
        _
      // Predicated region
      $region33: #{convnet_forward.1} parent=11 // pred_check
        %p243 = pneg %p166
      $region34: #{convnet_forward.1} parent=11 // pred_check_branch
        %245 = sbr.rel (%p243) target = $region36
      $region35: #{convnet_forward.1} parent=11 // pred_region
        _
      $region36: #{convnet_forward.1} parent=11 // pred_fallthru
        _
      // Predicated region
      $region37: #{convnet_forward.1} parent=11 // pred_check
        %p246 = pneg %p187
      $region38: #{convnet_forward.1} parent=11 // pred_check_branch
        %248 = sbr.rel (%p246) target = $region40
      $region39: #{convnet_forward.1} parent=11 // pred_region
        _
      $region40: #{convnet_forward.1} parent=11 // pred_fallthru
        _
    $region12: #{convnet_forward.1} parent=5 // pred_fallthru
      _
    %p249 = scmp.lt.s32.totalorder %s14, 2
    // Predicated region
    $region41: #{convnet_forward.1} parent=5 // pred_check
      %p250 = pneg %p249
    $region42: #{convnet_forward.1} parent=5 // pred_check_branch
      %252 = sbr.rel (%p250) target = $region44
    $region43: #{convnet_forward.1} parent=5 // pred_region
      // Predicated region
      $region45: #{convnet_forward.1} parent=43 // pred_check
        %p253 = pneg %p34
      $region46: #{convnet_forward.1} parent=43 // pred_check_branch
        %255 = sbr.rel (%p253) target = $region48
      $region47: #{convnet_forward.1} parent=43 // pred_region
        %p256 = scmp.lt.s32.totalorder %s14, 1
        %s257 = scalar_select %p256, %s14, 1
        %s258 = smul.addr %s257, 8
        %s259 = smul.addr %s258, 4
        %s260 = scalar_lea.vmem %s0, %s259
      $region48: #{convnet_forward.1} parent=43 // pred_fallthru
        _
    $region44: #{convnet_forward.1} parent=5 // pred_fallthru
      _
    %p261 = scmp.le.s32.totalorder 1, %s14
    %p262 = scmp.lt.s32.totalorder %s14, 3
    %p263 = pnand %p261, %p262
    %p264 = pneg %p263
    // Predicated region
    $region49: #{convnet_forward.1} parent=5 // pred_check
      _
    $region50: #{convnet_forward.1} parent=5 // pred_check_branch
      %266 = sbr.rel (%p263) target = $region52
    $region51: #{convnet_forward.1} parent=5 // pred_region
      %s267 = ssub.s32 %s14, 1
      %p268 = scmp.lt.s32.totalorder %s19, 1
      %s269 = scalar_select %p268, %s19, 1
      %s270 = smul.addr %s269, 8
      %s271 = smul.addr %s270, 4
      %s272 = scalar_lea.vmem %s0, %s271
      %p273 = pneg %p40
      %p274 = pneg %p37
      %p275 = pneg %p61
      %p276 = pneg %p58
      %p277 = pneg %p82
      %p278 = pneg %p79
      %p279 = pneg %p103
      %p280 = pneg %p100
      %p281 = pneg %p124
      %p282 = pneg %p121
      %p283 = pneg %p145
      %p284 = pneg %p142
      %p285 = pneg %p166
      %p286 = pneg %p163
      %p287 = pneg %p187
      %p288 = pneg %p184
      %p289 = pneg %p213
      %p290 = pneg %p210
      %p291 = scmp.lt.s32.totalorder %s19, 1
      %s292 = scalar_select %p291, %s19, 1
      %s293 = smul.addr %s292, 8
      %s294 = smul.addr %s293, 4
      %s295 = scalar_lea.vmem %s8, %s294
      %p296 = scmp.lt.s32.totalorder %s19, 1
      %s297 = scalar_select %p296, %s19, 1
      %s298 = smul.addr %s297, 8
      %s299 = smul.addr %s298, 4
      %s300 = scalar_lea.vmem %s0, %s299
      %p301 = scmp.lt.s32.totalorder %s19, 1
      %s302 = scalar_select %p301, %s19, 1
      %s303 = smul.addr %s302, 8
      %s304 = smul.addr %s303, 4
      %s305 = scalar_lea.vmem %s8, %s304
      %307 = vst [vmem:[#allocation2 + $0x180] sm:$0xc0] 0
      %308 = vst [vmem:[#allocation2 + $0x188] sm:$0xc0] 0
      %309 = vst [vmem:[#allocation2 + $0x190] sm:$0xc0] 0
      %310 = vst [vmem:[#allocation2 + $0x198] sm:$0xc0] 0
      %311 = vst [vmem:[#allocation2 + $0x1a0] sm:$0xc0] 0
      %312 = vst [vmem:[#allocation2 + $0x1a8] sm:$0xc0] 0
      %313 = vst [vmem:[#allocation2 + $0x1b0] sm:$0xc0] 0
      %314 = vst [vmem:[#allocation2 + $0x1b8] sm:$0xc0] 0
      %v315 = vld [vmem:[%s300] sm:$0xff]
      %v316 = vld [vmem:[%s300 + $0x8] sm:$0xff]
      %v317 = vld [vmem:[%s300 + $0x10] sm:$0xff]
      %v318 = vld [vmem:[%s300 + $0x18] sm:$0xff]
      %v323 = vcombine.high %v315, %v315
      %v324 = vcombine.high %v316, %v316
      %v325 = vcombine.high %v317, %v317
      %v326 = vcombine.high %v318, %v318
      %v331 = vld [vmem:[%s7] ss:$8 sm:$0xf]
      %v332 = vld [vmem:[%s7] ss:$8 sm:$0xf0]
      %v333 = vor.u32 %v331, %v332
      %v335 = vlaneseq
      %v336 = vshrl.u32 %v335, 7
      %v337 = vsub.s32 0, %v336
      %v338 = vrot.slane %v333, %v337
      %v339 = vlaneseq
      %v340 = vshrl.u32 %v339, 7
      %v341 = vsub.s32 1, %v340
      %v342 = vrot.slane %v333, %v341
      %v343 = vlaneseq
      %v344 = vshrl.u32 %v343, 7
      %v345 = vsub.s32 2, %v344
      %v346 = vrot.slane %v333, %v345
      %v347 = vlaneseq
      %v348 = vshrl.u32 %v347, 7
      %v349 = vsub.s32 3, %v348
      %v350 = vrot.slane %v333, %v349
      %v351 = vlaneseq
      %v352 = vshrl.u32 %v351, 7
      %v353 = vsub.s32 4, %v352
      %v354 = vrot.slane %v333, %v353
      %v355 = vlaneseq
      %v356 = vshrl.u32 %v355, 7
      %v357 = vsub.s32 5, %v356
      %v358 = vrot.slane %v333, %v357
      %v359 = vlaneseq
      %v360 = vshrl.u32 %v359, 7
      %v361 = vsub.s32 6, %v360
      %v362 = vrot.slane %v333, %v361
      %v363 = vlaneseq
      %v364 = vshrl.u32 %v363, 7
      %v365 = vsub.s32 7, %v364
      %v366 = vrot.slane %v333, %v365
      %367 = vrot.lane.b32.xlu0 %v338, 55
      %v368 = vpop.permute.xlu0 %367
      %369 = vrot.lane.b32.xlu0 %v342, 55
      %v370 = vpop.permute.xlu0 %369
      %371 = vrot.lane.b32.xlu0 %v346, 55
      %v372 = vpop.permute.xlu0 %371
      %373 = vrot.lane.b32.xlu0 %v350, 55
      %v374 = vpop.permute.xlu0 %373
      %375 = vrot.lane.b32.xlu0 %v354, 55
      %v376 = vpop.permute.xlu0 %375
      %377 = vrot.lane.b32.xlu0 %v358, 55
      %v378 = vpop.permute.xlu0 %377
      %379 = vrot.lane.b32.xlu0 %v362, 55
      %v380 = vpop.permute.xlu0 %379
      %381 = vrot.lane.b32.xlu0 %v366, 55
      %v382 = vpop.permute.xlu0 %381
      %vm383 = vcmask 449536
      %v384 = vsel %vm383, %v368, %v370
      %v385 = vsel %vm383, %v370, %v372
      %v386 = vsel %vm383, %v372, %v374
      %v387 = vsel %vm383, %v374, %v376
      %v388 = vsel %vm383, %v376, %v378
      %v389 = vsel %vm383, %v378, %v380
      %v390 = vsel %vm383, %v380, %v382
      %v400 = vmul.f32 %v368, 0.0
      %v401 = vmul.f32 %v315, %v384
      %v402 = vmul.f32 %v323, %v385
      %v403 = vmul.f32 %v316, %v386
      %v404 = vmul.f32 %v324, %v387
      %v405 = vmul.f32 %v317, %v388
      %v406 = vmul.f32 %v325, %v389
      %v407 = vmul.f32 %v318, %v390
      %v408 = vmul.f32 %v326, %v382
      %v409 = vpack.c.bf16 %v400, %v400
      %v410 = vpack.c.bf16 %v401, %v401
      %v411 = vpack.c.bf16 %v402, %v402
      %v412 = vpack.c.bf16 %v403, %v403
      %v413 = vpack.c.bf16 %v404, %v404
      %v414 = vpack.c.bf16 %v405, %v405
      %v415 = vpack.c.bf16 %v406, %v406
      %v416 = vpack.c.bf16 %v407, %v407
      %v417 = vpack.c.bf16 %v408, %v408
      %427 = vrot.lane.b32.xlu0 %v409, 73
      %v428 = vpop.permute.xlu0 %427
      %429 = vrot.lane.b32.xlu0 %v410, 73
      %v430 = vpop.permute.xlu0 %429
      %431 = vrot.lane.b32.xlu0 %v411, 73
      %v432 = vpop.permute.xlu0 %431
      %433 = vrot.lane.b32.xlu0 %v412, 73
      %v434 = vpop.permute.xlu0 %433
      %435 = vrot.lane.b32.xlu0 %v413, 73
      %v436 = vpop.permute.xlu0 %435
      %437 = vrot.lane.b32.xlu0 %v414, 73
      %v438 = vpop.permute.xlu0 %437
      %439 = vrot.lane.b32.xlu0 %v415, 73
      %v440 = vpop.permute.xlu0 %439
      %441 = vrot.lane.b32.xlu0 %v416, 73
      %v442 = vpop.permute.xlu0 %441
      %443 = vrot.lane.b32.xlu0 %v417, 73
      %v444 = vpop.permute.xlu0 %443
      %vm445 = vcmask 596992
      %v446 = vsel %vm445, %v428, %v430
      %v447 = vsel %vm445, %v430, %v432
      %v448 = vsel %vm445, %v432, %v434
      %v449 = vsel %vm445, %v434, %v436
      %v450 = vsel %vm445, %v436, %v438
      %v451 = vsel %vm445, %v438, %v440
      %v452 = vsel %vm445, %v440, %v442
      %v453 = vsel %vm445, %v442, %v444
      %462 = vst [vmem:[#allocation2] sm:$0x3] %v446
      %463 = vst [vmem:[#allocation2 + $0x8] sm:$0x3] %v447
      %464 = vst [vmem:[#allocation2 + $0x10] sm:$0x3] %v448
      %465 = vst [vmem:[#allocation2 + $0x18] sm:$0x3] %v449
      %466 = vst [vmem:[#allocation2 + $0x20] sm:$0x3] %v450
      %467 = vst [vmem:[#allocation2 + $0x28] sm:$0x3] %v451
      %468 = vst [vmem:[#allocation2 + $0x30] sm:$0x3] %v452
      %469 = vst [vmem:[#allocation2 + $0x38] sm:$0x3] %v453
      %s470 = scalar_lea.vmem %s7, 1
      %v471 = vld [vmem:[%s470] ss:$8 sm:$0xf]
      %v472 = vld [vmem:[%s470] ss:$8 sm:$0xf0]
      %v473 = vor.u32 %v471, %v472
      %v475 = vlaneseq
      %v476 = vshrl.u32 %v475, 7
      %v477 = vsub.s32 0, %v476
      %v478 = vrot.slane %v473, %v477
      %v479 = vlaneseq
      %v480 = vshrl.u32 %v479, 7
      %v481 = vsub.s32 1, %v480
      %v482 = vrot.slane %v473, %v481
      %v483 = vlaneseq
      %v484 = vshrl.u32 %v483, 7
      %v485 = vsub.s32 2, %v484
      %v486 = vrot.slane %v473, %v485
      %v487 = vlaneseq
      %v488 = vshrl.u32 %v487, 7
      %v489 = vsub.s32 3, %v488
      %v490 = vrot.slane %v473, %v489
      %v491 = vlaneseq
      %v492 = vshrl.u32 %v491, 7
      %v493 = vsub.s32 4, %v492
      %v494 = vrot.slane %v473, %v493
      %v495 = vlaneseq
      %v496 = vshrl.u32 %v495, 7
      %v497 = vsub.s32 5, %v496
      %v498 = vrot.slane %v473, %v497
      %v499 = vlaneseq
      %v500 = vshrl.u32 %v499, 7
      %v501 = vsub.s32 6, %v500
      %v502 = vrot.slane %v473, %v501
      %v503 = vlaneseq
      %v504 = vshrl.u32 %v503, 7
      %v505 = vsub.s32 7, %v504
      %v506 = vrot.slane %v473, %v505
      %507 = vrot.lane.b32.xlu0 %v478, 56
      %v508 = vpop.permute.xlu0 %507
      %509 = vrot.lane.b32.xlu0 %v482, 56
      %v510 = vpop.permute.xlu0 %509
      %511 = vrot.lane.b32.xlu0 %v486, 56
      %v512 = vpop.permute.xlu0 %511
      %513 = vrot.lane.b32.xlu0 %v490, 56
      %v514 = vpop.permute.xlu0 %513
      %515 = vrot.lane.b32.xlu0 %v494, 56
      %v516 = vpop.permute.xlu0 %515
      %517 = vrot.lane.b32.xlu0 %v498, 56
      %v518 = vpop.permute.xlu0 %517
      %519 = vrot.lane.b32.xlu0 %v502, 56
      %v520 = vpop.permute.xlu0 %519
      %521 = vrot.lane.b32.xlu0 %v506, 56
      %v522 = vpop.permute.xlu0 %521
      %vm523 = vcmask 457728
      %v524 = vsel %vm523, %v508, %v510
      %v525 = vsel %vm523, %v510, %v512
      %v526 = vsel %vm523, %v512, %v514
      %v527 = vsel %vm523, %v514, %v516
      %v528 = vsel %vm523, %v516, %v518
      %v529 = vsel %vm523, %v518, %v520
      %v530 = vsel %vm523, %v520, %v522
      %v540 = vmul.f32 %v508, 0.0
      %v541 = vmul.f32 %v315, %v524
      %v542 = vmul.f32 %v323, %v525
      %v543 = vmul.f32 %v316, %v526
      %v544 = vmul.f32 %v324, %v527
      %v545 = vmul.f32 %v317, %v528
      %v546 = vmul.f32 %v325, %v529
      %v547 = vmul.f32 %v318, %v530
      %v548 = vmul.f32 %v326, %v522
      %v549 = vpack.c.bf16 %v540, %v540
      %v550 = vpack.c.bf16 %v541, %v541
      %v551 = vpack.c.bf16 %v542, %v542
      %v552 = vpack.c.bf16 %v543, %v543
      %v553 = vpack.c.bf16 %v544, %v544
      %v554 = vpack.c.bf16 %v545, %v545
      %v555 = vpack.c.bf16 %v546, %v546
      %v556 = vpack.c.bf16 %v547, %v547
      %v557 = vpack.c.bf16 %v548, %v548
      %v567 = vrot.slane %v549, 6
      %v568 = vrot.slane %v550, 6
      %v569 = vrot.slane %v551, 6
      %v570 = vrot.slane %v552, 6
      %v571 = vrot.slane %v553, 6
      %v572 = vrot.slane %v554, 6
      %v573 = vrot.slane %v555, 6
      %v574 = vrot.slane %v556, 6
      %v575 = vrot.slane %v557, 6
      %576 = vrot.lane.b32.xlu0 %v567, 72
      %v577 = vpop.permute.xlu0 %576
      %578 = vrot.lane.b32.xlu0 %v568, 72
      %v579 = vpop.permute.xlu0 %578
      %580 = vrot.lane.b32.xlu0 %v569, 72
      %v581 = vpop.permute.xlu0 %580
      %582 = vrot.lane.b32.xlu0 %v570, 72
      %v583 = vpop.permute.xlu0 %582
      %584 = vrot.lane.b32.xlu0 %v571, 72
      %v585 = vpop.permute.xlu0 %584
      %586 = vrot.lane.b32.xlu0 %v572, 72
      %v587 = vpop.permute.xlu0 %586
      %588 = vrot.lane.b32.xlu0 %v573, 72
      %v589 = vpop.permute.xlu0 %588
      %590 = vrot.lane.b32.xlu0 %v574, 72
      %v591 = vpop.permute.xlu0 %590
      %592 = vrot.lane.b32.xlu0 %v575, 72
      %v593 = vpop.permute.xlu0 %592
      %vm594 = vcmask 588800
      %v595 = vsel %vm594, %v577, %v579
      %v596 = vsel %vm594, %v579, %v581
      %v597 = vsel %vm594, %v581, %v583
      %v598 = vsel %vm594, %v583, %v585
      %v599 = vsel %vm594, %v585, %v587
      %v600 = vsel %vm594, %v587, %v589
      %v601 = vsel %vm594, %v589, %v591
      %v602 = vsel %vm594, %v591, %v593
      %611 = vst [vmem:[#allocation2] sm:$0xc] %v595
      %612 = vst [vmem:[#allocation2 + $0x8] sm:$0xc] %v596
      %613 = vst [vmem:[#allocation2 + $0x10] sm:$0xc] %v597
      %614 = vst [vmem:[#allocation2 + $0x18] sm:$0xc] %v598
      %615 = vst [vmem:[#allocation2 + $0x20] sm:$0xc] %v599
      %616 = vst [vmem:[#allocation2 + $0x28] sm:$0xc] %v600
      %617 = vst [vmem:[#allocation2 + $0x30] sm:$0xc] %v601
      %618 = vst [vmem:[#allocation2 + $0x38] sm:$0xc] %v602
      %s619 = scalar_lea.vmem %s7, 2
      %v620 = vld [vmem:[%s619] ss:$8 sm:$0xf]
      %v621 = vld [vmem:[%s619] ss:$8 sm:$0xf0]
      %v622 = vor.u32 %v620, %v621
      %v624 = vlaneseq
      %v625 = vshrl.u32 %v624, 7
      %v626 = vsub.s32 0, %v625
      %v627 = vrot.slane %v622, %v626
      %v628 = vlaneseq
      %v629 = vshrl.u32 %v628, 7
      %v630 = vsub.s32 1, %v629
      %v631 = vrot.slane %v622, %v630
      %v632 = vlaneseq
      %v633 = vshrl.u32 %v632, 7
      %v634 = vsub.s32 2, %v633
      %v635 = vrot.slane %v622, %v634
      %v636 = vlaneseq
      %v637 = vshrl.u32 %v636, 7
      %v638 = vsub.s32 3, %v637
      %v639 = vrot.slane %v622, %v638
      %v640 = vlaneseq
      %v641 = vshrl.u32 %v640, 7
      %v642 = vsub.s32 4, %v641
      %v643 = vrot.slane %v622, %v642
      %v644 = vlaneseq
      %v645 = vshrl.u32 %v644, 7
      %v646 = vsub.s32 5, %v645
      %v647 = vrot.slane %v622, %v646
      %v648 = vlaneseq
      %v649 = vshrl.u32 %v648, 7
      %v650 = vsub.s32 6, %v649
      %v651 = vrot.slane %v622, %v650
      %v652 = vlaneseq
      %v653 = vshrl.u32 %v652, 7
      %v654 = vsub.s32 7, %v653
      %v655 = vrot.slane %v622, %v654
      %656 = vrot.lane.b32.xlu0 %v627, 57
      %v657 = vpop.permute.xlu0 %656
      %658 = vrot.lane.b32.xlu0 %v631, 57
      %v659 = vpop.permute.xlu0 %658
      %660 = vrot.lane.b32.xlu0 %v635, 57
      %v661 = vpop.permute.xlu0 %660
      %662 = vrot.lane.b32.xlu0 %v639, 57
      %v663 = vpop.permute.xlu0 %662
      %664 = vrot.lane.b32.xlu0 %v643, 57
      %v665 = vpop.permute.xlu0 %664
      %666 = vrot.lane.b32.xlu0 %v647, 57
      %v667 = vpop.permute.xlu0 %666
      %668 = vrot.lane.b32.xlu0 %v651, 57
      %v669 = vpop.permute.xlu0 %668
      %670 = vrot.lane.b32.xlu0 %v655, 57
      %v671 = vpop.permute.xlu0 %670
      %vm672 = vcmask 465920
      %v673 = vsel %vm672, %v657, %v659
      %v674 = vsel %vm672, %v659, %v661
      %v675 = vsel %vm672, %v661, %v663
      %v676 = vsel %vm672, %v663, %v665
      %v677 = vsel %vm672, %v665, %v667
      %v678 = vsel %vm672, %v667, %v669
      %v679 = vsel %vm672, %v669, %v671
      %v689 = vmul.f32 %v657, 0.0
      %v690 = vmul.f32 %v315, %v673
      %v691 = vmul.f32 %v323, %v674
      %v692 = vmul.f32 %v316, %v675
      %v693 = vmul.f32 %v324, %v676
      %v694 = vmul.f32 %v317, %v677
      %v695 = vmul.f32 %v325, %v678
      %v696 = vmul.f32 %v318, %v679
      %v697 = vmul.f32 %v326, %v671
      %v698 = vpack.c.bf16 %v689, %v689
      %v699 = vpack.c.bf16 %v690, %v690
      %v700 = vpack.c.bf16 %v691, %v691
      %v701 = vpack.c.bf16 %v692, %v692
      %v702 = vpack.c.bf16 %v693, %v693
      %v703 = vpack.c.bf16 %v694, %v694
      %v704 = vpack.c.bf16 %v695, %v695
      %v705 = vpack.c.bf16 %v696, %v696
      %v706 = vpack.c.bf16 %v697, %v697
      %v716 = vrot.slane %v698, 4
      %v717 = vrot.slane %v699, 4
      %v718 = vrot.slane %v700, 4
      %v719 = vrot.slane %v701, 4
      %v720 = vrot.slane %v702, 4
      %v721 = vrot.slane %v703, 4
      %v722 = vrot.slane %v704, 4
      %v723 = vrot.slane %v705, 4
      %v724 = vrot.slane %v706, 4
      %725 = vrot.lane.b32.xlu0 %v716, 71
      %v726 = vpop.permute.xlu0 %725
      %727 = vrot.lane.b32.xlu0 %v717, 71
      %v728 = vpop.permute.xlu0 %727
      %729 = vrot.lane.b32.xlu0 %v718, 71
      %v730 = vpop.permute.xlu0 %729
      %731 = vrot.lane.b32.xlu0 %v719, 71
      %v732 = vpop.permute.xlu0 %731
      %733 = vrot.lane.b32.xlu0 %v720, 71
      %v734 = vpop.permute.xlu0 %733
      %735 = vrot.lane.b32.xlu0 %v721, 71
      %v736 = vpop.permute.xlu0 %735
      %737 = vrot.lane.b32.xlu0 %v722, 71
      %v738 = vpop.permute.xlu0 %737
      %739 = vrot.lane.b32.xlu0 %v723, 71
      %v740 = vpop.permute.xlu0 %739
      %741 = vrot.lane.b32.xlu0 %v724, 71
      %v742 = vpop.permute.xlu0 %741
      %vm743 = vcmask 580608
      %v744 = vsel %vm743, %v726, %v728
      %v745 = vsel %vm743, %v728, %v730
      %v746 = vsel %vm743, %v730, %v732
      %v747 = vsel %vm743, %v732, %v734
      %v748 = vsel %vm743, %v734, %v736
      %v749 = vsel %vm743, %v736, %v738
      %v750 = vsel %vm743, %v738, %v740
      %v751 = vsel %vm743, %v740, %v742
      %760 = vst [vmem:[#allocation2] sm:$0x30] %v744
      %761 = vst [vmem:[#allocation2 + $0x8] sm:$0x30] %v745
      %762 = vst [vmem:[#allocation2 + $0x10] sm:$0x30] %v746
      %763 = vst [vmem:[#allocation2 + $0x18] sm:$0x30] %v747
      %764 = vst [vmem:[#allocation2 + $0x20] sm:$0x30] %v748
      %765 = vst [vmem:[#allocation2 + $0x28] sm:$0x30] %v749
      %766 = vst [vmem:[#allocation2 + $0x30] sm:$0x30] %v750
      %767 = vst [vmem:[#allocation2 + $0x38] sm:$0x30] %v751
      %s768 = scalar_lea.vmem %s7, 3
      %v769 = vld [vmem:[%s768] ss:$8 sm:$0xf]
      %v770 = vld [vmem:[%s768] ss:$8 sm:$0xf0]
      %v771 = vor.u32 %v769, %v770
      %v773 = vlaneseq
      %v774 = vshrl.u32 %v773, 7
      %v775 = vsub.s32 0, %v774
      %v776 = vrot.slane %v771, %v775
      %v777 = vlaneseq
      %v778 = vshrl.u32 %v777, 7
      %v779 = vsub.s32 1, %v778
      %v780 = vrot.slane %v771, %v779
      %v781 = vlaneseq
      %v782 = vshrl.u32 %v781, 7
      %v783 = vsub.s32 2, %v782
      %v784 = vrot.slane %v771, %v783
      %v785 = vlaneseq
      %v786 = vshrl.u32 %v785, 7
      %v787 = vsub.s32 3, %v786
      %v788 = vrot.slane %v771, %v787
      %v789 = vlaneseq
      %v790 = vshrl.u32 %v789, 7
      %v791 = vsub.s32 4, %v790
      %v792 = vrot.slane %v771, %v791
      %v793 = vlaneseq
      %v794 = vshrl.u32 %v793, 7
      %v795 = vsub.s32 5, %v794
      %v796 = vrot.slane %v771, %v795
      %v797 = vlaneseq
      %v798 = vshrl.u32 %v797, 7
      %v799 = vsub.s32 6, %v798
      %v800 = vrot.slane %v771, %v799
      %v801 = vlaneseq
      %v802 = vshrl.u32 %v801, 7
      %v803 = vsub.s32 7, %v802
      %v804 = vrot.slane %v771, %v803
      %805 = vrot.lane.b32.xlu0 %v776, 63
      %v806 = vpop.permute.xlu0 %805
      %807 = vrot.lane.b32.xlu0 %v780, 63
      %v808 = vpop.permute.xlu0 %807
      %809 = vrot.lane.b32.xlu0 %v784, 63
      %v810 = vpop.permute.xlu0 %809
      %811 = vrot.lane.b32.xlu0 %v788, 63
      %v812 = vpop.permute.xlu0 %811
      %813 = vrot.lane.b32.xlu0 %v792, 63
      %v814 = vpop.permute.xlu0 %813
      %815 = vrot.lane.b32.xlu0 %v796, 63
      %v816 = vpop.permute.xlu0 %815
      %817 = vrot.lane.b32.xlu0 %v800, 63
      %v818 = vpop.permute.xlu0 %817
      %819 = vrot.lane.b32.xlu0 %v804, 63
      %v820 = vpop.permute.xlu0 %819
      %vm821 = vcmask 515072
      %v822 = vsel %vm821, %v806, %v808
      %v823 = vsel %vm821, %v808, %v810
      %v824 = vsel %vm821, %v810, %v812
      %v825 = vsel %vm821, %v812, %v814
      %v826 = vsel %vm821, %v814, %v816
      %v827 = vsel %vm821, %v816, %v818
      %v828 = vsel %vm821, %v818, %v820
      %v838 = vmul.f32 %v806, 0.0
      %v839 = vmul.f32 %v315, %v822
      %v840 = vmul.f32 %v323, %v823
      %v841 = vmul.f32 %v316, %v824
      %v842 = vmul.f32 %v324, %v825
      %v843 = vmul.f32 %v317, %v826
      %v844 = vmul.f32 %v325, %v827
      %v845 = vmul.f32 %v318, %v828
      %v846 = vmul.f32 %v326, %v820
      %v847 = vpack.c.bf16 %v838, %v838
      %v848 = vpack.c.bf16 %v839, %v839
      %v849 = vpack.c.bf16 %v840, %v840
      %v850 = vpack.c.bf16 %v841, %v841
      %v851 = vpack.c.bf16 %v842, %v842
      %v852 = vpack.c.bf16 %v843, %v843
      %v853 = vpack.c.bf16 %v844, %v844
      %v854 = vpack.c.bf16 %v845, %v845
      %v855 = vpack.c.bf16 %v846, %v846
      %v865 = vrot.slane %v847, 2
      %v866 = vrot.slane %v848, 2
      %v867 = vrot.slane %v849, 2
      %v868 = vrot.slane %v850, 2
      %v869 = vrot.slane %v851, 2
      %v870 = vrot.slane %v852, 2
      %v871 = vrot.slane %v853, 2
      %v872 = vrot.slane %v854, 2
      %v873 = vrot.slane %v855, 2
      %874 = vrot.lane.b32.xlu0 %v865, 65
      %v875 = vpop.permute.xlu0 %874
      %876 = vrot.lane.b32.xlu0 %v866, 65
      %v877 = vpop.permute.xlu0 %876
      %878 = vrot.lane.b32.xlu0 %v867, 65
      %v879 = vpop.permute.xlu0 %878
      %880 = vrot.lane.b32.xlu0 %v868, 65
      %v881 = vpop.permute.xlu0 %880
      %882 = vrot.lane.b32.xlu0 %v869, 65
      %v883 = vpop.permute.xlu0 %882
      %884 = vrot.lane.b32.xlu0 %v870, 65
      %v885 = vpop.permute.xlu0 %884
      %886 = vrot.lane.b32.xlu0 %v871, 65
      %v887 = vpop.permute.xlu0 %886
      %888 = vrot.lane.b32.xlu0 %v872, 65
      %v889 = vpop.permute.xlu0 %888
      %890 = vrot.lane.b32.xlu0 %v873, 65
      %v891 = vpop.permute.xlu0 %890
      %vm892 = vcmask 531456
      %v893 = vsel %vm892, %v875, %v877
      %v894 = vsel %vm892, %v877, %v879
      %v895 = vsel %vm892, %v879, %v881
      %v896 = vsel %vm892, %v881, %v883
      %v897 = vsel %vm892, %v883, %v885
      %v898 = vsel %vm892, %v885, %v887
      %v899 = vsel %vm892, %v887, %v889
      %v900 = vsel %vm892, %v889, %v891
      %909 = vst [vmem:[#allocation2] sm:$0xc0] %v893
      %910 = vst [vmem:[#allocation2 + $0x8] sm:$0xc0] %v894
      %911 = vst [vmem:[#allocation2 + $0x10] sm:$0xc0] %v895
      %912 = vst [vmem:[#allocation2 + $0x18] sm:$0xc0] %v896
      %913 = vst [vmem:[#allocation2 + $0x20] sm:$0xc0] %v897
      %914 = vst [vmem:[#allocation2 + $0x28] sm:$0xc0] %v898
      %915 = vst [vmem:[#allocation2 + $0x30] sm:$0xc0] %v899
      %916 = vst [vmem:[#allocation2 + $0x38] sm:$0xc0] %v900
      %s917 = scalar_lea.vmem %s7, 4
      %v918 = vld [vmem:[%s917] ss:$8 sm:$0xf]
      %v919 = vld [vmem:[%s917] ss:$8 sm:$0xf0]
      %v920 = vor.u32 %v918, %v919
      %v922 = vlaneseq
      %v923 = vshrl.u32 %v922, 7
      %v924 = vsub.s32 0, %v923
      %v925 = vrot.slane %v920, %v924
      %v926 = vlaneseq
      %v927 = vshrl.u32 %v926, 7
      %v928 = vsub.s32 1, %v927
      %v929 = vrot.slane %v920, %v928
      %v930 = vlaneseq
      %v931 = vshrl.u32 %v930, 7
      %v932 = vsub.s32 2, %v931
      %v933 = vrot.slane %v920, %v932
      %v934 = vlaneseq
      %v935 = vshrl.u32 %v934, 7
      %v936 = vsub.s32 3, %v935
      %v937 = vrot.slane %v920, %v936
      %v938 = vlaneseq
      %v939 = vshrl.u32 %v938, 7
      %v940 = vsub.s32 4, %v939
      %v941 = vrot.slane %v920, %v940
      %v942 = vlaneseq
      %v943 = vshrl.u32 %v942, 7
      %v944 = vsub.s32 5, %v943
      %v945 = vrot.slane %v920, %v944
      %v946 = vlaneseq
      %v947 = vshrl.u32 %v946, 7
      %v948 = vsub.s32 6, %v947
      %v949 = vrot.slane %v920, %v948
      %v950 = vlaneseq
      %v951 = vshrl.u32 %v950, 7
      %v952 = vsub.s32 7, %v951
      %v953 = vrot.slane %v920, %v952
      %954 = vrot.lane.b32.xlu0 %v925, 64
      %v955 = vpop.permute.xlu0 %954
      %956 = vrot.lane.b32.xlu0 %v929, 64
      %v957 = vpop.permute.xlu0 %956
      %958 = vrot.lane.b32.xlu0 %v933, 64
      %v959 = vpop.permute.xlu0 %958
      %960 = vrot.lane.b32.xlu0 %v937, 64
      %v961 = vpop.permute.xlu0 %960
      %962 = vrot.lane.b32.xlu0 %v941, 64
      %v963 = vpop.permute.xlu0 %962
      %964 = vrot.lane.b32.xlu0 %v945, 64
      %v965 = vpop.permute.xlu0 %964
      %966 = vrot.lane.b32.xlu0 %v949, 64
      %v967 = vpop.permute.xlu0 %966
      %968 = vrot.lane.b32.xlu0 %v953, 64
      %v969 = vpop.permute.xlu0 %968
      %vm970 = vcmask 523264
      %v971 = vsel %vm970, %v955, %v957
      %v972 = vsel %vm970, %v957, %v959
      %v973 = vsel %vm970, %v959, %v961
      %v974 = vsel %vm970, %v961, %v963
      %v975 = vsel %vm970, %v963, %v965
      %v976 = vsel %vm970, %v965, %v967
      %v977 = vsel %vm970, %v967, %v969
      %v987 = vmul.f32 %v955, 0.0
      %v988 = vmul.f32 %v315, %v971
      %v989 = vmul.f32 %v323, %v972
      %v990 = vmul.f32 %v316, %v973
      %v991 = vmul.f32 %v324, %v974
      %v992 = vmul.f32 %v317, %v975
      %v993 = vmul.f32 %v325, %v976
      %v994 = vmul.f32 %v318, %v977
      %v995 = vmul.f32 %v326, %v969
      %v996 = vpack.c.bf16 %v987, %v987
      %v997 = vpack.c.bf16 %v988, %v988
      %v998 = vpack.c.bf16 %v989, %v989
      %v999 = vpack.c.bf16 %v990, %v990
      %v1000 = vpack.c.bf16 %v991, %v991
      %v1001 = vpack.c.bf16 %v992, %v992
      %v1002 = vpack.c.bf16 %v993, %v993
      %v1003 = vpack.c.bf16 %v994, %v994
      %v1004 = vpack.c.bf16 %v995, %v995
      %1014 = vrot.lane.b32.xlu0 %v996, 64
      %v1015 = vpop.permute.xlu0 %1014
      %1016 = vrot.lane.b32.xlu0 %v997, 64
      %v1017 = vpop.permute.xlu0 %1016
      %1018 = vrot.lane.b32.xlu0 %v998, 64
      %v1019 = vpop.permute.xlu0 %1018
      %1020 = vrot.lane.b32.xlu0 %v999, 64
      %v1021 = vpop.permute.xlu0 %1020
      %1022 = vrot.lane.b32.xlu0 %v1000, 64
      %v1023 = vpop.permute.xlu0 %1022
      %1024 = vrot.lane.b32.xlu0 %v1001, 64
      %v1025 = vpop.permute.xlu0 %1024
      %1026 = vrot.lane.b32.xlu0 %v1002, 64
      %v1027 = vpop.permute.xlu0 %1026
      %1028 = vrot.lane.b32.xlu0 %v1003, 64
      %v1029 = vpop.permute.xlu0 %1028
      %1030 = vrot.lane.b32.xlu0 %v1004, 64
      %v1031 = vpop.permute.xlu0 %1030
      %vm1032 = vcmask 523264
      %v1033 = vsel %vm1032, %v1015, %v1017
      %v1034 = vsel %vm1032, %v1017, %v1019
      %v1035 = vsel %vm1032, %v1019, %v1021
      %v1036 = vsel %vm1032, %v1021, %v1023
      %v1037 = vsel %vm1032, %v1023, %v1025
      %v1038 = vsel %vm1032, %v1025, %v1027
      %v1039 = vsel %vm1032, %v1027, %v1029
      %v1040 = vsel %vm1032, %v1029, %v1031
      %1049 = vst [vmem:[#allocation2 + $0x40] sm:$0x3] %v1033
      %1050 = vst [vmem:[#allocation2 + $0x48] sm:$0x3] %v1034
      %1051 = vst [vmem:[#allocation2 + $0x50] sm:$0x3] %v1035
      %1052 = vst [vmem:[#allocation2 + $0x58] sm:$0x3] %v1036
      %1053 = vst [vmem:[#allocation2 + $0x60] sm:$0x3] %v1037
      %1054 = vst [vmem:[#allocation2 + $0x68] sm:$0x3] %v1038
      %1055 = vst [vmem:[#allocation2 + $0x70] sm:$0x3] %v1039
      %1056 = vst [vmem:[#allocation2 + $0x78] sm:$0x3] %v1040
      %s1057 = scalar_lea.vmem %s7, 5
      %v1058 = vld [vmem:[%s1057] ss:$8 sm:$0xf]
      %v1059 = vld [vmem:[%s1057] ss:$8 sm:$0xf0]
      %v1060 = vor.u32 %v1058, %v1059
      %v1062 = vlaneseq
      %v1063 = vshrl.u32 %v1062, 7
      %v1064 = vsub.s32 0, %v1063
      %v1065 = vrot.slane %v1060, %v1064
      %v1066 = vlaneseq
      %v1067 = vshrl.u32 %v1066, 7
      %v1068 = vsub.s32 1, %v1067
      %v1069 = vrot.slane %v1060, %v1068
      %v1070 = vlaneseq
      %v1071 = vshrl.u32 %v1070, 7
      %v1072 = vsub.s32 2, %v1071
      %v1073 = vrot.slane %v1060, %v1072
      %v1074 = vlaneseq
      %v1075 = vshrl.u32 %v1074, 7
      %v1076 = vsub.s32 3, %v1075
      %v1077 = vrot.slane %v1060, %v1076
      %v1078 = vlaneseq
      %v1079 = vshrl.u32 %v1078, 7
      %v1080 = vsub.s32 4, %v1079
      %v1081 = vrot.slane %v1060, %v1080
      %v1082 = vlaneseq
      %v1083 = vshrl.u32 %v1082, 7
      %v1084 = vsub.s32 5, %v1083
      %v1085 = vrot.slane %v1060, %v1084
      %v1086 = vlaneseq
      %v1087 = vshrl.u32 %v1086, 7
      %v1088 = vsub.s32 6, %v1087
      %v1089 = vrot.slane %v1060, %v1088
      %v1090 = vlaneseq
      %v1091 = vshrl.u32 %v1090, 7
      %v1092 = vsub.s32 7, %v1091
      %v1093 = vrot.slane %v1060, %v1092
      %1094 = vrot.lane.b32.xlu0 %v1065, 65
      %v1095 = vpop.permute.xlu0 %1094
      %1096 = vrot.lane.b32.xlu0 %v1069, 65
      %v1097 = vpop.permute.xlu0 %1096
      %1098 = vrot.lane.b32.xlu0 %v1073, 65
      %v1099 = vpop.permute.xlu0 %1098
      %1100 = vrot.lane.b32.xlu0 %v1077, 65
      %v1101 = vpop.permute.xlu0 %1100
      %1102 = vrot.lane.b32.xlu0 %v1081, 65
      %v1103 = vpop.permute.xlu0 %1102
      %1104 = vrot.lane.b32.xlu0 %v1085, 65
      %v1105 = vpop.permute.xlu0 %1104
      %1106 = vrot.lane.b32.xlu0 %v1089, 65
      %v1107 = vpop.permute.xlu0 %1106
      %1108 = vrot.lane.b32.xlu0 %v1093, 65
      %v1109 = vpop.permute.xlu0 %1108
      %vm1110 = vcmask 531456
      %v1111 = vsel %vm1110, %v1095, %v1097
      %v1112 = vsel %vm1110, %v1097, %v1099
      %v1113 = vsel %vm1110, %v1099, %v1101
      %v1114 = vsel %vm1110, %v1101, %v1103
      %v1115 = vsel %vm1110, %v1103, %v1105
      %v1116 = vsel %vm1110, %v1105, %v1107
      %v1117 = vsel %vm1110, %v1107, %v1109
      %v1127 = vmul.f32 %v1095, 0.0
      %v1128 = vmul.f32 %v315, %v1111
      %v1129 = vmul.f32 %v323, %v1112
      %v1130 = vmul.f32 %v316, %v1113
      %v1131 = vmul.f32 %v324, %v1114
      %v1132 = vmul.f32 %v317, %v1115
      %v1133 = vmul.f32 %v325, %v1116
      %v1134 = vmul.f32 %v318, %v1117
      %v1135 = vmul.f32 %v326, %v1109
      %v1136 = vpack.c.bf16 %v1127, %v1127
      %v1137 = vpack.c.bf16 %v1128, %v1128
      %v1138 = vpack.c.bf16 %v1129, %v1129
      %v1139 = vpack.c.bf16 %v1130, %v1130
      %v1140 = vpack.c.bf16 %v1131, %v1131
      %v1141 = vpack.c.bf16 %v1132, %v1132
      %v1142 = vpack.c.bf16 %v1133, %v1133
      %v1143 = vpack.c.bf16 %v1134, %v1134
      %v1144 = vpack.c.bf16 %v1135, %v1135
      %v1154 = vrot.slane %v1136, 6
      %v1155 = vrot.slane %v1137, 6
      %v1156 = vrot.slane %v1138, 6
      %v1157 = vrot.slane %v1139, 6
      %v1158 = vrot.slane %v1140, 6
      %v1159 = vrot.slane %v1141, 6
      %v1160 = vrot.slane %v1142, 6
      %v1161 = vrot.slane %v1143, 6
      %v1162 = vrot.slane %v1144, 6
      %1163 = vrot.lane.b32.xlu0 %v1154, 63
      %v1164 = vpop.permute.xlu0 %1163
      %1165 = vrot.lane.b32.xlu0 %v1155, 63
      %v1166 = vpop.permute.xlu0 %1165
      %1167 = vrot.lane.b32.xlu0 %v1156, 63
      %v1168 = vpop.permute.xlu0 %1167
      %1169 = vrot.lane.b32.xlu0 %v1157, 63
      %v1170 = vpop.permute.xlu0 %1169
      %1171 = vrot.lane.b32.xlu0 %v1158, 63
      %v1172 = vpop.permute.xlu0 %1171
      %1173 = vrot.lane.b32.xlu0 %v1159, 63
      %v1174 = vpop.permute.xlu0 %1173
      %1175 = vrot.lane.b32.xlu0 %v1160, 63
      %v1176 = vpop.permute.xlu0 %1175
      %1177 = vrot.lane.b32.xlu0 %v1161, 63
      %v1178 = vpop.permute.xlu0 %1177
      %1179 = vrot.lane.b32.xlu0 %v1162, 63
      %v1180 = vpop.permute.xlu0 %1179
      %vm1181 = vcmask 515072
      %v1182 = vsel %vm1181, %v1164, %v1166
      %v1183 = vsel %vm1181, %v1166, %v1168
      %v1184 = vsel %vm1181, %v1168, %v1170
      %v1185 = vsel %vm1181, %v1170, %v1172
      %v1186 = vsel %vm1181, %v1172, %v1174
      %v1187 = vsel %vm1181, %v1174, %v1176
      %v1188 = vsel %vm1181, %v1176, %v1178
      %v1189 = vsel %vm1181, %v1178, %v1180
      %1198 = vst [vmem:[#allocation2 + $0x40] sm:$0xc] %v1182
      %1199 = vst [vmem:[#allocation2 + $0x48] sm:$0xc] %v1183
      %1200 = vst [vmem:[#allocation2 + $0x50] sm:$0xc] %v1184
      %1201 = vst [vmem:[#allocation2 + $0x58] sm:$0xc] %v1185
      %1202 = vst [vmem:[#allocation2 + $0x60] sm:$0xc] %v1186
      %1203 = vst [vmem:[#allocation2 + $0x68] sm:$0xc] %v1187
      %1204 = vst [vmem:[#allocation2 + $0x70] sm:$0xc] %v1188
      %1205 = vst [vmem:[#allocation2 + $0x78] sm:$0xc] %v1189
      %s1206 = scalar_lea.vmem %s7, 6
      %v1207 = vld [vmem:[%s1206] ss:$8 sm:$0xf]
      %v1208 = vld [vmem:[%s1206] ss:$8 sm:$0xf0]
      %v1209 = vor.u32 %v1207, %v1208
      %v1211 = vlaneseq
      %v1212 = vshrl.u32 %v1211, 7
      %v1213 = vsub.s32 0, %v1212
      %v1214 = vrot.slane %v1209, %v1213
      %v1215 = vlaneseq
      %v1216 = vshrl.u32 %v1215, 7
      %v1217 = vsub.s32 1, %v1216
      %v1218 = vrot.slane %v1209, %v1217
      %v1219 = vlaneseq
      %v1220 = vshrl.u32 %v1219, 7
      %v1221 = vsub.s32 2, %v1220
      %v1222 = vrot.slane %v1209, %v1221
      %v1223 = vlaneseq
      %v1224 = vshrl.u32 %v1223, 7
      %v1225 = vsub.s32 3, %v1224
      %v1226 = vrot.slane %v1209, %v1225
      %v1227 = vlaneseq
      %v1228 = vshrl.u32 %v1227, 7
      %v1229 = vsub.s32 4, %v1228
      %v1230 = vrot.slane %v1209, %v1229
      %v1231 = vlaneseq
      %v1232 = vshrl.u32 %v1231, 7
      %v1233 = vsub.s32 5, %v1232
      %v1234 = vrot.slane %v1209, %v1233
      %v1235 = vlaneseq
      %v1236 = vshrl.u32 %v1235, 7
      %v1237 = vsub.s32 6, %v1236
      %v1238 = vrot.slane %v1209, %v1237
      %v1239 = vlaneseq
      %v1240 = vshrl.u32 %v1239, 7
      %v1241 = vsub.s32 7, %v1240
      %v1242 = vrot.slane %v1209, %v1241
      %1243 = vrot.lane.b32.xlu0 %v1214, 71
      %v1244 = vpop.permute.xlu0 %1243
      %1245 = vrot.lane.b32.xlu0 %v1218, 71
      %v1246 = vpop.permute.xlu0 %1245
      %1247 = vrot.lane.b32.xlu0 %v1222, 71
      %v1248 = vpop.permute.xlu0 %1247
      %1249 = vrot.lane.b32.xlu0 %v1226, 71
      %v1250 = vpop.permute.xlu0 %1249
      %1251 = vrot.lane.b32.xlu0 %v1230, 71
      %v1252 = vpop.permute.xlu0 %1251
      %1253 = vrot.lane.b32.xlu0 %v1234, 71
      %v1254 = vpop.permute.xlu0 %1253
      %1255 = vrot.lane.b32.xlu0 %v1238, 71
      %v1256 = vpop.permute.xlu0 %1255
      %1257 = vrot.lane.b32.xlu0 %v1242, 71
      %v1258 = vpop.permute.xlu0 %1257
      %vm1259 = vcmask 580608
      %v1260 = vsel %vm1259, %v1244, %v1246
      %v1261 = vsel %vm1259, %v1246, %v1248
      %v1262 = vsel %vm1259, %v1248, %v1250
      %v1263 = vsel %vm1259, %v1250, %v1252
      %v1264 = vsel %vm1259, %v1252, %v1254
      %v1265 = vsel %vm1259, %v1254, %v1256
      %v1266 = vsel %vm1259, %v1256, %v1258
      %v1276 = vmul.f32 %v1244, 0.0
      %v1277 = vmul.f32 %v315, %v1260
      %v1278 = vmul.f32 %v323, %v1261
      %v1279 = vmul.f32 %v316, %v1262
      %v1280 = vmul.f32 %v324, %v1263
      %v1281 = vmul.f32 %v317, %v1264
      %v1282 = vmul.f32 %v325, %v1265
      %v1283 = vmul.f32 %v318, %v1266
      %v1284 = vmul.f32 %v326, %v1258
      %v1285 = vpack.c.bf16 %v1276, %v1276
      %v1286 = vpack.c.bf16 %v1277, %v1277
      %v1287 = vpack.c.bf16 %v1278, %v1278
      %v1288 = vpack.c.bf16 %v1279, %v1279
      %v1289 = vpack.c.bf16 %v1280, %v1280
      %v1290 = vpack.c.bf16 %v1281, %v1281
      %v1291 = vpack.c.bf16 %v1282, %v1282
      %v1292 = vpack.c.bf16 %v1283, %v1283
      %v1293 = vpack.c.bf16 %v1284, %v1284
      %v1303 = vrot.slane %v1285, 4
      %v1304 = vrot.slane %v1286, 4
      %v1305 = vrot.slane %v1287, 4
      %v1306 = vrot.slane %v1288, 4
      %v1307 = vrot.slane %v1289, 4
      %v1308 = vrot.slane %v1290, 4
      %v1309 = vrot.slane %v1291, 4
      %v1310 = vrot.slane %v1292, 4
      %v1311 = vrot.slane %v1293, 4
      %1312 = vrot.lane.b32.xlu0 %v1303, 57
      %v1313 = vpop.permute.xlu0 %1312
      %1314 = vrot.lane.b32.xlu0 %v1304, 57
      %v1315 = vpop.permute.xlu0 %1314
      %1316 = vrot.lane.b32.xlu0 %v1305, 57
      %v1317 = vpop.permute.xlu0 %1316
      %1318 = vrot.lane.b32.xlu0 %v1306, 57
      %v1319 = vpop.permute.xlu0 %1318
      %1320 = vrot.lane.b32.xlu0 %v1307, 57
      %v1321 = vpop.permute.xlu0 %1320
      %1322 = vrot.lane.b32.xlu0 %v1308, 57
      %v1323 = vpop.permute.xlu0 %1322
      %1324 = vrot.lane.b32.xlu0 %v1309, 57
      %v1325 = vpop.permute.xlu0 %1324
      %1326 = vrot.lane.b32.xlu0 %v1310, 57
      %v1327 = vpop.permute.xlu0 %1326
      %1328 = vrot.lane.b32.xlu0 %v1311, 57
      %v1329 = vpop.permute.xlu0 %1328
      %vm1330 = vcmask 465920
      %v1331 = vsel %vm1330, %v1313, %v1315
      %v1332 = vsel %vm1330, %v1315, %v1317
      %v1333 = vsel %vm1330, %v1317, %v1319
      %v1334 = vsel %vm1330, %v1319, %v1321
      %v1335 = vsel %vm1330, %v1321, %v1323
      %v1336 = vsel %vm1330, %v1323, %v1325
      %v1337 = vsel %vm1330, %v1325, %v1327
      %v1338 = vsel %vm1330, %v1327, %v1329
      %1347 = vst [vmem:[#allocation2 + $0x40] sm:$0x30] %v1331
      %1348 = vst [vmem:[#allocation2 + $0x48] sm:$0x30] %v1332
      %1349 = vst [vmem:[#allocation2 + $0x50] sm:$0x30] %v1333
      %1350 = vst [vmem:[#allocation2 + $0x58] sm:$0x30] %v1334
      %1351 = vst [vmem:[#allocation2 + $0x60] sm:$0x30] %v1335
      %1352 = vst [vmem:[#allocation2 + $0x68] sm:$0x30] %v1336
      %1353 = vst [vmem:[#allocation2 + $0x70] sm:$0x30] %v1337
      %1354 = vst [vmem:[#allocation2 + $0x78] sm:$0x30] %v1338
      %s1355 = scalar_lea.vmem %s7, 7
      %v1356 = vld [vmem:[%s1355] ss:$8 sm:$0xf]
      %v1357 = vld [vmem:[%s1355] ss:$8 sm:$0xf0]
      %v1358 = vor.u32 %v1356, %v1357
      %v1360 = vlaneseq
      %v1361 = vshrl.u32 %v1360, 7
      %v1362 = vsub.s32 0, %v1361
      %v1363 = vrot.slane %v1358, %v1362
      %v1364 = vlaneseq
      %v1365 = vshrl.u32 %v1364, 7
      %v1366 = vsub.s32 1, %v1365
      %v1367 = vrot.slane %v1358, %v1366
      %v1368 = vlaneseq
      %v1369 = vshrl.u32 %v1368, 7
      %v1370 = vsub.s32 2, %v1369
      %v1371 = vrot.slane %v1358, %v1370
      %v1372 = vlaneseq
      %v1373 = vshrl.u32 %v1372, 7
      %v1374 = vsub.s32 3, %v1373
      %v1375 = vrot.slane %v1358, %v1374
      %v1376 = vlaneseq
      %v1377 = vshrl.u32 %v1376, 7
      %v1378 = vsub.s32 4, %v1377
      %v1379 = vrot.slane %v1358, %v1378
      %v1380 = vlaneseq
      %v1381 = vshrl.u32 %v1380, 7
      %v1382 = vsub.s32 5, %v1381
      %v1383 = vrot.slane %v1358, %v1382
      %v1384 = vlaneseq
      %v1385 = vshrl.u32 %v1384, 7
      %v1386 = vsub.s32 6, %v1385
      %v1387 = vrot.slane %v1358, %v1386
      %v1388 = vlaneseq
      %v1389 = vshrl.u32 %v1388, 7
      %v1390 = vsub.s32 7, %v1389
      %v1391 = vrot.slane %v1358, %v1390
      %1392 = vrot.lane.b32.xlu0 %v1363, 72
      %v1393 = vpop.permute.xlu0 %1392
      %1394 = vrot.lane.b32.xlu0 %v1367, 72
      %v1395 = vpop.permute.xlu0 %1394
      %1396 = vrot.lane.b32.xlu0 %v1371, 72
      %v1397 = vpop.permute.xlu0 %1396
      %1398 = vrot.lane.b32.xlu0 %v1375, 72
      %v1399 = vpop.permute.xlu0 %1398
      %1400 = vrot.lane.b32.xlu0 %v1379, 72
      %v1401 = vpop.permute.xlu0 %1400
      %1402 = vrot.lane.b32.xlu0 %v1383, 72
      %v1403 = vpop.permute.xlu0 %1402
      %1404 = vrot.lane.b32.xlu0 %v1387, 72
      %v1405 = vpop.permute.xlu0 %1404
      %1406 = vrot.lane.b32.xlu0 %v1391, 72
      %v1407 = vpop.permute.xlu0 %1406
      %vm1408 = vcmask 588800
      %v1409 = vsel %vm1408, %v1393, %v1395
      %v1410 = vsel %vm1408, %v1395, %v1397
      %v1411 = vsel %vm1408, %v1397, %v1399
      %v1412 = vsel %vm1408, %v1399, %v1401
      %v1413 = vsel %vm1408, %v1401, %v1403
      %v1414 = vsel %vm1408, %v1403, %v1405
      %v1415 = vsel %vm1408, %v1405, %v1407
      %v1425 = vmul.f32 %v1393, 0.0
      %v1426 = vmul.f32 %v315, %v1409
      %v1427 = vmul.f32 %v323, %v1410
      %v1428 = vmul.f32 %v316, %v1411
      %v1429 = vmul.f32 %v324, %v1412
      %v1430 = vmul.f32 %v317, %v1413
      %v1431 = vmul.f32 %v325, %v1414
      %v1432 = vmul.f32 %v318, %v1415
      %v1433 = vmul.f32 %v326, %v1407
      %v1434 = vpack.c.bf16 %v1425, %v1425
      %v1435 = vpack.c.bf16 %v1426, %v1426
      %v1436 = vpack.c.bf16 %v1427, %v1427
      %v1437 = vpack.c.bf16 %v1428, %v1428
      %v1438 = vpack.c.bf16 %v1429, %v1429
      %v1439 = vpack.c.bf16 %v1430, %v1430
      %v1440 = vpack.c.bf16 %v1431, %v1431
      %v1441 = vpack.c.bf16 %v1432, %v1432
      %v1442 = vpack.c.bf16 %v1433, %v1433
      %v1452 = vrot.slane %v1434, 2
      %v1453 = vrot.slane %v1435, 2
      %v1454 = vrot.slane %v1436, 2
      %v1455 = vrot.slane %v1437, 2
      %v1456 = vrot.slane %v1438, 2
      %v1457 = vrot.slane %v1439, 2
      %v1458 = vrot.slane %v1440, 2
      %v1459 = vrot.slane %v1441, 2
      %v1460 = vrot.slane %v1442, 2
      %1461 = vrot.lane.b32.xlu0 %v1452, 56
      %v1462 = vpop.permute.xlu0 %1461
      %1463 = vrot.lane.b32.xlu0 %v1453, 56
      %v1464 = vpop.permute.xlu0 %1463
      %1465 = vrot.lane.b32.xlu0 %v1454, 56
      %v1466 = vpop.permute.xlu0 %1465
      %1467 = vrot.lane.b32.xlu0 %v1455, 56
      %v1468 = vpop.permute.xlu0 %1467
      %1469 = vrot.lane.b32.xlu0 %v1456, 56
      %v1470 = vpop.permute.xlu0 %1469
      %1471 = vrot.lane.b32.xlu0 %v1457, 56
      %v1472 = vpop.permute.xlu0 %1471
      %1473 = vrot.lane.b32.xlu0 %v1458, 56
      %v1474 = vpop.permute.xlu0 %1473
      %1475 = vrot.lane.b32.xlu0 %v1459, 56
      %v1476 = vpop.permute.xlu0 %1475
      %1477 = vrot.lane.b32.xlu0 %v1460, 56
      %v1478 = vpop.permute.xlu0 %1477
      %vm1479 = vcmask 457728
      %v1480 = vsel %vm1479, %v1462, %v1464
      %v1481 = vsel %vm1479, %v1464, %v1466
      %v1482 = vsel %vm1479, %v1466, %v1468
      %v1483 = vsel %vm1479, %v1468, %v1470
      %v1484 = vsel %vm1479, %v1470, %v1472
      %v1485 = vsel %vm1479, %v1472, %v1474
      %v1486 = vsel %vm1479, %v1474, %v1476
      %v1487 = vsel %vm1479, %v1476, %v1478
      %1496 = vst [vmem:[#allocation2 + $0x40] sm:$0xc0] %v1480
      %1497 = vst [vmem:[#allocation2 + $0x48] sm:$0xc0] %v1481
      %1498 = vst [vmem:[#allocation2 + $0x50] sm:$0xc0] %v1482
      %1499 = vst [vmem:[#allocation2 + $0x58] sm:$0xc0] %v1483
      %1500 = vst [vmem:[#allocation2 + $0x60] sm:$0xc0] %v1484
      %1501 = vst [vmem:[#allocation2 + $0x68] sm:$0xc0] %v1485
      %1502 = vst [vmem:[#allocation2 + $0x70] sm:$0xc0] %v1486
      %1503 = vst [vmem:[#allocation2 + $0x78] sm:$0xc0] %v1487
      %s1504 = scalar_lea.vmem %s7, 64
      %v1505 = vld [vmem:[%s1504] ss:$8 sm:$0xf]
      %v1506 = vld [vmem:[%s1504] ss:$8 sm:$0xf0]
      %v1507 = vor.u32 %v1505, %v1506
      %v1509 = vlaneseq
      %v1510 = vshrl.u32 %v1509, 7
      %v1511 = vsub.s32 0, %v1510
      %v1512 = vrot.slane %v1507, %v1511
      %v1513 = vlaneseq
      %v1514 = vshrl.u32 %v1513, 7
      %v1515 = vsub.s32 1, %v1514
      %v1516 = vrot.slane %v1507, %v1515
      %v1517 = vlaneseq
      %v1518 = vshrl.u32 %v1517, 7
      %v1519 = vsub.s32 2, %v1518
      %v1520 = vrot.slane %v1507, %v1519
      %v1521 = vlaneseq
      %v1522 = vshrl.u32 %v1521, 7
      %v1523 = vsub.s32 3, %v1522
      %v1524 = vrot.slane %v1507, %v1523
      %v1525 = vlaneseq
      %v1526 = vshrl.u32 %v1525, 7
      %v1527 = vsub.s32 4, %v1526
      %v1528 = vrot.slane %v1507, %v1527
      %v1529 = vlaneseq
      %v1530 = vshrl.u32 %v1529, 7
      %v1531 = vsub.s32 5, %v1530
      %v1532 = vrot.slane %v1507, %v1531
      %v1533 = vlaneseq
      %v1534 = vshrl.u32 %v1533, 7
      %v1535 = vsub.s32 6, %v1534
      %v1536 = vrot.slane %v1507, %v1535
      %v1537 = vlaneseq
      %v1538 = vshrl.u32 %v1537, 7
      %v1539 = vsub.s32 7, %v1538
      %v1540 = vrot.slane %v1507, %v1539
      %1541 = vrot.lane.b32.xlu0 %v1512, 73
      %v1542 = vpop.permute.xlu0 %1541
      %1543 = vrot.lane.b32.xlu0 %v1516, 73
      %v1544 = vpop.permute.xlu0 %1543
      %1545 = vrot.lane.b32.xlu0 %v1520, 73
      %v1546 = vpop.permute.xlu0 %1545
      %1547 = vrot.lane.b32.xlu0 %v1524, 73
      %v1548 = vpop.permute.xlu0 %1547
      %1549 = vrot.lane.b32.xlu0 %v1528, 73
      %v1550 = vpop.permute.xlu0 %1549
      %1551 = vrot.lane.b32.xlu0 %v1532, 73
      %v1552 = vpop.permute.xlu0 %1551
      %1553 = vrot.lane.b32.xlu0 %v1536, 73
      %v1554 = vpop.permute.xlu0 %1553
      %1555 = vrot.lane.b32.xlu0 %v1540, 73
      %v1556 = vpop.permute.xlu0 %1555
      %vm1557 = vcmask 596992
      %v1558 = vsel %vm1557, %v1542, %v1544
      %v1559 = vsel %vm1557, %v1544, %v1546
      %v1560 = vsel %vm1557, %v1546, %v1548
      %v1561 = vsel %vm1557, %v1548, %v1550
      %v1562 = vsel %vm1557, %v1550, %v1552
      %v1563 = vsel %vm1557, %v1552, %v1554
      %v1564 = vsel %vm1557, %v1554, %v1556
      %v1574 = vmul.f32 %v1542, 0.0
      %v1575 = vmul.f32 %v315, %v1558
      %v1576 = vmul.f32 %v323, %v1559
      %v1577 = vmul.f32 %v316, %v1560
      %v1578 = vmul.f32 %v324, %v1561
      %v1579 = vmul.f32 %v317, %v1562
      %v1580 = vmul.f32 %v325, %v1563
      %v1581 = vmul.f32 %v318, %v1564
      %v1582 = vmul.f32 %v326, %v1556
      %v1583 = vpack.c.bf16 %v1574, %v1574
      %v1584 = vpack.c.bf16 %v1575, %v1575
      %v1585 = vpack.c.bf16 %v1576, %v1576
      %v1586 = vpack.c.bf16 %v1577, %v1577
      %v1587 = vpack.c.bf16 %v1578, %v1578
      %v1588 = vpack.c.bf16 %v1579, %v1579
      %v1589 = vpack.c.bf16 %v1580, %v1580
      %v1590 = vpack.c.bf16 %v1581, %v1581
      %v1591 = vpack.c.bf16 %v1582, %v1582
      %1601 = vrot.lane.b32.xlu0 %v1583, 55
      %v1602 = vpop.permute.xlu0 %1601
      %1603 = vrot.lane.b32.xlu0 %v1584, 55
      %v1604 = vpop.permute.xlu0 %1603
      %1605 = vrot.lane.b32.xlu0 %v1585, 55
      %v1606 = vpop.permute.xlu0 %1605
      %1607 = vrot.lane.b32.xlu0 %v1586, 55
      %v1608 = vpop.permute.xlu0 %1607
      %1609 = vrot.lane.b32.xlu0 %v1587, 55
      %v1610 = vpop.permute.xlu0 %1609
      %1611 = vrot.lane.b32.xlu0 %v1588, 55
      %v1612 = vpop.permute.xlu0 %1611
      %1613 = vrot.lane.b32.xlu0 %v1589, 55
      %v1614 = vpop.permute.xlu0 %1613
      %1615 = vrot.lane.b32.xlu0 %v1590, 55
      %v1616 = vpop.permute.xlu0 %1615
      %1617 = vrot.lane.b32.xlu0 %v1591, 55
      %v1618 = vpop.permute.xlu0 %1617
      %vm1619 = vcmask 449536
      %v1620 = vsel %vm1619, %v1602, %v1604
      %v1621 = vsel %vm1619, %v1604, %v1606
      %v1622 = vsel %vm1619, %v1606, %v1608
      %v1623 = vsel %vm1619, %v1608, %v1610
      %v1624 = vsel %vm1619, %v1610, %v1612
      %v1625 = vsel %vm1619, %v1612, %v1614
      %v1626 = vsel %vm1619, %v1614, %v1616
      %v1627 = vsel %vm1619, %v1616, %v1618
      %1636 = vst [vmem:[#allocation2 + $0x80] sm:$0x3] %v1620
      %1637 = vst [vmem:[#allocation2 + $0x88] sm:$0x3] %v1621
      %1638 = vst [vmem:[#allocation2 + $0x90] sm:$0x3] %v1622
      %1639 = vst [vmem:[#allocation2 + $0x98] sm:$0x3] %v1623
      %1640 = vst [vmem:[#allocation2 + $0xa0] sm:$0x3] %v1624
      %1641 = vst [vmem:[#allocation2 + $0xa8] sm:$0x3] %v1625
      %1642 = vst [vmem:[#allocation2 + $0xb0] sm:$0x3] %v1626
      %1643 = vst [vmem:[#allocation2 + $0xb8] sm:$0x3] %v1627
      %s1644 = scalar_lea.vmem %s7, 65
      %v1645 = vld [vmem:[%s1644] ss:$8 sm:$0xf]
      %v1646 = vld [vmem:[%s1644] ss:$8 sm:$0xf0]
      %v1647 = vor.u32 %v1645, %v1646
      %v1649 = vlaneseq
      %v1650 = vshrl.u32 %v1649, 7
      %v1651 = vsub.s32 0, %v1650
      %v1652 = vrot.slane %v1647, %v1651
      %v1653 = vlaneseq
      %v1654 = vshrl.u32 %v1653, 7
      %v1655 = vsub.s32 1, %v1654
      %v1656 = vrot.slane %v1647, %v1655
      %v1657 = vlaneseq
      %v1658 = vshrl.u32 %v1657, 7
      %v1659 = vsub.s32 2, %v1658
      %v1660 = vrot.slane %v1647, %v1659
      %v1661 = vlaneseq
      %v1662 = vshrl.u32 %v1661, 7
      %v1663 = vsub.s32 3, %v1662
      %v1664 = vrot.slane %v1647, %v1663
      %v1665 = vlaneseq
      %v1666 = vshrl.u32 %v1665, 7
      %v1667 = vsub.s32 4, %v1666
      %v1668 = vrot.slane %v1647, %v1667
      %v1669 = vlaneseq
      %v1670 = vshrl.u32 %v1669, 7
      %v1671 = vsub.s32 5, %v1670
      %v1672 = vrot.slane %v1647, %v1671
      %v1673 = vlaneseq
      %v1674 = vshrl.u32 %v1673, 7
      %v1675 = vsub.s32 6, %v1674
      %v1676 = vrot.slane %v1647, %v1675
      %v1677 = vlaneseq
      %v1678 = vshrl.u32 %v1677, 7
      %v1679 = vsub.s32 7, %v1678
      %v1680 = vrot.slane %v1647, %v1679
      %1681 = vrot.lane.b32.xlu0 %v1652, 119
      %v1682 = vpop.permute.xlu0 %1681
      %1683 = vrot.lane.b32.xlu0 %v1656, 119
      %v1684 = vpop.permute.xlu0 %1683
      %1685 = vrot.lane.b32.xlu0 %v1660, 119
      %v1686 = vpop.permute.xlu0 %1685
      %1687 = vrot.lane.b32.xlu0 %v1664, 119
      %v1688 = vpop.permute.xlu0 %1687
      %1689 = vrot.lane.b32.xlu0 %v1668, 119
      %v1690 = vpop.permute.xlu0 %1689
      %1691 = vrot.lane.b32.xlu0 %v1672, 119
      %v1692 = vpop.permute.xlu0 %1691
      %1693 = vrot.lane.b32.xlu0 %v1676, 119
      %v1694 = vpop.permute.xlu0 %1693
      %1695 = vrot.lane.b32.xlu0 %v1680, 119
      %v1696 = vpop.permute.xlu0 %1695
      %vm1697 = vcmask 973824
      %v1698 = vsel %vm1697, %v1682, %v1684
      %v1699 = vsel %vm1697, %v1684, %v1686
      %v1700 = vsel %vm1697, %v1686, %v1688
      %v1701 = vsel %vm1697, %v1688, %v1690
      %v1702 = vsel %vm1697, %v1690, %v1692
      %v1703 = vsel %vm1697, %v1692, %v1694
      %v1704 = vsel %vm1697, %v1694, %v1696
      %v1714 = vmul.f32 %v1682, 0.0
      %v1715 = vmul.f32 %v315, %v1698
      %v1716 = vmul.f32 %v323, %v1699
      %v1717 = vmul.f32 %v316, %v1700
      %v1718 = vmul.f32 %v324, %v1701
      %v1719 = vmul.f32 %v317, %v1702
      %v1720 = vmul.f32 %v325, %v1703
      %v1721 = vmul.f32 %v318, %v1704
      %v1722 = vmul.f32 %v326, %v1696
      %v1723 = vpack.c.bf16 %v1714, %v1714
      %v1724 = vpack.c.bf16 %v1715, %v1715
      %v1725 = vpack.c.bf16 %v1716, %v1716
      %v1726 = vpack.c.bf16 %v1717, %v1717
      %v1727 = vpack.c.bf16 %v1718, %v1718
      %v1728 = vpack.c.bf16 %v1719, %v1719
      %v1729 = vpack.c.bf16 %v1720, %v1720
      %v1730 = vpack.c.bf16 %v1721, %v1721
      %v1731 = vpack.c.bf16 %v1722, %v1722
      %v1741 = vrot.slane %v1723, 6
      %v1742 = vrot.slane %v1724, 6
      %v1743 = vrot.slane %v1725, 6
      %v1744 = vrot.slane %v1726, 6
      %v1745 = vrot.slane %v1727, 6
      %v1746 = vrot.slane %v1728, 6
      %v1747 = vrot.slane %v1729, 6
      %v1748 = vrot.slane %v1730, 6
      %v1749 = vrot.slane %v1731, 6
      %1750 = vrot.lane.b32.xlu0 %v1741, 9
      %v1751 = vpop.permute.xlu0 %1750
      %1752 = vrot.lane.b32.xlu0 %v1742, 9
      %v1753 = vpop.permute.xlu0 %1752
      %1754 = vrot.lane.b32.xlu0 %v1743, 9
      %v1755 = vpop.permute.xlu0 %1754
      %1756 = vrot.lane.b32.xlu0 %v1744, 9
      %v1757 = vpop.permute.xlu0 %1756
      %1758 = vrot.lane.b32.xlu0 %v1745, 9
      %v1759 = vpop.permute.xlu0 %1758
      %1760 = vrot.lane.b32.xlu0 %v1746, 9
      %v1761 = vpop.permute.xlu0 %1760
      %1762 = vrot.lane.b32.xlu0 %v1747, 9
      %v1763 = vpop.permute.xlu0 %1762
      %1764 = vrot.lane.b32.xlu0 %v1748, 9
      %v1765 = vpop.permute.xlu0 %1764
      %1766 = vrot.lane.b32.xlu0 %v1749, 9
      %v1767 = vpop.permute.xlu0 %1766
      %vm1768 = vcmask 72704
      %v1769 = vsel %vm1768, %v1751, %v1753
      %v1770 = vsel %vm1768, %v1753, %v1755
      %v1771 = vsel %vm1768, %v1755, %v1757
      %v1772 = vsel %vm1768, %v1757, %v1759
      %v1773 = vsel %vm1768, %v1759, %v1761
      %v1774 = vsel %vm1768, %v1761, %v1763
      %v1775 = vsel %vm1768, %v1763, %v1765
      %v1776 = vsel %vm1768, %v1765, %v1767
      %1785 = vst [vmem:[#allocation2 + $0x80] sm:$0xc] %v1769
      %1786 = vst [vmem:[#allocation2 + $0x88] sm:$0xc] %v1770
      %1787 = vst [vmem:[#allocation2 + $0x90] sm:$0xc] %v1771
      %1788 = vst [vmem:[#allocation2 + $0x98] sm:$0xc] %v1772
      %1789 = vst [vmem:[#allocation2 + $0xa0] sm:$0xc] %v1773
      %1790 = vst [vmem:[#allocation2 + $0xa8] sm:$0xc] %v1774
      %1791 = vst [vmem:[#allocation2 + $0xb0] sm:$0xc] %v1775
      %1792 = vst [vmem:[#allocation2 + $0xb8] sm:$0xc] %v1776
      %s1793 = scalar_lea.vmem %s7, 66
      %v1794 = vld [vmem:[%s1793] ss:$8 sm:$0xf]
      %v1795 = vld [vmem:[%s1793] ss:$8 sm:$0xf0]
      %v1796 = vor.u32 %v1794, %v1795
      %v1798 = vlaneseq
      %v1799 = vshrl.u32 %v1798, 7
      %v1800 = vsub.s32 0, %v1799
      %v1801 = vrot.slane %v1796, %v1800
      %v1802 = vlaneseq
      %v1803 = vshrl.u32 %v1802, 7
      %v1804 = vsub.s32 1, %v1803
      %v1805 = vrot.slane %v1796, %v1804
      %v1806 = vlaneseq
      %v1807 = vshrl.u32 %v1806, 7
      %v1808 = vsub.s32 2, %v1807
      %v1809 = vrot.slane %v1796, %v1808
      %v1810 = vlaneseq
      %v1811 = vshrl.u32 %v1810, 7
      %v1812 = vsub.s32 3, %v1811
      %v1813 = vrot.slane %v1796, %v1812
      %v1814 = vlaneseq
      %v1815 = vshrl.u32 %v1814, 7
      %v1816 = vsub.s32 4, %v1815
      %v1817 = vrot.slane %v1796, %v1816
      %v1818 = vlaneseq
      %v1819 = vshrl.u32 %v1818, 7
      %v1820 = vsub.s32 5, %v1819
      %v1821 = vrot.slane %v1796, %v1820
      %v1822 = vlaneseq
      %v1823 = vshrl.u32 %v1822, 7
      %v1824 = vsub.s32 6, %v1823
      %v1825 = vrot.slane %v1796, %v1824
      %v1826 = vlaneseq
      %v1827 = vshrl.u32 %v1826, 7
      %v1828 = vsub.s32 7, %v1827
      %v1829 = vrot.slane %v1796, %v1828
      %1830 = vrot.lane.b32.xlu0 %v1801, 120
      %v1831 = vpop.permute.xlu0 %1830
      %1832 = vrot.lane.b32.xlu0 %v1805, 120
      %v1833 = vpop.permute.xlu0 %1832
      %1834 = vrot.lane.b32.xlu0 %v1809, 120
      %v1835 = vpop.permute.xlu0 %1834
      %1836 = vrot.lane.b32.xlu0 %v1813, 120
      %v1837 = vpop.permute.xlu0 %1836
      %1838 = vrot.lane.b32.xlu0 %v1817, 120
      %v1839 = vpop.permute.xlu0 %1838
      %1840 = vrot.lane.b32.xlu0 %v1821, 120
      %v1841 = vpop.permute.xlu0 %1840
      %1842 = vrot.lane.b32.xlu0 %v1825, 120
      %v1843 = vpop.permute.xlu0 %1842
      %1844 = vrot.lane.b32.xlu0 %v1829, 120
      %v1845 = vpop.permute.xlu0 %1844
      %vm1846 = vcmask 982016
      %v1847 = vsel %vm1846, %v1831, %v1833
      %v1848 = vsel %vm1846, %v1833, %v1835
      %v1849 = vsel %vm1846, %v1835, %v1837
      %v1850 = vsel %vm1846, %v1837, %v1839
      %v1851 = vsel %vm1846, %v1839, %v1841
      %v1852 = vsel %vm1846, %v1841, %v1843
      %v1853 = vsel %vm1846, %v1843, %v1845
      %v1863 = vmul.f32 %v1831, 0.0
      %v1864 = vmul.f32 %v315, %v1847
      %v1865 = vmul.f32 %v323, %v1848
      %v1866 = vmul.f32 %v316, %v1849
      %v1867 = vmul.f32 %v324, %v1850
      %v1868 = vmul.f32 %v317, %v1851
      %v1869 = vmul.f32 %v325, %v1852
      %v1870 = vmul.f32 %v318, %v1853
      %v1871 = vmul.f32 %v326, %v1845
      %v1872 = vpack.c.bf16 %v1863, %v1863
      %v1873 = vpack.c.bf16 %v1864, %v1864
      %v1874 = vpack.c.bf16 %v1865, %v1865
      %v1875 = vpack.c.bf16 %v1866, %v1866
      %v1876 = vpack.c.bf16 %v1867, %v1867
      %v1877 = vpack.c.bf16 %v1868, %v1868
      %v1878 = vpack.c.bf16 %v1869, %v1869
      %v1879 = vpack.c.bf16 %v1870, %v1870
      %v1880 = vpack.c.bf16 %v1871, %v1871
      %v1890 = vrot.slane %v1872, 4
      %v1891 = vrot.slane %v1873, 4
      %v1892 = vrot.slane %v1874, 4
      %v1893 = vrot.slane %v1875, 4
      %v1894 = vrot.slane %v1876, 4
      %v1895 = vrot.slane %v1877, 4
      %v1896 = vrot.slane %v1878, 4
      %v1897 = vrot.slane %v1879, 4
      %v1898 = vrot.slane %v1880, 4
      %1899 = vrot.lane.b32.xlu0 %v1890, 8
      %v1900 = vpop.permute.xlu0 %1899
      %1901 = vrot.lane.b32.xlu0 %v1891, 8
      %v1902 = vpop.permute.xlu0 %1901
      %1903 = vrot.lane.b32.xlu0 %v1892, 8
      %v1904 = vpop.permute.xlu0 %1903
      %1905 = vrot.lane.b32.xlu0 %v1893, 8
      %v1906 = vpop.permute.xlu0 %1905
      %1907 = vrot.lane.b32.xlu0 %v1894, 8
      %v1908 = vpop.permute.xlu0 %1907
      %1909 = vrot.lane.b32.xlu0 %v1895, 8
      %v1910 = vpop.permute.xlu0 %1909
      %1911 = vrot.lane.b32.xlu0 %v1896, 8
      %v1912 = vpop.permute.xlu0 %1911
      %1913 = vrot.lane.b32.xlu0 %v1897, 8
      %v1914 = vpop.permute.xlu0 %1913
      %1915 = vrot.lane.b32.xlu0 %v1898, 8
      %v1916 = vpop.permute.xlu0 %1915
      %vm1917 = vcmask 64512
      %v1918 = vsel %vm1917, %v1900, %v1902
      %v1919 = vsel %vm1917, %v1902, %v1904
      %v1920 = vsel %vm1917, %v1904, %v1906
      %v1921 = vsel %vm1917, %v1906, %v1908
      %v1922 = vsel %vm1917, %v1908, %v1910
      %v1923 = vsel %vm1917, %v1910, %v1912
      %v1924 = vsel %vm1917, %v1912, %v1914
      %v1925 = vsel %vm1917, %v1914, %v1916
      %1934 = vst [vmem:[#allocation2 + $0x80] sm:$0x30] %v1918
      %1935 = vst [vmem:[#allocation2 + $0x88] sm:$0x30] %v1919
      %1936 = vst [vmem:[#allocation2 + $0x90] sm:$0x30] %v1920
      %1937 = vst [vmem:[#allocation2 + $0x98] sm:$0x30] %v1921
      %1938 = vst [vmem:[#allocation2 + $0xa0] sm:$0x30] %v1922
      %1939 = vst [vmem:[#allocation2 + $0xa8] sm:$0x30] %v1923
      %1940 = vst [vmem:[#allocation2 + $0xb0] sm:$0x30] %v1924
      %1941 = vst [vmem:[#allocation2 + $0xb8] sm:$0x30] %v1925
      %s1942 = scalar_lea.vmem %s7, 67
      %v1943 = vld [vmem:[%s1942] ss:$8 sm:$0xf]
      %v1944 = vld [vmem:[%s1942] ss:$8 sm:$0xf0]
      %v1945 = vor.u32 %v1943, %v1944
      %v1947 = vlaneseq
      %v1948 = vshrl.u32 %v1947, 7
      %v1949 = vsub.s32 0, %v1948
      %v1950 = vrot.slane %v1945, %v1949
      %v1951 = vlaneseq
      %v1952 = vshrl.u32 %v1951, 7
      %v1953 = vsub.s32 1, %v1952
      %v1954 = vrot.slane %v1945, %v1953
      %v1955 = vlaneseq
      %v1956 = vshrl.u32 %v1955, 7
      %v1957 = vsub.s32 2, %v1956
      %v1958 = vrot.slane %v1945, %v1957
      %v1959 = vlaneseq
      %v1960 = vshrl.u32 %v1959, 7
      %v1961 = vsub.s32 3, %v1960
      %v1962 = vrot.slane %v1945, %v1961
      %v1963 = vlaneseq
      %v1964 = vshrl.u32 %v1963, 7
      %v1965 = vsub.s32 4, %v1964
      %v1966 = vrot.slane %v1945, %v1965
      %v1967 = vlaneseq
      %v1968 = vshrl.u32 %v1967, 7
      %v1969 = vsub.s32 5, %v1968
      %v1970 = vrot.slane %v1945, %v1969
      %v1971 = vlaneseq
      %v1972 = vshrl.u32 %v1971, 7
      %v1973 = vsub.s32 6, %v1972
      %v1974 = vrot.slane %v1945, %v1973
      %v1975 = vlaneseq
      %v1976 = vshrl.u32 %v1975, 7
      %v1977 = vsub.s32 7, %v1976
      %v1978 = vrot.slane %v1945, %v1977
      %1979 = vrot.lane.b32.xlu0 %v1950, 121
      %v1980 = vpop.permute.xlu0 %1979
      %1981 = vrot.lane.b32.xlu0 %v1954, 121
      %v1982 = vpop.permute.xlu0 %1981
      %1983 = vrot.lane.b32.xlu0 %v1958, 121
      %v1984 = vpop.permute.xlu0 %1983
      %1985 = vrot.lane.b32.xlu0 %v1962, 121
      %v1986 = vpop.permute.xlu0 %1985
      %1987 = vrot.lane.b32.xlu0 %v1966, 121
      %v1988 = vpop.permute.xlu0 %1987
      %1989 = vrot.lane.b32.xlu0 %v1970, 121
      %v1990 = vpop.permute.xlu0 %1989
      %1991 = vrot.lane.b32.xlu0 %v1974, 121
      %v1992 = vpop.permute.xlu0 %1991
      %1993 = vrot.lane.b32.xlu0 %v1978, 121
      %v1994 = vpop.permute.xlu0 %1993
      %vm1995 = vcmask 990208
      %v1996 = vsel %vm1995, %v1980, %v1982
      %v1997 = vsel %vm1995, %v1982, %v1984
      %v1998 = vsel %vm1995, %v1984, %v1986
      %v1999 = vsel %vm1995, %v1986, %v1988
      %v2000 = vsel %vm1995, %v1988, %v1990
      %v2001 = vsel %vm1995, %v1990, %v1992
      %v2002 = vsel %vm1995, %v1992, %v1994
      %v2012 = vmul.f32 %v1980, 0.0
      %v2013 = vmul.f32 %v315, %v1996
      %v2014 = vmul.f32 %v323, %v1997
      %v2015 = vmul.f32 %v316, %v1998
      %v2016 = vmul.f32 %v324, %v1999
      %v2017 = vmul.f32 %v317, %v2000
      %v2018 = vmul.f32 %v325, %v2001
      %v2019 = vmul.f32 %v318, %v2002
      %v2020 = vmul.f32 %v326, %v1994
      %v2021 = vpack.c.bf16 %v2012, %v2012
      %v2022 = vpack.c.bf16 %v2013, %v2013
      %v2023 = vpack.c.bf16 %v2014, %v2014
      %v2024 = vpack.c.bf16 %v2015, %v2015
      %v2025 = vpack.c.bf16 %v2016, %v2016
      %v2026 = vpack.c.bf16 %v2017, %v2017
      %v2027 = vpack.c.bf16 %v2018, %v2018
      %v2028 = vpack.c.bf16 %v2019, %v2019
      %v2029 = vpack.c.bf16 %v2020, %v2020
      %v2039 = vrot.slane %v2021, 2
      %v2040 = vrot.slane %v2022, 2
      %v2041 = vrot.slane %v2023, 2
      %v2042 = vrot.slane %v2024, 2
      %v2043 = vrot.slane %v2025, 2
      %v2044 = vrot.slane %v2026, 2
      %v2045 = vrot.slane %v2027, 2
      %v2046 = vrot.slane %v2028, 2
      %v2047 = vrot.slane %v2029, 2
      %2048 = vrot.lane.b32.xlu0 %v2039, 7
      %v2049 = vpop.permute.xlu0 %2048
      %2050 = vrot.lane.b32.xlu0 %v2040, 7
      %v2051 = vpop.permute.xlu0 %2050
      %2052 = vrot.lane.b32.xlu0 %v2041, 7
      %v2053 = vpop.permute.xlu0 %2052
      %2054 = vrot.lane.b32.xlu0 %v2042, 7
      %v2055 = vpop.permute.xlu0 %2054
      %2056 = vrot.lane.b32.xlu0 %v2043, 7
      %v2057 = vpop.permute.xlu0 %2056
      %2058 = vrot.lane.b32.xlu0 %v2044, 7
      %v2059 = vpop.permute.xlu0 %2058
      %2060 = vrot.lane.b32.xlu0 %v2045, 7
      %v2061 = vpop.permute.xlu0 %2060
      %2062 = vrot.lane.b32.xlu0 %v2046, 7
      %v2063 = vpop.permute.xlu0 %2062
      %2064 = vrot.lane.b32.xlu0 %v2047, 7
      %v2065 = vpop.permute.xlu0 %2064
      %vm2066 = vcmask 56320
      %v2067 = vsel %vm2066, %v2049, %v2051
      %v2068 = vsel %vm2066, %v2051, %v2053
      %v2069 = vsel %vm2066, %v2053, %v2055
      %v2070 = vsel %vm2066, %v2055, %v2057
      %v2071 = vsel %vm2066, %v2057, %v2059
      %v2072 = vsel %vm2066, %v2059, %v2061
      %v2073 = vsel %vm2066, %v2061, %v2063
      %v2074 = vsel %vm2066, %v2063, %v2065
      %2083 = vst [vmem:[#allocation2 + $0x80] sm:$0xc0] %v2067
      %2084 = vst [vmem:[#allocation2 + $0x88] sm:$0xc0] %v2068
      %2085 = vst [vmem:[#allocation2 + $0x90] sm:$0xc0] %v2069
      %2086 = vst [vmem:[#allocation2 + $0x98] sm:$0xc0] %v2070
      %2087 = vst [vmem:[#allocation2 + $0xa0] sm:$0xc0] %v2071
      %2088 = vst [vmem:[#allocation2 + $0xa8] sm:$0xc0] %v2072
      %2089 = vst [vmem:[#allocation2 + $0xb0] sm:$0xc0] %v2073
      %2090 = vst [vmem:[#allocation2 + $0xb8] sm:$0xc0] %v2074
      %s2091 = scalar_lea.vmem %s7, 68
      %v2092 = vld [vmem:[%s2091] ss:$8 sm:$0xf]
      %v2093 = vld [vmem:[%s2091] ss:$8 sm:$0xf0]
      %v2094 = vor.u32 %v2092, %v2093
      %v2096 = vlaneseq
      %v2097 = vshrl.u32 %v2096, 7
      %v2098 = vsub.s32 0, %v2097
      %v2099 = vrot.slane %v2094, %v2098
      %v2100 = vlaneseq
      %v2101 = vshrl.u32 %v2100, 7
      %v2102 = vsub.s32 1, %v2101
      %v2103 = vrot.slane %v2094, %v2102
      %v2104 = vlaneseq
      %v2105 = vshrl.u32 %v2104, 7
      %v2106 = vsub.s32 2, %v2105
      %v2107 = vrot.slane %v2094, %v2106
      %v2108 = vlaneseq
      %v2109 = vshrl.u32 %v2108, 7
      %v2110 = vsub.s32 3, %v2109
      %v2111 = vrot.slane %v2094, %v2110
      %v2112 = vlaneseq
      %v2113 = vshrl.u32 %v2112, 7
      %v2114 = vsub.s32 4, %v2113
      %v2115 = vrot.slane %v2094, %v2114
      %v2116 = vlaneseq
      %v2117 = vshrl.u32 %v2116, 7
      %v2118 = vsub.s32 5, %v2117
      %v2119 = vrot.slane %v2094, %v2118
      %v2120 = vlaneseq
      %v2121 = vshrl.u32 %v2120, 7
      %v2122 = vsub.s32 6, %v2121
      %v2123 = vrot.slane %v2094, %v2122
      %v2124 = vlaneseq
      %v2125 = vshrl.u32 %v2124, 7
      %v2126 = vsub.s32 7, %v2125
      %v2127 = vrot.slane %v2094, %v2126
      %2128 = vrot.lane.b32.xlu0 %v2099, 127
      %v2129 = vpop.permute.xlu0 %2128
      %2130 = vrot.lane.b32.xlu0 %v2103, 127
      %v2131 = vpop.permute.xlu0 %2130
      %2132 = vrot.lane.b32.xlu0 %v2107, 127
      %v2133 = vpop.permute.xlu0 %2132
      %2134 = vrot.lane.b32.xlu0 %v2111, 127
      %v2135 = vpop.permute.xlu0 %2134
      %2136 = vrot.lane.b32.xlu0 %v2115, 127
      %v2137 = vpop.permute.xlu0 %2136
      %2138 = vrot.lane.b32.xlu0 %v2119, 127
      %v2139 = vpop.permute.xlu0 %2138
      %2140 = vrot.lane.b32.xlu0 %v2123, 127
      %v2141 = vpop.permute.xlu0 %2140
      %2142 = vrot.lane.b32.xlu0 %v2127, 127
      %v2143 = vpop.permute.xlu0 %2142
      %vm2144 = vcmask 1039360
      %v2145 = vsel %vm2144, %v2129, %v2131
      %v2146 = vsel %vm2144, %v2131, %v2133
      %v2147 = vsel %vm2144, %v2133, %v2135
      %v2148 = vsel %vm2144, %v2135, %v2137
      %v2149 = vsel %vm2144, %v2137, %v2139
      %v2150 = vsel %vm2144, %v2139, %v2141
      %v2151 = vsel %vm2144, %v2141, %v2143
      %v2161 = vmul.f32 %v2129, 0.0
      %v2162 = vmul.f32 %v315, %v2145
      %v2163 = vmul.f32 %v323, %v2146
      %v2164 = vmul.f32 %v316, %v2147
      %v2165 = vmul.f32 %v324, %v2148
      %v2166 = vmul.f32 %v317, %v2149
      %v2167 = vmul.f32 %v325, %v2150
      %v2168 = vmul.f32 %v318, %v2151
      %v2169 = vmul.f32 %v326, %v2143
      %v2170 = vpack.c.bf16 %v2161, %v2161
      %v2171 = vpack.c.bf16 %v2162, %v2162
      %v2172 = vpack.c.bf16 %v2163, %v2163
      %v2173 = vpack.c.bf16 %v2164, %v2164
      %v2174 = vpack.c.bf16 %v2165, %v2165
      %v2175 = vpack.c.bf16 %v2166, %v2166
      %v2176 = vpack.c.bf16 %v2167, %v2167
      %v2177 = vpack.c.bf16 %v2168, %v2168
      %v2178 = vpack.c.bf16 %v2169, %v2169
      %2188 = vrot.lane.b32.xlu0 %v2170, 1
      %v2189 = vpop.permute.xlu0 %2188
      %2190 = vrot.lane.b32.xlu0 %v2171, 1
      %v2191 = vpop.permute.xlu0 %2190
      %2192 = vrot.lane.b32.xlu0 %v2172, 1
      %v2193 = vpop.permute.xlu0 %2192
      %2194 = vrot.lane.b32.xlu0 %v2173, 1
      %v2195 = vpop.permute.xlu0 %2194
      %2196 = vrot.lane.b32.xlu0 %v2174, 1
      %v2197 = vpop.permute.xlu0 %2196
      %2198 = vrot.lane.b32.xlu0 %v2175, 1
      %v2199 = vpop.permute.xlu0 %2198
      %2200 = vrot.lane.b32.xlu0 %v2176, 1
      %v2201 = vpop.permute.xlu0 %2200
      %2202 = vrot.lane.b32.xlu0 %v2177, 1
      %v2203 = vpop.permute.xlu0 %2202
      %2204 = vrot.lane.b32.xlu0 %v2178, 1
      %v2205 = vpop.permute.xlu0 %2204
      %vm2206 = vcmask 7168
      %v2207 = vsel %vm2206, %v2189, %v2191
      %v2208 = vsel %vm2206, %v2191, %v2193
      %v2209 = vsel %vm2206, %v2193, %v2195
      %v2210 = vsel %vm2206, %v2195, %v2197
      %v2211 = vsel %vm2206, %v2197, %v2199
      %v2212 = vsel %vm2206, %v2199, %v2201
      %v2213 = vsel %vm2206, %v2201, %v2203
      %v2214 = vsel %vm2206, %v2203, %v2205
      %2223 = vst [vmem:[#allocation2 + $0xc0] sm:$0x3] %v2207
      %2224 = vst [vmem:[#allocation2 + $0xc8] sm:$0x3] %v2208
      %2225 = vst [vmem:[#allocation2 + $0xd0] sm:$0x3] %v2209
      %2226 = vst [vmem:[#allocation2 + $0xd8] sm:$0x3] %v2210
      %2227 = vst [vmem:[#allocation2 + $0xe0] sm:$0x3] %v2211
      %2228 = vst [vmem:[#allocation2 + $0xe8] sm:$0x3] %v2212
      %2229 = vst [vmem:[#allocation2 + $0xf0] sm:$0x3] %v2213
      %2230 = vst [vmem:[#allocation2 + $0xf8] sm:$0x3] %v2214
      %s2231 = scalar_lea.vmem %s7, 69
      %v2232 = vld [vmem:[%s2231] ss:$8 sm:$0xf]
      %v2233 = vld [vmem:[%s2231] ss:$8 sm:$0xf0]
      %v2234 = vor.u32 %v2232, %v2233
      %v2236 = vlaneseq
      %v2237 = vshrl.u32 %v2236, 7
      %v2238 = vsub.s32 0, %v2237
      %v2239 = vrot.slane %v2234, %v2238
      %v2240 = vlaneseq
      %v2241 = vshrl.u32 %v2240, 7
      %v2242 = vsub.s32 1, %v2241
      %v2243 = vrot.slane %v2234, %v2242
      %v2244 = vlaneseq
      %v2245 = vshrl.u32 %v2244, 7
      %v2246 = vsub.s32 2, %v2245
      %v2247 = vrot.slane %v2234, %v2246
      %v2248 = vlaneseq
      %v2249 = vshrl.u32 %v2248, 7
      %v2250 = vsub.s32 3, %v2249
      %v2251 = vrot.slane %v2234, %v2250
      %v2252 = vlaneseq
      %v2253 = vshrl.u32 %v2252, 7
      %v2254 = vsub.s32 4, %v2253
      %v2255 = vrot.slane %v2234, %v2254
      %v2256 = vlaneseq
      %v2257 = vshrl.u32 %v2256, 7
      %v2258 = vsub.s32 5, %v2257
      %v2259 = vrot.slane %v2234, %v2258
      %v2260 = vlaneseq
      %v2261 = vshrl.u32 %v2260, 7
      %v2262 = vsub.s32 6, %v2261
      %v2263 = vrot.slane %v2234, %v2262
      %v2264 = vlaneseq
      %v2265 = vshrl.u32 %v2264, 7
      %v2266 = vsub.s32 7, %v2265
      %v2267 = vrot.slane %v2234, %v2266
      %v2276 = vmul.f32 %v315, %v2239
      %v2277 = vmul.f32 %v323, %v2243
      %v2278 = vmul.f32 %v316, %v2247
      %v2279 = vmul.f32 %v324, %v2251
      %v2280 = vmul.f32 %v317, %v2255
      %v2281 = vmul.f32 %v325, %v2259
      %v2282 = vmul.f32 %v318, %v2263
      %v2283 = vmul.f32 %v326, %v2267
      %v2284 = vpack.c.bf16 %v2276, %v2276
      %v2285 = vpack.c.bf16 %v2277, %v2277
      %v2286 = vpack.c.bf16 %v2278, %v2278
      %v2287 = vpack.c.bf16 %v2279, %v2279
      %v2288 = vpack.c.bf16 %v2280, %v2280
      %v2289 = vpack.c.bf16 %v2281, %v2281
      %v2290 = vpack.c.bf16 %v2282, %v2282
      %v2291 = vpack.c.bf16 %v2283, %v2283
      %v2300 = vrot.slane %v2284, 6
      %v2301 = vrot.slane %v2285, 6
      %v2302 = vrot.slane %v2286, 6
      %v2303 = vrot.slane %v2287, 6
      %v2304 = vrot.slane %v2288, 6
      %v2305 = vrot.slane %v2289, 6
      %v2306 = vrot.slane %v2290, 6
      %v2307 = vrot.slane %v2291, 6
      %2316 = vst [vmem:[#allocation2 + $0xc0] sm:$0xc] %v2300
      %2317 = vst [vmem:[#allocation2 + $0xc8] sm:$0xc] %v2301
      %2318 = vst [vmem:[#allocation2 + $0xd0] sm:$0xc] %v2302
      %2319 = vst [vmem:[#allocation2 + $0xd8] sm:$0xc] %v2303
      %2320 = vst [vmem:[#allocation2 + $0xe0] sm:$0xc] %v2304
      %2321 = vst [vmem:[#allocation2 + $0xe8] sm:$0xc] %v2305
      %2322 = vst [vmem:[#allocation2 + $0xf0] sm:$0xc] %v2306
      %2323 = vst [vmem:[#allocation2 + $0xf8] sm:$0xc] %v2307
      %s2324 = scalar_lea.vmem %s7, 70
      %v2325 = vld [vmem:[%s2324] ss:$8 sm:$0xf]
      %v2326 = vld [vmem:[%s2324] ss:$8 sm:$0xf0]
      %v2327 = vor.u32 %v2325, %v2326
      %v2329 = vlaneseq
      %v2330 = vshrl.u32 %v2329, 7
      %v2331 = vsub.s32 0, %v2330
      %v2332 = vrot.slane %v2327, %v2331
      %v2333 = vlaneseq
      %v2334 = vshrl.u32 %v2333, 7
      %v2335 = vsub.s32 1, %v2334
      %v2336 = vrot.slane %v2327, %v2335
      %v2337 = vlaneseq
      %v2338 = vshrl.u32 %v2337, 7
      %v2339 = vsub.s32 2, %v2338
      %v2340 = vrot.slane %v2327, %v2339
      %v2341 = vlaneseq
      %v2342 = vshrl.u32 %v2341, 7
      %v2343 = vsub.s32 3, %v2342
      %v2344 = vrot.slane %v2327, %v2343
      %v2345 = vlaneseq
      %v2346 = vshrl.u32 %v2345, 7
      %v2347 = vsub.s32 4, %v2346
      %v2348 = vrot.slane %v2327, %v2347
      %v2349 = vlaneseq
      %v2350 = vshrl.u32 %v2349, 7
      %v2351 = vsub.s32 5, %v2350
      %v2352 = vrot.slane %v2327, %v2351
      %v2353 = vlaneseq
      %v2354 = vshrl.u32 %v2353, 7
      %v2355 = vsub.s32 6, %v2354
      %v2356 = vrot.slane %v2327, %v2355
      %v2357 = vlaneseq
      %v2358 = vshrl.u32 %v2357, 7
      %v2359 = vsub.s32 7, %v2358
      %v2360 = vrot.slane %v2327, %v2359
      %2361 = vrot.lane.b32.xlu0 %v2332, 1
      %v2362 = vpop.permute.xlu0 %2361
      %2363 = vrot.lane.b32.xlu0 %v2336, 1
      %v2364 = vpop.permute.xlu0 %2363
      %2365 = vrot.lane.b32.xlu0 %v2340, 1
      %v2366 = vpop.permute.xlu0 %2365
      %2367 = vrot.lane.b32.xlu0 %v2344, 1
      %v2368 = vpop.permute.xlu0 %2367
      %2369 = vrot.lane.b32.xlu0 %v2348, 1
      %v2370 = vpop.permute.xlu0 %2369
      %2371 = vrot.lane.b32.xlu0 %v2352, 1
      %v2372 = vpop.permute.xlu0 %2371
      %2373 = vrot.lane.b32.xlu0 %v2356, 1
      %v2374 = vpop.permute.xlu0 %2373
      %2375 = vrot.lane.b32.xlu0 %v2360, 1
      %v2376 = vpop.permute.xlu0 %2375
      %vm2377 = vcmask 7168
      %v2378 = vsel %vm2377, %v2362, %v2364
      %v2379 = vsel %vm2377, %v2364, %v2366
      %v2380 = vsel %vm2377, %v2366, %v2368
      %v2381 = vsel %vm2377, %v2368, %v2370
      %v2382 = vsel %vm2377, %v2370, %v2372
      %v2383 = vsel %vm2377, %v2372, %v2374
      %v2384 = vsel %vm2377, %v2374, %v2376
      %v2394 = vmul.f32 %v315, %v2362
      %v2395 = vmul.f32 %v323, %v2378
      %v2396 = vmul.f32 %v316, %v2379
      %v2397 = vmul.f32 %v324, %v2380
      %v2398 = vmul.f32 %v317, %v2381
      %v2399 = vmul.f32 %v325, %v2382
      %v2400 = vmul.f32 %v318, %v2383
      %v2401 = vmul.f32 %v326, %v2384
      %v2402 = vmul.f32 %v2376, 0.0
      %v2403 = vpack.c.bf16 %v2394, %v2394
      %v2404 = vpack.c.bf16 %v2395, %v2395
      %v2405 = vpack.c.bf16 %v2396, %v2396
      %v2406 = vpack.c.bf16 %v2397, %v2397
      %v2407 = vpack.c.bf16 %v2398, %v2398
      %v2408 = vpack.c.bf16 %v2399, %v2399
      %v2409 = vpack.c.bf16 %v2400, %v2400
      %v2410 = vpack.c.bf16 %v2401, %v2401
      %v2411 = vpack.c.bf16 %v2402, %v2402
      %v2421 = vrot.slane %v2403, 4
      %v2422 = vrot.slane %v2404, 4
      %v2423 = vrot.slane %v2405, 4
      %v2424 = vrot.slane %v2406, 4
      %v2425 = vrot.slane %v2407, 4
      %v2426 = vrot.slane %v2408, 4
      %v2427 = vrot.slane %v2409, 4
      %v2428 = vrot.slane %v2410, 4
      %v2429 = vrot.slane %v2411, 4
      %2430 = vrot.lane.b32.xlu0 %v2421, 127
      %v2431 = vpop.permute.xlu0 %2430
      %2432 = vrot.lane.b32.xlu0 %v2422, 127
      %v2433 = vpop.permute.xlu0 %2432
      %2434 = vrot.lane.b32.xlu0 %v2423, 127
      %v2435 = vpop.permute.xlu0 %2434
      %2436 = vrot.lane.b32.xlu0 %v2424, 127
      %v2437 = vpop.permute.xlu0 %2436
      %2438 = vrot.lane.b32.xlu0 %v2425, 127
      %v2439 = vpop.permute.xlu0 %2438
      %2440 = vrot.lane.b32.xlu0 %v2426, 127
      %v2441 = vpop.permute.xlu0 %2440
      %2442 = vrot.lane.b32.xlu0 %v2427, 127
      %v2443 = vpop.permute.xlu0 %2442
      %2444 = vrot.lane.b32.xlu0 %v2428, 127
      %v2445 = vpop.permute.xlu0 %2444
      %2446 = vrot.lane.b32.xlu0 %v2429, 127
      %v2447 = vpop.permute.xlu0 %2446
      %vm2448 = vcmask 1039360
      %v2449 = vsel %vm2448, %v2431, %v2433
      %v2450 = vsel %vm2448, %v2433, %v2435
      %v2451 = vsel %vm2448, %v2435, %v2437
      %v2452 = vsel %vm2448, %v2437, %v2439
      %v2453 = vsel %vm2448, %v2439, %v2441
      %v2454 = vsel %vm2448, %v2441, %v2443
      %v2455 = vsel %vm2448, %v2443, %v2445
      %v2456 = vsel %vm2448, %v2445, %v2447
      %2465 = vst [vmem:[#allocation2 + $0xc0] sm:$0x30] %v2449
      %2466 = vst [vmem:[#allocation2 + $0xc8] sm:$0x30] %v2450
      %2467 = vst [vmem:[#allocation2 + $0xd0] sm:$0x30] %v2451
      %2468 = vst [vmem:[#allocation2 + $0xd8] sm:$0x30] %v2452
      %2469 = vst [vmem:[#allocation2 + $0xe0] sm:$0x30] %v2453
      %2470 = vst [vmem:[#allocation2 + $0xe8] sm:$0x30] %v2454
      %2471 = vst [vmem:[#allocation2 + $0xf0] sm:$0x30] %v2455
      %2472 = vst [vmem:[#allocation2 + $0xf8] sm:$0x30] %v2456
      %s2473 = scalar_lea.vmem %s7, 71
      %v2474 = vld [vmem:[%s2473] ss:$8 sm:$0xf]
      %v2475 = vld [vmem:[%s2473] ss:$8 sm:$0xf0]
      %v2476 = vor.u32 %v2474, %v2475
      %v2478 = vlaneseq
      %v2479 = vshrl.u32 %v2478, 7
      %v2480 = vsub.s32 0, %v2479
      %v2481 = vrot.slane %v2476, %v2480
      %v2482 = vlaneseq
      %v2483 = vshrl.u32 %v2482, 7
      %v2484 = vsub.s32 1, %v2483
      %v2485 = vrot.slane %v2476, %v2484
      %v2486 = vlaneseq
      %v2487 = vshrl.u32 %v2486, 7
      %v2488 = vsub.s32 2, %v2487
      %v2489 = vrot.slane %v2476, %v2488
      %v2490 = vlaneseq
      %v2491 = vshrl.u32 %v2490, 7
      %v2492 = vsub.s32 3, %v2491
      %v2493 = vrot.slane %v2476, %v2492
      %v2494 = vlaneseq
      %v2495 = vshrl.u32 %v2494, 7
      %v2496 = vsub.s32 4, %v2495
      %v2497 = vrot.slane %v2476, %v2496
      %v2498 = vlaneseq
      %v2499 = vshrl.u32 %v2498, 7
      %v2500 = vsub.s32 5, %v2499
      %v2501 = vrot.slane %v2476, %v2500
      %v2502 = vlaneseq
      %v2503 = vshrl.u32 %v2502, 7
      %v2504 = vsub.s32 6, %v2503
      %v2505 = vrot.slane %v2476, %v2504
      %v2506 = vlaneseq
      %v2507 = vshrl.u32 %v2506, 7
      %v2508 = vsub.s32 7, %v2507
      %v2509 = vrot.slane %v2476, %v2508
      %2510 = vrot.lane.b32.xlu0 %v2481, 7
      %v2511 = vpop.permute.xlu0 %2510
      %2512 = vrot.lane.b32.xlu0 %v2485, 7
      %v2513 = vpop.permute.xlu0 %2512
      %2514 = vrot.lane.b32.xlu0 %v2489, 7
      %v2515 = vpop.permute.xlu0 %2514
      %2516 = vrot.lane.b32.xlu0 %v2493, 7
      %v2517 = vpop.permute.xlu0 %2516
      %2518 = vrot.lane.b32.xlu0 %v2497, 7
      %v2519 = vpop.permute.xlu0 %2518
      %2520 = vrot.lane.b32.xlu0 %v2501, 7
      %v2521 = vpop.permute.xlu0 %2520
      %2522 = vrot.lane.b32.xlu0 %v2505, 7
      %v2523 = vpop.permute.xlu0 %2522
      %2524 = vrot.lane.b32.xlu0 %v2509, 7
      %v2525 = vpop.permute.xlu0 %2524
      %vm2526 = vcmask 56320
      %v2527 = vsel %vm2526, %v2511, %v2513
      %v2528 = vsel %vm2526, %v2513, %v2515
      %v2529 = vsel %vm2526, %v2515, %v2517
      %v2530 = vsel %vm2526, %v2517, %v2519
      %v2531 = vsel %vm2526, %v2519, %v2521
      %v2532 = vsel %vm2526, %v2521, %v2523
      %v2533 = vsel %vm2526, %v2523, %v2525
      %v2543 = vmul.f32 %v315, %v2511
      %v2544 = vmul.f32 %v323, %v2527
      %v2545 = vmul.f32 %v316, %v2528
      %v2546 = vmul.f32 %v324, %v2529
      %v2547 = vmul.f32 %v317, %v2530
      %v2548 = vmul.f32 %v325, %v2531
      %v2549 = vmul.f32 %v318, %v2532
      %v2550 = vmul.f32 %v326, %v2533
      %v2551 = vmul.f32 %v2525, 0.0
      %v2552 = vpack.c.bf16 %v2543, %v2543
      %v2553 = vpack.c.bf16 %v2544, %v2544
      %v2554 = vpack.c.bf16 %v2545, %v2545
      %v2555 = vpack.c.bf16 %v2546, %v2546
      %v2556 = vpack.c.bf16 %v2547, %v2547
      %v2557 = vpack.c.bf16 %v2548, %v2548
      %v2558 = vpack.c.bf16 %v2549, %v2549
      %v2559 = vpack.c.bf16 %v2550, %v2550
      %v2560 = vpack.c.bf16 %v2551, %v2551
      %v2570 = vrot.slane %v2552, 2
      %v2571 = vrot.slane %v2553, 2
      %v2572 = vrot.slane %v2554, 2
      %v2573 = vrot.slane %v2555, 2
      %v2574 = vrot.slane %v2556, 2
      %v2575 = vrot.slane %v2557, 2
      %v2576 = vrot.slane %v2558, 2
      %v2577 = vrot.slane %v2559, 2
      %v2578 = vrot.slane %v2560, 2
      %2579 = vrot.lane.b32.xlu0 %v2570, 121
      %v2580 = vpop.permute.xlu0 %2579
      %2581 = vrot.lane.b32.xlu0 %v2571, 121
      %v2582 = vpop.permute.xlu0 %2581
      %2583 = vrot.lane.b32.xlu0 %v2572, 121
      %v2584 = vpop.permute.xlu0 %2583
      %2585 = vrot.lane.b32.xlu0 %v2573, 121
      %v2586 = vpop.permute.xlu0 %2585
      %2587 = vrot.lane.b32.xlu0 %v2574, 121
      %v2588 = vpop.permute.xlu0 %2587
      %2589 = vrot.lane.b32.xlu0 %v2575, 121
      %v2590 = vpop.permute.xlu0 %2589
      %2591 = vrot.lane.b32.xlu0 %v2576, 121
      %v2592 = vpop.permute.xlu0 %2591
      %2593 = vrot.lane.b32.xlu0 %v2577, 121
      %v2594 = vpop.permute.xlu0 %2593
      %2595 = vrot.lane.b32.xlu0 %v2578, 121
      %v2596 = vpop.permute.xlu0 %2595
      %vm2597 = vcmask 990208
      %v2598 = vsel %vm2597, %v2580, %v2582
      %v2599 = vsel %vm2597, %v2582, %v2584
      %v2600 = vsel %vm2597, %v2584, %v2586
      %v2601 = vsel %vm2597, %v2586, %v2588
      %v2602 = vsel %vm2597, %v2588, %v2590
      %v2603 = vsel %vm2597, %v2590, %v2592
      %v2604 = vsel %vm2597, %v2592, %v2594
      %v2605 = vsel %vm2597, %v2594, %v2596
      %2614 = vst [vmem:[#allocation2 + $0xc0] sm:$0xc0] %v2598
      %2615 = vst [vmem:[#allocation2 + $0xc8] sm:$0xc0] %v2599
      %2616 = vst [vmem:[#allocation2 + $0xd0] sm:$0xc0] %v2600
      %2617 = vst [vmem:[#allocation2 + $0xd8] sm:$0xc0] %v2601
      %2618 = vst [vmem:[#allocation2 + $0xe0] sm:$0xc0] %v2602
      %2619 = vst [vmem:[#allocation2 + $0xe8] sm:$0xc0] %v2603
      %2620 = vst [vmem:[#allocation2 + $0xf0] sm:$0xc0] %v2604
      %2621 = vst [vmem:[#allocation2 + $0xf8] sm:$0xc0] %v2605
      %s2622 = scalar_lea.vmem %s7, 128
      %v2623 = vld [vmem:[%s2622] ss:$8 sm:$0xf]
      %v2624 = vld [vmem:[%s2622] ss:$8 sm:$0xf0]
      %v2625 = vor.u32 %v2623, %v2624
      %v2627 = vlaneseq
      %v2628 = vshrl.u32 %v2627, 7
      %v2629 = vsub.s32 0, %v2628
      %v2630 = vrot.slane %v2625, %v2629
      %v2631 = vlaneseq
      %v2632 = vshrl.u32 %v2631, 7
      %v2633 = vsub.s32 1, %v2632
      %v2634 = vrot.slane %v2625, %v2633
      %v2635 = vlaneseq
      %v2636 = vshrl.u32 %v2635, 7
      %v2637 = vsub.s32 2, %v2636
      %v2638 = vrot.slane %v2625, %v2637
      %v2639 = vlaneseq
      %v2640 = vshrl.u32 %v2639, 7
      %v2641 = vsub.s32 3, %v2640
      %v2642 = vrot.slane %v2625, %v2641
      %v2643 = vlaneseq
      %v2644 = vshrl.u32 %v2643, 7
      %v2645 = vsub.s32 4, %v2644
      %v2646 = vrot.slane %v2625, %v2645
      %v2647 = vlaneseq
      %v2648 = vshrl.u32 %v2647, 7
      %v2649 = vsub.s32 5, %v2648
      %v2650 = vrot.slane %v2625, %v2649
      %v2651 = vlaneseq
      %v2652 = vshrl.u32 %v2651, 7
      %v2653 = vsub.s32 6, %v2652
      %v2654 = vrot.slane %v2625, %v2653
      %v2655 = vlaneseq
      %v2656 = vshrl.u32 %v2655, 7
      %v2657 = vsub.s32 7, %v2656
      %v2658 = vrot.slane %v2625, %v2657
      %2659 = vrot.lane.b32.xlu0 %v2630, 8
      %v2660 = vpop.permute.xlu0 %2659
      %2661 = vrot.lane.b32.xlu0 %v2634, 8
      %v2662 = vpop.permute.xlu0 %2661
      %2663 = vrot.lane.b32.xlu0 %v2638, 8
      %v2664 = vpop.permute.xlu0 %2663
      %2665 = vrot.lane.b32.xlu0 %v2642, 8
      %v2666 = vpop.permute.xlu0 %2665
      %2667 = vrot.lane.b32.xlu0 %v2646, 8
      %v2668 = vpop.permute.xlu0 %2667
      %2669 = vrot.lane.b32.xlu0 %v2650, 8
      %v2670 = vpop.permute.xlu0 %2669
      %2671 = vrot.lane.b32.xlu0 %v2654, 8
      %v2672 = vpop.permute.xlu0 %2671
      %2673 = vrot.lane.b32.xlu0 %v2658, 8
      %v2674 = vpop.permute.xlu0 %2673
      %vm2675 = vcmask 64512
      %v2676 = vsel %vm2675, %v2660, %v2662
      %v2677 = vsel %vm2675, %v2662, %v2664
      %v2678 = vsel %vm2675, %v2664, %v2666
      %v2679 = vsel %vm2675, %v2666, %v2668
      %v2680 = vsel %vm2675, %v2668, %v2670
      %v2681 = vsel %vm2675, %v2670, %v2672
      %v2682 = vsel %vm2675, %v2672, %v2674
      %v2692 = vmul.f32 %v315, %v2660
      %v2693 = vmul.f32 %v323, %v2676
      %v2694 = vmul.f32 %v316, %v2677
      %v2695 = vmul.f32 %v324, %v2678
      %v2696 = vmul.f32 %v317, %v2679
      %v2697 = vmul.f32 %v325, %v2680
      %v2698 = vmul.f32 %v318, %v2681
      %v2699 = vmul.f32 %v326, %v2682
      %v2700 = vmul.f32 %v2674, 0.0
      %v2701 = vpack.c.bf16 %v2692, %v2692
      %v2702 = vpack.c.bf16 %v2693, %v2693
      %v2703 = vpack.c.bf16 %v2694, %v2694
      %v2704 = vpack.c.bf16 %v2695, %v2695
      %v2705 = vpack.c.bf16 %v2696, %v2696
      %v2706 = vpack.c.bf16 %v2697, %v2697
      %v2707 = vpack.c.bf16 %v2698, %v2698
      %v2708 = vpack.c.bf16 %v2699, %v2699
      %v2709 = vpack.c.bf16 %v2700, %v2700
      %2719 = vrot.lane.b32.xlu0 %v2701, 120
      %v2720 = vpop.permute.xlu0 %2719
      %2721 = vrot.lane.b32.xlu0 %v2702, 120
      %v2722 = vpop.permute.xlu0 %2721
      %2723 = vrot.lane.b32.xlu0 %v2703, 120
      %v2724 = vpop.permute.xlu0 %2723
      %2725 = vrot.lane.b32.xlu0 %v2704, 120
      %v2726 = vpop.permute.xlu0 %2725
      %2727 = vrot.lane.b32.xlu0 %v2705, 120
      %v2728 = vpop.permute.xlu0 %2727
      %2729 = vrot.lane.b32.xlu0 %v2706, 120
      %v2730 = vpop.permute.xlu0 %2729
      %2731 = vrot.lane.b32.xlu0 %v2707, 120
      %v2732 = vpop.permute.xlu0 %2731
      %2733 = vrot.lane.b32.xlu0 %v2708, 120
      %v2734 = vpop.permute.xlu0 %2733
      %2735 = vrot.lane.b32.xlu0 %v2709, 120
      %v2736 = vpop.permute.xlu0 %2735
      %vm2737 = vcmask 982016
      %v2738 = vsel %vm2737, %v2720, %v2722
      %v2739 = vsel %vm2737, %v2722, %v2724
      %v2740 = vsel %vm2737, %v2724, %v2726
      %v2741 = vsel %vm2737, %v2726, %v2728
      %v2742 = vsel %vm2737, %v2728, %v2730
      %v2743 = vsel %vm2737, %v2730, %v2732
      %v2744 = vsel %vm2737, %v2732, %v2734
      %v2745 = vsel %vm2737, %v2734, %v2736
      %2754 = vst [vmem:[#allocation2 + $0x100] sm:$0x3] %v2738
      %2755 = vst [vmem:[#allocation2 + $0x108] sm:$0x3] %v2739
      %2756 = vst [vmem:[#allocation2 + $0x110] sm:$0x3] %v2740
      %2757 = vst [vmem:[#allocation2 + $0x118] sm:$0x3] %v2741
      %2758 = vst [vmem:[#allocation2 + $0x120] sm:$0x3] %v2742
      %2759 = vst [vmem:[#allocation2 + $0x128] sm:$0x3] %v2743
      %2760 = vst [vmem:[#allocation2 + $0x130] sm:$0x3] %v2744
      %2761 = vst [vmem:[#allocation2 + $0x138] sm:$0x3] %v2745
      %s2762 = scalar_lea.vmem %s7, 129
      %v2763 = vld [vmem:[%s2762] ss:$8 sm:$0xf]
      %v2764 = vld [vmem:[%s2762] ss:$8 sm:$0xf0]
      %v2765 = vor.u32 %v2763, %v2764
      %v2767 = vlaneseq
      %v2768 = vshrl.u32 %v2767, 7
      %v2769 = vsub.s32 0, %v2768
      %v2770 = vrot.slane %v2765, %v2769
      %v2771 = vlaneseq
      %v2772 = vshrl.u32 %v2771, 7
      %v2773 = vsub.s32 1, %v2772
      %v2774 = vrot.slane %v2765, %v2773
      %v2775 = vlaneseq
      %v2776 = vshrl.u32 %v2775, 7
      %v2777 = vsub.s32 2, %v2776
      %v2778 = vrot.slane %v2765, %v2777
      %v2779 = vlaneseq
      %v2780 = vshrl.u32 %v2779, 7
      %v2781 = vsub.s32 3, %v2780
      %v2782 = vrot.slane %v2765, %v2781
      %v2783 = vlaneseq
      %v2784 = vshrl.u32 %v2783, 7
      %v2785 = vsub.s32 4, %v2784
      %v2786 = vrot.slane %v2765, %v2785
      %v2787 = vlaneseq
      %v2788 = vshrl.u32 %v2787, 7
      %v2789 = vsub.s32 5, %v2788
      %v2790 = vrot.slane %v2765, %v2789
      %v2791 = vlaneseq
      %v2792 = vshrl.u32 %v2791, 7
      %v2793 = vsub.s32 6, %v2792
      %v2794 = vrot.slane %v2765, %v2793
      %v2795 = vlaneseq
      %v2796 = vshrl.u32 %v2795, 7
      %v2797 = vsub.s32 7, %v2796
      %v2798 = vrot.slane %v2765, %v2797
      %2799 = vrot.lane.b32.xlu0 %v2770, 9
      %v2800 = vpop.permute.xlu0 %2799
      %2801 = vrot.lane.b32.xlu0 %v2774, 9
      %v2802 = vpop.permute.xlu0 %2801
      %2803 = vrot.lane.b32.xlu0 %v2778, 9
      %v2804 = vpop.permute.xlu0 %2803
      %2805 = vrot.lane.b32.xlu0 %v2782, 9
      %v2806 = vpop.permute.xlu0 %2805
      %2807 = vrot.lane.b32.xlu0 %v2786, 9
      %v2808 = vpop.permute.xlu0 %2807
      %2809 = vrot.lane.b32.xlu0 %v2790, 9
      %v2810 = vpop.permute.xlu0 %2809
      %2811 = vrot.lane.b32.xlu0 %v2794, 9
      %v2812 = vpop.permute.xlu0 %2811
      %2813 = vrot.lane.b32.xlu0 %v2798, 9
      %v2814 = vpop.permute.xlu0 %2813
      %vm2815 = vcmask 72704
      %v2816 = vsel %vm2815, %v2800, %v2802
      %v2817 = vsel %vm2815, %v2802, %v2804
      %v2818 = vsel %vm2815, %v2804, %v2806
      %v2819 = vsel %vm2815, %v2806, %v2808
      %v2820 = vsel %vm2815, %v2808, %v2810
      %v2821 = vsel %vm2815, %v2810, %v2812
      %v2822 = vsel %vm2815, %v2812, %v2814
      %v2832 = vmul.f32 %v315, %v2800
      %v2833 = vmul.f32 %v323, %v2816
      %v2834 = vmul.f32 %v316, %v2817
      %v2835 = vmul.f32 %v324, %v2818
      %v2836 = vmul.f32 %v317, %v2819
      %v2837 = vmul.f32 %v325, %v2820
      %v2838 = vmul.f32 %v318, %v2821
      %v2839 = vmul.f32 %v326, %v2822
      %v2840 = vmul.f32 %v2814, 0.0
      %v2841 = vpack.c.bf16 %v2832, %v2832
      %v2842 = vpack.c.bf16 %v2833, %v2833
      %v2843 = vpack.c.bf16 %v2834, %v2834
      %v2844 = vpack.c.bf16 %v2835, %v2835
      %v2845 = vpack.c.bf16 %v2836, %v2836
      %v2846 = vpack.c.bf16 %v2837, %v2837
      %v2847 = vpack.c.bf16 %v2838, %v2838
      %v2848 = vpack.c.bf16 %v2839, %v2839
      %v2849 = vpack.c.bf16 %v2840, %v2840
      %v2859 = vrot.slane %v2841, 6
      %v2860 = vrot.slane %v2842, 6
      %v2861 = vrot.slane %v2843, 6
      %v2862 = vrot.slane %v2844, 6
      %v2863 = vrot.slane %v2845, 6
      %v2864 = vrot.slane %v2846, 6
      %v2865 = vrot.slane %v2847, 6
      %v2866 = vrot.slane %v2848, 6
      %v2867 = vrot.slane %v2849, 6
      %2868 = vrot.lane.b32.xlu0 %v2859, 119
      %v2869 = vpop.permute.xlu0 %2868
      %2870 = vrot.lane.b32.xlu0 %v2860, 119
      %v2871 = vpop.permute.xlu0 %2870
      %2872 = vrot.lane.b32.xlu0 %v2861, 119
      %v2873 = vpop.permute.xlu0 %2872
      %2874 = vrot.lane.b32.xlu0 %v2862, 119
      %v2875 = vpop.permute.xlu0 %2874
      %2876 = vrot.lane.b32.xlu0 %v2863, 119
      %v2877 = vpop.permute.xlu0 %2876
      %2878 = vrot.lane.b32.xlu0 %v2864, 119
      %v2879 = vpop.permute.xlu0 %2878
      %2880 = vrot.lane.b32.xlu0 %v2865, 119
      %v2881 = vpop.permute.xlu0 %2880
      %2882 = vrot.lane.b32.xlu0 %v2866, 119
      %v2883 = vpop.permute.xlu0 %2882
      %2884 = vrot.lane.b32.xlu0 %v2867, 119
      %v2885 = vpop.permute.xlu0 %2884
      %vm2886 = vcmask 973824
      %v2887 = vsel %vm2886, %v2869, %v2871
      %v2888 = vsel %vm2886, %v2871, %v2873
      %v2889 = vsel %vm2886, %v2873, %v2875
      %v2890 = vsel %vm2886, %v2875, %v2877
      %v2891 = vsel %vm2886, %v2877, %v2879
      %v2892 = vsel %vm2886, %v2879, %v2881
      %v2893 = vsel %vm2886, %v2881, %v2883
      %v2894 = vsel %vm2886, %v2883, %v2885
      %2903 = vst [vmem:[#allocation2 + $0x100] sm:$0xc] %v2887
      %2904 = vst [vmem:[#allocation2 + $0x108] sm:$0xc] %v2888
      %2905 = vst [vmem:[#allocation2 + $0x110] sm:$0xc] %v2889
      %2906 = vst [vmem:[#allocation2 + $0x118] sm:$0xc] %v2890
      %2907 = vst [vmem:[#allocation2 + $0x120] sm:$0xc] %v2891
      %2908 = vst [vmem:[#allocation2 + $0x128] sm:$0xc] %v2892
      %2909 = vst [vmem:[#allocation2 + $0x130] sm:$0xc] %v2893
      %2910 = vst [vmem:[#allocation2 + $0x138] sm:$0xc] %v2894
      %s2911 = scalar_lea.vmem %s7, 130
      %v2912 = vld [vmem:[%s2911] ss:$8 sm:$0xf]
      %v2913 = vld [vmem:[%s2911] ss:$8 sm:$0xf0]
      %v2914 = vor.u32 %v2912, %v2913
      %v2916 = vlaneseq
      %v2917 = vshrl.u32 %v2916, 7
      %v2918 = vsub.s32 0, %v2917
      %v2919 = vrot.slane %v2914, %v2918
      %v2920 = vlaneseq
      %v2921 = vshrl.u32 %v2920, 7
      %v2922 = vsub.s32 1, %v2921
      %v2923 = vrot.slane %v2914, %v2922
      %v2924 = vlaneseq
      %v2925 = vshrl.u32 %v2924, 7
      %v2926 = vsub.s32 2, %v2925
      %v2927 = vrot.slane %v2914, %v2926
      %v2928 = vlaneseq
      %v2929 = vshrl.u32 %v2928, 7
      %v2930 = vsub.s32 3, %v2929
      %v2931 = vrot.slane %v2914, %v2930
      %v2932 = vlaneseq
      %v2933 = vshrl.u32 %v2932, 7
      %v2934 = vsub.s32 4, %v2933
      %v2935 = vrot.slane %v2914, %v2934
      %v2936 = vlaneseq
      %v2937 = vshrl.u32 %v2936, 7
      %v2938 = vsub.s32 5, %v2937
      %v2939 = vrot.slane %v2914, %v2938
      %v2940 = vlaneseq
      %v2941 = vshrl.u32 %v2940, 7
      %v2942 = vsub.s32 6, %v2941
      %v2943 = vrot.slane %v2914, %v2942
      %v2944 = vlaneseq
      %v2945 = vshrl.u32 %v2944, 7
      %v2946 = vsub.s32 7, %v2945
      %v2947 = vrot.slane %v2914, %v2946
      %2948 = vrot.lane.b32.xlu0 %v2919, 55
      %v2949 = vpop.permute.xlu0 %2948
      %2950 = vrot.lane.b32.xlu0 %v2923, 55
      %v2951 = vpop.permute.xlu0 %2950
      %2952 = vrot.lane.b32.xlu0 %v2927, 55
      %v2953 = vpop.permute.xlu0 %2952
      %2954 = vrot.lane.b32.xlu0 %v2931, 55
      %v2955 = vpop.permute.xlu0 %2954
      %2956 = vrot.lane.b32.xlu0 %v2935, 55
      %v2957 = vpop.permute.xlu0 %2956
      %2958 = vrot.lane.b32.xlu0 %v2939, 55
      %v2959 = vpop.permute.xlu0 %2958
      %2960 = vrot.lane.b32.xlu0 %v2943, 55
      %v2961 = vpop.permute.xlu0 %2960
      %2962 = vrot.lane.b32.xlu0 %v2947, 55
      %v2963 = vpop.permute.xlu0 %2962
      %v2964 = vsel %vm383, %v2949, %v2951
      %v2965 = vsel %vm383, %v2951, %v2953
      %v2966 = vsel %vm383, %v2953, %v2955
      %v2967 = vsel %vm383, %v2955, %v2957
      %v2968 = vsel %vm383, %v2957, %v2959
      %v2969 = vsel %vm383, %v2959, %v2961
      %v2970 = vsel %vm383, %v2961, %v2963
      %v2980 = vmul.f32 %v315, %v2949
      %v2981 = vmul.f32 %v323, %v2964
      %v2982 = vmul.f32 %v316, %v2965
      %v2983 = vmul.f32 %v324, %v2966
      %v2984 = vmul.f32 %v317, %v2967
      %v2985 = vmul.f32 %v325, %v2968
      %v2986 = vmul.f32 %v318, %v2969
      %v2987 = vmul.f32 %v326, %v2970
      %v2988 = vmul.f32 %v2963, 0.0
      %v2989 = vpack.c.bf16 %v2980, %v2980
      %v2990 = vpack.c.bf16 %v2981, %v2981
      %v2991 = vpack.c.bf16 %v2982, %v2982
      %v2992 = vpack.c.bf16 %v2983, %v2983
      %v2993 = vpack.c.bf16 %v2984, %v2984
      %v2994 = vpack.c.bf16 %v2985, %v2985
      %v2995 = vpack.c.bf16 %v2986, %v2986
      %v2996 = vpack.c.bf16 %v2987, %v2987
      %v2997 = vpack.c.bf16 %v2988, %v2988
      %v3007 = vrot.slane %v2989, 4
      %v3008 = vrot.slane %v2990, 4
      %v3009 = vrot.slane %v2991, 4
      %v3010 = vrot.slane %v2992, 4
      %v3011 = vrot.slane %v2993, 4
      %v3012 = vrot.slane %v2994, 4
      %v3013 = vrot.slane %v2995, 4
      %v3014 = vrot.slane %v2996, 4
      %v3015 = vrot.slane %v2997, 4
      %3016 = vrot.lane.b32.xlu0 %v3007, 73
      %v3017 = vpop.permute.xlu0 %3016
      %3018 = vrot.lane.b32.xlu0 %v3008, 73
      %v3019 = vpop.permute.xlu0 %3018
      %3020 = vrot.lane.b32.xlu0 %v3009, 73
      %v3021 = vpop.permute.xlu0 %3020
      %3022 = vrot.lane.b32.xlu0 %v3010, 73
      %v3023 = vpop.permute.xlu0 %3022
      %3024 = vrot.lane.b32.xlu0 %v3011, 73
      %v3025 = vpop.permute.xlu0 %3024
      %3026 = vrot.lane.b32.xlu0 %v3012, 73
      %v3027 = vpop.permute.xlu0 %3026
      %3028 = vrot.lane.b32.xlu0 %v3013, 73
      %v3029 = vpop.permute.xlu0 %3028
      %3030 = vrot.lane.b32.xlu0 %v3014, 73
      %v3031 = vpop.permute.xlu0 %3030
      %3032 = vrot.lane.b32.xlu0 %v3015, 73
      %v3033 = vpop.permute.xlu0 %3032
      %v3034 = vsel %vm445, %v3017, %v3019
      %v3035 = vsel %vm445, %v3019, %v3021
      %v3036 = vsel %vm445, %v3021, %v3023
      %v3037 = vsel %vm445, %v3023, %v3025
      %v3038 = vsel %vm445, %v3025, %v3027
      %v3039 = vsel %vm445, %v3027, %v3029
      %v3040 = vsel %vm445, %v3029, %v3031
      %v3041 = vsel %vm445, %v3031, %v3033
      %3050 = vst [vmem:[#allocation2 + $0x100] sm:$0x30] %v3034
      %3051 = vst [vmem:[#allocation2 + $0x108] sm:$0x30] %v3035
      %3052 = vst [vmem:[#allocation2 + $0x110] sm:$0x30] %v3036
      %3053 = vst [vmem:[#allocation2 + $0x118] sm:$0x30] %v3037
      %3054 = vst [vmem:[#allocation2 + $0x120] sm:$0x30] %v3038
      %3055 = vst [vmem:[#allocation2 + $0x128] sm:$0x30] %v3039
      %3056 = vst [vmem:[#allocation2 + $0x130] sm:$0x30] %v3040
      %3057 = vst [vmem:[#allocation2 + $0x138] sm:$0x30] %v3041
      %s3058 = scalar_lea.vmem %s7, 131
      %v3059 = vld [vmem:[%s3058] ss:$8 sm:$0xf]
      %v3060 = vld [vmem:[%s3058] ss:$8 sm:$0xf0]
      %v3061 = vor.u32 %v3059, %v3060
      %v3063 = vlaneseq
      %v3064 = vshrl.u32 %v3063, 7
      %v3065 = vsub.s32 0, %v3064
      %v3066 = vrot.slane %v3061, %v3065
      %v3067 = vlaneseq
      %v3068 = vshrl.u32 %v3067, 7
      %v3069 = vsub.s32 1, %v3068
      %v3070 = vrot.slane %v3061, %v3069
      %v3071 = vlaneseq
      %v3072 = vshrl.u32 %v3071, 7
      %v3073 = vsub.s32 2, %v3072
      %v3074 = vrot.slane %v3061, %v3073
      %v3075 = vlaneseq
      %v3076 = vshrl.u32 %v3075, 7
      %v3077 = vsub.s32 3, %v3076
      %v3078 = vrot.slane %v3061, %v3077
      %v3079 = vlaneseq
      %v3080 = vshrl.u32 %v3079, 7
      %v3081 = vsub.s32 4, %v3080
      %v3082 = vrot.slane %v3061, %v3081
      %v3083 = vlaneseq
      %v3084 = vshrl.u32 %v3083, 7
      %v3085 = vsub.s32 5, %v3084
      %v3086 = vrot.slane %v3061, %v3085
      %v3087 = vlaneseq
      %v3088 = vshrl.u32 %v3087, 7
      %v3089 = vsub.s32 6, %v3088
      %v3090 = vrot.slane %v3061, %v3089
      %v3091 = vlaneseq
      %v3092 = vshrl.u32 %v3091, 7
      %v3093 = vsub.s32 7, %v3092
      %v3094 = vrot.slane %v3061, %v3093
      %3095 = vrot.lane.b32.xlu0 %v3066, 56
      %v3096 = vpop.permute.xlu0 %3095
      %3097 = vrot.lane.b32.xlu0 %v3070, 56
      %v3098 = vpop.permute.xlu0 %3097
      %3099 = vrot.lane.b32.xlu0 %v3074, 56
      %v3100 = vpop.permute.xlu0 %3099
      %3101 = vrot.lane.b32.xlu0 %v3078, 56
      %v3102 = vpop.permute.xlu0 %3101
      %3103 = vrot.lane.b32.xlu0 %v3082, 56
      %v3104 = vpop.permute.xlu0 %3103
      %3105 = vrot.lane.b32.xlu0 %v3086, 56
      %v3106 = vpop.permute.xlu0 %3105
      %3107 = vrot.lane.b32.xlu0 %v3090, 56
      %v3108 = vpop.permute.xlu0 %3107
      %3109 = vrot.lane.b32.xlu0 %v3094, 56
      %v3110 = vpop.permute.xlu0 %3109
      %v3111 = vsel %vm523, %v3096, %v3098
      %v3112 = vsel %vm523, %v3098, %v3100
      %v3113 = vsel %vm523, %v3100, %v3102
      %v3114 = vsel %vm523, %v3102, %v3104
      %v3115 = vsel %vm523, %v3104, %v3106
      %v3116 = vsel %vm523, %v3106, %v3108
      %v3117 = vsel %vm523, %v3108, %v3110
      %v3127 = vmul.f32 %v315, %v3096
      %v3128 = vmul.f32 %v323, %v3111
      %v3129 = vmul.f32 %v316, %v3112
      %v3130 = vmul.f32 %v324, %v3113
      %v3131 = vmul.f32 %v317, %v3114
      %v3132 = vmul.f32 %v325, %v3115
      %v3133 = vmul.f32 %v318, %v3116
      %v3134 = vmul.f32 %v326, %v3117
      %v3135 = vmul.f32 %v3110, 0.0
      %v3136 = vpack.c.bf16 %v3127, %v3127
      %v3137 = vpack.c.bf16 %v3128, %v3128
      %v3138 = vpack.c.bf16 %v3129, %v3129
      %v3139 = vpack.c.bf16 %v3130, %v3130
      %v3140 = vpack.c.bf16 %v3131, %v3131
      %v3141 = vpack.c.bf16 %v3132, %v3132
      %v3142 = vpack.c.bf16 %v3133, %v3133
      %v3143 = vpack.c.bf16 %v3134, %v3134
      %v3144 = vpack.c.bf16 %v3135, %v3135
      %v3154 = vrot.slane %v3136, 2
      %v3155 = vrot.slane %v3137, 2
      %v3156 = vrot.slane %v3138, 2
      %v3157 = vrot.slane %v3139, 2
      %v3158 = vrot.slane %v3140, 2
      %v3159 = vrot.slane %v3141, 2
      %v3160 = vrot.slane %v3142, 2
      %v3161 = vrot.slane %v3143, 2
      %v3162 = vrot.slane %v3144, 2
      %3163 = vrot.lane.b32.xlu0 %v3154, 72
      %v3164 = vpop.permute.xlu0 %3163
      %3165 = vrot.lane.b32.xlu0 %v3155, 72
      %v3166 = vpop.permute.xlu0 %3165
      %3167 = vrot.lane.b32.xlu0 %v3156, 72
      %v3168 = vpop.permute.xlu0 %3167
      %3169 = vrot.lane.b32.xlu0 %v3157, 72
      %v3170 = vpop.permute.xlu0 %3169
      %3171 = vrot.lane.b32.xlu0 %v3158, 72
      %v3172 = vpop.permute.xlu0 %3171
      %3173 = vrot.lane.b32.xlu0 %v3159, 72
      %v3174 = vpop.permute.xlu0 %3173
      %3175 = vrot.lane.b32.xlu0 %v3160, 72
      %v3176 = vpop.permute.xlu0 %3175
      %3177 = vrot.lane.b32.xlu0 %v3161, 72
      %v3178 = vpop.permute.xlu0 %3177
      %3179 = vrot.lane.b32.xlu0 %v3162, 72
      %v3180 = vpop.permute.xlu0 %3179
      %v3181 = vsel %vm594, %v3164, %v3166
      %v3182 = vsel %vm594, %v3166, %v3168
      %v3183 = vsel %vm594, %v3168, %v3170
      %v3184 = vsel %vm594, %v3170, %v3172
      %v3185 = vsel %vm594, %v3172, %v3174
      %v3186 = vsel %vm594, %v3174, %v3176
      %v3187 = vsel %vm594, %v3176, %v3178
      %v3188 = vsel %vm594, %v3178, %v3180
      %3197 = vst [vmem:[#allocation2 + $0x100] sm:$0xc0] %v3181
      %3198 = vst [vmem:[#allocation2 + $0x108] sm:$0xc0] %v3182
      %3199 = vst [vmem:[#allocation2 + $0x110] sm:$0xc0] %v3183
      %3200 = vst [vmem:[#allocation2 + $0x118] sm:$0xc0] %v3184
      %3201 = vst [vmem:[#allocation2 + $0x120] sm:$0xc0] %v3185
      %3202 = vst [vmem:[#allocation2 + $0x128] sm:$0xc0] %v3186
      %3203 = vst [vmem:[#allocation2 + $0x130] sm:$0xc0] %v3187
      %3204 = vst [vmem:[#allocation2 + $0x138] sm:$0xc0] %v3188
      %s3205 = scalar_lea.vmem %s7, 132
      %v3206 = vld [vmem:[%s3205] ss:$8 sm:$0xf]
      %v3207 = vld [vmem:[%s3205] ss:$8 sm:$0xf0]
      %v3208 = vor.u32 %v3206, %v3207
      %v3210 = vlaneseq
      %v3211 = vshrl.u32 %v3210, 7
      %v3212 = vsub.s32 0, %v3211
      %v3213 = vrot.slane %v3208, %v3212
      %v3214 = vlaneseq
      %v3215 = vshrl.u32 %v3214, 7
      %v3216 = vsub.s32 1, %v3215
      %v3217 = vrot.slane %v3208, %v3216
      %v3218 = vlaneseq
      %v3219 = vshrl.u32 %v3218, 7
      %v3220 = vsub.s32 2, %v3219
      %v3221 = vrot.slane %v3208, %v3220
      %v3222 = vlaneseq
      %v3223 = vshrl.u32 %v3222, 7
      %v3224 = vsub.s32 3, %v3223
      %v3225 = vrot.slane %v3208, %v3224
      %v3226 = vlaneseq
      %v3227 = vshrl.u32 %v3226, 7
      %v3228 = vsub.s32 4, %v3227
      %v3229 = vrot.slane %v3208, %v3228
      %v3230 = vlaneseq
      %v3231 = vshrl.u32 %v3230, 7
      %v3232 = vsub.s32 5, %v3231
      %v3233 = vrot.slane %v3208, %v3232
      %v3234 = vlaneseq
      %v3235 = vshrl.u32 %v3234, 7
      %v3236 = vsub.s32 6, %v3235
      %v3237 = vrot.slane %v3208, %v3236
      %v3238 = vlaneseq
      %v3239 = vshrl.u32 %v3238, 7
      %v3240 = vsub.s32 7, %v3239
      %v3241 = vrot.slane %v3208, %v3240
      %3242 = vrot.lane.b32.xlu0 %v3213, 57
      %v3243 = vpop.permute.xlu0 %3242
      %3244 = vrot.lane.b32.xlu0 %v3217, 57
      %v3245 = vpop.permute.xlu0 %3244
      %3246 = vrot.lane.b32.xlu0 %v3221, 57
      %v3247 = vpop.permute.xlu0 %3246
      %3248 = vrot.lane.b32.xlu0 %v3225, 57
      %v3249 = vpop.permute.xlu0 %3248
      %3250 = vrot.lane.b32.xlu0 %v3229, 57
      %v3251 = vpop.permute.xlu0 %3250
      %3252 = vrot.lane.b32.xlu0 %v3233, 57
      %v3253 = vpop.permute.xlu0 %3252
      %3254 = vrot.lane.b32.xlu0 %v3237, 57
      %v3255 = vpop.permute.xlu0 %3254
      %3256 = vrot.lane.b32.xlu0 %v3241, 57
      %v3257 = vpop.permute.xlu0 %3256
      %v3258 = vsel %vm672, %v3243, %v3245
      %v3259 = vsel %vm672, %v3245, %v3247
      %v3260 = vsel %vm672, %v3247, %v3249
      %v3261 = vsel %vm672, %v3249, %v3251
      %v3262 = vsel %vm672, %v3251, %v3253
      %v3263 = vsel %vm672, %v3253, %v3255
      %v3264 = vsel %vm672, %v3255, %v3257
      %v3274 = vmul.f32 %v315, %v3243
      %v3275 = vmul.f32 %v323, %v3258
      %v3276 = vmul.f32 %v316, %v3259
      %v3277 = vmul.f32 %v324, %v3260
      %v3278 = vmul.f32 %v317, %v3261
      %v3279 = vmul.f32 %v325, %v3262
      %v3280 = vmul.f32 %v318, %v3263
      %v3281 = vmul.f32 %v326, %v3264
      %v3282 = vmul.f32 %v3257, 0.0
      %v3283 = vpack.c.bf16 %v3274, %v3274
      %v3284 = vpack.c.bf16 %v3275, %v3275
      %v3285 = vpack.c.bf16 %v3276, %v3276
      %v3286 = vpack.c.bf16 %v3277, %v3277
      %v3287 = vpack.c.bf16 %v3278, %v3278
      %v3288 = vpack.c.bf16 %v3279, %v3279
      %v3289 = vpack.c.bf16 %v3280, %v3280
      %v3290 = vpack.c.bf16 %v3281, %v3281
      %v3291 = vpack.c.bf16 %v3282, %v3282
      %3301 = vrot.lane.b32.xlu0 %v3283, 71
      %v3302 = vpop.permute.xlu0 %3301
      %3303 = vrot.lane.b32.xlu0 %v3284, 71
      %v3304 = vpop.permute.xlu0 %3303
      %3305 = vrot.lane.b32.xlu0 %v3285, 71
      %v3306 = vpop.permute.xlu0 %3305
      %3307 = vrot.lane.b32.xlu0 %v3286, 71
      %v3308 = vpop.permute.xlu0 %3307
      %3309 = vrot.lane.b32.xlu0 %v3287, 71
      %v3310 = vpop.permute.xlu0 %3309
      %3311 = vrot.lane.b32.xlu0 %v3288, 71
      %v3312 = vpop.permute.xlu0 %3311
      %3313 = vrot.lane.b32.xlu0 %v3289, 71
      %v3314 = vpop.permute.xlu0 %3313
      %3315 = vrot.lane.b32.xlu0 %v3290, 71
      %v3316 = vpop.permute.xlu0 %3315
      %3317 = vrot.lane.b32.xlu0 %v3291, 71
      %v3318 = vpop.permute.xlu0 %3317
      %v3319 = vsel %vm743, %v3302, %v3304
      %v3320 = vsel %vm743, %v3304, %v3306
      %v3321 = vsel %vm743, %v3306, %v3308
      %v3322 = vsel %vm743, %v3308, %v3310
      %v3323 = vsel %vm743, %v3310, %v3312
      %v3324 = vsel %vm743, %v3312, %v3314
      %v3325 = vsel %vm743, %v3314, %v3316
      %v3326 = vsel %vm743, %v3316, %v3318
      %3335 = vst [vmem:[#allocation2 + $0x140] sm:$0x3] %v3319
      %3336 = vst [vmem:[#allocation2 + $0x148] sm:$0x3] %v3320
      %3337 = vst [vmem:[#allocation2 + $0x150] sm:$0x3] %v3321
      %3338 = vst [vmem:[#allocation2 + $0x158] sm:$0x3] %v3322
      %3339 = vst [vmem:[#allocation2 + $0x160] sm:$0x3] %v3323
      %3340 = vst [vmem:[#allocation2 + $0x168] sm:$0x3] %v3324
      %3341 = vst [vmem:[#allocation2 + $0x170] sm:$0x3] %v3325
      %3342 = vst [vmem:[#allocation2 + $0x178] sm:$0x3] %v3326
      %s3343 = scalar_lea.vmem %s7, 133
      %v3344 = vld [vmem:[%s3343] ss:$8 sm:$0xf]
      %v3345 = vld [vmem:[%s3343] ss:$8 sm:$0xf0]
      %v3346 = vor.u32 %v3344, %v3345
      %v3348 = vlaneseq
      %v3349 = vshrl.u32 %v3348, 7
      %v3350 = vsub.s32 0, %v3349
      %v3351 = vrot.slane %v3346, %v3350
      %v3352 = vlaneseq
      %v3353 = vshrl.u32 %v3352, 7
      %v3354 = vsub.s32 1, %v3353
      %v3355 = vrot.slane %v3346, %v3354
      %v3356 = vlaneseq
      %v3357 = vshrl.u32 %v3356, 7
      %v3358 = vsub.s32 2, %v3357
      %v3359 = vrot.slane %v3346, %v3358
      %v3360 = vlaneseq
      %v3361 = vshrl.u32 %v3360, 7
      %v3362 = vsub.s32 3, %v3361
      %v3363 = vrot.slane %v3346, %v3362
      %v3364 = vlaneseq
      %v3365 = vshrl.u32 %v3364, 7
      %v3366 = vsub.s32 4, %v3365
      %v3367 = vrot.slane %v3346, %v3366
      %v3368 = vlaneseq
      %v3369 = vshrl.u32 %v3368, 7
      %v3370 = vsub.s32 5, %v3369
      %v3371 = vrot.slane %v3346, %v3370
      %v3372 = vlaneseq
      %v3373 = vshrl.u32 %v3372, 7
      %v3374 = vsub.s32 6, %v3373
      %v3375 = vrot.slane %v3346, %v3374
      %v3376 = vlaneseq
      %v3377 = vshrl.u32 %v3376, 7
      %v3378 = vsub.s32 7, %v3377
      %v3379 = vrot.slane %v3346, %v3378
      %3380 = vrot.lane.b32.xlu0 %v3351, 63
      %v3381 = vpop.permute.xlu0 %3380
      %3382 = vrot.lane.b32.xlu0 %v3355, 63
      %v3383 = vpop.permute.xlu0 %3382
      %3384 = vrot.lane.b32.xlu0 %v3359, 63
      %v3385 = vpop.permute.xlu0 %3384
      %3386 = vrot.lane.b32.xlu0 %v3363, 63
      %v3387 = vpop.permute.xlu0 %3386
      %3388 = vrot.lane.b32.xlu0 %v3367, 63
      %v3389 = vpop.permute.xlu0 %3388
      %3390 = vrot.lane.b32.xlu0 %v3371, 63
      %v3391 = vpop.permute.xlu0 %3390
      %3392 = vrot.lane.b32.xlu0 %v3375, 63
      %v3393 = vpop.permute.xlu0 %3392
      %3394 = vrot.lane.b32.xlu0 %v3379, 63
      %v3395 = vpop.permute.xlu0 %3394
      %v3396 = vsel %vm821, %v3381, %v3383
      %v3397 = vsel %vm821, %v3383, %v3385
      %v3398 = vsel %vm821, %v3385, %v3387
      %v3399 = vsel %vm821, %v3387, %v3389
      %v3400 = vsel %vm821, %v3389, %v3391
      %v3401 = vsel %vm821, %v3391, %v3393
      %v3402 = vsel %vm821, %v3393, %v3395
      %v3412 = vmul.f32 %v315, %v3381
      %v3413 = vmul.f32 %v323, %v3396
      %v3414 = vmul.f32 %v316, %v3397
      %v3415 = vmul.f32 %v324, %v3398
      %v3416 = vmul.f32 %v317, %v3399
      %v3417 = vmul.f32 %v325, %v3400
      %v3418 = vmul.f32 %v318, %v3401
      %v3419 = vmul.f32 %v326, %v3402
      %v3420 = vmul.f32 %v3395, 0.0
      %v3421 = vpack.c.bf16 %v3412, %v3412
      %v3422 = vpack.c.bf16 %v3413, %v3413
      %v3423 = vpack.c.bf16 %v3414, %v3414
      %v3424 = vpack.c.bf16 %v3415, %v3415
      %v3425 = vpack.c.bf16 %v3416, %v3416
      %v3426 = vpack.c.bf16 %v3417, %v3417
      %v3427 = vpack.c.bf16 %v3418, %v3418
      %v3428 = vpack.c.bf16 %v3419, %v3419
      %v3429 = vpack.c.bf16 %v3420, %v3420
      %v3439 = vrot.slane %v3421, 6
      %v3440 = vrot.slane %v3422, 6
      %v3441 = vrot.slane %v3423, 6
      %v3442 = vrot.slane %v3424, 6
      %v3443 = vrot.slane %v3425, 6
      %v3444 = vrot.slane %v3426, 6
      %v3445 = vrot.slane %v3427, 6
      %v3446 = vrot.slane %v3428, 6
      %v3447 = vrot.slane %v3429, 6
      %3448 = vrot.lane.b32.xlu0 %v3439, 65
      %v3449 = vpop.permute.xlu0 %3448
      %3450 = vrot.lane.b32.xlu0 %v3440, 65
      %v3451 = vpop.permute.xlu0 %3450
      %3452 = vrot.lane.b32.xlu0 %v3441, 65
      %v3453 = vpop.permute.xlu0 %3452
      %3454 = vrot.lane.b32.xlu0 %v3442, 65
      %v3455 = vpop.permute.xlu0 %3454
      %3456 = vrot.lane.b32.xlu0 %v3443, 65
      %v3457 = vpop.permute.xlu0 %3456
      %3458 = vrot.lane.b32.xlu0 %v3444, 65
      %v3459 = vpop.permute.xlu0 %3458
      %3460 = vrot.lane.b32.xlu0 %v3445, 65
      %v3461 = vpop.permute.xlu0 %3460
      %3462 = vrot.lane.b32.xlu0 %v3446, 65
      %v3463 = vpop.permute.xlu0 %3462
      %3464 = vrot.lane.b32.xlu0 %v3447, 65
      %v3465 = vpop.permute.xlu0 %3464
      %v3466 = vsel %vm892, %v3449, %v3451
      %v3467 = vsel %vm892, %v3451, %v3453
      %v3468 = vsel %vm892, %v3453, %v3455
      %v3469 = vsel %vm892, %v3455, %v3457
      %v3470 = vsel %vm892, %v3457, %v3459
      %v3471 = vsel %vm892, %v3459, %v3461
      %v3472 = vsel %vm892, %v3461, %v3463
      %v3473 = vsel %vm892, %v3463, %v3465
      %3482 = vst [vmem:[#allocation2 + $0x140] sm:$0xc] %v3466
      %3483 = vst [vmem:[#allocation2 + $0x148] sm:$0xc] %v3467
      %3484 = vst [vmem:[#allocation2 + $0x150] sm:$0xc] %v3468
      %3485 = vst [vmem:[#allocation2 + $0x158] sm:$0xc] %v3469
      %3486 = vst [vmem:[#allocation2 + $0x160] sm:$0xc] %v3470
      %3487 = vst [vmem:[#allocation2 + $0x168] sm:$0xc] %v3471
      %3488 = vst [vmem:[#allocation2 + $0x170] sm:$0xc] %v3472
      %3489 = vst [vmem:[#allocation2 + $0x178] sm:$0xc] %v3473
      %s3490 = scalar_lea.vmem %s7, 134
      %v3491 = vld [vmem:[%s3490] ss:$8 sm:$0xf]
      %v3492 = vld [vmem:[%s3490] ss:$8 sm:$0xf0]
      %v3493 = vor.u32 %v3491, %v3492
      %v3495 = vlaneseq
      %v3496 = vshrl.u32 %v3495, 7
      %v3497 = vsub.s32 0, %v3496
      %v3498 = vrot.slane %v3493, %v3497
      %v3499 = vlaneseq
      %v3500 = vshrl.u32 %v3499, 7
      %v3501 = vsub.s32 1, %v3500
      %v3502 = vrot.slane %v3493, %v3501
      %v3503 = vlaneseq
      %v3504 = vshrl.u32 %v3503, 7
      %v3505 = vsub.s32 2, %v3504
      %v3506 = vrot.slane %v3493, %v3505
      %v3507 = vlaneseq
      %v3508 = vshrl.u32 %v3507, 7
      %v3509 = vsub.s32 3, %v3508
      %v3510 = vrot.slane %v3493, %v3509
      %v3511 = vlaneseq
      %v3512 = vshrl.u32 %v3511, 7
      %v3513 = vsub.s32 4, %v3512
      %v3514 = vrot.slane %v3493, %v3513
      %v3515 = vlaneseq
      %v3516 = vshrl.u32 %v3515, 7
      %v3517 = vsub.s32 5, %v3516
      %v3518 = vrot.slane %v3493, %v3517
      %v3519 = vlaneseq
      %v3520 = vshrl.u32 %v3519, 7
      %v3521 = vsub.s32 6, %v3520
      %v3522 = vrot.slane %v3493, %v3521
      %v3523 = vlaneseq
      %v3524 = vshrl.u32 %v3523, 7
      %v3525 = vsub.s32 7, %v3524
      %v3526 = vrot.slane %v3493, %v3525
      %3527 = vrot.lane.b32.xlu0 %v3498, 64
      %v3528 = vpop.permute.xlu0 %3527
      %3529 = vrot.lane.b32.xlu0 %v3502, 64
      %v3530 = vpop.permute.xlu0 %3529
      %3531 = vrot.lane.b32.xlu0 %v3506, 64
      %v3532 = vpop.permute.xlu0 %3531
      %3533 = vrot.lane.b32.xlu0 %v3510, 64
      %v3534 = vpop.permute.xlu0 %3533
      %3535 = vrot.lane.b32.xlu0 %v3514, 64
      %v3536 = vpop.permute.xlu0 %3535
      %3537 = vrot.lane.b32.xlu0 %v3518, 64
      %v3538 = vpop.permute.xlu0 %3537
      %3539 = vrot.lane.b32.xlu0 %v3522, 64
      %v3540 = vpop.permute.xlu0 %3539
      %3541 = vrot.lane.b32.xlu0 %v3526, 64
      %v3542 = vpop.permute.xlu0 %3541
      %v3543 = vsel %vm970, %v3528, %v3530
      %v3544 = vsel %vm970, %v3530, %v3532
      %v3545 = vsel %vm970, %v3532, %v3534
      %v3546 = vsel %vm970, %v3534, %v3536
      %v3547 = vsel %vm970, %v3536, %v3538
      %v3548 = vsel %vm970, %v3538, %v3540
      %v3549 = vsel %vm970, %v3540, %v3542
      %v3559 = vmul.f32 %v315, %v3528
      %v3560 = vmul.f32 %v323, %v3543
      %v3561 = vmul.f32 %v316, %v3544
      %v3562 = vmul.f32 %v324, %v3545
      %v3563 = vmul.f32 %v317, %v3546
      %v3564 = vmul.f32 %v325, %v3547
      %v3565 = vmul.f32 %v318, %v3548
      %v3566 = vmul.f32 %v326, %v3549
      %v3567 = vmul.f32 %v3542, 0.0
      %v3568 = vpack.c.bf16 %v3559, %v3559
      %v3569 = vpack.c.bf16 %v3560, %v3560
      %v3570 = vpack.c.bf16 %v3561, %v3561
      %v3571 = vpack.c.bf16 %v3562, %v3562
      %v3572 = vpack.c.bf16 %v3563, %v3563
      %v3573 = vpack.c.bf16 %v3564, %v3564
      %v3574 = vpack.c.bf16 %v3565, %v3565
      %v3575 = vpack.c.bf16 %v3566, %v3566
      %v3576 = vpack.c.bf16 %v3567, %v3567
      %v3586 = vrot.slane %v3568, 4
      %v3587 = vrot.slane %v3569, 4
      %v3588 = vrot.slane %v3570, 4
      %v3589 = vrot.slane %v3571, 4
      %v3590 = vrot.slane %v3572, 4
      %v3591 = vrot.slane %v3573, 4
      %v3592 = vrot.slane %v3574, 4
      %v3593 = vrot.slane %v3575, 4
      %v3594 = vrot.slane %v3576, 4
      %3595 = vrot.lane.b32.xlu0 %v3586, 64
      %v3596 = vpop.permute.xlu0 %3595
      %3597 = vrot.lane.b32.xlu0 %v3587, 64
      %v3598 = vpop.permute.xlu0 %3597
      %3599 = vrot.lane.b32.xlu0 %v3588, 64
      %v3600 = vpop.permute.xlu0 %3599
      %3601 = vrot.lane.b32.xlu0 %v3589, 64
      %v3602 = vpop.permute.xlu0 %3601
      %3603 = vrot.lane.b32.xlu0 %v3590, 64
      %v3604 = vpop.permute.xlu0 %3603
      %3605 = vrot.lane.b32.xlu0 %v3591, 64
      %v3606 = vpop.permute.xlu0 %3605
      %3607 = vrot.lane.b32.xlu0 %v3592, 64
      %v3608 = vpop.permute.xlu0 %3607
      %3609 = vrot.lane.b32.xlu0 %v3593, 64
      %v3610 = vpop.permute.xlu0 %3609
      %3611 = vrot.lane.b32.xlu0 %v3594, 64
      %v3612 = vpop.permute.xlu0 %3611
      %v3613 = vsel %vm1032, %v3596, %v3598
      %v3614 = vsel %vm1032, %v3598, %v3600
      %v3615 = vsel %vm1032, %v3600, %v3602
      %v3616 = vsel %vm1032, %v3602, %v3604
      %v3617 = vsel %vm1032, %v3604, %v3606
      %v3618 = vsel %vm1032, %v3606, %v3608
      %v3619 = vsel %vm1032, %v3608, %v3610
      %v3620 = vsel %vm1032, %v3610, %v3612
      %3629 = vst [vmem:[#allocation2 + $0x140] sm:$0x30] %v3613
      %3630 = vst [vmem:[#allocation2 + $0x148] sm:$0x30] %v3614
      %3631 = vst [vmem:[#allocation2 + $0x150] sm:$0x30] %v3615
      %3632 = vst [vmem:[#allocation2 + $0x158] sm:$0x30] %v3616
      %3633 = vst [vmem:[#allocation2 + $0x160] sm:$0x30] %v3617
      %3634 = vst [vmem:[#allocation2 + $0x168] sm:$0x30] %v3618
      %3635 = vst [vmem:[#allocation2 + $0x170] sm:$0x30] %v3619
      %3636 = vst [vmem:[#allocation2 + $0x178] sm:$0x30] %v3620
      %s3637 = scalar_lea.vmem %s7, 135
      %v3638 = vld [vmem:[%s3637] ss:$8 sm:$0xf]
      %v3639 = vld [vmem:[%s3637] ss:$8 sm:$0xf0]
      %v3640 = vor.u32 %v3638, %v3639
      %v3642 = vlaneseq
      %v3643 = vshrl.u32 %v3642, 7
      %v3644 = vsub.s32 0, %v3643
      %v3645 = vrot.slane %v3640, %v3644
      %v3646 = vlaneseq
      %v3647 = vshrl.u32 %v3646, 7
      %v3648 = vsub.s32 1, %v3647
      %v3649 = vrot.slane %v3640, %v3648
      %v3650 = vlaneseq
      %v3651 = vshrl.u32 %v3650, 7
      %v3652 = vsub.s32 2, %v3651
      %v3653 = vrot.slane %v3640, %v3652
      %v3654 = vlaneseq
      %v3655 = vshrl.u32 %v3654, 7
      %v3656 = vsub.s32 3, %v3655
      %v3657 = vrot.slane %v3640, %v3656
      %v3658 = vlaneseq
      %v3659 = vshrl.u32 %v3658, 7
      %v3660 = vsub.s32 4, %v3659
      %v3661 = vrot.slane %v3640, %v3660
      %v3662 = vlaneseq
      %v3663 = vshrl.u32 %v3662, 7
      %v3664 = vsub.s32 5, %v3663
      %v3665 = vrot.slane %v3640, %v3664
      %v3666 = vlaneseq
      %v3667 = vshrl.u32 %v3666, 7
      %v3668 = vsub.s32 6, %v3667
      %v3669 = vrot.slane %v3640, %v3668
      %v3670 = vlaneseq
      %v3671 = vshrl.u32 %v3670, 7
      %v3672 = vsub.s32 7, %v3671
      %v3673 = vrot.slane %v3640, %v3672
      %3674 = vrot.lane.b32.xlu0 %v3645, 65
      %v3675 = vpop.permute.xlu0 %3674
      %3676 = vrot.lane.b32.xlu0 %v3649, 65
      %v3677 = vpop.permute.xlu0 %3676
      %3678 = vrot.lane.b32.xlu0 %v3653, 65
      %v3679 = vpop.permute.xlu0 %3678
      %3680 = vrot.lane.b32.xlu0 %v3657, 65
      %v3681 = vpop.permute.xlu0 %3680
      %3682 = vrot.lane.b32.xlu0 %v3661, 65
      %v3683 = vpop.permute.xlu0 %3682
      %3684 = vrot.lane.b32.xlu0 %v3665, 65
      %v3685 = vpop.permute.xlu0 %3684
      %3686 = vrot.lane.b32.xlu0 %v3669, 65
      %v3687 = vpop.permute.xlu0 %3686
      %3688 = vrot.lane.b32.xlu0 %v3673, 65
      %v3689 = vpop.permute.xlu0 %3688
      %v3690 = vsel %vm1110, %v3675, %v3677
      %v3691 = vsel %vm1110, %v3677, %v3679
      %v3692 = vsel %vm1110, %v3679, %v3681
      %v3693 = vsel %vm1110, %v3681, %v3683
      %v3694 = vsel %vm1110, %v3683, %v3685
      %v3695 = vsel %vm1110, %v3685, %v3687
      %v3696 = vsel %vm1110, %v3687, %v3689
      %v3706 = vmul.f32 %v315, %v3675
      %v3707 = vmul.f32 %v323, %v3690
      %v3708 = vmul.f32 %v316, %v3691
      %v3709 = vmul.f32 %v324, %v3692
      %v3710 = vmul.f32 %v317, %v3693
      %v3711 = vmul.f32 %v325, %v3694
      %v3712 = vmul.f32 %v318, %v3695
      %v3713 = vmul.f32 %v326, %v3696
      %v3714 = vmul.f32 %v3689, 0.0
      %v3715 = vpack.c.bf16 %v3706, %v3706
      %v3716 = vpack.c.bf16 %v3707, %v3707
      %v3717 = vpack.c.bf16 %v3708, %v3708
      %v3718 = vpack.c.bf16 %v3709, %v3709
      %v3719 = vpack.c.bf16 %v3710, %v3710
      %v3720 = vpack.c.bf16 %v3711, %v3711
      %v3721 = vpack.c.bf16 %v3712, %v3712
      %v3722 = vpack.c.bf16 %v3713, %v3713
      %v3723 = vpack.c.bf16 %v3714, %v3714
      %v3733 = vrot.slane %v3715, 2
      %v3734 = vrot.slane %v3716, 2
      %v3735 = vrot.slane %v3717, 2
      %v3736 = vrot.slane %v3718, 2
      %v3737 = vrot.slane %v3719, 2
      %v3738 = vrot.slane %v3720, 2
      %v3739 = vrot.slane %v3721, 2
      %v3740 = vrot.slane %v3722, 2
      %v3741 = vrot.slane %v3723, 2
      %3742 = vrot.lane.b32.xlu0 %v3733, 63
      %v3743 = vpop.permute.xlu0 %3742
      %3744 = vrot.lane.b32.xlu0 %v3734, 63
      %v3745 = vpop.permute.xlu0 %3744
      %3746 = vrot.lane.b32.xlu0 %v3735, 63
      %v3747 = vpop.permute.xlu0 %3746
      %3748 = vrot.lane.b32.xlu0 %v3736, 63
      %v3749 = vpop.permute.xlu0 %3748
      %3750 = vrot.lane.b32.xlu0 %v3737, 63
      %v3751 = vpop.permute.xlu0 %3750
      %3752 = vrot.lane.b32.xlu0 %v3738, 63
      %v3753 = vpop.permute.xlu0 %3752
      %3754 = vrot.lane.b32.xlu0 %v3739, 63
      %v3755 = vpop.permute.xlu0 %3754
      %3756 = vrot.lane.b32.xlu0 %v3740, 63
      %v3757 = vpop.permute.xlu0 %3756
      %3758 = vrot.lane.b32.xlu0 %v3741, 63
      %v3759 = vpop.permute.xlu0 %3758
      %v3760 = vsel %vm1181, %v3743, %v3745
      %v3761 = vsel %vm1181, %v3745, %v3747
      %v3762 = vsel %vm1181, %v3747, %v3749
      %v3763 = vsel %vm1181, %v3749, %v3751
      %v3764 = vsel %vm1181, %v3751, %v3753
      %v3765 = vsel %vm1181, %v3753, %v3755
      %v3766 = vsel %vm1181, %v3755, %v3757
      %v3767 = vsel %vm1181, %v3757, %v3759
      %3776 = vst [vmem:[#allocation2 + $0x140] sm:$0xc0] %v3760
      %3777 = vst [vmem:[#allocation2 + $0x148] sm:$0xc0] %v3761
      %3778 = vst [vmem:[#allocation2 + $0x150] sm:$0xc0] %v3762
      %3779 = vst [vmem:[#allocation2 + $0x158] sm:$0xc0] %v3763
      %3780 = vst [vmem:[#allocation2 + $0x160] sm:$0xc0] %v3764
      %3781 = vst [vmem:[#allocation2 + $0x168] sm:$0xc0] %v3765
      %3782 = vst [vmem:[#allocation2 + $0x170] sm:$0xc0] %v3766
      %3783 = vst [vmem:[#allocation2 + $0x178] sm:$0xc0] %v3767
      %s3784 = scalar_lea.vmem %s7, 192
      %v3785 = vld [vmem:[%s3784] ss:$8 sm:$0xf]
      %v3786 = vld [vmem:[%s3784] ss:$8 sm:$0xf0]
      %v3787 = vor.u32 %v3785, %v3786
      %v3789 = vlaneseq
      %v3790 = vshrl.u32 %v3789, 7
      %v3791 = vsub.s32 0, %v3790
      %v3792 = vrot.slane %v3787, %v3791
      %v3793 = vlaneseq
      %v3794 = vshrl.u32 %v3793, 7
      %v3795 = vsub.s32 1, %v3794
      %v3796 = vrot.slane %v3787, %v3795
      %v3797 = vlaneseq
      %v3798 = vshrl.u32 %v3797, 7
      %v3799 = vsub.s32 2, %v3798
      %v3800 = vrot.slane %v3787, %v3799
      %v3801 = vlaneseq
      %v3802 = vshrl.u32 %v3801, 7
      %v3803 = vsub.s32 3, %v3802
      %v3804 = vrot.slane %v3787, %v3803
      %v3805 = vlaneseq
      %v3806 = vshrl.u32 %v3805, 7
      %v3807 = vsub.s32 4, %v3806
      %v3808 = vrot.slane %v3787, %v3807
      %v3809 = vlaneseq
      %v3810 = vshrl.u32 %v3809, 7
      %v3811 = vsub.s32 5, %v3810
      %v3812 = vrot.slane %v3787, %v3811
      %v3813 = vlaneseq
      %v3814 = vshrl.u32 %v3813, 7
      %v3815 = vsub.s32 6, %v3814
      %v3816 = vrot.slane %v3787, %v3815
      %v3817 = vlaneseq
      %v3818 = vshrl.u32 %v3817, 7
      %v3819 = vsub.s32 7, %v3818
      %v3820 = vrot.slane %v3787, %v3819
      %3821 = vrot.lane.b32.xlu0 %v3792, 71
      %v3822 = vpop.permute.xlu0 %3821
      %3823 = vrot.lane.b32.xlu0 %v3796, 71
      %v3824 = vpop.permute.xlu0 %3823
      %3825 = vrot.lane.b32.xlu0 %v3800, 71
      %v3826 = vpop.permute.xlu0 %3825
      %3827 = vrot.lane.b32.xlu0 %v3804, 71
      %v3828 = vpop.permute.xlu0 %3827
      %3829 = vrot.lane.b32.xlu0 %v3808, 71
      %v3830 = vpop.permute.xlu0 %3829
      %3831 = vrot.lane.b32.xlu0 %v3812, 71
      %v3832 = vpop.permute.xlu0 %3831
      %3833 = vrot.lane.b32.xlu0 %v3816, 71
      %v3834 = vpop.permute.xlu0 %3833
      %3835 = vrot.lane.b32.xlu0 %v3820, 71
      %v3836 = vpop.permute.xlu0 %3835
      %v3837 = vsel %vm1259, %v3822, %v3824
      %v3838 = vsel %vm1259, %v3824, %v3826
      %v3839 = vsel %vm1259, %v3826, %v3828
      %v3840 = vsel %vm1259, %v3828, %v3830
      %v3841 = vsel %vm1259, %v3830, %v3832
      %v3842 = vsel %vm1259, %v3832, %v3834
      %v3843 = vsel %vm1259, %v3834, %v3836
      %v3853 = vmul.f32 %v315, %v3822
      %v3854 = vmul.f32 %v323, %v3837
      %v3855 = vmul.f32 %v316, %v3838
      %v3856 = vmul.f32 %v324, %v3839
      %v3857 = vmul.f32 %v317, %v3840
      %v3858 = vmul.f32 %v325, %v3841
      %v3859 = vmul.f32 %v318, %v3842
      %v3860 = vmul.f32 %v326, %v3843
      %v3861 = vmul.f32 %v3836, 0.0
      %v3862 = vpack.c.bf16 %v3853, %v3853
      %v3863 = vpack.c.bf16 %v3854, %v3854
      %v3864 = vpack.c.bf16 %v3855, %v3855
      %v3865 = vpack.c.bf16 %v3856, %v3856
      %v3866 = vpack.c.bf16 %v3857, %v3857
      %v3867 = vpack.c.bf16 %v3858, %v3858
      %v3868 = vpack.c.bf16 %v3859, %v3859
      %v3869 = vpack.c.bf16 %v3860, %v3860
      %v3870 = vpack.c.bf16 %v3861, %v3861
      %3880 = vrot.lane.b32.xlu0 %v3862, 57
      %v3881 = vpop.permute.xlu0 %3880
      %3882 = vrot.lane.b32.xlu0 %v3863, 57
      %v3883 = vpop.permute.xlu0 %3882
      %3884 = vrot.lane.b32.xlu0 %v3864, 57
      %v3885 = vpop.permute.xlu0 %3884
      %3886 = vrot.lane.b32.xlu0 %v3865, 57
      %v3887 = vpop.permute.xlu0 %3886
      %3888 = vrot.lane.b32.xlu0 %v3866, 57
      %v3889 = vpop.permute.xlu0 %3888
      %3890 = vrot.lane.b32.xlu0 %v3867, 57
      %v3891 = vpop.permute.xlu0 %3890
      %3892 = vrot.lane.b32.xlu0 %v3868, 57
      %v3893 = vpop.permute.xlu0 %3892
      %3894 = vrot.lane.b32.xlu0 %v3869, 57
      %v3895 = vpop.permute.xlu0 %3894
      %3896 = vrot.lane.b32.xlu0 %v3870, 57
      %v3897 = vpop.permute.xlu0 %3896
      %v3898 = vsel %vm1330, %v3881, %v3883
      %v3899 = vsel %vm1330, %v3883, %v3885
      %v3900 = vsel %vm1330, %v3885, %v3887
      %v3901 = vsel %vm1330, %v3887, %v3889
      %v3902 = vsel %vm1330, %v3889, %v3891
      %v3903 = vsel %vm1330, %v3891, %v3893
      %v3904 = vsel %vm1330, %v3893, %v3895
      %v3905 = vsel %vm1330, %v3895, %v3897
      %3914 = vst [vmem:[#allocation2 + $0x180] sm:$0x3] %v3898
      %3915 = vst [vmem:[#allocation2 + $0x188] sm:$0x3] %v3899
      %3916 = vst [vmem:[#allocation2 + $0x190] sm:$0x3] %v3900
      %3917 = vst [vmem:[#allocation2 + $0x198] sm:$0x3] %v3901
      %3918 = vst [vmem:[#allocation2 + $0x1a0] sm:$0x3] %v3902
      %3919 = vst [vmem:[#allocation2 + $0x1a8] sm:$0x3] %v3903
      %3920 = vst [vmem:[#allocation2 + $0x1b0] sm:$0x3] %v3904
      %3921 = vst [vmem:[#allocation2 + $0x1b8] sm:$0x3] %v3905
      %s3922 = scalar_lea.vmem %s7, 193
      %v3923 = vld [vmem:[%s3922] ss:$8 sm:$0xf]
      %v3924 = vld [vmem:[%s3922] ss:$8 sm:$0xf0]
      %v3925 = vor.u32 %v3923, %v3924
      %v3927 = vlaneseq
      %v3928 = vshrl.u32 %v3927, 7
      %v3929 = vsub.s32 0, %v3928
      %v3930 = vrot.slane %v3925, %v3929
      %v3931 = vlaneseq
      %v3932 = vshrl.u32 %v3931, 7
      %v3933 = vsub.s32 1, %v3932
      %v3934 = vrot.slane %v3925, %v3933
      %v3935 = vlaneseq
      %v3936 = vshrl.u32 %v3935, 7
      %v3937 = vsub.s32 2, %v3936
      %v3938 = vrot.slane %v3925, %v3937
      %v3939 = vlaneseq
      %v3940 = vshrl.u32 %v3939, 7
      %v3941 = vsub.s32 3, %v3940
      %v3942 = vrot.slane %v3925, %v3941
      %v3943 = vlaneseq
      %v3944 = vshrl.u32 %v3943, 7
      %v3945 = vsub.s32 4, %v3944
      %v3946 = vrot.slane %v3925, %v3945
      %v3947 = vlaneseq
      %v3948 = vshrl.u32 %v3947, 7
      %v3949 = vsub.s32 5, %v3948
      %v3950 = vrot.slane %v3925, %v3949
      %v3951 = vlaneseq
      %v3952 = vshrl.u32 %v3951, 7
      %v3953 = vsub.s32 6, %v3952
      %v3954 = vrot.slane %v3925, %v3953
      %v3955 = vlaneseq
      %v3956 = vshrl.u32 %v3955, 7
      %v3957 = vsub.s32 7, %v3956
      %v3958 = vrot.slane %v3925, %v3957
      %3959 = vrot.lane.b32.xlu0 %v3930, 72
      %v3960 = vpop.permute.xlu0 %3959
      %3961 = vrot.lane.b32.xlu0 %v3934, 72
      %v3962 = vpop.permute.xlu0 %3961
      %3963 = vrot.lane.b32.xlu0 %v3938, 72
      %v3964 = vpop.permute.xlu0 %3963
      %3965 = vrot.lane.b32.xlu0 %v3942, 72
      %v3966 = vpop.permute.xlu0 %3965
      %3967 = vrot.lane.b32.xlu0 %v3946, 72
      %v3968 = vpop.permute.xlu0 %3967
      %3969 = vrot.lane.b32.xlu0 %v3950, 72
      %v3970 = vpop.permute.xlu0 %3969
      %3971 = vrot.lane.b32.xlu0 %v3954, 72
      %v3972 = vpop.permute.xlu0 %3971
      %3973 = vrot.lane.b32.xlu0 %v3958, 72
      %v3974 = vpop.permute.xlu0 %3973
      %v3975 = vsel %vm1408, %v3960, %v3962
      %v3976 = vsel %vm1408, %v3962, %v3964
      %v3977 = vsel %vm1408, %v3964, %v3966
      %v3978 = vsel %vm1408, %v3966, %v3968
      %v3979 = vsel %vm1408, %v3968, %v3970
      %v3980 = vsel %vm1408, %v3970, %v3972
      %v3981 = vsel %vm1408, %v3972, %v3974
      %v3991 = vmul.f32 %v315, %v3960
      %v3992 = vmul.f32 %v323, %v3975
      %v3993 = vmul.f32 %v316, %v3976
      %v3994 = vmul.f32 %v324, %v3977
      %v3995 = vmul.f32 %v317, %v3978
      %v3996 = vmul.f32 %v325, %v3979
      %v3997 = vmul.f32 %v318, %v3980
      %v3998 = vmul.f32 %v326, %v3981
      %v3999 = vmul.f32 %v3974, 0.0
      %v4000 = vpack.c.bf16 %v3991, %v3991
      %v4001 = vpack.c.bf16 %v3992, %v3992
      %v4002 = vpack.c.bf16 %v3993, %v3993
      %v4003 = vpack.c.bf16 %v3994, %v3994
      %v4004 = vpack.c.bf16 %v3995, %v3995
      %v4005 = vpack.c.bf16 %v3996, %v3996
      %v4006 = vpack.c.bf16 %v3997, %v3997
      %v4007 = vpack.c.bf16 %v3998, %v3998
      %v4008 = vpack.c.bf16 %v3999, %v3999
      %v4018 = vrot.slane %v4000, 6
      %v4019 = vrot.slane %v4001, 6
      %v4020 = vrot.slane %v4002, 6
      %v4021 = vrot.slane %v4003, 6
      %v4022 = vrot.slane %v4004, 6
      %v4023 = vrot.slane %v4005, 6
      %v4024 = vrot.slane %v4006, 6
      %v4025 = vrot.slane %v4007, 6
      %v4026 = vrot.slane %v4008, 6
      %4027 = vrot.lane.b32.xlu0 %v4018, 56
      %v4028 = vpop.permute.xlu0 %4027
      %4029 = vrot.lane.b32.xlu0 %v4019, 56
      %v4030 = vpop.permute.xlu0 %4029
      %4031 = vrot.lane.b32.xlu0 %v4020, 56
      %v4032 = vpop.permute.xlu0 %4031
      %4033 = vrot.lane.b32.xlu0 %v4021, 56
      %v4034 = vpop.permute.xlu0 %4033
      %4035 = vrot.lane.b32.xlu0 %v4022, 56
      %v4036 = vpop.permute.xlu0 %4035
      %4037 = vrot.lane.b32.xlu0 %v4023, 56
      %v4038 = vpop.permute.xlu0 %4037
      %4039 = vrot.lane.b32.xlu0 %v4024, 56
      %v4040 = vpop.permute.xlu0 %4039
      %4041 = vrot.lane.b32.xlu0 %v4025, 56
      %v4042 = vpop.permute.xlu0 %4041
      %4043 = vrot.lane.b32.xlu0 %v4026, 56
      %v4044 = vpop.permute.xlu0 %4043
      %v4045 = vsel %vm1479, %v4028, %v4030
      %v4046 = vsel %vm1479, %v4030, %v4032
      %v4047 = vsel %vm1479, %v4032, %v4034
      %v4048 = vsel %vm1479, %v4034, %v4036
      %v4049 = vsel %vm1479, %v4036, %v4038
      %v4050 = vsel %vm1479, %v4038, %v4040
      %v4051 = vsel %vm1479, %v4040, %v4042
      %v4052 = vsel %vm1479, %v4042, %v4044
      %4061 = vst [vmem:[#allocation2 + $0x180] sm:$0xc] %v4045
      %4062 = vst [vmem:[#allocation2 + $0x188] sm:$0xc] %v4046
      %4063 = vst [vmem:[#allocation2 + $0x190] sm:$0xc] %v4047
      %4064 = vst [vmem:[#allocation2 + $0x198] sm:$0xc] %v4048
      %4065 = vst [vmem:[#allocation2 + $0x1a0] sm:$0xc] %v4049
      %4066 = vst [vmem:[#allocation2 + $0x1a8] sm:$0xc] %v4050
      %4067 = vst [vmem:[#allocation2 + $0x1b0] sm:$0xc] %v4051
      %4068 = vst [vmem:[#allocation2 + $0x1b8] sm:$0xc] %v4052
      %s4069 = scalar_lea.vmem %s7, 194
      %v4070 = vld [vmem:[%s4069] ss:$8 sm:$0xf]
      %v4071 = vld [vmem:[%s4069] ss:$8 sm:$0xf0]
      %v4072 = vor.u32 %v4070, %v4071
      %v4074 = vlaneseq
      %v4075 = vshrl.u32 %v4074, 7
      %v4076 = vsub.s32 0, %v4075
      %v4077 = vrot.slane %v4072, %v4076
      %v4078 = vlaneseq
      %v4079 = vshrl.u32 %v4078, 7
      %v4080 = vsub.s32 1, %v4079
      %v4081 = vrot.slane %v4072, %v4080
      %v4082 = vlaneseq
      %v4083 = vshrl.u32 %v4082, 7
      %v4084 = vsub.s32 2, %v4083
      %v4085 = vrot.slane %v4072, %v4084
      %v4086 = vlaneseq
      %v4087 = vshrl.u32 %v4086, 7
      %v4088 = vsub.s32 3, %v4087
      %v4089 = vrot.slane %v4072, %v4088
      %v4090 = vlaneseq
      %v4091 = vshrl.u32 %v4090, 7
      %v4092 = vsub.s32 4, %v4091
      %v4093 = vrot.slane %v4072, %v4092
      %v4094 = vlaneseq
      %v4095 = vshrl.u32 %v4094, 7
      %v4096 = vsub.s32 5, %v4095
      %v4097 = vrot.slane %v4072, %v4096
      %v4098 = vlaneseq
      %v4099 = vshrl.u32 %v4098, 7
      %v4100 = vsub.s32 6, %v4099
      %v4101 = vrot.slane %v4072, %v4100
      %v4102 = vlaneseq
      %v4103 = vshrl.u32 %v4102, 7
      %v4104 = vsub.s32 7, %v4103
      %v4105 = vrot.slane %v4072, %v4104
      %4106 = vrot.lane.b32.xlu0 %v4077, 73
      %v4107 = vpop.permute.xlu0 %4106
      %4108 = vrot.lane.b32.xlu0 %v4081, 73
      %v4109 = vpop.permute.xlu0 %4108
      %4110 = vrot.lane.b32.xlu0 %v4085, 73
      %v4111 = vpop.permute.xlu0 %4110
      %4112 = vrot.lane.b32.xlu0 %v4089, 73
      %v4113 = vpop.permute.xlu0 %4112
      %4114 = vrot.lane.b32.xlu0 %v4093, 73
      %v4115 = vpop.permute.xlu0 %4114
      %4116 = vrot.lane.b32.xlu0 %v4097, 73
      %v4117 = vpop.permute.xlu0 %4116
      %4118 = vrot.lane.b32.xlu0 %v4101, 73
      %v4119 = vpop.permute.xlu0 %4118
      %4120 = vrot.lane.b32.xlu0 %v4105, 73
      %v4121 = vpop.permute.xlu0 %4120
      %v4122 = vsel %vm1557, %v4107, %v4109
      %v4123 = vsel %vm1557, %v4109, %v4111
      %v4124 = vsel %vm1557, %v4111, %v4113
      %v4125 = vsel %vm1557, %v4113, %v4115
      %v4126 = vsel %vm1557, %v4115, %v4117
      %v4127 = vsel %vm1557, %v4117, %v4119
      %v4128 = vsel %vm1557, %v4119, %v4121
      %v4138 = vmul.f32 %v315, %v4107
      %v4139 = vmul.f32 %v323, %v4122
      %v4140 = vmul.f32 %v316, %v4123
      %v4141 = vmul.f32 %v324, %v4124
      %v4142 = vmul.f32 %v317, %v4125
      %v4143 = vmul.f32 %v325, %v4126
      %v4144 = vmul.f32 %v318, %v4127
      %v4145 = vmul.f32 %v326, %v4128
      %v4146 = vmul.f32 %v4121, 0.0
      %v4147 = vpack.c.bf16 %v4138, %v4138
      %v4148 = vpack.c.bf16 %v4139, %v4139
      %v4149 = vpack.c.bf16 %v4140, %v4140
      %v4150 = vpack.c.bf16 %v4141, %v4141
      %v4151 = vpack.c.bf16 %v4142, %v4142
      %v4152 = vpack.c.bf16 %v4143, %v4143
      %v4153 = vpack.c.bf16 %v4144, %v4144
      %v4154 = vpack.c.bf16 %v4145, %v4145
      %v4155 = vpack.c.bf16 %v4146, %v4146
      %v4165 = vrot.slane %v4147, 4
      %v4166 = vrot.slane %v4148, 4
      %v4167 = vrot.slane %v4149, 4
      %v4168 = vrot.slane %v4150, 4
      %v4169 = vrot.slane %v4151, 4
      %v4170 = vrot.slane %v4152, 4
      %v4171 = vrot.slane %v4153, 4
      %v4172 = vrot.slane %v4154, 4
      %v4173 = vrot.slane %v4155, 4
      %4174 = vrot.lane.b32.xlu0 %v4165, 55
      %v4175 = vpop.permute.xlu0 %4174
      %4176 = vrot.lane.b32.xlu0 %v4166, 55
      %v4177 = vpop.permute.xlu0 %4176
      %4178 = vrot.lane.b32.xlu0 %v4167, 55
      %v4179 = vpop.permute.xlu0 %4178
      %4180 = vrot.lane.b32.xlu0 %v4168, 55
      %v4181 = vpop.permute.xlu0 %4180
      %4182 = vrot.lane.b32.xlu0 %v4169, 55
      %v4183 = vpop.permute.xlu0 %4182
      %4184 = vrot.lane.b32.xlu0 %v4170, 55
      %v4185 = vpop.permute.xlu0 %4184
      %4186 = vrot.lane.b32.xlu0 %v4171, 55
      %v4187 = vpop.permute.xlu0 %4186
      %4188 = vrot.lane.b32.xlu0 %v4172, 55
      %v4189 = vpop.permute.xlu0 %4188
      %4190 = vrot.lane.b32.xlu0 %v4173, 55
      %v4191 = vpop.permute.xlu0 %4190
      %v4192 = vsel %vm1619, %v4175, %v4177
      %v4193 = vsel %vm1619, %v4177, %v4179
      %v4194 = vsel %vm1619, %v4179, %v4181
      %v4195 = vsel %vm1619, %v4181, %v4183
      %v4196 = vsel %vm1619, %v4183, %v4185
      %v4197 = vsel %vm1619, %v4185, %v4187
      %v4198 = vsel %vm1619, %v4187, %v4189
      %v4199 = vsel %vm1619, %v4189, %v4191
      %4208 = vst [vmem:[#allocation2 + $0x180] sm:$0x30] %v4192
      %4209 = vst [vmem:[#allocation2 + $0x188] sm:$0x30] %v4193
      %4210 = vst [vmem:[#allocation2 + $0x190] sm:$0x30] %v4194
      %4211 = vst [vmem:[#allocation2 + $0x198] sm:$0x30] %v4195
      %4212 = vst [vmem:[#allocation2 + $0x1a0] sm:$0x30] %v4196
      %4213 = vst [vmem:[#allocation2 + $0x1a8] sm:$0x30] %v4197
      %4214 = vst [vmem:[#allocation2 + $0x1b0] sm:$0x30] %v4198
      %4215 = vst [vmem:[#allocation2 + $0x1b8] sm:$0x30] %v4199
      %v4216 = vld [vmem:[%s1] sm:$0xf]
      %v4217 = vld [vmem:[%s1 + $0x4] sm:$0xf]
      %v4218 = vld [vmem:[%s1 + $0x8] sm:$0xf]
      %v4219 = vld [vmem:[%s1 + $0xc] sm:$0xf]
      %v4220 = vld [vmem:[#allocation2] sm:$0xff]
      %v4221 = vld [vmem:[#allocation2 + $0x8] sm:$0xff]
      %v4222 = vld [vmem:[#allocation2 + $0x10] sm:$0xff]
      %v4223 = vld [vmem:[#allocation2 + $0x18] sm:$0xff]
      %v4224 = vld [vmem:[#allocation2 + $0x20] sm:$0xff]
      %v4225 = vld [vmem:[#allocation2 + $0x28] sm:$0xff]
      %v4226 = vld [vmem:[#allocation2 + $0x30] sm:$0xff]
      %v4227 = vld [vmem:[#allocation2 + $0x38] sm:$0xff]
      %v4228 = vld [vmem:[#allocation2 + $0x40] sm:$0xff]
      %v4229 = vld [vmem:[#allocation2 + $0x48] sm:$0xff]
      %v4230 = vld [vmem:[#allocation2 + $0x50] sm:$0xff]
      %v4231 = vld [vmem:[#allocation2 + $0x58] sm:$0xff]
      %v4232 = vld [vmem:[#allocation2 + $0x60] sm:$0xff]
      %v4233 = vld [vmem:[#allocation2 + $0x68] sm:$0xff]
      %v4234 = vld [vmem:[#allocation2 + $0x70] sm:$0xff]
      %v4235 = vld [vmem:[#allocation2 + $0x78] sm:$0xff]
      %v4236 = vld [vmem:[#allocation2 + $0x80] sm:$0xff]
      %v4237 = vld [vmem:[#allocation2 + $0x88] sm:$0xff]
      %v4238 = vld [vmem:[#allocation2 + $0x90] sm:$0xff]
      %v4239 = vld [vmem:[#allocation2 + $0x98] sm:$0xff]
      %v4240 = vld [vmem:[#allocation2 + $0xa0] sm:$0xff]
      %v4241 = vld [vmem:[#allocation2 + $0xa8] sm:$0xff]
      %v4242 = vld [vmem:[#allocation2 + $0xb0] sm:$0xff]
      %v4243 = vld [vmem:[#allocation2 + $0xb8] sm:$0xff]
      %v4244 = vld [vmem:[#allocation2 + $0xc0] sm:$0xff]
      %v4245 = vld [vmem:[#allocation2 + $0xc8] sm:$0xff]
      %v4246 = vld [vmem:[#allocation2 + $0xd0] sm:$0xff]
      %v4247 = vld [vmem:[#allocation2 + $0xd8] sm:$0xff]
      %v4248 = vld [vmem:[#allocation2 + $0xe0] sm:$0xff]
      %v4249 = vld [vmem:[#allocation2 + $0xe8] sm:$0xff]
      %v4250 = vld [vmem:[#allocation2 + $0xf0] sm:$0xff]
      %v4251 = vld [vmem:[#allocation2 + $0xf8] sm:$0xff]
      %v4252 = vld [vmem:[#allocation2 + $0x100] sm:$0xff]
      %v4253 = vld [vmem:[#allocation2 + $0x108] sm:$0xff]
      %v4254 = vld [vmem:[#allocation2 + $0x110] sm:$0xff]
      %v4255 = vld [vmem:[#allocation2 + $0x118] sm:$0xff]
      %v4256 = vld [vmem:[#allocation2 + $0x120] sm:$0xff]
      %v4257 = vld [vmem:[#allocation2 + $0x128] sm:$0xff]
      %v4258 = vld [vmem:[#allocation2 + $0x130] sm:$0xff]
      %v4259 = vld [vmem:[#allocation2 + $0x138] sm:$0xff]
      %v4260 = vld [vmem:[#allocation2 + $0x140] sm:$0xff]
      %v4261 = vld [vmem:[#allocation2 + $0x148] sm:$0xff]
      %v4262 = vld [vmem:[#allocation2 + $0x150] sm:$0xff]
      %v4263 = vld [vmem:[#allocation2 + $0x158] sm:$0xff]
      %v4264 = vld [vmem:[#allocation2 + $0x160] sm:$0xff]
      %v4265 = vld [vmem:[#allocation2 + $0x168] sm:$0xff]
      %v4266 = vld [vmem:[#allocation2 + $0x170] sm:$0xff]
      %v4267 = vld [vmem:[#allocation2 + $0x178] sm:$0xff]
      %v4268 = vld [vmem:[#allocation2 + $0x180] sm:$0xff]
      %v4269 = vld [vmem:[#allocation2 + $0x188] sm:$0xff]
      %v4270 = vld [vmem:[#allocation2 + $0x190] sm:$0xff]
      %v4271 = vld [vmem:[#allocation2 + $0x198] sm:$0xff]
      %v4272 = vld [vmem:[#allocation2 + $0x1a0] sm:$0xff]
      %v4273 = vld [vmem:[#allocation2 + $0x1a8] sm:$0xff]
      %v4274 = vld [vmem:[#allocation2 + $0x1b0] sm:$0xff]
      %v4275 = vld [vmem:[#allocation2 + $0x1b8] sm:$0xff]
      %v4276 = vld [vmem:[%s2] sm:$0xff]
      %v4277 = vld [vmem:[%s2 + $0x8] sm:$0xff]
      %v4278 = vld [vmem:[%s2 + $0x10] sm:$0xff]
      %v4279 = vld [vmem:[%s2 + $0x18] sm:$0xff]
      %4281 = vset.pattern.permute.xlu0 0
      %4282 = vperm.xlu0 %4281, %v4276
      %v4283 = vpop.permute.xlu0 %4282
      %4286 = vset.pattern.permute.xlu0 0
      %4287 = vperm.xlu0 %4286, %v4277
      %v4288 = vpop.permute.xlu0 %4287
      %4291 = vset.pattern.permute.xlu0 0
      %4292 = vperm.xlu0 %4291, %v4278
      %v4293 = vpop.permute.xlu0 %4292
      %4296 = vset.pattern.permute.xlu0 0
      %4297 = vperm.xlu0 %4296, %v4279
      %v4298 = vpop.permute.xlu0 %4297
      %v4304 = vunpack.c.l.b16 %v4216
      %v4305 = vunpack.c.l.b16 %v4217
      %v4306 = vunpack.c.l.b16 %v4218
      %v4307 = vunpack.c.l.b16 %v4219
      %v4308 = vpack.c.b16 %v4305, %v4304
      %v4309 = vpack.c.b16 %v4307, %v4306
      %vm4310 = vcmask 916480
      %v4312 = vsel %vm4310, %v4308, 0
      %v4315 = vsel %vm4310, %v4309, 0
      %4317 = vmatprep.subr.bf16.mxu0 %v4221
      %4318 = vmatpush1.bf16.msra.mxu0 %v4220
      %4319 = vmatprep.subr.bf16.mxu0 %v4229
      %4320 = vmatpush1.bf16.msra.mxu0 %v4228
      %4321 = vmatprep.subr.bf16.mxu0 %v4237
      %4322 = vmatpush1.bf16.msra.mxu0 %v4236
      %4323 = vmatprep.subr.bf16.mxu0 %v4245
      %4324 = vmatpush1.bf16.msra.mxu0 %v4244
      %4325 = vmatprep.subr.bf16.mxu0 %v4253
      %4326 = vmatpush1.bf16.msra.mxu0 %v4252
      %4327 = vmatprep.subr.bf16.mxu0 %v4261
      %4328 = vmatpush1.bf16.msra.mxu0 %v4260
      %4329 = vmatprep.subr.bf16.mxu0 %v4269
      %4330 = vmatpush1.bf16.msra.mxu0 %v4268
      %4331 = vmatprep.subr.bf16.mxu0 0
      %4332 = vmatpush1.bf16.msra.mxu0 0
      %4333 = vmatprep.subr.bf16.mxu0 0
      %4334 = vmatpush1.bf16.msra.mxu0 0
      %4335 = vmatprep.subr.bf16.mxu0 0
      %4336 = vmatpush1.bf16.msra.mxu0 0
      %4337 = vmatprep.subr.bf16.mxu0 0
      %4338 = vmatpush1.bf16.msra.mxu0 0
      %4339 = vmatprep.subr.bf16.mxu0 0
      %4340 = vmatpush1.bf16.msra.mxu0 0
      %4341 = vmatprep.subr.bf16.mxu0 0
      %4342 = vmatpush1.bf16.msra.mxu0 0
      %4343 = vmatprep.subr.bf16.mxu0 0
      %4344 = vmatpush1.bf16.msra.mxu0 0
      %4345 = vmatprep.subr.bf16.mxu0 0
      %4346 = vmatpush1.bf16.msra.mxu0 0
      %4347 = vmatprep.subr.bf16.mxu0 0
      %4348 = vmatpush1.bf16.msra.mxu0 0
      %4349 = vmatprep.mubr.bf16.mxu0 0
      %4350 = vmatmul.mubr.bf16.gmra.mrb[0].mxu0 %v4312
      %v4351 = vpop.f32.mrb[0].mxu0
      %v4352 = vadd.f32 %v4283, %v4351
      %v4353 = vpop.f32.mrb[0].mxu0
      %v4354 = vadd.f32 %v4283, %v4353
      %v4355 = vpop.f32.mrb[0].mxu0
      %v4356 = vadd.f32 %v4288, %v4355
      %v4357 = vpop.f32.mrb[0].mxu0
      %v4358 = vadd.f32 %v4288, %v4357
      %4359 = vmatprep.mubr.bf16.mxu0 0
      %4360 = vmatmul.mubr.bf16.gmra.mrb[0].mxu0 %v4315
      %v4361 = vpop.f32.mrb[0].mxu0
      %v4362 = vadd.f32 %v4293, %v4361
      %v4363 = vpop.f32.mrb[0].mxu0
      %v4364 = vadd.f32 %v4293, %v4363
      %v4365 = vpop.f32.mrb[0].mxu0
      %v4366 = vadd.f32 %v4298, %v4365
      %v4367 = vpop.f32.mrb[0].mxu0
      %v4368 = vadd.f32 %v4298, %v4367
      %4369 = vdwg.mxu0
      %4370 = vmatprep.subr.bf16.mxu0 %v4223
      %4371 = vmatpush1.bf16.msra.mxu0 %v4222
      %4372 = vmatprep.subr.bf16.mxu0 %v4231
      %4373 = vmatpush1.bf16.msra.mxu0 %v4230
      %4374 = vmatprep.subr.bf16.mxu0 %v4239
      %4375 = vmatpush1.bf16.msra.mxu0 %v4238
      %4376 = vmatprep.subr.bf16.mxu0 %v4247
      %4377 = vmatpush1.bf16.msra.mxu0 %v4246
      %4378 = vmatprep.subr.bf16.mxu0 %v4255
      %4379 = vmatpush1.bf16.msra.mxu0 %v4254
      %4380 = vmatprep.subr.bf16.mxu0 %v4263
      %4381 = vmatpush1.bf16.msra.mxu0 %v4262
      %4382 = vmatprep.subr.bf16.mxu0 %v4271
      %4383 = vmatpush1.bf16.msra.mxu0 %v4270
      %4384 = vmatprep.subr.bf16.mxu0 0
      %4385 = vmatpush1.bf16.msra.mxu0 0
      %4386 = vmatprep.subr.bf16.mxu0 0
      %4387 = vmatpush1.bf16.msra.mxu0 0
      %4388 = vmatprep.subr.bf16.mxu0 0
      %4389 = vmatpush1.bf16.msra.mxu0 0
      %4390 = vmatprep.subr.bf16.mxu0 0
      %4391 = vmatpush1.bf16.msra.mxu0 0
      %4392 = vmatprep.subr.bf16.mxu0 0
      %4393 = vmatpush1.bf16.msra.mxu0 0
      %4394 = vmatprep.subr.bf16.mxu0 0
      %4395 = vmatpush1.bf16.msra.mxu0 0
      %4396 = vmatprep.subr.bf16.mxu0 0
      %4397 = vmatpush1.bf16.msra.mxu0 0
      %4398 = vmatprep.subr.bf16.mxu0 0
      %4399 = vmatpush1.bf16.msra.mxu0 0
      %4400 = vmatprep.subr.bf16.mxu0 0
      %4401 = vmatpush1.bf16.msra.mxu0 0
      %4402 = vmatprep.mubr.bf16.mxu0 0
      %4403 = vmatmul.mubr.bf16.gmra.mrb[0].mxu0 %v4312
      %v4404 = vpop.f32.mrb[0].mxu0
      %v4405 = vadd.f32 %v4283, %v4404
      %v4406 = vpop.f32.mrb[0].mxu0
      %v4407 = vadd.f32 %v4283, %v4406
      %v4408 = vpop.f32.mrb[0].mxu0
      %v4409 = vadd.f32 %v4288, %v4408
      %v4410 = vpop.f32.mrb[0].mxu0
      %v4411 = vadd.f32 %v4288, %v4410
      %4412 = vmatprep.mubr.bf16.mxu0 0
      %4413 = vmatmul.mubr.bf16.gmra.mrb[0].mxu0 %v4315
      %v4414 = vpop.f32.mrb[0].mxu0
      %v4415 = vadd.f32 %v4293, %v4414
      %v4416 = vpop.f32.mrb[0].mxu0
      %v4417 = vadd.f32 %v4293, %v4416
      %v4418 = vpop.f32.mrb[0].mxu0
      %v4419 = vadd.f32 %v4298, %v4418
      %v4420 = vpop.f32.mrb[0].mxu0
      %v4421 = vadd.f32 %v4298, %v4420
      %4422 = vdwg.mxu0
      %4423 = vmatprep.subr.bf16.mxu0 %v4225
      %4424 = vmatpush1.bf16.msra.mxu0 %v4224
      %4425 = vmatprep.subr.bf16.mxu0 %v4233
      %4426 = vmatpush1.bf16.msra.mxu0 %v4232
      %4427 = vmatprep.subr.bf16.mxu0 %v4241
      %4428 = vmatpush1.bf16.msra.mxu0 %v4240
      %4429 = vmatprep.subr.bf16.mxu0 %v4249
      %4430 = vmatpush1.bf16.msra.mxu0 %v4248
      %4431 = vmatprep.subr.bf16.mxu0 %v4257
      %4432 = vmatpush1.bf16.msra.mxu0 %v4256
      %4433 = vmatprep.subr.bf16.mxu0 %v4265
      %4434 = vmatpush1.bf16.msra.mxu0 %v4264
      %4435 = vmatprep.subr.bf16.mxu0 %v4273
      %4436 = vmatpush1.bf16.msra.mxu0 %v4272
      %4437 = vmatprep.subr.bf16.mxu0 0
      %4438 = vmatpush1.bf16.msra.mxu0 0
      %4439 = vmatprep.subr.bf16.mxu0 0
      %4440 = vmatpush1.bf16.msra.mxu0 0
      %4441 = vmatprep.subr.bf16.mxu0 0
      %4442 = vmatpush1.bf16.msra.mxu0 0
      %4443 = vmatprep.subr.bf16.mxu0 0
      %4444 = vmatpush1.bf16.msra.mxu0 0
      %4445 = vmatprep.subr.bf16.mxu0 0
      %4446 = vmatpush1.bf16.msra.mxu0 0
      %4447 = vmatprep.subr.bf16.mxu0 0
      %4448 = vmatpush1.bf16.msra.mxu0 0
      %4449 = vmatprep.subr.bf16.mxu0 0
      %4450 = vmatpush1.bf16.msra.mxu0 0
      %4451 = vmatprep.subr.bf16.mxu0 0
      %4452 = vmatpush1.bf16.msra.mxu0 0
      %4453 = vmatprep.subr.bf16.mxu0 0
      %4454 = vmatpush1.bf16.msra.mxu0 0
      %4455 = vmatprep.mubr.bf16.mxu0 0
      %4456 = vmatmul.mubr.bf16.gmra.mrb[0].mxu0 %v4312
      %v4457 = vpop.f32.mrb[0].mxu0
      %v4458 = vadd.f32 %v4283, %v4457
      %v4459 = vpop.f32.mrb[0].mxu0
      %v4460 = vadd.f32 %v4283, %v4459
      %v4461 = vpop.f32.mrb[0].mxu0
      %v4462 = vadd.f32 %v4288, %v4461
      %v4463 = vpop.f32.mrb[0].mxu0
      %v4464 = vadd.f32 %v4288, %v4463
      %4465 = vmatprep.mubr.bf16.mxu0 0
      %4466 = vmatmul.mubr.bf16.gmra.mrb[0].mxu0 %v4315
      %v4467 = vpop.f32.mrb[0].mxu0
      %v4468 = vadd.f32 %v4293, %v4467
      %v4469 = vpop.f32.mrb[0].mxu0
      %v4470 = vadd.f32 %v4293, %v4469
      %v4471 = vpop.f32.mrb[0].mxu0
      %v4472 = vadd.f32 %v4298, %v4471
      %v4473 = vpop.f32.mrb[0].mxu0
      %v4474 = vadd.f32 %v4298, %v4473
      %4475 = vdwg.mxu0
      %4476 = vmatprep.subr.bf16.mxu0 %v4227
      %4477 = vmatpush1.bf16.msra.mxu0 %v4226
      %4478 = vmatprep.subr.bf16.mxu0 %v4235
      %4479 = vmatpush1.bf16.msra.mxu0 %v4234
      %4480 = vmatprep.subr.bf16.mxu0 %v4243
      %4481 = vmatpush1.bf16.msra.mxu0 %v4242
      %4482 = vmatprep.subr.bf16.mxu0 %v4251
      %4483 = vmatpush1.bf16.msra.mxu0 %v4250
      %4484 = vmatprep.subr.bf16.mxu0 %v4259
      %4485 = vmatpush1.bf16.msra.mxu0 %v4258
      %4486 = vmatprep.subr.bf16.mxu0 %v4267
      %4487 = vmatpush1.bf16.msra.mxu0 %v4266
      %4488 = vmatprep.subr.bf16.mxu0 %v4275
      %4489 = vmatpush1.bf16.msra.mxu0 %v4274
      %4490 = vmatprep.subr.bf16.mxu0 0
      %4491 = vmatpush1.bf16.msra.mxu0 0
      %4492 = vmatprep.subr.bf16.mxu0 0
      %4493 = vmatpush1.bf16.msra.mxu0 0
      %4494 = vmatprep.subr.bf16.mxu0 0
      %4495 = vmatpush1.bf16.msra.mxu0 0
      %4496 = vmatprep.subr.bf16.mxu0 0
      %4497 = vmatpush1.bf16.msra.mxu0 0
      %4498 = vmatprep.subr.bf16.mxu0 0
      %4499 = vmatpush1.bf16.msra.mxu0 0
      %4500 = vmatprep.subr.bf16.mxu0 0
      %4501 = vmatpush1.bf16.msra.mxu0 0
      %4502 = vmatprep.subr.bf16.mxu0 0
      %4503 = vmatpush1.bf16.msra.mxu0 0
      %4504 = vmatprep.subr.bf16.mxu0 0
      %4505 = vmatpush1.bf16.msra.mxu0 0
      %4506 = vmatprep.subr.bf16.mxu0 0
      %4507 = vmatpush1.bf16.msra.mxu0 0
      %4508 = vmatprep.mubr.bf16.mxu0 0
      %4509 = vmatmul.mubr.bf16.gmra.mrb[0].mxu0 %v4312
      %v4510 = vpop.f32.mrb[0].mxu0
      %v4511 = vadd.f32 %v4283, %v4510
      %v4512 = vpop.f32.mrb[0].mxu0
      %v4513 = vadd.f32 %v4283, %v4512
      %v4514 = vpop.f32.mrb[0].mxu0
      %v4515 = vadd.f32 %v4288, %v4514
      %v4516 = vpop.f32.mrb[0].mxu0
      %v4517 = vadd.f32 %v4288, %v4516
      %4518 = vmatprep.mubr.bf16.mxu0 0
      %4519 = vmatmul.mubr.bf16.gmra.mrb[0].mxu0 %v4315
      %v4520 = vpop.f32.mrb[0].mxu0
      %v4521 = vadd.f32 %v4293, %v4520
      %v4522 = vpop.f32.mrb[0].mxu0
      %v4523 = vadd.f32 %v4293, %v4522
      %v4524 = vpop.f32.mrb[0].mxu0
      %v4525 = vadd.f32 %v4298, %v4524
      %v4526 = vpop.f32.mrb[0].mxu0
      %v4527 = vadd.f32 %v4298, %v4526
      %4528 = vdwg.mxu0
      %v4529 = vmax.f32 %v4352, 0.0
      %v4530 = vmax.f32 %v4354, 0.0
      %v4531 = vmax.f32 %v4405, 0.0
      %v4532 = vmax.f32 %v4407, 0.0
      %v4533 = vmax.f32 %v4458, 0.0
      %v4534 = vmax.f32 %v4460, 0.0
      %v4535 = vmax.f32 %v4511, 0.0
      %v4536 = vmax.f32 %v4513, 0.0
      %v4537 = vmax.f32 %v4356, 0.0
      %v4538 = vmax.f32 %v4358, 0.0
      %v4539 = vmax.f32 %v4409, 0.0
      %v4540 = vmax.f32 %v4411, 0.0
      %v4541 = vmax.f32 %v4462, 0.0
      %v4542 = vmax.f32 %v4464, 0.0
      %v4543 = vmax.f32 %v4515, 0.0
      %v4544 = vmax.f32 %v4517, 0.0
      %v4545 = vmax.f32 %v4362, 0.0
      %v4546 = vmax.f32 %v4364, 0.0
      %v4547 = vmax.f32 %v4415, 0.0
      %v4548 = vmax.f32 %v4417, 0.0
      %v4549 = vmax.f32 %v4468, 0.0
      %v4550 = vmax.f32 %v4470, 0.0
      %v4551 = vmax.f32 %v4521, 0.0
      %v4552 = vmax.f32 %v4523, 0.0
      %v4553 = vmax.f32 %v4366, 0.0
      %v4554 = vmax.f32 %v4368, 0.0
      %v4555 = vmax.f32 %v4419, 0.0
      %v4556 = vmax.f32 %v4421, 0.0
      %v4557 = vmax.f32 %v4472, 0.0
      %v4558 = vmax.f32 %v4474, 0.0
      %v4559 = vmax.f32 %v4525, 0.0
      %v4560 = vmax.f32 %v4527, 0.0
      %v4561 = vld [vmem:[%s3] sm:$0xf]
      %v4562 = vld [vmem:[%s3 + $0x4] sm:$0xf]
      %v4563 = vld [vmem:[%s3 + $0x8] sm:$0xf]
      %v4564 = vld [vmem:[%s3 + $0xc] sm:$0xf]
      %v4565 = vpack.c.bf16 %v4537, %v4529
      %v4566 = vpack.c.bf16 %v4538, %v4530
      %v4567 = vpack.c.bf16 %v4539, %v4531
      %v4568 = vpack.c.bf16 %v4540, %v4532
      %v4569 = vpack.c.bf16 %v4541, %v4533
      %v4570 = vpack.c.bf16 %v4542, %v4534
      %v4571 = vpack.c.bf16 %v4543, %v4535
      %v4572 = vpack.c.bf16 %v4544, %v4536
      %v4573 = vpack.c.bf16 %v4553, %v4545
      %v4574 = vpack.c.bf16 %v4554, %v4546
      %v4575 = vpack.c.bf16 %v4555, %v4547
      %v4576 = vpack.c.bf16 %v4556, %v4548
      %v4577 = vpack.c.bf16 %v4557, %v4549
      %v4578 = vpack.c.bf16 %v4558, %v4550
      %v4579 = vpack.c.bf16 %v4559, %v4551
      %v4580 = vpack.c.bf16 %v4560, %v4552
      %v4581 = vld [vmem:[%s4] sm:$0xff]
      %v4582 = vld [vmem:[%s4 + $0x8] sm:$0xff]
      %v4583 = vld [vmem:[%s4 + $0x10] sm:$0xff]
      %v4584 = vld [vmem:[%s4 + $0x18] sm:$0xff]
      %4586 = vset.pattern.permute.xlu0 0
      %4587 = vperm.xlu0 %4586, %v4581
      %v4588 = vpop.permute.xlu0 %4587
      %4591 = vset.pattern.permute.xlu0 0
      %4592 = vperm.xlu0 %4591, %v4582
      %v4593 = vpop.permute.xlu0 %4592
      %4596 = vset.pattern.permute.xlu0 0
      %4597 = vperm.xlu0 %4596, %v4583
      %v4598 = vpop.permute.xlu0 %4597
      %4601 = vset.pattern.permute.xlu0 0
      %4602 = vperm.xlu0 %4601, %v4584
      %v4603 = vpop.permute.xlu0 %4602
      %v4609 = vunpack.c.l.b16 %v4561
      %v4610 = vunpack.c.l.b16 %v4562
      %v4611 = vunpack.c.l.b16 %v4563
      %v4612 = vunpack.c.l.b16 %v4564
      %v4613 = vpack.c.b16 %v4610, %v4609
      %v4614 = vpack.c.b16 %v4612, %v4611
      %vm4615 = vcmask 261120
      %v4617 = vsel %vm4615, %v4613, 0
      %v4620 = vsel %vm4615, %v4614, 0
      %4622 = vmatprep.subr.bf16.mxu0 %v4566
      %4623 = vmatpush1.bf16.msra.mxu0 %v4565
      %4624 = vmatprep.subr.bf16.mxu0 %v4574
      %4625 = vmatpush1.bf16.msra.mxu0 %v4573
      %4626 = vmatprep.subr.bf16.mxu0 0
      %4627 = vmatpush1.bf16.msra.mxu0 0
      %4628 = vmatprep.subr.bf16.mxu0 0
      %4629 = vmatpush1.bf16.msra.mxu0 0
      %4630 = vmatprep.subr.bf16.mxu0 0
      %4631 = vmatpush1.bf16.msra.mxu0 0
      %4632 = vmatprep.subr.bf16.mxu0 0
      %4633 = vmatpush1.bf16.msra.mxu0 0
      %4634 = vmatprep.subr.bf16.mxu0 0
      %4635 = vmatpush1.bf16.msra.mxu0 0
      %4636 = vmatprep.subr.bf16.mxu0 0
      %4637 = vmatpush1.bf16.msra.mxu0 0
      %4638 = vmatprep.subr.bf16.mxu0 0
      %4639 = vmatpush1.bf16.msra.mxu0 0
      %4640 = vmatprep.subr.bf16.mxu0 0
      %4641 = vmatpush1.bf16.msra.mxu0 0
      %4642 = vmatprep.subr.bf16.mxu0 0
      %4643 = vmatpush1.bf16.msra.mxu0 0
      %4644 = vmatprep.subr.bf16.mxu0 0
      %4645 = vmatpush1.bf16.msra.mxu0 0
      %4646 = vmatprep.subr.bf16.mxu0 0
      %4647 = vmatpush1.bf16.msra.mxu0 0
      %4648 = vmatprep.subr.bf16.mxu0 0
      %4649 = vmatpush1.bf16.msra.mxu0 0
      %4650 = vmatprep.subr.bf16.mxu0 0
      %4651 = vmatpush1.bf16.msra.mxu0 0
      %4652 = vmatprep.subr.bf16.mxu0 0
      %4653 = vmatpush1.bf16.msra.mxu0 0
      %4654 = vmatprep.mubr.bf16.mxu0 0
      %4655 = vmatmul.mubr.bf16.gmra.mrb[0].mxu0 %v4617
      %v4656 = vpop.f32.mrb[0].mxu0
      %v4657 = vadd.f32 %v4588, %v4656
      %v4658 = vpop.f32.mrb[0].mxu0
      %v4659 = vadd.f32 %v4588, %v4658
      %v4660 = vpop.f32.mrb[0].mxu0
      %v4661 = vadd.f32 %v4593, %v4660
      %v4662 = vpop.f32.mrb[0].mxu0
      %v4663 = vadd.f32 %v4593, %v4662
      %4664 = vmatprep.mubr.bf16.mxu0 0
      %4665 = vmatmul.mubr.bf16.gmra.mrb[0].mxu0 %v4620
      %v4666 = vpop.f32.mrb[0].mxu0
      %v4667 = vadd.f32 %v4598, %v4666
      %v4668 = vpop.f32.mrb[0].mxu0
      %v4669 = vadd.f32 %v4598, %v4668
      %v4670 = vpop.f32.mrb[0].mxu0
      %v4671 = vadd.f32 %v4603, %v4670
      %v4672 = vpop.f32.mrb[0].mxu0
      %v4673 = vadd.f32 %v4603, %v4672
      %4674 = vdwg.mxu0
      %4675 = vmatprep.subr.bf16.mxu0 %v4568
      %4676 = vmatpush1.bf16.msra.mxu0 %v4567
      %4677 = vmatprep.subr.bf16.mxu0 %v4576
      %4678 = vmatpush1.bf16.msra.mxu0 %v4575
      %4679 = vmatprep.subr.bf16.mxu0 0
      %4680 = vmatpush1.bf16.msra.mxu0 0
      %4681 = vmatprep.subr.bf16.mxu0 0
      %4682 = vmatpush1.bf16.msra.mxu0 0
      %4683 = vmatprep.subr.bf16.mxu0 0
      %4684 = vmatpush1.bf16.msra.mxu0 0
      %4685 = vmatprep.subr.bf16.mxu0 0
      %4686 = vmatpush1.bf16.msra.mxu0 0
      %4687 = vmatprep.subr.bf16.mxu0 0
      %4688 = vmatpush1.bf16.msra.mxu0 0
      %4689 = vmatprep.subr.bf16.mxu0 0
      %4690 = vmatpush1.bf16.msra.mxu0 0
      %4691 = vmatprep.subr.bf16.mxu0 0
      %4692 = vmatpush1.bf16.msra.mxu0 0
      %4693 = vmatprep.subr.bf16.mxu0 0
      %4694 = vmatpush1.bf16.msra.mxu0 0
      %4695 = vmatprep.subr.bf16.mxu0 0
      %4696 = vmatpush1.bf16.msra.mxu0 0
      %4697 = vmatprep.subr.bf16.mxu0 0
      %4698 = vmatpush1.bf16.msra.mxu0 0
      %4699 = vmatprep.subr.bf16.mxu0 0
      %4700 = vmatpush1.bf16.msra.mxu0 0
      %4701 = vmatprep.subr.bf16.mxu0 0
      %4702 = vmatpush1.bf16.msra.mxu0 0
      %4703 = vmatprep.subr.bf16.mxu0 0
      %4704 = vmatpush1.bf16.msra.mxu0 0
      %4705 = vmatprep.subr.bf16.mxu0 0
      %4706 = vmatpush1.bf16.msra.mxu0 0
      %4707 = vmatprep.mubr.bf16.mxu0 0
      %4708 = vmatmul.mubr.bf16.gmra.mrb[0].mxu0 %v4617
      %v4709 = vpop.f32.mrb[0].mxu0
      %v4710 = vadd.f32 %v4588, %v4709
      %v4711 = vpop.f32.mrb[0].mxu0
      %v4712 = vadd.f32 %v4588, %v4711
      %v4713 = vpop.f32.mrb[0].mxu0
      %v4714 = vadd.f32 %v4593, %v4713
      %v4715 = vpop.f32.mrb[0].mxu0
      %v4716 = vadd.f32 %v4593, %v4715
      %4717 = vmatprep.mubr.bf16.mxu0 0
      %4718 = vmatmul.mubr.bf16.gmra.mrb[0].mxu0 %v4620
      %v4719 = vpop.f32.mrb[0].mxu0
      %v4720 = vadd.f32 %v4598, %v4719
      %v4721 = vpop.f32.mrb[0].mxu0
      %v4722 = vadd.f32 %v4598, %v4721
      %v4723 = vpop.f32.mrb[0].mxu0
      %v4724 = vadd.f32 %v4603, %v4723
      %v4725 = vpop.f32.mrb[0].mxu0
      %v4726 = vadd.f32 %v4603, %v4725
      %4727 = vdwg.mxu0
      %4728 = vmatprep.subr.bf16.mxu0 %v4570
      %4729 = vmatpush1.bf16.msra.mxu0 %v4569
      %4730 = vmatprep.subr.bf16.mxu0 %v4578
      %4731 = vmatpush1.bf16.msra.mxu0 %v4577
      %4732 = vmatprep.subr.bf16.mxu0 0
      %4733 = vmatpush1.bf16.msra.mxu0 0
      %4734 = vmatprep.subr.bf16.mxu0 0
      %4735 = vmatpush1.bf16.msra.mxu0 0
      %4736 = vmatprep.subr.bf16.mxu0 0
      %4737 = vmatpush1.bf16.msra.mxu0 0
      %4738 = vmatprep.subr.bf16.mxu0 0
      %4739 = vmatpush1.bf16.msra.mxu0 0
      %4740 = vmatprep.subr.bf16.mxu0 0
      %4741 = vmatpush1.bf16.msra.mxu0 0
      %4742 = vmatprep.subr.bf16.mxu0 0
      %4743 = vmatpush1.bf16.msra.mxu0 0
      %4744 = vmatprep.subr.bf16.mxu0 0
      %4745 = vmatpush1.bf16.msra.mxu0 0
      %4746 = vmatprep.subr.bf16.mxu0 0
      %4747 = vmatpush1.bf16.msra.mxu0 0
      %4748 = vmatprep.subr.bf16.mxu0 0
      %4749 = vmatpush1.bf16.msra.mxu0 0
      %4750 = vmatprep.subr.bf16.mxu0 0
      %4751 = vmatpush1.bf16.msra.mxu0 0
      %4752 = vmatprep.subr.bf16.mxu0 0
      %4753 = vmatpush1.bf16.msra.mxu0 0
      %4754 = vmatprep.subr.bf16.mxu0 0
      %4755 = vmatpush1.bf16.msra.mxu0 0
      %4756 = vmatprep.subr.bf16.mxu0 0
      %4757 = vmatpush1.bf16.msra.mxu0 0
      %4758 = vmatprep.subr.bf16.mxu0 0
      %4759 = vmatpush1.bf16.msra.mxu0 0
      %4760 = vmatprep.mubr.bf16.mxu0 0
      %4761 = vmatmul.mubr.bf16.gmra.mrb[0].mxu0 %v4617
      %v4762 = vpop.f32.mrb[0].mxu0
      %v4763 = vadd.f32 %v4588, %v4762
      %v4764 = vpop.f32.mrb[0].mxu0
      %v4765 = vadd.f32 %v4588, %v4764
      %v4766 = vpop.f32.mrb[0].mxu0
      %v4767 = vadd.f32 %v4593, %v4766
      %v4768 = vpop.f32.mrb[0].mxu0
      %v4769 = vadd.f32 %v4593, %v4768
      %4770 = vmatprep.mubr.bf16.mxu0 0
      %4771 = vmatmul.mubr.bf16.gmra.mrb[0].mxu0 %v4620
      %v4772 = vpop.f32.mrb[0].mxu0
      %v4773 = vadd.f32 %v4598, %v4772
      %v4774 = vpop.f32.mrb[0].mxu0
      %v4775 = vadd.f32 %v4598, %v4774
      %v4776 = vpop.f32.mrb[0].mxu0
      %v4777 = vadd.f32 %v4603, %v4776
      %v4778 = vpop.f32.mrb[0].mxu0
      %v4779 = vadd.f32 %v4603, %v4778
      %4780 = vdwg.mxu0
      %4781 = vmatprep.subr.bf16.mxu0 %v4572
      %4782 = vmatpush1.bf16.msra.mxu0 %v4571
      %4783 = vmatprep.subr.bf16.mxu0 %v4580
      %4784 = vmatpush1.bf16.msra.mxu0 %v4579
      %4785 = vmatprep.subr.bf16.mxu0 0
      %4786 = vmatpush1.bf16.msra.mxu0 0
      %4787 = vmatprep.subr.bf16.mxu0 0
      %4788 = vmatpush1.bf16.msra.mxu0 0
      %4789 = vmatprep.subr.bf16.mxu0 0
      %4790 = vmatpush1.bf16.msra.mxu0 0
      %4791 = vmatprep.subr.bf16.mxu0 0
      %4792 = vmatpush1.bf16.msra.mxu0 0
      %4793 = vmatprep.subr.bf16.mxu0 0
      %4794 = vmatpush1.bf16.msra.mxu0 0
      %4795 = vmatprep.subr.bf16.mxu0 0
      %4796 = vmatpush1.bf16.msra.mxu0 0
      %4797 = vmatprep.subr.bf16.mxu0 0
      %4798 = vmatpush1.bf16.msra.mxu0 0
      %4799 = vmatprep.subr.bf16.mxu0 0
      %4800 = vmatpush1.bf16.msra.mxu0 0
      %4801 = vmatprep.subr.bf16.mxu0 0
      %4802 = vmatpush1.bf16.msra.mxu0 0
      %4803 = vmatprep.subr.bf16.mxu0 0
      %4804 = vmatpush1.bf16.msra.mxu0 0
      %4805 = vmatprep.subr.bf16.mxu0 0
      %4806 = vmatpush1.bf16.msra.mxu0 0
      %4807 = vmatprep.subr.bf16.mxu0 0
      %4808 = vmatpush1.bf16.msra.mxu0 0
      %4809 = vmatprep.subr.bf16.mxu0 0
      %4810 = vmatpush1.bf16.msra.mxu0 0
      %4811 = vmatprep.subr.bf16.mxu0 0
      %4812 = vmatpush1.bf16.msra.mxu0 0
      %4813 = vmatprep.mubr.bf16.mxu0 0
      %4814 = vmatmul.mubr.bf16.gmra.mrb[0].mxu0 %v4617
      %v4815 = vpop.f32.mrb[0].mxu0
      %v4816 = vadd.f32 %v4588, %v4815
      %v4817 = vpop.f32.mrb[0].mxu0
      %v4818 = vadd.f32 %v4588, %v4817
      %v4819 = vpop.f32.mrb[0].mxu0
      %v4820 = vadd.f32 %v4593, %v4819
      %v4821 = vpop.f32.mrb[0].mxu0
      %v4822 = vadd.f32 %v4593, %v4821
      %4823 = vmatprep.mubr.bf16.mxu0 0
      %4824 = vmatmul.mubr.bf16.gmra.mrb[0].mxu0 %v4620
      %v4825 = vpop.f32.mrb[0].mxu0
      %v4826 = vadd.f32 %v4598, %v4825
      %v4827 = vpop.f32.mrb[0].mxu0
      %v4828 = vadd.f32 %v4598, %v4827
      %v4829 = vpop.f32.mrb[0].mxu0
      %v4830 = vadd.f32 %v4603, %v4829
      %v4831 = vpop.f32.mrb[0].mxu0
      %v4832 = vadd.f32 %v4603, %v4831
      %4833 = vdwg.mxu0
      %v4834 = vmax.f32 %v4657, 0.0
      %v4835 = vmax.f32 %v4659, 0.0
      %v4836 = vmax.f32 %v4710, 0.0
      %v4837 = vmax.f32 %v4712, 0.0
      %v4838 = vmax.f32 %v4763, 0.0
      %v4839 = vmax.f32 %v4765, 0.0
      %v4840 = vmax.f32 %v4816, 0.0
      %v4841 = vmax.f32 %v4818, 0.0
      %v4842 = vmax.f32 %v4661, 0.0
      %v4843 = vmax.f32 %v4663, 0.0
      %v4844 = vmax.f32 %v4714, 0.0
      %v4845 = vmax.f32 %v4716, 0.0
      %v4846 = vmax.f32 %v4767, 0.0
      %v4847 = vmax.f32 %v4769, 0.0
      %v4848 = vmax.f32 %v4820, 0.0
      %v4849 = vmax.f32 %v4822, 0.0
      %v4850 = vmax.f32 %v4667, 0.0
      %v4851 = vmax.f32 %v4669, 0.0
      %v4852 = vmax.f32 %v4720, 0.0
      %v4853 = vmax.f32 %v4722, 0.0
      %v4854 = vmax.f32 %v4773, 0.0
      %v4855 = vmax.f32 %v4775, 0.0
      %v4856 = vmax.f32 %v4826, 0.0
      %v4857 = vmax.f32 %v4828, 0.0
      %v4858 = vmax.f32 %v4671, 0.0
      %v4859 = vmax.f32 %v4673, 0.0
      %v4860 = vmax.f32 %v4724, 0.0
      %v4861 = vmax.f32 %v4726, 0.0
      %v4862 = vmax.f32 %v4777, 0.0
      %v4863 = vmax.f32 %v4779, 0.0
      %v4864 = vmax.f32 %v4830, 0.0
      %v4865 = vmax.f32 %v4832, 0.0
      %v4866 = vld [vmem:[%s7] ss:$8 sm:$0xf]
      %v4867 = vld [vmem:[%s7] ss:$8 sm:$0xf0]
      %v4868 = vor.u32 %v4866, %v4867
      %v4870 = vlaneseq
      %v4871 = vshrl.u32 %v4870, 7
      %v4872 = vsub.s32 0, %v4871
      %v4873 = vrot.slane %v4868, %v4872
      %v4874 = vlaneseq
      %v4875 = vshrl.u32 %v4874, 7
      %v4876 = vsub.s32 1, %v4875
      %v4877 = vrot.slane %v4868, %v4876
      %v4878 = vlaneseq
      %v4879 = vshrl.u32 %v4878, 7
      %v4880 = vsub.s32 2, %v4879
      %v4881 = vrot.slane %v4868, %v4880
      %v4882 = vlaneseq
      %v4883 = vshrl.u32 %v4882, 7
      %v4884 = vsub.s32 3, %v4883
      %v4885 = vrot.slane %v4868, %v4884
      %v4886 = vlaneseq
      %v4887 = vshrl.u32 %v4886, 7
      %v4888 = vsub.s32 4, %v4887
      %v4889 = vrot.slane %v4868, %v4888
      %v4890 = vlaneseq
      %v4891 = vshrl.u32 %v4890, 7
      %v4892 = vsub.s32 5, %v4891
      %v4893 = vrot.slane %v4868, %v4892
      %v4894 = vlaneseq
      %v4895 = vshrl.u32 %v4894, 7
      %v4896 = vsub.s32 6, %v4895
      %v4897 = vrot.slane %v4868, %v4896
      %v4898 = vlaneseq
      %v4899 = vshrl.u32 %v4898, 7
      %v4900 = vsub.s32 7, %v4899
      %v4901 = vrot.slane %v4868, %v4900
      %4902 = vrot.lane.b32.xlu0 %v4873, 55
      %v4903 = vpop.permute.xlu0 %4902
      %4904 = vrot.lane.b32.xlu0 %v4877, 55
      %v4905 = vpop.permute.xlu0 %4904
      %4906 = vrot.lane.b32.xlu0 %v4881, 55
      %v4907 = vpop.permute.xlu0 %4906
      %4908 = vrot.lane.b32.xlu0 %v4885, 55
      %v4909 = vpop.permute.xlu0 %4908
      %4910 = vrot.lane.b32.xlu0 %v4889, 55
      %v4911 = vpop.permute.xlu0 %4910
      %4912 = vrot.lane.b32.xlu0 %v4893, 55
      %v4913 = vpop.permute.xlu0 %4912
      %4914 = vrot.lane.b32.xlu0 %v4897, 55
      %v4915 = vpop.permute.xlu0 %4914
      %4916 = vrot.lane.b32.xlu0 %v4901, 55
      %v4917 = vpop.permute.xlu0 %4916
      %v4918 = vsel %vm383, %v4903, %v4905
      %v4919 = vsel %vm383, %v4905, %v4907
      %v4920 = vsel %vm383, %v4907, %v4909
      %v4921 = vsel %vm383, %v4909, %v4911
      %v4922 = vsel %vm383, %v4911, %v4913
      %v4923 = vsel %vm383, %v4913, %v4915
      %v4924 = vsel %vm383, %v4915, %v4917
      %v4934 = vmul.f32 %v4903, 0.0
      %v4935 = vmul.f32 %v4834, %v4918
      %v4936 = vmul.f32 %v4835, %v4919
      %v4937 = vmul.f32 %v4836, %v4920
      %v4938 = vmul.f32 %v4837, %v4921
      %v4939 = vmul.f32 %v4838, %v4922
      %v4940 = vmul.f32 %v4839, %v4923
      %v4941 = vmul.f32 %v4840, %v4924
      %v4942 = vmul.f32 %v4841, %v4917
      %v4943 = vmul.f32 %v4842, %v4918
      %v4944 = vmul.f32 %v4843, %v4919
      %v4945 = vmul.f32 %v4844, %v4920
      %v4946 = vmul.f32 %v4845, %v4921
      %v4947 = vmul.f32 %v4846, %v4922
      %v4948 = vmul.f32 %v4847, %v4923
      %v4949 = vmul.f32 %v4848, %v4924
      %v4950 = vmul.f32 %v4849, %v4917
      %v4951 = vmul.f32 %v4850, %v4918
      %v4952 = vmul.f32 %v4851, %v4919
      %v4953 = vmul.f32 %v4852, %v4920
      %v4954 = vmul.f32 %v4853, %v4921
      %v4955 = vmul.f32 %v4854, %v4922
      %v4956 = vmul.f32 %v4855, %v4923
      %v4957 = vmul.f32 %v4856, %v4924
      %v4958 = vmul.f32 %v4857, %v4917
      %v4959 = vmul.f32 %v4858, %v4918
      %v4960 = vmul.f32 %v4859, %v4919
      %v4961 = vmul.f32 %v4860, %v4920
      %v4962 = vmul.f32 %v4861, %v4921
      %v4963 = vmul.f32 %v4862, %v4922
      %v4964 = vmul.f32 %v4863, %v4923
      %v4965 = vmul.f32 %v4864, %v4924
      %v4966 = vmul.f32 %v4865, %v4917
      %v4967 = vpack.c.bf16 %v4934, %v4934
      %v4968 = vpack.c.bf16 %v4943, %v4935
      %v4969 = vpack.c.bf16 %v4944, %v4936
      %v4970 = vpack.c.bf16 %v4945, %v4937
      %v4971 = vpack.c.bf16 %v4946, %v4938
      %v4972 = vpack.c.bf16 %v4947, %v4939
      %v4973 = vpack.c.bf16 %v4948, %v4940
      %v4974 = vpack.c.bf16 %v4949, %v4941
      %v4975 = vpack.c.bf16 %v4950, %v4942
      %v4976 = vpack.c.bf16 %v4959, %v4951
      %v4977 = vpack.c.bf16 %v4960, %v4952
      %v4978 = vpack.c.bf16 %v4961, %v4953
      %v4979 = vpack.c.bf16 %v4962, %v4954
      %v4980 = vpack.c.bf16 %v4963, %v4955
      %v4981 = vpack.c.bf16 %v4964, %v4956
      %v4982 = vpack.c.bf16 %v4965, %v4957
      %v4983 = vpack.c.bf16 %v4966, %v4958
      %5001 = vrot.lane.b32.xlu0 %v4967, 73
      %v5002 = vpop.permute.xlu0 %5001
      %5003 = vrot.lane.b32.xlu0 %v4968, 73
      %v5004 = vpop.permute.xlu0 %5003
      %5005 = vrot.lane.b32.xlu0 %v4969, 73
      %v5006 = vpop.permute.xlu0 %5005
      %5007 = vrot.lane.b32.xlu0 %v4970, 73
      %v5008 = vpop.permute.xlu0 %5007
      %5009 = vrot.lane.b32.xlu0 %v4971, 73
      %v5010 = vpop.permute.xlu0 %5009
      %5011 = vrot.lane.b32.xlu0 %v4972, 73
      %v5012 = vpop.permute.xlu0 %5011
      %5013 = vrot.lane.b32.xlu0 %v4973, 73
      %v5014 = vpop.permute.xlu0 %5013
      %5015 = vrot.lane.b32.xlu0 %v4974, 73
      %v5016 = vpop.permute.xlu0 %5015
      %5017 = vrot.lane.b32.xlu0 %v4975, 73
      %v5018 = vpop.permute.xlu0 %5017
      %5019 = vrot.lane.b32.xlu0 %v4976, 73
      %v5020 = vpop.permute.xlu0 %5019
      %5021 = vrot.lane.b32.xlu0 %v4977, 73
      %v5022 = vpop.permute.xlu0 %5021
      %5023 = vrot.lane.b32.xlu0 %v4978, 73
      %v5024 = vpop.permute.xlu0 %5023
      %5025 = vrot.lane.b32.xlu0 %v4979, 73
      %v5026 = vpop.permute.xlu0 %5025
      %5027 = vrot.lane.b32.xlu0 %v4980, 73
      %v5028 = vpop.permute.xlu0 %5027
      %5029 = vrot.lane.b32.xlu0 %v4981, 73
      %v5030 = vpop.permute.xlu0 %5029
      %5031 = vrot.lane.b32.xlu0 %v4982, 73
      %v5032 = vpop.permute.xlu0 %5031
      %5033 = vrot.lane.b32.xlu0 %v4983, 73
      %v5034 = vpop.permute.xlu0 %5033
      %v5035 = vsel %vm445, %v5002, %v5004
      %v5036 = vsel %vm445, %v5004, %v5006
      %v5037 = vsel %vm445, %v5006, %v5008
      %v5038 = vsel %vm445, %v5008, %v5010
      %v5039 = vsel %vm445, %v5010, %v5012
      %v5040 = vsel %vm445, %v5012, %v5014
      %v5041 = vsel %vm445, %v5014, %v5016
      %v5042 = vsel %vm445, %v5016, %v5018
      %v5043 = vsel %vm445, %v5002, %v5020
      %v5044 = vsel %vm445, %v5020, %v5022
      %v5045 = vsel %vm445, %v5022, %v5024
      %v5046 = vsel %vm445, %v5024, %v5026
      %v5047 = vsel %vm445, %v5026, %v5028
      %v5048 = vsel %vm445, %v5028, %v5030
      %v5049 = vsel %vm445, %v5030, %v5032
      %v5050 = vsel %vm445, %v5032, %v5034
      %5067 = vst [vmem:[#allocation3] sm:$0xff] %v5035
      %5068 = vst [vmem:[#allocation3 + $0x8] sm:$0xff] %v5036
      %5069 = vst [vmem:[#allocation3 + $0x10] sm:$0xff] %v5037
      %5070 = vst [vmem:[#allocation3 + $0x18] sm:$0xff] %v5038
      %5071 = vst [vmem:[#allocation3 + $0x20] sm:$0xff] %v5039
      %5072 = vst [vmem:[#allocation3 + $0x28] sm:$0xff] %v5040
      %5073 = vst [vmem:[#allocation3 + $0x30] sm:$0xff] %v5041
      %5074 = vst [vmem:[#allocation3 + $0x38] sm:$0xff] %v5042
      %5075 = vst [vmem:[#allocation3 + $0x40] sm:$0xff] %v5043
      %5076 = vst [vmem:[#allocation3 + $0x48] sm:$0xff] %v5044
      %5077 = vst [vmem:[#allocation3 + $0x50] sm:$0xff] %v5045
      %5078 = vst [vmem:[#allocation3 + $0x58] sm:$0xff] %v5046
      %5079 = vst [vmem:[#allocation3 + $0x60] sm:$0xff] %v5047
      %5080 = vst [vmem:[#allocation3 + $0x68] sm:$0xff] %v5048
      %5081 = vst [vmem:[#allocation3 + $0x70] sm:$0xff] %v5049
      %5082 = vst [vmem:[#allocation3 + $0x78] sm:$0xff] %v5050
      %v5083 = vld [vmem:[%s470] ss:$8 sm:$0xf]
      %v5084 = vld [vmem:[%s470] ss:$8 sm:$0xf0]
      %v5085 = vor.u32 %v5083, %v5084
      %v5087 = vlaneseq
      %v5088 = vshrl.u32 %v5087, 7
      %v5089 = vsub.s32 0, %v5088
      %v5090 = vrot.slane %v5085, %v5089
      %v5091 = vlaneseq
      %v5092 = vshrl.u32 %v5091, 7
      %v5093 = vsub.s32 1, %v5092
      %v5094 = vrot.slane %v5085, %v5093
      %v5095 = vlaneseq
      %v5096 = vshrl.u32 %v5095, 7
      %v5097 = vsub.s32 2, %v5096
      %v5098 = vrot.slane %v5085, %v5097
      %v5099 = vlaneseq
      %v5100 = vshrl.u32 %v5099, 7
      %v5101 = vsub.s32 3, %v5100
      %v5102 = vrot.slane %v5085, %v5101
      %v5103 = vlaneseq
      %v5104 = vshrl.u32 %v5103, 7
      %v5105 = vsub.s32 4, %v5104
      %v5106 = vrot.slane %v5085, %v5105
      %v5107 = vlaneseq
      %v5108 = vshrl.u32 %v5107, 7
      %v5109 = vsub.s32 5, %v5108
      %v5110 = vrot.slane %v5085, %v5109
      %v5111 = vlaneseq
      %v5112 = vshrl.u32 %v5111, 7
      %v5113 = vsub.s32 6, %v5112
      %v5114 = vrot.slane %v5085, %v5113
      %v5115 = vlaneseq
      %v5116 = vshrl.u32 %v5115, 7
      %v5117 = vsub.s32 7, %v5116
      %v5118 = vrot.slane %v5085, %v5117
      %5119 = vrot.lane.b32.xlu0 %v5090, 56
      %v5120 = vpop.permute.xlu0 %5119
      %5121 = vrot.lane.b32.xlu0 %v5094, 56
      %v5122 = vpop.permute.xlu0 %5121
      %5123 = vrot.lane.b32.xlu0 %v5098, 56
      %v5124 = vpop.permute.xlu0 %5123
      %5125 = vrot.lane.b32.xlu0 %v5102, 56
      %v5126 = vpop.permute.xlu0 %5125
      %5127 = vrot.lane.b32.xlu0 %v5106, 56
      %v5128 = vpop.permute.xlu0 %5127
      %5129 = vrot.lane.b32.xlu0 %v5110, 56
      %v5130 = vpop.permute.xlu0 %5129
      %5131 = vrot.lane.b32.xlu0 %v5114, 56
      %v5132 = vpop.permute.xlu0 %5131
      %5133 = vrot.lane.b32.xlu0 %v5118, 56
      %v5134 = vpop.permute.xlu0 %5133
      %v5135 = vsel %vm523, %v5120, %v5122
      %v5136 = vsel %vm523, %v5122, %v5124
      %v5137 = vsel %vm523, %v5124, %v5126
      %v5138 = vsel %vm523, %v5126, %v5128
      %v5139 = vsel %vm523, %v5128, %v5130
      %v5140 = vsel %vm523, %v5130, %v5132
      %v5141 = vsel %vm523, %v5132, %v5134
      %v5151 = vmul.f32 %v5120, 0.0
      %v5152 = vmul.f32 %v4834, %v5135
      %v5153 = vmul.f32 %v4835, %v5136
      %v5154 = vmul.f32 %v4836, %v5137
      %v5155 = vmul.f32 %v4837, %v5138
      %v5156 = vmul.f32 %v4838, %v5139
      %v5157 = vmul.f32 %v4839, %v5140
      %v5158 = vmul.f32 %v4840, %v5141
      %v5159 = vmul.f32 %v4841, %v5134
      %v5160 = vmul.f32 %v4842, %v5135
      %v5161 = vmul.f32 %v4843, %v5136
      %v5162 = vmul.f32 %v4844, %v5137
      %v5163 = vmul.f32 %v4845, %v5138
      %v5164 = vmul.f32 %v4846, %v5139
      %v5165 = vmul.f32 %v4847, %v5140
      %v5166 = vmul.f32 %v4848, %v5141
      %v5167 = vmul.f32 %v4849, %v5134
      %v5168 = vmul.f32 %v4850, %v5135
      %v5169 = vmul.f32 %v4851, %v5136
      %v5170 = vmul.f32 %v4852, %v5137
      %v5171 = vmul.f32 %v4853, %v5138
      %v5172 = vmul.f32 %v4854, %v5139
      %v5173 = vmul.f32 %v4855, %v5140
      %v5174 = vmul.f32 %v4856, %v5141
      %v5175 = vmul.f32 %v4857, %v5134
      %v5176 = vmul.f32 %v4858, %v5135
      %v5177 = vmul.f32 %v4859, %v5136
      %v5178 = vmul.f32 %v4860, %v5137
      %v5179 = vmul.f32 %v4861, %v5138
      %v5180 = vmul.f32 %v4862, %v5139
      %v5181 = vmul.f32 %v4863, %v5140
      %v5182 = vmul.f32 %v4864, %v5141
      %v5183 = vmul.f32 %v4865, %v5134
      %v5184 = vpack.c.bf16 %v5151, %v5151
      %v5185 = vpack.c.bf16 %v5160, %v5152
      %v5186 = vpack.c.bf16 %v5161, %v5153
      %v5187 = vpack.c.bf16 %v5162, %v5154
      %v5188 = vpack.c.bf16 %v5163, %v5155
      %v5189 = vpack.c.bf16 %v5164, %v5156
      %v5190 = vpack.c.bf16 %v5165, %v5157
      %v5191 = vpack.c.bf16 %v5166, %v5158
      %v5192 = vpack.c.bf16 %v5167, %v5159
      %v5193 = vpack.c.bf16 %v5176, %v5168
      %v5194 = vpack.c.bf16 %v5177, %v5169
      %v5195 = vpack.c.bf16 %v5178, %v5170
      %v5196 = vpack.c.bf16 %v5179, %v5171
      %v5197 = vpack.c.bf16 %v5180, %v5172
      %v5198 = vpack.c.bf16 %v5181, %v5173
      %v5199 = vpack.c.bf16 %v5182, %v5174
      %v5200 = vpack.c.bf16 %v5183, %v5175
      %5218 = vrot.lane.b32.xlu0 %v5184, 72
      %v5219 = vpop.permute.xlu0 %5218
      %5220 = vrot.lane.b32.xlu0 %v5185, 72
      %v5221 = vpop.permute.xlu0 %5220
      %5222 = vrot.lane.b32.xlu0 %v5186, 72
      %v5223 = vpop.permute.xlu0 %5222
      %5224 = vrot.lane.b32.xlu0 %v5187, 72
      %v5225 = vpop.permute.xlu0 %5224
      %5226 = vrot.lane.b32.xlu0 %v5188, 72
      %v5227 = vpop.permute.xlu0 %5226
      %5228 = vrot.lane.b32.xlu0 %v5189, 72
      %v5229 = vpop.permute.xlu0 %5228
      %5230 = vrot.lane.b32.xlu0 %v5190, 72
      %v5231 = vpop.permute.xlu0 %5230
      %5232 = vrot.lane.b32.xlu0 %v5191, 72
      %v5233 = vpop.permute.xlu0 %5232
      %5234 = vrot.lane.b32.xlu0 %v5192, 72
      %v5235 = vpop.permute.xlu0 %5234
      %5236 = vrot.lane.b32.xlu0 %v5193, 72
      %v5237 = vpop.permute.xlu0 %5236
      %5238 = vrot.lane.b32.xlu0 %v5194, 72
      %v5239 = vpop.permute.xlu0 %5238
      %5240 = vrot.lane.b32.xlu0 %v5195, 72
      %v5241 = vpop.permute.xlu0 %5240
      %5242 = vrot.lane.b32.xlu0 %v5196, 72
      %v5243 = vpop.permute.xlu0 %5242
      %5244 = vrot.lane.b32.xlu0 %v5197, 72
      %v5245 = vpop.permute.xlu0 %5244
      %5246 = vrot.lane.b32.xlu0 %v5198, 72
      %v5247 = vpop.permute.xlu0 %5246
      %5248 = vrot.lane.b32.xlu0 %v5199, 72
      %v5249 = vpop.permute.xlu0 %5248
      %5250 = vrot.lane.b32.xlu0 %v5200, 72
      %v5251 = vpop.permute.xlu0 %5250
      %v5252 = vsel %vm594, %v5219, %v5221
      %v5253 = vsel %vm594, %v5221, %v5223
      %v5254 = vsel %vm594, %v5223, %v5225
      %v5255 = vsel %vm594, %v5225, %v5227
      %v5256 = vsel %vm594, %v5227, %v5229
      %v5257 = vsel %vm594, %v5229, %v5231
      %v5258 = vsel %vm594, %v5231, %v5233
      %v5259 = vsel %vm594, %v5233, %v5235
      %v5260 = vsel %vm594, %v5219, %v5237
      %v5261 = vsel %vm594, %v5237, %v5239
      %v5262 = vsel %vm594, %v5239, %v5241
      %v5263 = vsel %vm594, %v5241, %v5243
      %v5264 = vsel %vm594, %v5243, %v5245
      %v5265 = vsel %vm594, %v5245, %v5247
      %v5266 = vsel %vm594, %v5247, %v5249
      %v5267 = vsel %vm594, %v5249, %v5251
      %5284 = vst [vmem:[#allocation3 + $0x80] sm:$0xff] %v5252
      %5285 = vst [vmem:[#allocation3 + $0x88] sm:$0xff] %v5253
      %5286 = vst [vmem:[#allocation3 + $0x90] sm:$0xff] %v5254
      %5287 = vst [vmem:[#allocation3 + $0x98] sm:$0xff] %v5255
      %5288 = vst [vmem:[#allocation3 + $0xa0] sm:$0xff] %v5256
      %5289 = vst [vmem:[#allocation3 + $0xa8] sm:$0xff] %v5257
      %5290 = vst [vmem:[#allocation3 + $0xb0] sm:$0xff] %v5258
      %5291 = vst [vmem:[#allocation3 + $0xb8] sm:$0xff] %v5259
      %5292 = vst [vmem:[#allocation3 + $0xc0] sm:$0xff] %v5260
      %5293 = vst [vmem:[#allocation3 + $0xc8] sm:$0xff] %v5261
      %5294 = vst [vmem:[#allocation3 + $0xd0] sm:$0xff] %v5262
      %5295 = vst [vmem:[#allocation3 + $0xd8] sm:$0xff] %v5263
      %5296 = vst [vmem:[#allocation3 + $0xe0] sm:$0xff] %v5264
      %5297 = vst [vmem:[#allocation3 + $0xe8] sm:$0xff] %v5265
      %5298 = vst [vmem:[#allocation3 + $0xf0] sm:$0xff] %v5266
      %5299 = vst [vmem:[#allocation3 + $0xf8] sm:$0xff] %v5267
      %v5300 = vld [vmem:[%s619] ss:$8 sm:$0xf]
      %v5301 = vld [vmem:[%s619] ss:$8 sm:$0xf0]
      %v5302 = vor.u32 %v5300, %v5301
      %v5304 = vlaneseq
      %v5305 = vshrl.u32 %v5304, 7
      %v5306 = vsub.s32 0, %v5305
      %v5307 = vrot.slane %v5302, %v5306
      %v5308 = vlaneseq
      %v5309 = vshrl.u32 %v5308, 7
      %v5310 = vsub.s32 1, %v5309
      %v5311 = vrot.slane %v5302, %v5310
      %v5312 = vlaneseq
      %v5313 = vshrl.u32 %v5312, 7
      %v5314 = vsub.s32 2, %v5313
      %v5315 = vrot.slane %v5302, %v5314
      %v5316 = vlaneseq
      %v5317 = vshrl.u32 %v5316, 7
      %v5318 = vsub.s32 3, %v5317
      %v5319 = vrot.slane %v5302, %v5318
      %v5320 = vlaneseq
      %v5321 = vshrl.u32 %v5320, 7
      %v5322 = vsub.s32 4, %v5321
      %v5323 = vrot.slane %v5302, %v5322
      %v5324 = vlaneseq
      %v5325 = vshrl.u32 %v5324, 7
      %v5326 = vsub.s32 5, %v5325
      %v5327 = vrot.slane %v5302, %v5326
      %v5328 = vlaneseq
      %v5329 = vshrl.u32 %v5328, 7
      %v5330 = vsub.s32 6, %v5329
      %v5331 = vrot.slane %v5302, %v5330
      %v5332 = vlaneseq
      %v5333 = vshrl.u32 %v5332, 7
      %v5334 = vsub.s32 7, %v5333
      %v5335 = vrot.slane %v5302, %v5334
      %5336 = vrot.lane.b32.xlu0 %v5307, 57
      %v5337 = vpop.permute.xlu0 %5336
      %5338 = vrot.lane.b32.xlu0 %v5311, 57
      %v5339 = vpop.permute.xlu0 %5338
      %5340 = vrot.lane.b32.xlu0 %v5315, 57
      %v5341 = vpop.permute.xlu0 %5340
      %5342 = vrot.lane.b32.xlu0 %v5319, 57
      %v5343 = vpop.permute.xlu0 %5342
      %5344 = vrot.lane.b32.xlu0 %v5323, 57
      %v5345 = vpop.permute.xlu0 %5344
      %5346 = vrot.lane.b32.xlu0 %v5327, 57
      %v5347 = vpop.permute.xlu0 %5346
      %5348 = vrot.lane.b32.xlu0 %v5331, 57
      %v5349 = vpop.permute.xlu0 %5348
      %5350 = vrot.lane.b32.xlu0 %v5335, 57
      %v5351 = vpop.permute.xlu0 %5350
      %v5352 = vsel %vm672, %v5337, %v5339
      %v5353 = vsel %vm672, %v5339, %v5341
      %v5354 = vsel %vm672, %v5341, %v5343
      %v5355 = vsel %vm672, %v5343, %v5345
      %v5356 = vsel %vm672, %v5345, %v5347
      %v5357 = vsel %vm672, %v5347, %v5349
      %v5358 = vsel %vm672, %v5349, %v5351
      %v5368 = vmul.f32 %v5337, 0.0
      %v5369 = vmul.f32 %v4834, %v5352
      %v5370 = vmul.f32 %v4835, %v5353
      %v5371 = vmul.f32 %v4836, %v5354
      %v5372 = vmul.f32 %v4837, %v5355
      %v5373 = vmul.f32 %v4838, %v5356
      %v5374 = vmul.f32 %v4839, %v5357
      %v5375 = vmul.f32 %v4840, %v5358
      %v5376 = vmul.f32 %v4841, %v5351
      %v5377 = vmul.f32 %v4842, %v5352
      %v5378 = vmul.f32 %v4843, %v5353
      %v5379 = vmul.f32 %v4844, %v5354
      %v5380 = vmul.f32 %v4845, %v5355
      %v5381 = vmul.f32 %v4846, %v5356
      %v5382 = vmul.f32 %v4847, %v5357
      %v5383 = vmul.f32 %v4848, %v5358
      %v5384 = vmul.f32 %v4849, %v5351
      %v5385 = vmul.f32 %v4850, %v5352
      %v5386 = vmul.f32 %v4851, %v5353
      %v5387 = vmul.f32 %v4852, %v5354
      %v5388 = vmul.f32 %v4853, %v5355
      %v5389 = vmul.f32 %v4854, %v5356
      %v5390 = vmul.f32 %v4855, %v5357
      %v5391 = vmul.f32 %v4856, %v5358
      %v5392 = vmul.f32 %v4857, %v5351
      %v5393 = vmul.f32 %v4858, %v5352
      %v5394 = vmul.f32 %v4859, %v5353
      %v5395 = vmul.f32 %v4860, %v5354
      %v5396 = vmul.f32 %v4861, %v5355
      %v5397 = vmul.f32 %v4862, %v5356
      %v5398 = vmul.f32 %v4863, %v5357
      %v5399 = vmul.f32 %v4864, %v5358
      %v5400 = vmul.f32 %v4865, %v5351
      %v5401 = vpack.c.bf16 %v5368, %v5368
      %v5402 = vpack.c.bf16 %v5377, %v5369
      %v5403 = vpack.c.bf16 %v5378, %v5370
      %v5404 = vpack.c.bf16 %v5379, %v5371
      %v5405 = vpack.c.bf16 %v5380, %v5372
      %v5406 = vpack.c.bf16 %v5381, %v5373
      %v5407 = vpack.c.bf16 %v5382, %v5374
      %v5408 = vpack.c.bf16 %v5383, %v5375
      %v5409 = vpack.c.bf16 %v5384, %v5376
      %v5410 = vpack.c.bf16 %v5393, %v5385
      %v5411 = vpack.c.bf16 %v5394, %v5386
      %v5412 = vpack.c.bf16 %v5395, %v5387
      %v5413 = vpack.c.bf16 %v5396, %v5388
      %v5414 = vpack.c.bf16 %v5397, %v5389
      %v5415 = vpack.c.bf16 %v5398, %v5390
      %v5416 = vpack.c.bf16 %v5399, %v5391
      %v5417 = vpack.c.bf16 %v5400, %v5392
      %5435 = vrot.lane.b32.xlu0 %v5401, 71
      %v5436 = vpop.permute.xlu0 %5435
      %5437 = vrot.lane.b32.xlu0 %v5402, 71
      %v5438 = vpop.permute.xlu0 %5437
      %5439 = vrot.lane.b32.xlu0 %v5403, 71
      %v5440 = vpop.permute.xlu0 %5439
      %5441 = vrot.lane.b32.xlu0 %v5404, 71
      %v5442 = vpop.permute.xlu0 %5441
      %5443 = vrot.lane.b32.xlu0 %v5405, 71
      %v5444 = vpop.permute.xlu0 %5443
      %5445 = vrot.lane.b32.xlu0 %v5406, 71
      %v5446 = vpop.permute.xlu0 %5445
      %5447 = vrot.lane.b32.xlu0 %v5407, 71
      %v5448 = vpop.permute.xlu0 %5447
      %5449 = vrot.lane.b32.xlu0 %v5408, 71
      %v5450 = vpop.permute.xlu0 %5449
      %5451 = vrot.lane.b32.xlu0 %v5409, 71
      %v5452 = vpop.permute.xlu0 %5451
      %5453 = vrot.lane.b32.xlu0 %v5410, 71
      %v5454 = vpop.permute.xlu0 %5453
      %5455 = vrot.lane.b32.xlu0 %v5411, 71
      %v5456 = vpop.permute.xlu0 %5455
      %5457 = vrot.lane.b32.xlu0 %v5412, 71
      %v5458 = vpop.permute.xlu0 %5457
      %5459 = vrot.lane.b32.xlu0 %v5413, 71
      %v5460 = vpop.permute.xlu0 %5459
      %5461 = vrot.lane.b32.xlu0 %v5414, 71
      %v5462 = vpop.permute.xlu0 %5461
      %5463 = vrot.lane.b32.xlu0 %v5415, 71
      %v5464 = vpop.permute.xlu0 %5463
      %5465 = vrot.lane.b32.xlu0 %v5416, 71
      %v5466 = vpop.permute.xlu0 %5465
      %5467 = vrot.lane.b32.xlu0 %v5417, 71
      %v5468 = vpop.permute.xlu0 %5467
      %v5469 = vsel %vm743, %v5436, %v5438
      %v5470 = vsel %vm743, %v5438, %v5440
      %v5471 = vsel %vm743, %v5440, %v5442
      %v5472 = vsel %vm743, %v5442, %v5444
      %v5473 = vsel %vm743, %v5444, %v5446
      %v5474 = vsel %vm743, %v5446, %v5448
      %v5475 = vsel %vm743, %v5448, %v5450
      %v5476 = vsel %vm743, %v5450, %v5452
      %v5477 = vsel %vm743, %v5436, %v5454
      %v5478 = vsel %vm743, %v5454, %v5456
      %v5479 = vsel %vm743, %v5456, %v5458
      %v5480 = vsel %vm743, %v5458, %v5460
      %v5481 = vsel %vm743, %v5460, %v5462
      %v5482 = vsel %vm743, %v5462, %v5464
      %v5483 = vsel %vm743, %v5464, %v5466
      %v5484 = vsel %vm743, %v5466, %v5468
      %5501 = vst [vmem:[#allocation3 + $0x100] sm:$0xff] %v5469
      %5502 = vst [vmem:[#allocation3 + $0x108] sm:$0xff] %v5470
      %5503 = vst [vmem:[#allocation3 + $0x110] sm:$0xff] %v5471
      %5504 = vst [vmem:[#allocation3 + $0x118] sm:$0xff] %v5472
      %5505 = vst [vmem:[#allocation3 + $0x120] sm:$0xff] %v5473
      %5506 = vst [vmem:[#allocation3 + $0x128] sm:$0xff] %v5474
      %5507 = vst [vmem:[#allocation3 + $0x130] sm:$0xff] %v5475
      %5508 = vst [vmem:[#allocation3 + $0x138] sm:$0xff] %v5476
      %5509 = vst [vmem:[#allocation3 + $0x140] sm:$0xff] %v5477
      %5510 = vst [vmem:[#allocation3 + $0x148] sm:$0xff] %v5478
      %5511 = vst [vmem:[#allocation3 + $0x150] sm:$0xff] %v5479
      %5512 = vst [vmem:[#allocation3 + $0x158] sm:$0xff] %v5480
      %5513 = vst [vmem:[#allocation3 + $0x160] sm:$0xff] %v5481
      %5514 = vst [vmem:[#allocation3 + $0x168] sm:$0xff] %v5482
      %5515 = vst [vmem:[#allocation3 + $0x170] sm:$0xff] %v5483
      %5516 = vst [vmem:[#allocation3 + $0x178] sm:$0xff] %v5484
      %v5517 = vld [vmem:[%s768] ss:$8 sm:$0xf]
      %v5518 = vld [vmem:[%s768] ss:$8 sm:$0xf0]
      %v5519 = vor.u32 %v5517, %v5518
      %v5521 = vlaneseq
      %v5522 = vshrl.u32 %v5521, 7
      %v5523 = vsub.s32 0, %v5522
      %v5524 = vrot.slane %v5519, %v5523
      %v5525 = vlaneseq
      %v5526 = vshrl.u32 %v5525, 7
      %v5527 = vsub.s32 1, %v5526
      %v5528 = vrot.slane %v5519, %v5527
      %v5529 = vlaneseq
      %v5530 = vshrl.u32 %v5529, 7
      %v5531 = vsub.s32 2, %v5530
      %v5532 = vrot.slane %v5519, %v5531
      %v5533 = vlaneseq
      %v5534 = vshrl.u32 %v5533, 7
      %v5535 = vsub.s32 3, %v5534
      %v5536 = vrot.slane %v5519, %v5535
      %v5537 = vlaneseq
      %v5538 = vshrl.u32 %v5537, 7
      %v5539 = vsub.s32 4, %v5538
      %v5540 = vrot.slane %v5519, %v5539
      %v5541 = vlaneseq
      %v5542 = vshrl.u32 %v5541, 7
      %v5543 = vsub.s32 5, %v5542
      %v5544 = vrot.slane %v5519, %v5543
      %v5545 = vlaneseq
      %v5546 = vshrl.u32 %v5545, 7
      %v5547 = vsub.s32 6, %v5546
      %v5548 = vrot.slane %v5519, %v5547
      %v5549 = vlaneseq
      %v5550 = vshrl.u32 %v5549, 7
      %v5551 = vsub.s32 7, %v5550
      %v5552 = vrot.slane %v5519, %v5551
      %5553 = vrot.lane.b32.xlu0 %v5524, 63
      %v5554 = vpop.permute.xlu0 %5553
      %5555 = vrot.lane.b32.xlu0 %v5528, 63
      %v5556 = vpop.permute.xlu0 %5555
      %5557 = vrot.lane.b32.xlu0 %v5532, 63
      %v5558 = vpop.permute.xlu0 %5557
      %5559 = vrot.lane.b32.xlu0 %v5536, 63
      %v5560 = vpop.permute.xlu0 %5559
      %5561 = vrot.lane.b32.xlu0 %v5540, 63
      %v5562 = vpop.permute.xlu0 %5561
      %5563 = vrot.lane.b32.xlu0 %v5544, 63
      %v5564 = vpop.permute.xlu0 %5563
      %5565 = vrot.lane.b32.xlu0 %v5548, 63
      %v5566 = vpop.permute.xlu0 %5565
      %5567 = vrot.lane.b32.xlu0 %v5552, 63
      %v5568 = vpop.permute.xlu0 %5567
      %v5569 = vsel %vm821, %v5554, %v5556
      %v5570 = vsel %vm821, %v5556, %v5558
      %v5571 = vsel %vm821, %v5558, %v5560
      %v5572 = vsel %vm821, %v5560, %v5562
      %v5573 = vsel %vm821, %v5562, %v5564
      %v5574 = vsel %vm821, %v5564, %v5566
      %v5575 = vsel %vm821, %v5566, %v5568
      %v5585 = vmul.f32 %v5554, 0.0
      %v5586 = vmul.f32 %v4834, %v5569
      %v5587 = vmul.f32 %v4835, %v5570
      %v5588 = vmul.f32 %v4836, %v5571
      %v5589 = vmul.f32 %v4837, %v5572
      %v5590 = vmul.f32 %v4838, %v5573
      %v5591 = vmul.f32 %v4839, %v5574
      %v5592 = vmul.f32 %v4840, %v5575
      %v5593 = vmul.f32 %v4841, %v5568
      %v5594 = vmul.f32 %v4842, %v5569
      %v5595 = vmul.f32 %v4843, %v5570
      %v5596 = vmul.f32 %v4844, %v5571
      %v5597 = vmul.f32 %v4845, %v5572
      %v5598 = vmul.f32 %v4846, %v5573
      %v5599 = vmul.f32 %v4847, %v5574
      %v5600 = vmul.f32 %v4848, %v5575
      %v5601 = vmul.f32 %v4849, %v5568
      %v5602 = vmul.f32 %v4850, %v5569
      %v5603 = vmul.f32 %v4851, %v5570
      %v5604 = vmul.f32 %v4852, %v5571
      %v5605 = vmul.f32 %v4853, %v5572
      %v5606 = vmul.f32 %v4854, %v5573
      %v5607 = vmul.f32 %v4855, %v5574
      %v5608 = vmul.f32 %v4856, %v5575
      %v5609 = vmul.f32 %v4857, %v5568
      %v5610 = vmul.f32 %v4858, %v5569
      %v5611 = vmul.f32 %v4859, %v5570
      %v5612 = vmul.f32 %v4860, %v5571
      %v5613 = vmul.f32 %v4861, %v5572
      %v5614 = vmul.f32 %v4862, %v5573
      %v5615 = vmul.f32 %v4863, %v5574
      %v5616 = vmul.f32 %v4864, %v5575
      %v5617 = vmul.f32 %v4865, %v5568
      %v5618 = vpack.c.bf16 %v5585, %v5585
      %v5619 = vpack.c.bf16 %v5594, %v5586
      %v5620 = vpack.c.bf16 %v5595, %v5587
      %v5621 = vpack.c.bf16 %v5596, %v5588
      %v5622 = vpack.c.bf16 %v5597, %v5589
      %v5623 = vpack.c.bf16 %v5598, %v5590
      %v5624 = vpack.c.bf16 %v5599, %v5591
      %v5625 = vpack.c.bf16 %v5600, %v5592
      %v5626 = vpack.c.bf16 %v5601, %v5593
      %v5627 = vpack.c.bf16 %v5610, %v5602
      %v5628 = vpack.c.bf16 %v5611, %v5603
      %v5629 = vpack.c.bf16 %v5612, %v5604
      %v5630 = vpack.c.bf16 %v5613, %v5605
      %v5631 = vpack.c.bf16 %v5614, %v5606
      %v5632 = vpack.c.bf16 %v5615, %v5607
      %v5633 = vpack.c.bf16 %v5616, %v5608
      %v5634 = vpack.c.bf16 %v5617, %v5609
      %5652 = vrot.lane.b32.xlu0 %v5618, 65
      %v5653 = vpop.permute.xlu0 %5652
      %5654 = vrot.lane.b32.xlu0 %v5619, 65
      %v5655 = vpop.permute.xlu0 %5654
      %5656 = vrot.lane.b32.xlu0 %v5620, 65
      %v5657 = vpop.permute.xlu0 %5656
      %5658 = vrot.lane.b32.xlu0 %v5621, 65
      %v5659 = vpop.permute.xlu0 %5658
      %5660 = vrot.lane.b32.xlu0 %v5622, 65
      %v5661 = vpop.permute.xlu0 %5660
      %5662 = vrot.lane.b32.xlu0 %v5623, 65
      %v5663 = vpop.permute.xlu0 %5662
      %5664 = vrot.lane.b32.xlu0 %v5624, 65
      %v5665 = vpop.permute.xlu0 %5664
      %5666 = vrot.lane.b32.xlu0 %v5625, 65
      %v5667 = vpop.permute.xlu0 %5666
      %5668 = vrot.lane.b32.xlu0 %v5626, 65
      %v5669 = vpop.permute.xlu0 %5668
      %5670 = vrot.lane.b32.xlu0 %v5627, 65
      %v5671 = vpop.permute.xlu0 %5670
      %5672 = vrot.lane.b32.xlu0 %v5628, 65
      %v5673 = vpop.permute.xlu0 %5672
      %5674 = vrot.lane.b32.xlu0 %v5629, 65
      %v5675 = vpop.permute.xlu0 %5674
      %5676 = vrot.lane.b32.xlu0 %v5630, 65
      %v5677 = vpop.permute.xlu0 %5676
      %5678 = vrot.lane.b32.xlu0 %v5631, 65
      %v5679 = vpop.permute.xlu0 %5678
      %5680 = vrot.lane.b32.xlu0 %v5632, 65
      %v5681 = vpop.permute.xlu0 %5680
      %5682 = vrot.lane.b32.xlu0 %v5633, 65
      %v5683 = vpop.permute.xlu0 %5682
      %5684 = vrot.lane.b32.xlu0 %v5634, 65
      %v5685 = vpop.permute.xlu0 %5684
      %v5686 = vsel %vm892, %v5653, %v5655
      %v5687 = vsel %vm892, %v5655, %v5657
      %v5688 = vsel %vm892, %v5657, %v5659
      %v5689 = vsel %vm892, %v5659, %v5661
      %v5690 = vsel %vm892, %v5661, %v5663
      %v5691 = vsel %vm892, %v5663, %v5665
      %v5692 = vsel %vm892, %v5665, %v5667
      %v5693 = vsel %vm892, %v5667, %v5669
      %v5694 = vsel %vm892, %v5653, %v5671
      %v5695 = vsel %vm892, %v5671, %v5673
      %v5696 = vsel %vm892, %v5673, %v5675
      %v5697 = vsel %vm892, %v5675, %v5677
      %v5698 = vsel %vm892, %v5677, %v5679
      %v5699 = vsel %vm892, %v5679, %v5681
      %v5700 = vsel %vm892, %v5681, %v5683
      %v5701 = vsel %vm892, %v5683, %v5685
      %5718 = vst [vmem:[#allocation3 + $0x180] sm:$0xff] %v5686
      %5719 = vst [vmem:[#allocation3 + $0x188] sm:$0xff] %v5687
      %5720 = vst [vmem:[#allocation3 + $0x190] sm:$0xff] %v5688
      %5721 = vst [vmem:[#allocation3 + $0x198] sm:$0xff] %v5689
      %5722 = vst [vmem:[#allocation3 + $0x1a0] sm:$0xff] %v5690
      %5723 = vst [vmem:[#allocation3 + $0x1a8] sm:$0xff] %v5691
      %5724 = vst [vmem:[#allocation3 + $0x1b0] sm:$0xff] %v5692
      %5725 = vst [vmem:[#allocation3 + $0x1b8] sm:$0xff] %v5693
      %5726 = vst [vmem:[#allocation3 + $0x1c0] sm:$0xff] %v5694
      %5727 = vst [vmem:[#allocation3 + $0x1c8] sm:$0xff] %v5695
      %5728 = vst [vmem:[#allocation3 + $0x1d0] sm:$0xff] %v5696
      %5729 = vst [vmem:[#allocation3 + $0x1d8] sm:$0xff] %v5697
      %5730 = vst [vmem:[#allocation3 + $0x1e0] sm:$0xff] %v5698
      %5731 = vst [vmem:[#allocation3 + $0x1e8] sm:$0xff] %v5699
      %5732 = vst [vmem:[#allocation3 + $0x1f0] sm:$0xff] %v5700
      %5733 = vst [vmem:[#allocation3 + $0x1f8] sm:$0xff] %v5701
      %v5734 = vld [vmem:[%s917] ss:$8 sm:$0xf]
      %v5735 = vld [vmem:[%s917] ss:$8 sm:$0xf0]
      %v5736 = vor.u32 %v5734, %v5735
      %v5738 = vlaneseq
      %v5739 = vshrl.u32 %v5738, 7
      %v5740 = vsub.s32 0, %v5739
      %v5741 = vrot.slane %v5736, %v5740
      %v5742 = vlaneseq
      %v5743 = vshrl.u32 %v5742, 7
      %v5744 = vsub.s32 1, %v5743
      %v5745 = vrot.slane %v5736, %v5744
      %v5746 = vlaneseq
      %v5747 = vshrl.u32 %v5746, 7
      %v5748 = vsub.s32 2, %v5747
      %v5749 = vrot.slane %v5736, %v5748
      %v5750 = vlaneseq
      %v5751 = vshrl.u32 %v5750, 7
      %v5752 = vsub.s32 3, %v5751
      %v5753 = vrot.slane %v5736, %v5752
      %v5754 = vlaneseq
      %v5755 = vshrl.u32 %v5754, 7
      %v5756 = vsub.s32 4, %v5755
      %v5757 = vrot.slane %v5736, %v5756
      %v5758 = vlaneseq
      %v5759 = vshrl.u32 %v5758, 7
      %v5760 = vsub.s32 5, %v5759
      %v5761 = vrot.slane %v5736, %v5760
      %v5762 = vlaneseq
      %v5763 = vshrl.u32 %v5762, 7
      %v5764 = vsub.s32 6, %v5763
      %v5765 = vrot.slane %v5736, %v5764
      %v5766 = vlaneseq
      %v5767 = vshrl.u32 %v5766, 7
      %v5768 = vsub.s32 7, %v5767
      %v5769 = vrot.slane %v5736, %v5768
      %5770 = vrot.lane.b32.xlu0 %v5741, 64
      %v5771 = vpop.permute.xlu0 %5770
      %5772 = vrot.lane.b32.xlu0 %v5745, 64
      %v5773 = vpop.permute.xlu0 %5772
      %5774 = vrot.lane.b32.xlu0 %v5749, 64
      %v5775 = vpop.permute.xlu0 %5774
      %5776 = vrot.lane.b32.xlu0 %v5753, 64
      %v5777 = vpop.permute.xlu0 %5776
      %5778 = vrot.lane.b32.xlu0 %v5757, 64
      %v5779 = vpop.permute.xlu0 %5778
      %5780 = vrot.lane.b32.xlu0 %v5761, 64
      %v5781 = vpop.permute.xlu0 %5780
      %5782 = vrot.lane.b32.xlu0 %v5765, 64
      %v5783 = vpop.permute.xlu0 %5782
      %5784 = vrot.lane.b32.xlu0 %v5769, 64
      %v5785 = vpop.permute.xlu0 %5784
      %v5786 = vsel %vm970, %v5771, %v5773
      %v5787 = vsel %vm970, %v5773, %v5775
      %v5788 = vsel %vm970, %v5775, %v5777
      %v5789 = vsel %vm970, %v5777, %v5779
      %v5790 = vsel %vm970, %v5779, %v5781
      %v5791 = vsel %vm970, %v5781, %v5783
      %v5792 = vsel %vm970, %v5783, %v5785
      %v5802 = vmul.f32 %v5771, 0.0
      %v5803 = vmul.f32 %v4834, %v5786
      %v5804 = vmul.f32 %v4835, %v5787
      %v5805 = vmul.f32 %v4836, %v5788
      %v5806 = vmul.f32 %v4837, %v5789
      %v5807 = vmul.f32 %v4838, %v5790
      %v5808 = vmul.f32 %v4839, %v5791
      %v5809 = vmul.f32 %v4840, %v5792
      %v5810 = vmul.f32 %v4841, %v5785
      %v5811 = vmul.f32 %v4842, %v5786
      %v5812 = vmul.f32 %v4843, %v5787
      %v5813 = vmul.f32 %v4844, %v5788
      %v5814 = vmul.f32 %v4845, %v5789
      %v5815 = vmul.f32 %v4846, %v5790
      %v5816 = vmul.f32 %v4847, %v5791
      %v5817 = vmul.f32 %v4848, %v5792
      %v5818 = vmul.f32 %v4849, %v5785
      %v5819 = vmul.f32 %v4850, %v5786
      %v5820 = vmul.f32 %v4851, %v5787
      %v5821 = vmul.f32 %v4852, %v5788
      %v5822 = vmul.f32 %v4853, %v5789
      %v5823 = vmul.f32 %v4854, %v5790
      %v5824 = vmul.f32 %v4855, %v5791
      %v5825 = vmul.f32 %v4856, %v5792
      %v5826 = vmul.f32 %v4857, %v5785
      %v5827 = vmul.f32 %v4858, %v5786
      %v5828 = vmul.f32 %v4859, %v5787
      %v5829 = vmul.f32 %v4860, %v5788
      %v5830 = vmul.f32 %v4861, %v5789
      %v5831 = vmul.f32 %v4862, %v5790
      %v5832 = vmul.f32 %v4863, %v5791
      %v5833 = vmul.f32 %v4864, %v5792
      %v5834 = vmul.f32 %v4865, %v5785
      %v5835 = vpack.c.bf16 %v5802, %v5802
      %v5836 = vpack.c.bf16 %v5811, %v5803
      %v5837 = vpack.c.bf16 %v5812, %v5804
      %v5838 = vpack.c.bf16 %v5813, %v5805
      %v5839 = vpack.c.bf16 %v5814, %v5806
      %v5840 = vpack.c.bf16 %v5815, %v5807
      %v5841 = vpack.c.bf16 %v5816, %v5808
      %v5842 = vpack.c.bf16 %v5817, %v5809
      %v5843 = vpack.c.bf16 %v5818, %v5810
      %v5844 = vpack.c.bf16 %v5827, %v5819
      %v5845 = vpack.c.bf16 %v5828, %v5820
      %v5846 = vpack.c.bf16 %v5829, %v5821
      %v5847 = vpack.c.bf16 %v5830, %v5822
      %v5848 = vpack.c.bf16 %v5831, %v5823
      %v5849 = vpack.c.bf16 %v5832, %v5824
      %v5850 = vpack.c.bf16 %v5833, %v5825
      %v5851 = vpack.c.bf16 %v5834, %v5826
      %5869 = vrot.lane.b32.xlu0 %v5835, 64
      %v5870 = vpop.permute.xlu0 %5869
      %5871 = vrot.lane.b32.xlu0 %v5836, 64
      %v5872 = vpop.permute.xlu0 %5871
      %5873 = vrot.lane.b32.xlu0 %v5837, 64
      %v5874 = vpop.permute.xlu0 %5873
      %5875 = vrot.lane.b32.xlu0 %v5838, 64
      %v5876 = vpop.permute.xlu0 %5875
      %5877 = vrot.lane.b32.xlu0 %v5839, 64
      %v5878 = vpop.permute.xlu0 %5877
      %5879 = vrot.lane.b32.xlu0 %v5840, 64
      %v5880 = vpop.permute.xlu0 %5879
      %5881 = vrot.lane.b32.xlu0 %v5841, 64
      %v5882 = vpop.permute.xlu0 %5881
      %5883 = vrot.lane.b32.xlu0 %v5842, 64
      %v5884 = vpop.permute.xlu0 %5883
      %5885 = vrot.lane.b32.xlu0 %v5843, 64
      %v5886 = vpop.permute.xlu0 %5885
      %5887 = vrot.lane.b32.xlu0 %v5844, 64
      %v5888 = vpop.permute.xlu0 %5887
      %5889 = vrot.lane.b32.xlu0 %v5845, 64
      %v5890 = vpop.permute.xlu0 %5889
      %5891 = vrot.lane.b32.xlu0 %v5846, 64
      %v5892 = vpop.permute.xlu0 %5891
      %5893 = vrot.lane.b32.xlu0 %v5847, 64
      %v5894 = vpop.permute.xlu0 %5893
      %5895 = vrot.lane.b32.xlu0 %v5848, 64
      %v5896 = vpop.permute.xlu0 %5895
      %5897 = vrot.lane.b32.xlu0 %v5849, 64
      %v5898 = vpop.permute.xlu0 %5897
      %5899 = vrot.lane.b32.xlu0 %v5850, 64
      %v5900 = vpop.permute.xlu0 %5899
      %5901 = vrot.lane.b32.xlu0 %v5851, 64
      %v5902 = vpop.permute.xlu0 %5901
      %v5903 = vsel %vm1032, %v5870, %v5872
      %v5904 = vsel %vm1032, %v5872, %v5874
      %v5905 = vsel %vm1032, %v5874, %v5876
      %v5906 = vsel %vm1032, %v5876, %v5878
      %v5907 = vsel %vm1032, %v5878, %v5880
      %v5908 = vsel %vm1032, %v5880, %v5882
      %v5909 = vsel %vm1032, %v5882, %v5884
      %v5910 = vsel %vm1032, %v5884, %v5886
      %v5911 = vsel %vm1032, %v5870, %v5888
      %v5912 = vsel %vm1032, %v5888, %v5890
      %v5913 = vsel %vm1032, %v5890, %v5892
      %v5914 = vsel %vm1032, %v5892, %v5894
      %v5915 = vsel %vm1032, %v5894, %v5896
      %v5916 = vsel %vm1032, %v5896, %v5898
      %v5917 = vsel %vm1032, %v5898, %v5900
      %v5918 = vsel %vm1032, %v5900, %v5902
      %5935 = vst [vmem:[#allocation3 + $0x200] sm:$0xff] %v5903
      %5936 = vst [vmem:[#allocation3 + $0x208] sm:$0xff] %v5904
      %5937 = vst [vmem:[#allocation3 + $0x210] sm:$0xff] %v5905
      %5938 = vst [vmem:[#allocation3 + $0x218] sm:$0xff] %v5906
      %5939 = vst [vmem:[#allocation3 + $0x220] sm:$0xff] %v5907
      %5940 = vst [vmem:[#allocation3 + $0x228] sm:$0xff] %v5908
      %5941 = vst [vmem:[#allocation3 + $0x230] sm:$0xff] %v5909
      %5942 = vst [vmem:[#allocation3 + $0x238] sm:$0xff] %v5910
      %5943 = vst [vmem:[#allocation3 + $0x240] sm:$0xff] %v5911
      %5944 = vst [vmem:[#allocation3 + $0x248] sm:$0xff] %v5912
      %5945 = vst [vmem:[#allocation3 + $0x250] sm:$0xff] %v5913
      %5946 = vst [vmem:[#allocation3 + $0x258] sm:$0xff] %v5914
      %5947 = vst [vmem:[#allocation3 + $0x260] sm:$0xff] %v5915
      %5948 = vst [vmem:[#allocation3 + $0x268] sm:$0xff] %v5916
      %5949 = vst [vmem:[#allocation3 + $0x270] sm:$0xff] %v5917
      %5950 = vst [vmem:[#allocation3 + $0x278] sm:$0xff] %v5918
      %v5951 = vld [vmem:[%s1057] ss:$8 sm:$0xf]
      %v5952 = vld [vmem:[%s1057] ss:$8 sm:$0xf0]
      %v5953 = vor.u32 %v5951, %v5952
      %v5955 = vlaneseq
      %v5956 = vshrl.u32 %v5955, 7
      %v5957 = vsub.s32 0, %v5956
      %v5958 = vrot.slane %v5953, %v5957
      %v5959 = vlaneseq
      %v5960 = vshrl.u32 %v5959, 7
      %v5961 = vsub.s32 1, %v5960
      %v5962 = vrot.slane %v5953, %v5961
      %v5963 = vlaneseq
      %v5964 = vshrl.u32 %v5963, 7
      %v5965 = vsub.s32 2, %v5964
      %v5966 = vrot.slane %v5953, %v5965
      %v5967 = vlaneseq
      %v5968 = vshrl.u32 %v5967, 7
      %v5969 = vsub.s32 3, %v5968
      %v5970 = vrot.slane %v5953, %v5969
      %v5971 = vlaneseq
      %v5972 = vshrl.u32 %v5971, 7
      %v5973 = vsub.s32 4, %v5972
      %v5974 = vrot.slane %v5953, %v5973
      %v5975 = vlaneseq
      %v5976 = vshrl.u32 %v5975, 7
      %v5977 = vsub.s32 5, %v5976
      %v5978 = vrot.slane %v5953, %v5977
      %v5979 = vlaneseq
      %v5980 = vshrl.u32 %v5979, 7
      %v5981 = vsub.s32 6, %v5980
      %v5982 = vrot.slane %v5953, %v5981
      %v5983 = vlaneseq
      %v5984 = vshrl.u32 %v5983, 7
      %v5985 = vsub.s32 7, %v5984
      %v5986 = vrot.slane %v5953, %v5985
      %5987 = vrot.lane.b32.xlu0 %v5958, 65
      %v5988 = vpop.permute.xlu0 %5987
      %5989 = vrot.lane.b32.xlu0 %v5962, 65
      %v5990 = vpop.permute.xlu0 %5989
      %5991 = vrot.lane.b32.xlu0 %v5966, 65
      %v5992 = vpop.permute.xlu0 %5991
      %5993 = vrot.lane.b32.xlu0 %v5970, 65
      %v5994 = vpop.permute.xlu0 %5993
      %5995 = vrot.lane.b32.xlu0 %v5974, 65
      %v5996 = vpop.permute.xlu0 %5995
      %5997 = vrot.lane.b32.xlu0 %v5978, 65
      %v5998 = vpop.permute.xlu0 %5997
      %5999 = vrot.lane.b32.xlu0 %v5982, 65
      %v6000 = vpop.permute.xlu0 %5999
      %6001 = vrot.lane.b32.xlu0 %v5986, 65
      %v6002 = vpop.permute.xlu0 %6001
      %v6003 = vsel %vm1110, %v5988, %v5990
      %v6004 = vsel %vm1110, %v5990, %v5992
      %v6005 = vsel %vm1110, %v5992, %v5994
      %v6006 = vsel %vm1110, %v5994, %v5996
      %v6007 = vsel %vm1110, %v5996, %v5998
      %v6008 = vsel %vm1110, %v5998, %v6000
      %v6009 = vsel %vm1110, %v6000, %v6002
      %v6019 = vmul.f32 %v5988, 0.0
      %v6020 = vmul.f32 %v4834, %v6003
      %v6021 = vmul.f32 %v4835, %v6004
      %v6022 = vmul.f32 %v4836, %v6005
      %v6023 = vmul.f32 %v4837, %v6006
      %v6024 = vmul.f32 %v4838, %v6007
      %v6025 = vmul.f32 %v4839, %v6008
      %v6026 = vmul.f32 %v4840, %v6009
      %v6027 = vmul.f32 %v4841, %v6002
      %v6028 = vmul.f32 %v4842, %v6003
      %v6029 = vmul.f32 %v4843, %v6004
      %v6030 = vmul.f32 %v4844, %v6005
      %v6031 = vmul.f32 %v4845, %v6006
      %v6032 = vmul.f32 %v4846, %v6007
      %v6033 = vmul.f32 %v4847, %v6008
      %v6034 = vmul.f32 %v4848, %v6009
      %v6035 = vmul.f32 %v4849, %v6002
      %v6036 = vmul.f32 %v4850, %v6003
      %v6037 = vmul.f32 %v4851, %v6004
      %v6038 = vmul.f32 %v4852, %v6005
      %v6039 = vmul.f32 %v4853, %v6006
      %v6040 = vmul.f32 %v4854, %v6007
      %v6041 = vmul.f32 %v4855, %v6008
      %v6042 = vmul.f32 %v4856, %v6009
      %v6043 = vmul.f32 %v4857, %v6002
      %v6044 = vmul.f32 %v4858, %v6003
      %v6045 = vmul.f32 %v4859, %v6004
      %v6046 = vmul.f32 %v4860, %v6005
      %v6047 = vmul.f32 %v4861, %v6006
      %v6048 = vmul.f32 %v4862, %v6007
      %v6049 = vmul.f32 %v4863, %v6008
      %v6050 = vmul.f32 %v4864, %v6009
      %v6051 = vmul.f32 %v4865, %v6002
      %v6052 = vpack.c.bf16 %v6019, %v6019
      %v6053 = vpack.c.bf16 %v6028, %v6020
      %v6054 = vpack.c.bf16 %v6029, %v6021
      %v6055 = vpack.c.bf16 %v6030, %v6022
      %v6056 = vpack.c.bf16 %v6031, %v6023
      %v6057 = vpack.c.bf16 %v6032, %v6024
      %v6058 = vpack.c.bf16 %v6033, %v6025
      %v6059 = vpack.c.bf16 %v6034, %v6026
      %v6060 = vpack.c.bf16 %v6035, %v6027
      %v6061 = vpack.c.bf16 %v6044, %v6036
      %v6062 = vpack.c.bf16 %v6045, %v6037
      %v6063 = vpack.c.bf16 %v6046, %v6038
      %v6064 = vpack.c.bf16 %v6047, %v6039
      %v6065 = vpack.c.bf16 %v6048, %v6040
      %v6066 = vpack.c.bf16 %v6049, %v6041
      %v6067 = vpack.c.bf16 %v6050, %v6042
      %v6068 = vpack.c.bf16 %v6051, %v6043
      %6086 = vrot.lane.b32.xlu0 %v6052, 63
      %v6087 = vpop.permute.xlu0 %6086
      %6088 = vrot.lane.b32.xlu0 %v6053, 63
      %v6089 = vpop.permute.xlu0 %6088
      %6090 = vrot.lane.b32.xlu0 %v6054, 63
      %v6091 = vpop.permute.xlu0 %6090
      %6092 = vrot.lane.b32.xlu0 %v6055, 63
      %v6093 = vpop.permute.xlu0 %6092
      %6094 = vrot.lane.b32.xlu0 %v6056, 63
      %v6095 = vpop.permute.xlu0 %6094
      %6096 = vrot.lane.b32.xlu0 %v6057, 63
      %v6097 = vpop.permute.xlu0 %6096
      %6098 = vrot.lane.b32.xlu0 %v6058, 63
      %v6099 = vpop.permute.xlu0 %6098
      %6100 = vrot.lane.b32.xlu0 %v6059, 63
      %v6101 = vpop.permute.xlu0 %6100
      %6102 = vrot.lane.b32.xlu0 %v6060, 63
      %v6103 = vpop.permute.xlu0 %6102
      %6104 = vrot.lane.b32.xlu0 %v6061, 63
      %v6105 = vpop.permute.xlu0 %6104
      %6106 = vrot.lane.b32.xlu0 %v6062, 63
      %v6107 = vpop.permute.xlu0 %6106
      %6108 = vrot.lane.b32.xlu0 %v6063, 63
      %v6109 = vpop.permute.xlu0 %6108
      %6110 = vrot.lane.b32.xlu0 %v6064, 63
      %v6111 = vpop.permute.xlu0 %6110
      %6112 = vrot.lane.b32.xlu0 %v6065, 63
      %v6113 = vpop.permute.xlu0 %6112
      %6114 = vrot.lane.b32.xlu0 %v6066, 63
      %v6115 = vpop.permute.xlu0 %6114
      %6116 = vrot.lane.b32.xlu0 %v6067, 63
      %v6117 = vpop.permute.xlu0 %6116
      %6118 = vrot.lane.b32.xlu0 %v6068, 63
      %v6119 = vpop.permute.xlu0 %6118
      %v6120 = vsel %vm1181, %v6087, %v6089
      %v6121 = vsel %vm1181, %v6089, %v6091
      %v6122 = vsel %vm1181, %v6091, %v6093
      %v6123 = vsel %vm1181, %v6093, %v6095
      %v6124 = vsel %vm1181, %v6095, %v6097
      %v6125 = vsel %vm1181, %v6097, %v6099
      %v6126 = vsel %vm1181, %v6099, %v6101
      %v6127 = vsel %vm1181, %v6101, %v6103
      %v6128 = vsel %vm1181, %v6087, %v6105
      %v6129 = vsel %vm1181, %v6105, %v6107
      %v6130 = vsel %vm1181, %v6107, %v6109
      %v6131 = vsel %vm1181, %v6109, %v6111
      %v6132 = vsel %vm1181, %v6111, %v6113
      %v6133 = vsel %vm1181, %v6113, %v6115
      %v6134 = vsel %vm1181, %v6115, %v6117
      %v6135 = vsel %vm1181, %v6117, %v6119
      %6152 = vst [vmem:[#allocation3 + $0x280] sm:$0xff] %v6120
      %6153 = vst [vmem:[#allocation3 + $0x288] sm:$0xff] %v6121
      %6154 = vst [vmem:[#allocation3 + $0x290] sm:$0xff] %v6122
      %6155 = vst [vmem:[#allocation3 + $0x298] sm:$0xff] %v6123
      %6156 = vst [vmem:[#allocation3 + $0x2a0] sm:$0xff] %v6124
      %6157 = vst [vmem:[#allocation3 + $0x2a8] sm:$0xff] %v6125
      %6158 = vst [vmem:[#allocation3 + $0x2b0] sm:$0xff] %v6126
      %6159 = vst [vmem:[#allocation3 + $0x2b8] sm:$0xff] %v6127
      %6160 = vst [vmem:[#allocation3 + $0x2c0] sm:$0xff] %v6128
      %6161 = vst [vmem:[#allocation3 + $0x2c8] sm:$0xff] %v6129
      %6162 = vst [vmem:[#allocation3 + $0x2d0] sm:$0xff] %v6130
      %6163 = vst [vmem:[#allocation3 + $0x2d8] sm:$0xff] %v6131
      %6164 = vst [vmem:[#allocation3 + $0x2e0] sm:$0xff] %v6132
      %6165 = vst [vmem:[#allocation3 + $0x2e8] sm:$0xff] %v6133
      %6166 = vst [vmem:[#allocation3 + $0x2f0] sm:$0xff] %v6134
      %6167 = vst [vmem:[#allocation3 + $0x2f8] sm:$0xff] %v6135
      %v6168 = vld [vmem:[%s1206] ss:$8 sm:$0xf]
      %v6169 = vld [vmem:[%s1206] ss:$8 sm:$0xf0]
      %v6170 = vor.u32 %v6168, %v6169
      %v6172 = vlaneseq
      %v6173 = vshrl.u32 %v6172, 7
      %v6174 = vsub.s32 0, %v6173
      %v6175 = vrot.slane %v6170, %v6174
      %v6176 = vlaneseq
      %v6177 = vshrl.u32 %v6176, 7
      %v6178 = vsub.s32 1, %v6177
      %v6179 = vrot.slane %v6170, %v6178
      %v6180 = vlaneseq
      %v6181 = vshrl.u32 %v6180, 7
      %v6182 = vsub.s32 2, %v6181
      %v6183 = vrot.slane %v6170, %v6182
      %v6184 = vlaneseq
      %v6185 = vshrl.u32 %v6184, 7
      %v6186 = vsub.s32 3, %v6185
      %v6187 = vrot.slane %v6170, %v6186
      %v6188 = vlaneseq
      %v6189 = vshrl.u32 %v6188, 7
      %v6190 = vsub.s32 4, %v6189
      %v6191 = vrot.slane %v6170, %v6190
      %v6192 = vlaneseq
      %v6193 = vshrl.u32 %v6192, 7
      %v6194 = vsub.s32 5, %v6193
      %v6195 = vrot.slane %v6170, %v6194
      %v6196 = vlaneseq
      %v6197 = vshrl.u32 %v6196, 7
      %v6198 = vsub.s32 6, %v6197
      %v6199 = vrot.slane %v6170, %v6198
      %v6200 = vlaneseq
      %v6201 = vshrl.u32 %v6200, 7
      %v6202 = vsub.s32 7, %v6201
      %v6203 = vrot.slane %v6170, %v6202
      %6204 = vrot.lane.b32.xlu0 %v6175, 71
      %v6205 = vpop.permute.xlu0 %6204
      %6206 = vrot.lane.b32.xlu0 %v6179, 71
      %v6207 = vpop.permute.xlu0 %6206
      %6208 = vrot.lane.b32.xlu0 %v6183, 71
      %v6209 = vpop.permute.xlu0 %6208
      %6210 = vrot.lane.b32.xlu0 %v6187, 71
      %v6211 = vpop.permute.xlu0 %6210
      %6212 = vrot.lane.b32.xlu0 %v6191, 71
      %v6213 = vpop.permute.xlu0 %6212
      %6214 = vrot.lane.b32.xlu0 %v6195, 71
      %v6215 = vpop.permute.xlu0 %6214
      %6216 = vrot.lane.b32.xlu0 %v6199, 71
      %v6217 = vpop.permute.xlu0 %6216
      %6218 = vrot.lane.b32.xlu0 %v6203, 71
      %v6219 = vpop.permute.xlu0 %6218
      %v6220 = vsel %vm1259, %v6205, %v6207
      %v6221 = vsel %vm1259, %v6207, %v6209
      %v6222 = vsel %vm1259, %v6209, %v6211
      %v6223 = vsel %vm1259, %v6211, %v6213
      %v6224 = vsel %vm1259, %v6213, %v6215
      %v6225 = vsel %vm1259, %v6215, %v6217
      %v6226 = vsel %vm1259, %v6217, %v6219
      %v6236 = vmul.f32 %v6205, 0.0
      %v6237 = vmul.f32 %v4834, %v6220
      %v6238 = vmul.f32 %v4835, %v6221
      %v6239 = vmul.f32 %v4836, %v6222
      %v6240 = vmul.f32 %v4837, %v6223
      %v6241 = vmul.f32 %v4838, %v6224
      %v6242 = vmul.f32 %v4839, %v6225
      %v6243 = vmul.f32 %v4840, %v6226
      %v6244 = vmul.f32 %v4841, %v6219
      %v6245 = vmul.f32 %v4842, %v6220
      %v6246 = vmul.f32 %v4843, %v6221
      %v6247 = vmul.f32 %v4844, %v6222
      %v6248 = vmul.f32 %v4845, %v6223
      %v6249 = vmul.f32 %v4846, %v6224
      %v6250 = vmul.f32 %v4847, %v6225
      %v6251 = vmul.f32 %v4848, %v6226
      %v6252 = vmul.f32 %v4849, %v6219
      %v6253 = vmul.f32 %v4850, %v6220
      %v6254 = vmul.f32 %v4851, %v6221
      %v6255 = vmul.f32 %v4852, %v6222
      %v6256 = vmul.f32 %v4853, %v6223
      %v6257 = vmul.f32 %v4854, %v6224
      %v6258 = vmul.f32 %v4855, %v6225
      %v6259 = vmul.f32 %v4856, %v6226
      %v6260 = vmul.f32 %v4857, %v6219
      %v6261 = vmul.f32 %v4858, %v6220
      %v6262 = vmul.f32 %v4859, %v6221
      %v6263 = vmul.f32 %v4860, %v6222
      %v6264 = vmul.f32 %v4861, %v6223
      %v6265 = vmul.f32 %v4862, %v6224
      %v6266 = vmul.f32 %v4863, %v6225
      %v6267 = vmul.f32 %v4864, %v6226
      %v6268 = vmul.f32 %v4865, %v6219
      %v6269 = vpack.c.bf16 %v6236, %v6236
      %v6270 = vpack.c.bf16 %v6245, %v6237
      %v6271 = vpack.c.bf16 %v6246, %v6238
      %v6272 = vpack.c.bf16 %v6247, %v6239
      %v6273 = vpack.c.bf16 %v6248, %v6240
      %v6274 = vpack.c.bf16 %v6249, %v6241
      %v6275 = vpack.c.bf16 %v6250, %v6242
      %v6276 = vpack.c.bf16 %v6251, %v6243
      %v6277 = vpack.c.bf16 %v6252, %v6244
      %v6278 = vpack.c.bf16 %v6261, %v6253
      %v6279 = vpack.c.bf16 %v6262, %v6254
      %v6280 = vpack.c.bf16 %v6263, %v6255
      %v6281 = vpack.c.bf16 %v6264, %v6256
      %v6282 = vpack.c.bf16 %v6265, %v6257
      %v6283 = vpack.c.bf16 %v6266, %v6258
      %v6284 = vpack.c.bf16 %v6267, %v6259
      %v6285 = vpack.c.bf16 %v6268, %v6260
      %6303 = vrot.lane.b32.xlu0 %v6269, 57
      %v6304 = vpop.permute.xlu0 %6303
      %6305 = vrot.lane.b32.xlu0 %v6270, 57
      %v6306 = vpop.permute.xlu0 %6305
      %6307 = vrot.lane.b32.xlu0 %v6271, 57
      %v6308 = vpop.permute.xlu0 %6307
      %6309 = vrot.lane.b32.xlu0 %v6272, 57
      %v6310 = vpop.permute.xlu0 %6309
      %6311 = vrot.lane.b32.xlu0 %v6273, 57
      %v6312 = vpop.permute.xlu0 %6311
      %6313 = vrot.lane.b32.xlu0 %v6274, 57
      %v6314 = vpop.permute.xlu0 %6313
      %6315 = vrot.lane.b32.xlu0 %v6275, 57
      %v6316 = vpop.permute.xlu0 %6315
      %6317 = vrot.lane.b32.xlu0 %v6276, 57
      %v6318 = vpop.permute.xlu0 %6317
      %6319 = vrot.lane.b32.xlu0 %v6277, 57
      %v6320 = vpop.permute.xlu0 %6319
      %6321 = vrot.lane.b32.xlu0 %v6278, 57
      %v6322 = vpop.permute.xlu0 %6321
      %6323 = vrot.lane.b32.xlu0 %v6279, 57
      %v6324 = vpop.permute.xlu0 %6323
      %6325 = vrot.lane.b32.xlu0 %v6280, 57
      %v6326 = vpop.permute.xlu0 %6325
      %6327 = vrot.lane.b32.xlu0 %v6281, 57
      %v6328 = vpop.permute.xlu0 %6327
      %6329 = vrot.lane.b32.xlu0 %v6282, 57
      %v6330 = vpop.permute.xlu0 %6329
      %6331 = vrot.lane.b32.xlu0 %v6283, 57
      %v6332 = vpop.permute.xlu0 %6331
      %6333 = vrot.lane.b32.xlu0 %v6284, 57
      %v6334 = vpop.permute.xlu0 %6333
      %6335 = vrot.lane.b32.xlu0 %v6285, 57
      %v6336 = vpop.permute.xlu0 %6335
      %v6337 = vsel %vm1330, %v6304, %v6306
      %v6338 = vsel %vm1330, %v6306, %v6308
      %v6339 = vsel %vm1330, %v6308, %v6310
      %v6340 = vsel %vm1330, %v6310, %v6312
      %v6341 = vsel %vm1330, %v6312, %v6314
      %v6342 = vsel %vm1330, %v6314, %v6316
      %v6343 = vsel %vm1330, %v6316, %v6318
      %v6344 = vsel %vm1330, %v6318, %v6320
      %v6345 = vsel %vm1330, %v6304, %v6322
      %v6346 = vsel %vm1330, %v6322, %v6324
      %v6347 = vsel %vm1330, %v6324, %v6326
      %v6348 = vsel %vm1330, %v6326, %v6328
      %v6349 = vsel %vm1330, %v6328, %v6330
      %v6350 = vsel %vm1330, %v6330, %v6332
      %v6351 = vsel %vm1330, %v6332, %v6334
      %v6352 = vsel %vm1330, %v6334, %v6336
      %6369 = vst [vmem:[#allocation3 + $0x300] sm:$0xff] %v6337
      %6370 = vst [vmem:[#allocation3 + $0x308] sm:$0xff] %v6338
      %6371 = vst [vmem:[#allocation3 + $0x310] sm:$0xff] %v6339
      %6372 = vst [vmem:[#allocation3 + $0x318] sm:$0xff] %v6340
      %6373 = vst [vmem:[#allocation3 + $0x320] sm:$0xff] %v6341
      %6374 = vst [vmem:[#allocation3 + $0x328] sm:$0xff] %v6342
      %6375 = vst [vmem:[#allocation3 + $0x330] sm:$0xff] %v6343
      %6376 = vst [vmem:[#allocation3 + $0x338] sm:$0xff] %v6344
      %6377 = vst [vmem:[#allocation3 + $0x340] sm:$0xff] %v6345
      %6378 = vst [vmem:[#allocation3 + $0x348] sm:$0xff] %v6346
      %6379 = vst [vmem:[#allocation3 + $0x350] sm:$0xff] %v6347
      %6380 = vst [vmem:[#allocation3 + $0x358] sm:$0xff] %v6348
      %6381 = vst [vmem:[#allocation3 + $0x360] sm:$0xff] %v6349
      %6382 = vst [vmem:[#allocation3 + $0x368] sm:$0xff] %v6350
      %6383 = vst [vmem:[#allocation3 + $0x370] sm:$0xff] %v6351
      %6384 = vst [vmem:[#allocation3 + $0x378] sm:$0xff] %v6352
      %v6385 = vld [vmem:[%s1355] ss:$8 sm:$0xf]
      %v6386 = vld [vmem:[%s1355] ss:$8 sm:$0xf0]
      %v6387 = vor.u32 %v6385, %v6386
      %v6389 = vlaneseq
      %v6390 = vshrl.u32 %v6389, 7
      %v6391 = vsub.s32 0, %v6390
      %v6392 = vrot.slane %v6387, %v6391
      %v6393 = vlaneseq
      %v6394 = vshrl.u32 %v6393, 7
      %v6395 = vsub.s32 1, %v6394
      %v6396 = vrot.slane %v6387, %v6395
      %v6397 = vlaneseq
      %v6398 = vshrl.u32 %v6397, 7
      %v6399 = vsub.s32 2, %v6398
      %v6400 = vrot.slane %v6387, %v6399
      %v6401 = vlaneseq
      %v6402 = vshrl.u32 %v6401, 7
      %v6403 = vsub.s32 3, %v6402
      %v6404 = vrot.slane %v6387, %v6403
      %v6405 = vlaneseq
      %v6406 = vshrl.u32 %v6405, 7
      %v6407 = vsub.s32 4, %v6406
      %v6408 = vrot.slane %v6387, %v6407
      %v6409 = vlaneseq
      %v6410 = vshrl.u32 %v6409, 7
      %v6411 = vsub.s32 5, %v6410
      %v6412 = vrot.slane %v6387, %v6411
      %v6413 = vlaneseq
      %v6414 = vshrl.u32 %v6413, 7
      %v6415 = vsub.s32 6, %v6414
      %v6416 = vrot.slane %v6387, %v6415
      %v6417 = vlaneseq
      %v6418 = vshrl.u32 %v6417, 7
      %v6419 = vsub.s32 7, %v6418
      %v6420 = vrot.slane %v6387, %v6419
      %6421 = vrot.lane.b32.xlu0 %v6392, 72
      %v6422 = vpop.permute.xlu0 %6421
      %6423 = vrot.lane.b32.xlu0 %v6396, 72
      %v6424 = vpop.permute.xlu0 %6423
      %6425 = vrot.lane.b32.xlu0 %v6400, 72
      %v6426 = vpop.permute.xlu0 %6425
      %6427 = vrot.lane.b32.xlu0 %v6404, 72
      %v6428 = vpop.permute.xlu0 %6427
      %6429 = vrot.lane.b32.xlu0 %v6408, 72
      %v6430 = vpop.permute.xlu0 %6429
      %6431 = vrot.lane.b32.xlu0 %v6412, 72
      %v6432 = vpop.permute.xlu0 %6431
      %6433 = vrot.lane.b32.xlu0 %v6416, 72
      %v6434 = vpop.permute.xlu0 %6433
      %6435 = vrot.lane.b32.xlu0 %v6420, 72
      %v6436 = vpop.permute.xlu0 %6435
      %v6437 = vsel %vm1408, %v6422, %v6424
      %v6438 = vsel %vm1408, %v6424, %v6426
      %v6439 = vsel %vm1408, %v6426, %v6428
      %v6440 = vsel %vm1408, %v6428, %v6430
      %v6441 = vsel %vm1408, %v6430, %v6432
      %v6442 = vsel %vm1408, %v6432, %v6434
      %v6443 = vsel %vm1408, %v6434, %v6436
      %v6453 = vmul.f32 %v6422, 0.0
      %v6454 = vmul.f32 %v4834, %v6437
      %v6455 = vmul.f32 %v4835, %v6438
      %v6456 = vmul.f32 %v4836, %v6439
      %v6457 = vmul.f32 %v4837, %v6440
      %v6458 = vmul.f32 %v4838, %v6441
      %v6459 = vmul.f32 %v4839, %v6442
      %v6460 = vmul.f32 %v4840, %v6443
      %v6461 = vmul.f32 %v4841, %v6436
      %v6462 = vmul.f32 %v4842, %v6437
      %v6463 = vmul.f32 %v4843, %v6438
      %v6464 = vmul.f32 %v4844, %v6439
      %v6465 = vmul.f32 %v4845, %v6440
      %v6466 = vmul.f32 %v4846, %v6441
      %v6467 = vmul.f32 %v4847, %v6442
      %v6468 = vmul.f32 %v4848, %v6443
      %v6469 = vmul.f32 %v4849, %v6436
      %v6470 = vmul.f32 %v4850, %v6437
      %v6471 = vmul.f32 %v4851, %v6438
      %v6472 = vmul.f32 %v4852, %v6439
      %v6473 = vmul.f32 %v4853, %v6440
      %v6474 = vmul.f32 %v4854, %v6441
      %v6475 = vmul.f32 %v4855, %v6442
      %v6476 = vmul.f32 %v4856, %v6443
      %v6477 = vmul.f32 %v4857, %v6436
      %v6478 = vmul.f32 %v4858, %v6437
      %v6479 = vmul.f32 %v4859, %v6438
      %v6480 = vmul.f32 %v4860, %v6439
      %v6481 = vmul.f32 %v4861, %v6440
      %v6482 = vmul.f32 %v4862, %v6441
      %v6483 = vmul.f32 %v4863, %v6442
      %v6484 = vmul.f32 %v4864, %v6443
      %v6485 = vmul.f32 %v4865, %v6436
      %v6486 = vpack.c.bf16 %v6453, %v6453
      %v6487 = vpack.c.bf16 %v6462, %v6454
      %v6488 = vpack.c.bf16 %v6463, %v6455
      %v6489 = vpack.c.bf16 %v6464, %v6456
      %v6490 = vpack.c.bf16 %v6465, %v6457
      %v6491 = vpack.c.bf16 %v6466, %v6458
      %v6492 = vpack.c.bf16 %v6467, %v6459
      %v6493 = vpack.c.bf16 %v6468, %v6460
      %v6494 = vpack.c.bf16 %v6469, %v6461
      %v6495 = vpack.c.bf16 %v6478, %v6470
      %v6496 = vpack.c.bf16 %v6479, %v6471
      %v6497 = vpack.c.bf16 %v6480, %v6472
      %v6498 = vpack.c.bf16 %v6481, %v6473
      %v6499 = vpack.c.bf16 %v6482, %v6474
      %v6500 = vpack.c.bf16 %v6483, %v6475
      %v6501 = vpack.c.bf16 %v6484, %v6476
      %v6502 = vpack.c.bf16 %v6485, %v6477
      %6520 = vrot.lane.b32.xlu0 %v6486, 56
      %v6521 = vpop.permute.xlu0 %6520
      %6522 = vrot.lane.b32.xlu0 %v6487, 56
      %v6523 = vpop.permute.xlu0 %6522
      %6524 = vrot.lane.b32.xlu0 %v6488, 56
      %v6525 = vpop.permute.xlu0 %6524
      %6526 = vrot.lane.b32.xlu0 %v6489, 56
      %v6527 = vpop.permute.xlu0 %6526
      %6528 = vrot.lane.b32.xlu0 %v6490, 56
      %v6529 = vpop.permute.xlu0 %6528
      %6530 = vrot.lane.b32.xlu0 %v6491, 56
      %v6531 = vpop.permute.xlu0 %6530
      %6532 = vrot.lane.b32.xlu0 %v6492, 56
      %v6533 = vpop.permute.xlu0 %6532
      %6534 = vrot.lane.b32.xlu0 %v6493, 56
      %v6535 = vpop.permute.xlu0 %6534
      %6536 = vrot.lane.b32.xlu0 %v6494, 56
      %v6537 = vpop.permute.xlu0 %6536
      %6538 = vrot.lane.b32.xlu0 %v6495, 56
      %v6539 = vpop.permute.xlu0 %6538
      %6540 = vrot.lane.b32.xlu0 %v6496, 56
      %v6541 = vpop.permute.xlu0 %6540
      %6542 = vrot.lane.b32.xlu0 %v6497, 56
      %v6543 = vpop.permute.xlu0 %6542
      %6544 = vrot.lane.b32.xlu0 %v6498, 56
      %v6545 = vpop.permute.xlu0 %6544
      %6546 = vrot.lane.b32.xlu0 %v6499, 56
      %v6547 = vpop.permute.xlu0 %6546
      %6548 = vrot.lane.b32.xlu0 %v6500, 56
      %v6549 = vpop.permute.xlu0 %6548
      %6550 = vrot.lane.b32.xlu0 %v6501, 56
      %v6551 = vpop.permute.xlu0 %6550
      %6552 = vrot.lane.b32.xlu0 %v6502, 56
      %v6553 = vpop.permute.xlu0 %6552
      %v6554 = vsel %vm1479, %v6521, %v6523
      %v6555 = vsel %vm1479, %v6523, %v6525
      %v6556 = vsel %vm1479, %v6525, %v6527
      %v6557 = vsel %vm1479, %v6527, %v6529
      %v6558 = vsel %vm1479, %v6529, %v6531
      %v6559 = vsel %vm1479, %v6531, %v6533
      %v6560 = vsel %vm1479, %v6533, %v6535
      %v6561 = vsel %vm1479, %v6535, %v6537
      %v6562 = vsel %vm1479, %v6521, %v6539
      %v6563 = vsel %vm1479, %v6539, %v6541
      %v6564 = vsel %vm1479, %v6541, %v6543
      %v6565 = vsel %vm1479, %v6543, %v6545
      %v6566 = vsel %vm1479, %v6545, %v6547
      %v6567 = vsel %vm1479, %v6547, %v6549
      %v6568 = vsel %vm1479, %v6549, %v6551
      %v6569 = vsel %vm1479, %v6551, %v6553
      %6586 = vst [vmem:[#allocation3 + $0x380] sm:$0xff] %v6554
      %6587 = vst [vmem:[#allocation3 + $0x388] sm:$0xff] %v6555
      %6588 = vst [vmem:[#allocation3 + $0x390] sm:$0xff] %v6556
      %6589 = vst [vmem:[#allocation3 + $0x398] sm:$0xff] %v6557
      %6590 = vst [vmem:[#allocation3 + $0x3a0] sm:$0xff] %v6558
      %6591 = vst [vmem:[#allocation3 + $0x3a8] sm:$0xff] %v6559
      %6592 = vst [vmem:[#allocation3 + $0x3b0] sm:$0xff] %v6560
      %6593 = vst [vmem:[#allocation3 + $0x3b8] sm:$0xff] %v6561
      %6594 = vst [vmem:[#allocation3 + $0x3c0] sm:$0xff] %v6562
      %6595 = vst [vmem:[#allocation3 + $0x3c8] sm:$0xff] %v6563
      %6596 = vst [vmem:[#allocation3 + $0x3d0] sm:$0xff] %v6564
      %6597 = vst [vmem:[#allocation3 + $0x3d8] sm:$0xff] %v6565
      %6598 = vst [vmem:[#allocation3 + $0x3e0] sm:$0xff] %v6566
      %6599 = vst [vmem:[#allocation3 + $0x3e8] sm:$0xff] %v6567
      %6600 = vst [vmem:[#allocation3 + $0x3f0] sm:$0xff] %v6568
      %6601 = vst [vmem:[#allocation3 + $0x3f8] sm:$0xff] %v6569
      %v6602 = vld [vmem:[%s1504] ss:$8 sm:$0xf]
      %v6603 = vld [vmem:[%s1504] ss:$8 sm:$0xf0]
      %v6604 = vor.u32 %v6602, %v6603
      %v6606 = vlaneseq
      %v6607 = vshrl.u32 %v6606, 7
      %v6608 = vsub.s32 0, %v6607
      %v6609 = vrot.slane %v6604, %v6608
      %v6610 = vlaneseq
      %v6611 = vshrl.u32 %v6610, 7
      %v6612 = vsub.s32 1, %v6611
      %v6613 = vrot.slane %v6604, %v6612
      %v6614 = vlaneseq
      %v6615 = vshrl.u32 %v6614, 7
      %v6616 = vsub.s32 2, %v6615
      %v6617 = vrot.slane %v6604, %v6616
      %v6618 = vlaneseq
      %v6619 = vshrl.u32 %v6618, 7
      %v6620 = vsub.s32 3, %v6619
      %v6621 = vrot.slane %v6604, %v6620
      %v6622 = vlaneseq
      %v6623 = vshrl.u32 %v6622, 7
      %v6624 = vsub.s32 4, %v6623
      %v6625 = vrot.slane %v6604, %v6624
      %v6626 = vlaneseq
      %v6627 = vshrl.u32 %v6626, 7
      %v6628 = vsub.s32 5, %v6627
      %v6629 = vrot.slane %v6604, %v6628
      %v6630 = vlaneseq
      %v6631 = vshrl.u32 %v6630, 7
      %v6632 = vsub.s32 6, %v6631
      %v6633 = vrot.slane %v6604, %v6632
      %v6634 = vlaneseq
      %v6635 = vshrl.u32 %v6634, 7
      %v6636 = vsub.s32 7, %v6635
      %v6637 = vrot.slane %v6604, %v6636
      %6638 = vrot.lane.b32.xlu0 %v6609, 73
      %v6639 = vpop.permute.xlu0 %6638
      %6640 = vrot.lane.b32.xlu0 %v6613, 73
      %v6641 = vpop.permute.xlu0 %6640
      %6642 = vrot.lane.b32.xlu0 %v6617, 73
      %v6643 = vpop.permute.xlu0 %6642
      %6644 = vrot.lane.b32.xlu0 %v6621, 73
      %v6645 = vpop.permute.xlu0 %6644
      %6646 = vrot.lane.b32.xlu0 %v6625, 73
      %v6647 = vpop.permute.xlu0 %6646
      %6648 = vrot.lane.b32.xlu0 %v6629, 73
      %v6649 = vpop.permute.xlu0 %6648
      %6650 = vrot.lane.b32.xlu0 %v6633, 73
      %v6651 = vpop.permute.xlu0 %6650
      %6652 = vrot.lane.b32.xlu0 %v6637, 73
      %v6653 = vpop.permute.xlu0 %6652
      %v6654 = vsel %vm1557, %v6639, %v6641
      %v6655 = vsel %vm1557, %v6641, %v6643
      %v6656 = vsel %vm1557, %v6643, %v6645
      %v6657 = vsel %vm1557, %v6645, %v6647
      %v6658 = vsel %vm1557, %v6647, %v6649
      %v6659 = vsel %vm1557, %v6649, %v6651
      %v6660 = vsel %vm1557, %v6651, %v6653
      %v6670 = vmul.f32 %v6639, 0.0
      %v6671 = vmul.f32 %v4834, %v6654
      %v6672 = vmul.f32 %v4835, %v6655
      %v6673 = vmul.f32 %v4836, %v6656
      %v6674 = vmul.f32 %v4837, %v6657
      %v6675 = vmul.f32 %v4838, %v6658
      %v6676 = vmul.f32 %v4839, %v6659
      %v6677 = vmul.f32 %v4840, %v6660
      %v6678 = vmul.f32 %v4841, %v6653
      %v6679 = vmul.f32 %v4842, %v6654
      %v6680 = vmul.f32 %v4843, %v6655
      %v6681 = vmul.f32 %v4844, %v6656
      %v6682 = vmul.f32 %v4845, %v6657
      %v6683 = vmul.f32 %v4846, %v6658
      %v6684 = vmul.f32 %v4847, %v6659
      %v6685 = vmul.f32 %v4848, %v6660
      %v6686 = vmul.f32 %v4849, %v6653
      %v6687 = vmul.f32 %v4850, %v6654
      %v6688 = vmul.f32 %v4851, %v6655
      %v6689 = vmul.f32 %v4852, %v6656
      %v6690 = vmul.f32 %v4853, %v6657
      %v6691 = vmul.f32 %v4854, %v6658
      %v6692 = vmul.f32 %v4855, %v6659
      %v6693 = vmul.f32 %v4856, %v6660
      %v6694 = vmul.f32 %v4857, %v6653
      %v6695 = vmul.f32 %v4858, %v6654
      %v6696 = vmul.f32 %v4859, %v6655
      %v6697 = vmul.f32 %v4860, %v6656
      %v6698 = vmul.f32 %v4861, %v6657
      %v6699 = vmul.f32 %v4862, %v6658
      %v6700 = vmul.f32 %v4863, %v6659
      %v6701 = vmul.f32 %v4864, %v6660
      %v6702 = vmul.f32 %v4865, %v6653
      %v6703 = vpack.c.bf16 %v6670, %v6670
      %v6704 = vpack.c.bf16 %v6679, %v6671
      %v6705 = vpack.c.bf16 %v6680, %v6672
      %v6706 = vpack.c.bf16 %v6681, %v6673
      %v6707 = vpack.c.bf16 %v6682, %v6674
      %v6708 = vpack.c.bf16 %v6683, %v6675
      %v6709 = vpack.c.bf16 %v6684, %v6676
      %v6710 = vpack.c.bf16 %v6685, %v6677
      %v6711 = vpack.c.bf16 %v6686, %v6678
      %v6712 = vpack.c.bf16 %v6695, %v6687
      %v6713 = vpack.c.bf16 %v6696, %v6688
      %v6714 = vpack.c.bf16 %v6697, %v6689
      %v6715 = vpack.c.bf16 %v6698, %v6690
      %v6716 = vpack.c.bf16 %v6699, %v6691
      %v6717 = vpack.c.bf16 %v6700, %v6692
      %v6718 = vpack.c.bf16 %v6701, %v6693
      %v6719 = vpack.c.bf16 %v6702, %v6694
      %6737 = vrot.lane.b32.xlu0 %v6703, 55
      %v6738 = vpop.permute.xlu0 %6737
      %6739 = vrot.lane.b32.xlu0 %v6704, 55
      %v6740 = vpop.permute.xlu0 %6739
      %6741 = vrot.lane.b32.xlu0 %v6705, 55
      %v6742 = vpop.permute.xlu0 %6741
      %6743 = vrot.lane.b32.xlu0 %v6706, 55
      %v6744 = vpop.permute.xlu0 %6743
      %6745 = vrot.lane.b32.xlu0 %v6707, 55
      %v6746 = vpop.permute.xlu0 %6745
      %6747 = vrot.lane.b32.xlu0 %v6708, 55
      %v6748 = vpop.permute.xlu0 %6747
      %6749 = vrot.lane.b32.xlu0 %v6709, 55
      %v6750 = vpop.permute.xlu0 %6749
      %6751 = vrot.lane.b32.xlu0 %v6710, 55
      %v6752 = vpop.permute.xlu0 %6751
      %6753 = vrot.lane.b32.xlu0 %v6711, 55
      %v6754 = vpop.permute.xlu0 %6753
      %6755 = vrot.lane.b32.xlu0 %v6712, 55
      %v6756 = vpop.permute.xlu0 %6755
      %6757 = vrot.lane.b32.xlu0 %v6713, 55
      %v6758 = vpop.permute.xlu0 %6757
      %6759 = vrot.lane.b32.xlu0 %v6714, 55
      %v6760 = vpop.permute.xlu0 %6759
      %6761 = vrot.lane.b32.xlu0 %v6715, 55
      %v6762 = vpop.permute.xlu0 %6761
      %6763 = vrot.lane.b32.xlu0 %v6716, 55
      %v6764 = vpop.permute.xlu0 %6763
      %6765 = vrot.lane.b32.xlu0 %v6717, 55
      %v6766 = vpop.permute.xlu0 %6765
      %6767 = vrot.lane.b32.xlu0 %v6718, 55
      %v6768 = vpop.permute.xlu0 %6767
      %6769 = vrot.lane.b32.xlu0 %v6719, 55
      %v6770 = vpop.permute.xlu0 %6769
      %v6771 = vsel %vm1619, %v6738, %v6740
      %v6772 = vsel %vm1619, %v6740, %v6742
      %v6773 = vsel %vm1619, %v6742, %v6744
      %v6774 = vsel %vm1619, %v6744, %v6746
      %v6775 = vsel %vm1619, %v6746, %v6748
      %v6776 = vsel %vm1619, %v6748, %v6750
      %v6777 = vsel %vm1619, %v6750, %v6752
      %v6778 = vsel %vm1619, %v6752, %v6754
      %v6779 = vsel %vm1619, %v6738, %v6756
      %v6780 = vsel %vm1619, %v6756, %v6758
      %v6781 = vsel %vm1619, %v6758, %v6760
      %v6782 = vsel %vm1619, %v6760, %v6762
      %v6783 = vsel %vm1619, %v6762, %v6764
      %v6784 = vsel %vm1619, %v6764, %v6766
      %v6785 = vsel %vm1619, %v6766, %v6768
      %v6786 = vsel %vm1619, %v6768, %v6770
      %6803 = vst [vmem:[#allocation3 + $0x400] sm:$0xff] %v6771
      %6804 = vst [vmem:[#allocation3 + $0x408] sm:$0xff] %v6772
      %6805 = vst [vmem:[#allocation3 + $0x410] sm:$0xff] %v6773
      %6806 = vst [vmem:[#allocation3 + $0x418] sm:$0xff] %v6774
      %6807 = vst [vmem:[#allocation3 + $0x420] sm:$0xff] %v6775
      %6808 = vst [vmem:[#allocation3 + $0x428] sm:$0xff] %v6776
      %6809 = vst [vmem:[#allocation3 + $0x430] sm:$0xff] %v6777
      %6810 = vst [vmem:[#allocation3 + $0x438] sm:$0xff] %v6778
      %6811 = vst [vmem:[#allocation3 + $0x440] sm:$0xff] %v6779
      %6812 = vst [vmem:[#allocation3 + $0x448] sm:$0xff] %v6780
      %6813 = vst [vmem:[#allocation3 + $0x450] sm:$0xff] %v6781
      %6814 = vst [vmem:[#allocation3 + $0x458] sm:$0xff] %v6782
      %6815 = vst [vmem:[#allocation3 + $0x460] sm:$0xff] %v6783
      %6816 = vst [vmem:[#allocation3 + $0x468] sm:$0xff] %v6784
      %6817 = vst [vmem:[#allocation3 + $0x470] sm:$0xff] %v6785
      %6818 = vst [vmem:[#allocation3 + $0x478] sm:$0xff] %v6786
      %v6819 = vld [vmem:[%s1644] ss:$8 sm:$0xf]
      %v6820 = vld [vmem:[%s1644] ss:$8 sm:$0xf0]
      %v6821 = vor.u32 %v6819, %v6820
      %v6823 = vlaneseq
      %v6824 = vshrl.u32 %v6823, 7
      %v6825 = vsub.s32 0, %v6824
      %v6826 = vrot.slane %v6821, %v6825
      %v6827 = vlaneseq
      %v6828 = vshrl.u32 %v6827, 7
      %v6829 = vsub.s32 1, %v6828
      %v6830 = vrot.slane %v6821, %v6829
      %v6831 = vlaneseq
      %v6832 = vshrl.u32 %v6831, 7
      %v6833 = vsub.s32 2, %v6832
      %v6834 = vrot.slane %v6821, %v6833
      %v6835 = vlaneseq
      %v6836 = vshrl.u32 %v6835, 7
      %v6837 = vsub.s32 3, %v6836
      %v6838 = vrot.slane %v6821, %v6837
      %v6839 = vlaneseq
      %v6840 = vshrl.u32 %v6839, 7
      %v6841 = vsub.s32 4, %v6840
      %v6842 = vrot.slane %v6821, %v6841
      %v6843 = vlaneseq
      %v6844 = vshrl.u32 %v6843, 7
      %v6845 = vsub.s32 5, %v6844
      %v6846 = vrot.slane %v6821, %v6845
      %v6847 = vlaneseq
      %v6848 = vshrl.u32 %v6847, 7
      %v6849 = vsub.s32 6, %v6848
      %v6850 = vrot.slane %v6821, %v6849
      %v6851 = vlaneseq
      %v6852 = vshrl.u32 %v6851, 7
      %v6853 = vsub.s32 7, %v6852
      %v6854 = vrot.slane %v6821, %v6853
      %6855 = vrot.lane.b32.xlu0 %v6826, 119
      %v6856 = vpop.permute.xlu0 %6855
      %6857 = vrot.lane.b32.xlu0 %v6830, 119
      %v6858 = vpop.permute.xlu0 %6857
      %6859 = vrot.lane.b32.xlu0 %v6834, 119
      %v6860 = vpop.permute.xlu0 %6859
      %6861 = vrot.lane.b32.xlu0 %v6838, 119
      %v6862 = vpop.permute.xlu0 %6861
      %6863 = vrot.lane.b32.xlu0 %v6842, 119
      %v6864 = vpop.permute.xlu0 %6863
      %6865 = vrot.lane.b32.xlu0 %v6846, 119
      %v6866 = vpop.permute.xlu0 %6865
      %6867 = vrot.lane.b32.xlu0 %v6850, 119
      %v6868 = vpop.permute.xlu0 %6867
      %6869 = vrot.lane.b32.xlu0 %v6854, 119
      %v6870 = vpop.permute.xlu0 %6869
      %v6871 = vsel %vm1697, %v6856, %v6858
      %v6872 = vsel %vm1697, %v6858, %v6860
      %v6873 = vsel %vm1697, %v6860, %v6862
      %v6874 = vsel %vm1697, %v6862, %v6864
      %v6875 = vsel %vm1697, %v6864, %v6866
      %v6876 = vsel %vm1697, %v6866, %v6868
      %v6877 = vsel %vm1697, %v6868, %v6870
      %v6887 = vmul.f32 %v6856, 0.0
      %v6888 = vmul.f32 %v4834, %v6871
      %v6889 = vmul.f32 %v4835, %v6872
      %v6890 = vmul.f32 %v4836, %v6873
      %v6891 = vmul.f32 %v4837, %v6874
      %v6892 = vmul.f32 %v4838, %v6875
      %v6893 = vmul.f32 %v4839, %v6876
      %v6894 = vmul.f32 %v4840, %v6877
      %v6895 = vmul.f32 %v4841, %v6870
      %v6896 = vmul.f32 %v4842, %v6871
      %v6897 = vmul.f32 %v4843, %v6872
      %v6898 = vmul.f32 %v4844, %v6873
      %v6899 = vmul.f32 %v4845, %v6874
      %v6900 = vmul.f32 %v4846, %v6875
      %v6901 = vmul.f32 %v4847, %v6876
      %v6902 = vmul.f32 %v4848, %v6877
      %v6903 = vmul.f32 %v4849, %v6870
      %v6904 = vmul.f32 %v4850, %v6871
      %v6905 = vmul.f32 %v4851, %v6872
      %v6906 = vmul.f32 %v4852, %v6873
      %v6907 = vmul.f32 %v4853, %v6874
      %v6908 = vmul.f32 %v4854, %v6875
      %v6909 = vmul.f32 %v4855, %v6876
      %v6910 = vmul.f32 %v4856, %v6877
      %v6911 = vmul.f32 %v4857, %v6870
      %v6912 = vmul.f32 %v4858, %v6871
      %v6913 = vmul.f32 %v4859, %v6872
      %v6914 = vmul.f32 %v4860, %v6873
      %v6915 = vmul.f32 %v4861, %v6874
      %v6916 = vmul.f32 %v4862, %v6875
      %v6917 = vmul.f32 %v4863, %v6876
      %v6918 = vmul.f32 %v4864, %v6877
      %v6919 = vmul.f32 %v4865, %v6870
      %v6920 = vpack.c.bf16 %v6887, %v6887
      %v6921 = vpack.c.bf16 %v6896, %v6888
      %v6922 = vpack.c.bf16 %v6897, %v6889
      %v6923 = vpack.c.bf16 %v6898, %v6890
      %v6924 = vpack.c.bf16 %v6899, %v6891
      %v6925 = vpack.c.bf16 %v6900, %v6892
      %v6926 = vpack.c.bf16 %v6901, %v6893
      %v6927 = vpack.c.bf16 %v6902, %v6894
      %v6928 = vpack.c.bf16 %v6903, %v6895
      %v6929 = vpack.c.bf16 %v6912, %v6904
      %v6930 = vpack.c.bf16 %v6913, %v6905
      %v6931 = vpack.c.bf16 %v6914, %v6906
      %v6932 = vpack.c.bf16 %v6915, %v6907
      %v6933 = vpack.c.bf16 %v6916, %v6908
      %v6934 = vpack.c.bf16 %v6917, %v6909
      %v6935 = vpack.c.bf16 %v6918, %v6910
      %v6936 = vpack.c.bf16 %v6919, %v6911
      %6954 = vrot.lane.b32.xlu0 %v6920, 9
      %v6955 = vpop.permute.xlu0 %6954
      %6956 = vrot.lane.b32.xlu0 %v6921, 9
      %v6957 = vpop.permute.xlu0 %6956
      %6958 = vrot.lane.b32.xlu0 %v6922, 9
      %v6959 = vpop.permute.xlu0 %6958
      %6960 = vrot.lane.b32.xlu0 %v6923, 9
      %v6961 = vpop.permute.xlu0 %6960
      %6962 = vrot.lane.b32.xlu0 %v6924, 9
      %v6963 = vpop.permute.xlu0 %6962
      %6964 = vrot.lane.b32.xlu0 %v6925, 9
      %v6965 = vpop.permute.xlu0 %6964
      %6966 = vrot.lane.b32.xlu0 %v6926, 9
      %v6967 = vpop.permute.xlu0 %6966
      %6968 = vrot.lane.b32.xlu0 %v6927, 9
      %v6969 = vpop.permute.xlu0 %6968
      %6970 = vrot.lane.b32.xlu0 %v6928, 9
      %v6971 = vpop.permute.xlu0 %6970
      %6972 = vrot.lane.b32.xlu0 %v6929, 9
      %v6973 = vpop.permute.xlu0 %6972
      %6974 = vrot.lane.b32.xlu0 %v6930, 9
      %v6975 = vpop.permute.xlu0 %6974
      %6976 = vrot.lane.b32.xlu0 %v6931, 9
      %v6977 = vpop.permute.xlu0 %6976
      %6978 = vrot.lane.b32.xlu0 %v6932, 9
      %v6979 = vpop.permute.xlu0 %6978
      %6980 = vrot.lane.b32.xlu0 %v6933, 9
      %v6981 = vpop.permute.xlu0 %6980
      %6982 = vrot.lane.b32.xlu0 %v6934, 9
      %v6983 = vpop.permute.xlu0 %6982
      %6984 = vrot.lane.b32.xlu0 %v6935, 9
      %v6985 = vpop.permute.xlu0 %6984
      %6986 = vrot.lane.b32.xlu0 %v6936, 9
      %v6987 = vpop.permute.xlu0 %6986
      %v6988 = vsel %vm1768, %v6955, %v6957
      %v6989 = vsel %vm1768, %v6957, %v6959
      %v6990 = vsel %vm1768, %v6959, %v6961
      %v6991 = vsel %vm1768, %v6961, %v6963
      %v6992 = vsel %vm1768, %v6963, %v6965
      %v6993 = vsel %vm1768, %v6965, %v6967
      %v6994 = vsel %vm1768, %v6967, %v6969
      %v6995 = vsel %vm1768, %v6969, %v6971
      %v6996 = vsel %vm1768, %v6955, %v6973
      %v6997 = vsel %vm1768, %v6973, %v6975
      %v6998 = vsel %vm1768, %v6975, %v6977
      %v6999 = vsel %vm1768, %v6977, %v6979
      %v7000 = vsel %vm1768, %v6979, %v6981
      %v7001 = vsel %vm1768, %v6981, %v6983
      %v7002 = vsel %vm1768, %v6983, %v6985
      %v7003 = vsel %vm1768, %v6985, %v6987
      %7020 = vst [vmem:[#allocation3 + $0x480] sm:$0xff] %v6988
      %7021 = vst [vmem:[#allocation3 + $0x488] sm:$0xff] %v6989
      %7022 = vst [vmem:[#allocation3 + $0x490] sm:$0xff] %v6990
      %7023 = vst [vmem:[#allocation3 + $0x498] sm:$0xff] %v6991
      %7024 = vst [vmem:[#allocation3 + $0x4a0] sm:$0xff] %v6992
      %7025 = vst [vmem:[#allocation3 + $0x4a8] sm:$0xff] %v6993
      %7026 = vst [vmem:[#allocation3 + $0x4b0] sm:$0xff] %v6994
      %7027 = vst [vmem:[#allocation3 + $0x4b8] sm:$0xff] %v6995
      %7028 = vst [vmem:[#allocation3 + $0x4c0] sm:$0xff] %v6996
      %7029 = vst [vmem:[#allocation3 + $0x4c8] sm:$0xff] %v6997
      %7030 = vst [vmem:[#allocation3 + $0x4d0] sm:$0xff] %v6998
      %7031 = vst [vmem:[#allocation3 + $0x4d8] sm:$0xff] %v6999
      %7032 = vst [vmem:[#allocation3 + $0x4e0] sm:$0xff] %v7000
      %7033 = vst [vmem:[#allocation3 + $0x4e8] sm:$0xff] %v7001
      %7034 = vst [vmem:[#allocation3 + $0x4f0] sm:$0xff] %v7002
      %7035 = vst [vmem:[#allocation3 + $0x4f8] sm:$0xff] %v7003
      %v7036 = vld [vmem:[%s1793] ss:$8 sm:$0xf]
      %v7037 = vld [vmem:[%s1793] ss:$8 sm:$0xf0]
      %v7038 = vor.u32 %v7036, %v7037
      %v7040 = vlaneseq
      %v7041 = vshrl.u32 %v7040, 7
      %v7042 = vsub.s32 0, %v7041
      %v7043 = vrot.slane %v7038, %v7042
      %v7044 = vlaneseq
      %v7045 = vshrl.u32 %v7044, 7
      %v7046 = vsub.s32 1, %v7045
      %v7047 = vrot.slane %v7038, %v7046
      %v7048 = vlaneseq
      %v7049 = vshrl.u32 %v7048, 7
      %v7050 = vsub.s32 2, %v7049
      %v7051 = vrot.slane %v7038, %v7050
      %v7052 = vlaneseq
      %v7053 = vshrl.u32 %v7052, 7
      %v7054 = vsub.s32 3, %v7053
      %v7055 = vrot.slane %v7038, %v7054
      %v7056 = vlaneseq
      %v7057 = vshrl.u32 %v7056, 7
      %v7058 = vsub.s32 4, %v7057
      %v7059 = vrot.slane %v7038, %v7058
      %v7060 = vlaneseq
      %v7061 = vshrl.u32 %v7060, 7
      %v7062 = vsub.s32 5, %v7061
      %v7063 = vrot.slane %v7038, %v7062
      %v7064 = vlaneseq
      %v7065 = vshrl.u32 %v7064, 7
      %v7066 = vsub.s32 6, %v7065
      %v7067 = vrot.slane %v7038, %v7066
      %v7068 = vlaneseq
      %v7069 = vshrl.u32 %v7068, 7
      %v7070 = vsub.s32 7, %v7069
      %v7071 = vrot.slane %v7038, %v7070
      %7072 = vrot.lane.b32.xlu0 %v7043, 120
      %v7073 = vpop.permute.xlu0 %7072
      %7074 = vrot.lane.b32.xlu0 %v7047, 120
      %v7075 = vpop.permute.xlu0 %7074
      %7076 = vrot.lane.b32.xlu0 %v7051, 120
      %v7077 = vpop.permute.xlu0 %7076
      %7078 = vrot.lane.b32.xlu0 %v7055, 120
      %v7079 = vpop.permute.xlu0 %7078
      %7080 = vrot.lane.b32.xlu0 %v7059, 120
      %v7081 = vpop.permute.xlu0 %7080
      %7082 = vrot.lane.b32.xlu0 %v7063, 120
      %v7083 = vpop.permute.xlu0 %7082
      %7084 = vrot.lane.b32.xlu0 %v7067, 120
      %v7085 = vpop.permute.xlu0 %7084
      %7086 = vrot.lane.b32.xlu0 %v7071, 120
      %v7087 = vpop.permute.xlu0 %7086
      %v7088 = vsel %vm1846, %v7073, %v7075
      %v7089 = vsel %vm1846, %v7075, %v7077
      %v7090 = vsel %vm1846, %v7077, %v7079
      %v7091 = vsel %vm1846, %v7079, %v7081
      %v7092 = vsel %vm1846, %v7081, %v7083
      %v7093 = vsel %vm1846, %v7083, %v7085
      %v7094 = vsel %vm1846, %v7085, %v7087
      %v7104 = vmul.f32 %v7073, 0.0
      %v7105 = vmul.f32 %v4834, %v7088
      %v7106 = vmul.f32 %v4835, %v7089
      %v7107 = vmul.f32 %v4836, %v7090
      %v7108 = vmul.f32 %v4837, %v7091
      %v7109 = vmul.f32 %v4838, %v7092
      %v7110 = vmul.f32 %v4839, %v7093
      %v7111 = vmul.f32 %v4840, %v7094
      %v7112 = vmul.f32 %v4841, %v7087
      %v7113 = vmul.f32 %v4842, %v7088
      %v7114 = vmul.f32 %v4843, %v7089
      %v7115 = vmul.f32 %v4844, %v7090
      %v7116 = vmul.f32 %v4845, %v7091
      %v7117 = vmul.f32 %v4846, %v7092
      %v7118 = vmul.f32 %v4847, %v7093
      %v7119 = vmul.f32 %v4848, %v7094
      %v7120 = vmul.f32 %v4849, %v7087
      %v7121 = vmul.f32 %v4850, %v7088
      %v7122 = vmul.f32 %v4851, %v7089
      %v7123 = vmul.f32 %v4852, %v7090
      %v7124 = vmul.f32 %v4853, %v7091
      %v7125 = vmul.f32 %v4854, %v7092
      %v7126 = vmul.f32 %v4855, %v7093
      %v7127 = vmul.f32 %v4856, %v7094
      %v7128 = vmul.f32 %v4857, %v7087
      %v7129 = vmul.f32 %v4858, %v7088
      %v7130 = vmul.f32 %v4859, %v7089
      %v7131 = vmul.f32 %v4860, %v7090
      %v7132 = vmul.f32 %v4861, %v7091
      %v7133 = vmul.f32 %v4862, %v7092
      %v7134 = vmul.f32 %v4863, %v7093
      %v7135 = vmul.f32 %v4864, %v7094
      %v7136 = vmul.f32 %v4865, %v7087
      %v7137 = vpack.c.bf16 %v7104, %v7104
      %v7138 = vpack.c.bf16 %v7113, %v7105
      %v7139 = vpack.c.bf16 %v7114, %v7106
      %v7140 = vpack.c.bf16 %v7115, %v7107
      %v7141 = vpack.c.bf16 %v7116, %v7108
      %v7142 = vpack.c.bf16 %v7117, %v7109
      %v7143 = vpack.c.bf16 %v7118, %v7110
      %v7144 = vpack.c.bf16 %v7119, %v7111
      %v7145 = vpack.c.bf16 %v7120, %v7112
      %v7146 = vpack.c.bf16 %v7129, %v7121
      %v7147 = vpack.c.bf16 %v7130, %v7122
      %v7148 = vpack.c.bf16 %v7131, %v7123
      %v7149 = vpack.c.bf16 %v7132, %v7124
      %v7150 = vpack.c.bf16 %v7133, %v7125
      %v7151 = vpack.c.bf16 %v7134, %v7126
      %v7152 = vpack.c.bf16 %v7135, %v7127
      %v7153 = vpack.c.bf16 %v7136, %v7128
      %7171 = vrot.lane.b32.xlu0 %v7137, 8
      %v7172 = vpop.permute.xlu0 %7171
      %7173 = vrot.lane.b32.xlu0 %v7138, 8
      %v7174 = vpop.permute.xlu0 %7173
      %7175 = vrot.lane.b32.xlu0 %v7139, 8
      %v7176 = vpop.permute.xlu0 %7175
      %7177 = vrot.lane.b32.xlu0 %v7140, 8
      %v7178 = vpop.permute.xlu0 %7177
      %7179 = vrot.lane.b32.xlu0 %v7141, 8
      %v7180 = vpop.permute.xlu0 %7179
      %7181 = vrot.lane.b32.xlu0 %v7142, 8
      %v7182 = vpop.permute.xlu0 %7181
      %7183 = vrot.lane.b32.xlu0 %v7143, 8
      %v7184 = vpop.permute.xlu0 %7183
      %7185 = vrot.lane.b32.xlu0 %v7144, 8
      %v7186 = vpop.permute.xlu0 %7185
      %7187 = vrot.lane.b32.xlu0 %v7145, 8
      %v7188 = vpop.permute.xlu0 %7187
      %7189 = vrot.lane.b32.xlu0 %v7146, 8
      %v7190 = vpop.permute.xlu0 %7189
      %7191 = vrot.lane.b32.xlu0 %v7147, 8
      %v7192 = vpop.permute.xlu0 %7191
      %7193 = vrot.lane.b32.xlu0 %v7148, 8
      %v7194 = vpop.permute.xlu0 %7193
      %7195 = vrot.lane.b32.xlu0 %v7149, 8
      %v7196 = vpop.permute.xlu0 %7195
      %7197 = vrot.lane.b32.xlu0 %v7150, 8
      %v7198 = vpop.permute.xlu0 %7197
      %7199 = vrot.lane.b32.xlu0 %v7151, 8
      %v7200 = vpop.permute.xlu0 %7199
      %7201 = vrot.lane.b32.xlu0 %v7152, 8
      %v7202 = vpop.permute.xlu0 %7201
      %7203 = vrot.lane.b32.xlu0 %v7153, 8
      %v7204 = vpop.permute.xlu0 %7203
      %v7205 = vsel %vm1917, %v7172, %v7174
      %v7206 = vsel %vm1917, %v7174, %v7176
      %v7207 = vsel %vm1917, %v7176, %v7178
      %v7208 = vsel %vm1917, %v7178, %v7180
      %v7209 = vsel %vm1917, %v7180, %v7182
      %v7210 = vsel %vm1917, %v7182, %v7184
      %v7211 = vsel %vm1917, %v7184, %v7186
      %v7212 = vsel %vm1917, %v7186, %v7188
      %v7213 = vsel %vm1917, %v7172, %v7190
      %v7214 = vsel %vm1917, %v7190, %v7192
      %v7215 = vsel %vm1917, %v7192, %v7194
      %v7216 = vsel %vm1917, %v7194, %v7196
      %v7217 = vsel %vm1917, %v7196, %v7198
      %v7218 = vsel %vm1917, %v7198, %v7200
      %v7219 = vsel %vm1917, %v7200, %v7202
      %v7220 = vsel %vm1917, %v7202, %v7204
      %7237 = vst [vmem:[#allocation3 + $0x500] sm:$0xff] %v7205
      %7238 = vst [vmem:[#allocation3 + $0x508] sm:$0xff] %v7206
      %7239 = vst [vmem:[#allocation3 + $0x510] sm:$0xff] %v7207
      %7240 = vst [vmem:[#allocation3 + $0x518] sm:$0xff] %v7208
      %7241 = vst [vmem:[#allocation3 + $0x520] sm:$0xff] %v7209
      %7242 = vst [vmem:[#allocation3 + $0x528] sm:$0xff] %v7210
      %7243 = vst [vmem:[#allocation3 + $0x530] sm:$0xff] %v7211
      %7244 = vst [vmem:[#allocation3 + $0x538] sm:$0xff] %v7212
      %7245 = vst [vmem:[#allocation3 + $0x540] sm:$0xff] %v7213
      %7246 = vst [vmem:[#allocation3 + $0x548] sm:$0xff] %v7214
      %7247 = vst [vmem:[#allocation3 + $0x550] sm:$0xff] %v7215
      %7248 = vst [vmem:[#allocation3 + $0x558] sm:$0xff] %v7216
      %7249 = vst [vmem:[#allocation3 + $0x560] sm:$0xff] %v7217
      %7250 = vst [vmem:[#allocation3 + $0x568] sm:$0xff] %v7218
      %7251 = vst [vmem:[#allocation3 + $0x570] sm:$0xff] %v7219
      %7252 = vst [vmem:[#allocation3 + $0x578] sm:$0xff] %v7220
      %v7253 = vld [vmem:[%s1942] ss:$8 sm:$0xf]
      %v7254 = vld [vmem:[%s1942] ss:$8 sm:$0xf0]
      %v7255 = vor.u32 %v7253, %v7254
      %v7257 = vlaneseq
      %v7258 = vshrl.u32 %v7257, 7
      %v7259 = vsub.s32 0, %v7258
      %v7260 = vrot.slane %v7255, %v7259
      %v7261 = vlaneseq
      %v7262 = vshrl.u32 %v7261, 7
      %v7263 = vsub.s32 1, %v7262
      %v7264 = vrot.slane %v7255, %v7263
      %v7265 = vlaneseq
      %v7266 = vshrl.u32 %v7265, 7
      %v7267 = vsub.s32 2, %v7266
      %v7268 = vrot.slane %v7255, %v7267
      %v7269 = vlaneseq
      %v7270 = vshrl.u32 %v7269, 7
      %v7271 = vsub.s32 3, %v7270
      %v7272 = vrot.slane %v7255, %v7271
      %v7273 = vlaneseq
      %v7274 = vshrl.u32 %v7273, 7
      %v7275 = vsub.s32 4, %v7274
      %v7276 = vrot.slane %v7255, %v7275
      %v7277 = vlaneseq
      %v7278 = vshrl.u32 %v7277, 7
      %v7279 = vsub.s32 5, %v7278
      %v7280 = vrot.slane %v7255, %v7279
      %v7281 = vlaneseq
      %v7282 = vshrl.u32 %v7281, 7
      %v7283 = vsub.s32 6, %v7282
      %v7284 = vrot.slane %v7255, %v7283
      %v7285 = vlaneseq
      %v7286 = vshrl.u32 %v7285, 7
      %v7287 = vsub.s32 7, %v7286
      %v7288 = vrot.slane %v7255, %v7287
      %7289 = vrot.lane.b32.xlu0 %v7260, 121
      %v7290 = vpop.permute.xlu0 %7289
      %7291 = vrot.lane.b32.xlu0 %v7264, 121
      %v7292 = vpop.permute.xlu0 %7291
      %7293 = vrot.lane.b32.xlu0 %v7268, 121
      %v7294 = vpop.permute.xlu0 %7293
      %7295 = vrot.lane.b32.xlu0 %v7272, 121
      %v7296 = vpop.permute.xlu0 %7295
      %7297 = vrot.lane.b32.xlu0 %v7276, 121
      %v7298 = vpop.permute.xlu0 %7297
      %7299 = vrot.lane.b32.xlu0 %v7280, 121
      %v7300 = vpop.permute.xlu0 %7299
      %7301 = vrot.lane.b32.xlu0 %v7284, 121
      %v7302 = vpop.permute.xlu0 %7301
      %7303 = vrot.lane.b32.xlu0 %v7288, 121
      %v7304 = vpop.permute.xlu0 %7303
      %v7305 = vsel %vm1995, %v7290, %v7292
      %v7306 = vsel %vm1995, %v7292, %v7294
      %v7307 = vsel %vm1995, %v7294, %v7296
      %v7308 = vsel %vm1995, %v7296, %v7298
      %v7309 = vsel %vm1995, %v7298, %v7300
      %v7310 = vsel %vm1995, %v7300, %v7302
      %v7311 = vsel %vm1995, %v7302, %v7304
      %v7321 = vmul.f32 %v7290, 0.0
      %v7322 = vmul.f32 %v4834, %v7305
      %v7323 = vmul.f32 %v4835, %v7306
      %v7324 = vmul.f32 %v4836, %v7307
      %v7325 = vmul.f32 %v4837, %v7308
      %v7326 = vmul.f32 %v4838, %v7309
      %v7327 = vmul.f32 %v4839, %v7310
      %v7328 = vmul.f32 %v4840, %v7311
      %v7329 = vmul.f32 %v4841, %v7304
      %v7330 = vmul.f32 %v4842, %v7305
      %v7331 = vmul.f32 %v4843, %v7306
      %v7332 = vmul.f32 %v4844, %v7307
      %v7333 = vmul.f32 %v4845, %v7308
      %v7334 = vmul.f32 %v4846, %v7309
      %v7335 = vmul.f32 %v4847, %v7310
      %v7336 = vmul.f32 %v4848, %v7311
      %v7337 = vmul.f32 %v4849, %v7304
      %v7338 = vmul.f32 %v4850, %v7305
      %v7339 = vmul.f32 %v4851, %v7306
      %v7340 = vmul.f32 %v4852, %v7307
      %v7341 = vmul.f32 %v4853, %v7308
      %v7342 = vmul.f32 %v4854, %v7309
      %v7343 = vmul.f32 %v4855, %v7310
      %v7344 = vmul.f32 %v4856, %v7311
      %v7345 = vmul.f32 %v4857, %v7304
      %v7346 = vmul.f32 %v4858, %v7305
      %v7347 = vmul.f32 %v4859, %v7306
      %v7348 = vmul.f32 %v4860, %v7307
      %v7349 = vmul.f32 %v4861, %v7308
      %v7350 = vmul.f32 %v4862, %v7309
      %v7351 = vmul.f32 %v4863, %v7310
      %v7352 = vmul.f32 %v4864, %v7311
      %v7353 = vmul.f32 %v4865, %v7304
      %v7354 = vpack.c.bf16 %v7321, %v7321
      %v7355 = vpack.c.bf16 %v7330, %v7322
      %v7356 = vpack.c.bf16 %v7331, %v7323
      %v7357 = vpack.c.bf16 %v7332, %v7324
      %v7358 = vpack.c.bf16 %v7333, %v7325
      %v7359 = vpack.c.bf16 %v7334, %v7326
      %v7360 = vpack.c.bf16 %v7335, %v7327
      %v7361 = vpack.c.bf16 %v7336, %v7328
      %v7362 = vpack.c.bf16 %v7337, %v7329
      %v7363 = vpack.c.bf16 %v7346, %v7338
      %v7364 = vpack.c.bf16 %v7347, %v7339
      %v7365 = vpack.c.bf16 %v7348, %v7340
      %v7366 = vpack.c.bf16 %v7349, %v7341
      %v7367 = vpack.c.bf16 %v7350, %v7342
      %v7368 = vpack.c.bf16 %v7351, %v7343
      %v7369 = vpack.c.bf16 %v7352, %v7344
      %v7370 = vpack.c.bf16 %v7353, %v7345
      %7388 = vrot.lane.b32.xlu0 %v7354, 7
      %v7389 = vpop.permute.xlu0 %7388
      %7390 = vrot.lane.b32.xlu0 %v7355, 7
      %v7391 = vpop.permute.xlu0 %7390
      %7392 = vrot.lane.b32.xlu0 %v7356, 7
      %v7393 = vpop.permute.xlu0 %7392
      %7394 = vrot.lane.b32.xlu0 %v7357, 7
      %v7395 = vpop.permute.xlu0 %7394
      %7396 = vrot.lane.b32.xlu0 %v7358, 7
      %v7397 = vpop.permute.xlu0 %7396
      %7398 = vrot.lane.b32.xlu0 %v7359, 7
      %v7399 = vpop.permute.xlu0 %7398
      %7400 = vrot.lane.b32.xlu0 %v7360, 7
      %v7401 = vpop.permute.xlu0 %7400
      %7402 = vrot.lane.b32.xlu0 %v7361, 7
      %v7403 = vpop.permute.xlu0 %7402
      %7404 = vrot.lane.b32.xlu0 %v7362, 7
      %v7405 = vpop.permute.xlu0 %7404
      %7406 = vrot.lane.b32.xlu0 %v7363, 7
      %v7407 = vpop.permute.xlu0 %7406
      %7408 = vrot.lane.b32.xlu0 %v7364, 7
      %v7409 = vpop.permute.xlu0 %7408
      %7410 = vrot.lane.b32.xlu0 %v7365, 7
      %v7411 = vpop.permute.xlu0 %7410
      %7412 = vrot.lane.b32.xlu0 %v7366, 7
      %v7413 = vpop.permute.xlu0 %7412
      %7414 = vrot.lane.b32.xlu0 %v7367, 7
      %v7415 = vpop.permute.xlu0 %7414
      %7416 = vrot.lane.b32.xlu0 %v7368, 7
      %v7417 = vpop.permute.xlu0 %7416
      %7418 = vrot.lane.b32.xlu0 %v7369, 7
      %v7419 = vpop.permute.xlu0 %7418
      %7420 = vrot.lane.b32.xlu0 %v7370, 7
      %v7421 = vpop.permute.xlu0 %7420
      %v7422 = vsel %vm2066, %v7389, %v7391
      %v7423 = vsel %vm2066, %v7391, %v7393
      %v7424 = vsel %vm2066, %v7393, %v7395
      %v7425 = vsel %vm2066, %v7395, %v7397
      %v7426 = vsel %vm2066, %v7397, %v7399
      %v7427 = vsel %vm2066, %v7399, %v7401
      %v7428 = vsel %vm2066, %v7401, %v7403
      %v7429 = vsel %vm2066, %v7403, %v7405
      %v7430 = vsel %vm2066, %v7389, %v7407
      %v7431 = vsel %vm2066, %v7407, %v7409
      %v7432 = vsel %vm2066, %v7409, %v7411
      %v7433 = vsel %vm2066, %v7411, %v7413
      %v7434 = vsel %vm2066, %v7413, %v7415
      %v7435 = vsel %vm2066, %v7415, %v7417
      %v7436 = vsel %vm2066, %v7417, %v7419
      %v7437 = vsel %vm2066, %v7419, %v7421
      %7454 = vst [vmem:[#allocation3 + $0x580] sm:$0xff] %v7422
      %7455 = vst [vmem:[#allocation3 + $0x588] sm:$0xff] %v7423
      %7456 = vst [vmem:[#allocation3 + $0x590] sm:$0xff] %v7424
      %7457 = vst [vmem:[#allocation3 + $0x598] sm:$0xff] %v7425
      %7458 = vst [vmem:[#allocation3 + $0x5a0] sm:$0xff] %v7426
      %7459 = vst [vmem:[#allocation3 + $0x5a8] sm:$0xff] %v7427
      %7460 = vst [vmem:[#allocation3 + $0x5b0] sm:$0xff] %v7428
      %7461 = vst [vmem:[#allocation3 + $0x5b8] sm:$0xff] %v7429
      %7462 = vst [vmem:[#allocation3 + $0x5c0] sm:$0xff] %v7430
      %7463 = vst [vmem:[#allocation3 + $0x5c8] sm:$0xff] %v7431
      %7464 = vst [vmem:[#allocation3 + $0x5d0] sm:$0xff] %v7432
      %7465 = vst [vmem:[#allocation3 + $0x5d8] sm:$0xff] %v7433
      %7466 = vst [vmem:[#allocation3 + $0x5e0] sm:$0xff] %v7434
      %7467 = vst [vmem:[#allocation3 + $0x5e8] sm:$0xff] %v7435
      %7468 = vst [vmem:[#allocation3 + $0x5f0] sm:$0xff] %v7436
      %7469 = vst [vmem:[#allocation3 + $0x5f8] sm:$0xff] %v7437
      %v7470 = vld [vmem:[%s2091] ss:$8 sm:$0xf]
      %v7471 = vld [vmem:[%s2091] ss:$8 sm:$0xf0]
      %v7472 = vor.u32 %v7470, %v7471
      %v7474 = vlaneseq
      %v7475 = vshrl.u32 %v7474, 7
      %v7476 = vsub.s32 0, %v7475
      %v7477 = vrot.slane %v7472, %v7476
      %v7478 = vlaneseq
      %v7479 = vshrl.u32 %v7478, 7
      %v7480 = vsub.s32 1, %v7479
      %v7481 = vrot.slane %v7472, %v7480
      %v7482 = vlaneseq
      %v7483 = vshrl.u32 %v7482, 7
      %v7484 = vsub.s32 2, %v7483
      %v7485 = vrot.slane %v7472, %v7484
      %v7486 = vlaneseq
      %v7487 = vshrl.u32 %v7486, 7
      %v7488 = vsub.s32 3, %v7487
      %v7489 = vrot.slane %v7472, %v7488
      %v7490 = vlaneseq
      %v7491 = vshrl.u32 %v7490, 7
      %v7492 = vsub.s32 4, %v7491
      %v7493 = vrot.slane %v7472, %v7492
      %v7494 = vlaneseq
      %v7495 = vshrl.u32 %v7494, 7
      %v7496 = vsub.s32 5, %v7495
      %v7497 = vrot.slane %v7472, %v7496
      %v7498 = vlaneseq
      %v7499 = vshrl.u32 %v7498, 7
      %v7500 = vsub.s32 6, %v7499
      %v7501 = vrot.slane %v7472, %v7500
      %v7502 = vlaneseq
      %v7503 = vshrl.u32 %v7502, 7
      %v7504 = vsub.s32 7, %v7503
      %v7505 = vrot.slane %v7472, %v7504
      %7506 = vrot.lane.b32.xlu0 %v7477, 127
      %v7507 = vpop.permute.xlu0 %7506
      %7508 = vrot.lane.b32.xlu0 %v7481, 127
      %v7509 = vpop.permute.xlu0 %7508
      %7510 = vrot.lane.b32.xlu0 %v7485, 127
      %v7511 = vpop.permute.xlu0 %7510
      %7512 = vrot.lane.b32.xlu0 %v7489, 127
      %v7513 = vpop.permute.xlu0 %7512
      %7514 = vrot.lane.b32.xlu0 %v7493, 127
      %v7515 = vpop.permute.xlu0 %7514
      %7516 = vrot.lane.b32.xlu0 %v7497, 127
      %v7517 = vpop.permute.xlu0 %7516
      %7518 = vrot.lane.b32.xlu0 %v7501, 127
      %v7519 = vpop.permute.xlu0 %7518
      %7520 = vrot.lane.b32.xlu0 %v7505, 127
      %v7521 = vpop.permute.xlu0 %7520
      %v7522 = vsel %vm2144, %v7507, %v7509
      %v7523 = vsel %vm2144, %v7509, %v7511
      %v7524 = vsel %vm2144, %v7511, %v7513
      %v7525 = vsel %vm2144, %v7513, %v7515
      %v7526 = vsel %vm2144, %v7515, %v7517
      %v7527 = vsel %vm2144, %v7517, %v7519
      %v7528 = vsel %vm2144, %v7519, %v7521
      %v7538 = vmul.f32 %v7507, 0.0
      %v7539 = vmul.f32 %v4834, %v7522
      %v7540 = vmul.f32 %v4835, %v7523
      %v7541 = vmul.f32 %v4836, %v7524
      %v7542 = vmul.f32 %v4837, %v7525
      %v7543 = vmul.f32 %v4838, %v7526
      %v7544 = vmul.f32 %v4839, %v7527
      %v7545 = vmul.f32 %v4840, %v7528
      %v7546 = vmul.f32 %v4841, %v7521
      %v7547 = vmul.f32 %v4842, %v7522
      %v7548 = vmul.f32 %v4843, %v7523
      %v7549 = vmul.f32 %v4844, %v7524
      %v7550 = vmul.f32 %v4845, %v7525
      %v7551 = vmul.f32 %v4846, %v7526
      %v7552 = vmul.f32 %v4847, %v7527
      %v7553 = vmul.f32 %v4848, %v7528
      %v7554 = vmul.f32 %v4849, %v7521
      %v7555 = vmul.f32 %v4850, %v7522
      %v7556 = vmul.f32 %v4851, %v7523
      %v7557 = vmul.f32 %v4852, %v7524
      %v7558 = vmul.f32 %v4853, %v7525
      %v7559 = vmul.f32 %v4854, %v7526
      %v7560 = vmul.f32 %v4855, %v7527
      %v7561 = vmul.f32 %v4856, %v7528
      %v7562 = vmul.f32 %v4857, %v7521
      %v7563 = vmul.f32 %v4858, %v7522
      %v7564 = vmul.f32 %v4859, %v7523
      %v7565 = vmul.f32 %v4860, %v7524
      %v7566 = vmul.f32 %v4861, %v7525
      %v7567 = vmul.f32 %v4862, %v7526
      %v7568 = vmul.f32 %v4863, %v7527
      %v7569 = vmul.f32 %v4864, %v7528
      %v7570 = vmul.f32 %v4865, %v7521
      %v7571 = vpack.c.bf16 %v7538, %v7538
      %v7572 = vpack.c.bf16 %v7547, %v7539
      %v7573 = vpack.c.bf16 %v7548, %v7540
      %v7574 = vpack.c.bf16 %v7549, %v7541
      %v7575 = vpack.c.bf16 %v7550, %v7542
      %v7576 = vpack.c.bf16 %v7551, %v7543
      %v7577 = vpack.c.bf16 %v7552, %v7544
      %v7578 = vpack.c.bf16 %v7553, %v7545
      %v7579 = vpack.c.bf16 %v7554, %v7546
      %v7580 = vpack.c.bf16 %v7563, %v7555
      %v7581 = vpack.c.bf16 %v7564, %v7556
      %v7582 = vpack.c.bf16 %v7565, %v7557
      %v7583 = vpack.c.bf16 %v7566, %v7558
      %v7584 = vpack.c.bf16 %v7567, %v7559
      %v7585 = vpack.c.bf16 %v7568, %v7560
      %v7586 = vpack.c.bf16 %v7569, %v7561
      %v7587 = vpack.c.bf16 %v7570, %v7562
      %7605 = vrot.lane.b32.xlu0 %v7571, 1
      %v7606 = vpop.permute.xlu0 %7605
      %7607 = vrot.lane.b32.xlu0 %v7572, 1
      %v7608 = vpop.permute.xlu0 %7607
      %7609 = vrot.lane.b32.xlu0 %v7573, 1
      %v7610 = vpop.permute.xlu0 %7609
      %7611 = vrot.lane.b32.xlu0 %v7574, 1
      %v7612 = vpop.permute.xlu0 %7611
      %7613 = vrot.lane.b32.xlu0 %v7575, 1
      %v7614 = vpop.permute.xlu0 %7613
      %7615 = vrot.lane.b32.xlu0 %v7576, 1
      %v7616 = vpop.permute.xlu0 %7615
      %7617 = vrot.lane.b32.xlu0 %v7577, 1
      %v7618 = vpop.permute.xlu0 %7617
      %7619 = vrot.lane.b32.xlu0 %v7578, 1
      %v7620 = vpop.permute.xlu0 %7619
      %7621 = vrot.lane.b32.xlu0 %v7579, 1
      %v7622 = vpop.permute.xlu0 %7621
      %7623 = vrot.lane.b32.xlu0 %v7580, 1
      %v7624 = vpop.permute.xlu0 %7623
      %7625 = vrot.lane.b32.xlu0 %v7581, 1
      %v7626 = vpop.permute.xlu0 %7625
      %7627 = vrot.lane.b32.xlu0 %v7582, 1
      %v7628 = vpop.permute.xlu0 %7627
      %7629 = vrot.lane.b32.xlu0 %v7583, 1
      %v7630 = vpop.permute.xlu0 %7629
      %7631 = vrot.lane.b32.xlu0 %v7584, 1
      %v7632 = vpop.permute.xlu0 %7631
      %7633 = vrot.lane.b32.xlu0 %v7585, 1
      %v7634 = vpop.permute.xlu0 %7633
      %7635 = vrot.lane.b32.xlu0 %v7586, 1
      %v7636 = vpop.permute.xlu0 %7635
      %7637 = vrot.lane.b32.xlu0 %v7587, 1
      %v7638 = vpop.permute.xlu0 %7637
      %v7639 = vsel %vm2206, %v7606, %v7608
      %v7640 = vsel %vm2206, %v7608, %v7610
      %v7641 = vsel %vm2206, %v7610, %v7612
      %v7642 = vsel %vm2206, %v7612, %v7614
      %v7643 = vsel %vm2206, %v7614, %v7616
      %v7644 = vsel %vm2206, %v7616, %v7618
      %v7645 = vsel %vm2206, %v7618, %v7620
      %v7646 = vsel %vm2206, %v7620, %v7622
      %v7647 = vsel %vm2206, %v7606, %v7624
      %v7648 = vsel %vm2206, %v7624, %v7626
      %v7649 = vsel %vm2206, %v7626, %v7628
      %v7650 = vsel %vm2206, %v7628, %v7630
      %v7651 = vsel %vm2206, %v7630, %v7632
      %v7652 = vsel %vm2206, %v7632, %v7634
      %v7653 = vsel %vm2206, %v7634, %v7636
      %v7654 = vsel %vm2206, %v7636, %v7638
      %7671 = vst [vmem:[#allocation3 + $0x600] sm:$0xff] %v7639
      %7672 = vst [vmem:[#allocation3 + $0x608] sm:$0xff] %v7640
      %7673 = vst [vmem:[#allocation3 + $0x610] sm:$0xff] %v7641
      %7674 = vst [vmem:[#allocation3 + $0x618] sm:$0xff] %v7642
      %7675 = vst [vmem:[#allocation3 + $0x620] sm:$0xff] %v7643
      %7676 = vst [vmem:[#allocation3 + $0x628] sm:$0xff] %v7644
      %7677 = vst [vmem:[#allocation3 + $0x630] sm:$0xff] %v7645
      %7678 = vst [vmem:[#allocation3 + $0x638] sm:$0xff] %v7646
      %7679 = vst [vmem:[#allocation3 + $0x640] sm:$0xff] %v7647
      %7680 = vst [vmem:[#allocation3 + $0x648] sm:$0xff] %v7648
      %7681 = vst [vmem:[#allocation3 + $0x650] sm:$0xff] %v7649
      %7682 = vst [vmem:[#allocation3 + $0x658] sm:$0xff] %v7650
      %7683 = vst [vmem:[#allocation3 + $0x660] sm:$0xff] %v7651
      %7684 = vst [vmem:[#allocation3 + $0x668] sm:$0xff] %v7652
      %7685 = vst [vmem:[#allocation3 + $0x670] sm:$0xff] %v7653
      %7686 = vst [vmem:[#allocation3 + $0x678] sm:$0xff] %v7654
      %v7687 = vld [vmem:[%s2231] ss:$8 sm:$0xf]
      %v7688 = vld [vmem:[%s2231] ss:$8 sm:$0xf0]
      %v7689 = vor.u32 %v7687, %v7688
      %v7691 = vlaneseq
      %v7692 = vshrl.u32 %v7691, 7
      %v7693 = vsub.s32 0, %v7692
      %v7694 = vrot.slane %v7689, %v7693
      %v7695 = vlaneseq
      %v7696 = vshrl.u32 %v7695, 7
      %v7697 = vsub.s32 1, %v7696
      %v7698 = vrot.slane %v7689, %v7697
      %v7699 = vlaneseq
      %v7700 = vshrl.u32 %v7699, 7
      %v7701 = vsub.s32 2, %v7700
      %v7702 = vrot.slane %v7689, %v7701
      %v7703 = vlaneseq
      %v7704 = vshrl.u32 %v7703, 7
      %v7705 = vsub.s32 3, %v7704
      %v7706 = vrot.slane %v7689, %v7705
      %v7707 = vlaneseq
      %v7708 = vshrl.u32 %v7707, 7
      %v7709 = vsub.s32 4, %v7708
      %v7710 = vrot.slane %v7689, %v7709
      %v7711 = vlaneseq
      %v7712 = vshrl.u32 %v7711, 7
      %v7713 = vsub.s32 5, %v7712
      %v7714 = vrot.slane %v7689, %v7713
      %v7715 = vlaneseq
      %v7716 = vshrl.u32 %v7715, 7
      %v7717 = vsub.s32 6, %v7716
      %v7718 = vrot.slane %v7689, %v7717
      %v7719 = vlaneseq
      %v7720 = vshrl.u32 %v7719, 7
      %v7721 = vsub.s32 7, %v7720
      %v7722 = vrot.slane %v7689, %v7721
      %v7731 = vmul.f32 %v4834, %v7694
      %v7732 = vmul.f32 %v4835, %v7698
      %v7733 = vmul.f32 %v4836, %v7702
      %v7734 = vmul.f32 %v4837, %v7706
      %v7735 = vmul.f32 %v4838, %v7710
      %v7736 = vmul.f32 %v4839, %v7714
      %v7737 = vmul.f32 %v4840, %v7718
      %v7738 = vmul.f32 %v4841, %v7722
      %v7739 = vmul.f32 %v4842, %v7694
      %v7740 = vmul.f32 %v4843, %v7698
      %v7741 = vmul.f32 %v4844, %v7702
      %v7742 = vmul.f32 %v4845, %v7706
      %v7743 = vmul.f32 %v4846, %v7710
      %v7744 = vmul.f32 %v4847, %v7714
      %v7745 = vmul.f32 %v4848, %v7718
      %v7746 = vmul.f32 %v4849, %v7722
      %v7747 = vmul.f32 %v4850, %v7694
      %v7748 = vmul.f32 %v4851, %v7698
      %v7749 = vmul.f32 %v4852, %v7702
      %v7750 = vmul.f32 %v4853, %v7706
      %v7751 = vmul.f32 %v4854, %v7710
      %v7752 = vmul.f32 %v4855, %v7714
      %v7753 = vmul.f32 %v4856, %v7718
      %v7754 = vmul.f32 %v4857, %v7722
      %v7755 = vmul.f32 %v4858, %v7694
      %v7756 = vmul.f32 %v4859, %v7698
      %v7757 = vmul.f32 %v4860, %v7702
      %v7758 = vmul.f32 %v4861, %v7706
      %v7759 = vmul.f32 %v4862, %v7710
      %v7760 = vmul.f32 %v4863, %v7714
      %v7761 = vmul.f32 %v4864, %v7718
      %v7762 = vmul.f32 %v4865, %v7722
      %v7763 = vpack.c.bf16 %v7739, %v7731
      %v7764 = vpack.c.bf16 %v7740, %v7732
      %v7765 = vpack.c.bf16 %v7741, %v7733
      %v7766 = vpack.c.bf16 %v7742, %v7734
      %v7767 = vpack.c.bf16 %v7743, %v7735
      %v7768 = vpack.c.bf16 %v7744, %v7736
      %v7769 = vpack.c.bf16 %v7745, %v7737
      %v7770 = vpack.c.bf16 %v7746, %v7738
      %v7771 = vpack.c.bf16 %v7755, %v7747
      %v7772 = vpack.c.bf16 %v7756, %v7748
      %v7773 = vpack.c.bf16 %v7757, %v7749
      %v7774 = vpack.c.bf16 %v7758, %v7750
      %v7775 = vpack.c.bf16 %v7759, %v7751
      %v7776 = vpack.c.bf16 %v7760, %v7752
      %v7777 = vpack.c.bf16 %v7761, %v7753
      %v7778 = vpack.c.bf16 %v7762, %v7754
      %7779 = vst [vmem:[#allocation3 + $0x680] sm:$0xff] %v7763
      %7780 = vst [vmem:[#allocation3 + $0x688] sm:$0xff] %v7764
      %7781 = vst [vmem:[#allocation3 + $0x690] sm:$0xff] %v7765
      %7782 = vst [vmem:[#allocation3 + $0x698] sm:$0xff] %v7766
      %7783 = vst [vmem:[#allocation3 + $0x6a0] sm:$0xff] %v7767
      %7784 = vst [vmem:[#allocation3 + $0x6a8] sm:$0xff] %v7768
      %7785 = vst [vmem:[#allocation3 + $0x6b0] sm:$0xff] %v7769
      %7786 = vst [vmem:[#allocation3 + $0x6b8] sm:$0xff] %v7770
      %7787 = vst [vmem:[#allocation3 + $0x6c0] sm:$0xff] %v7771
      %7788 = vst [vmem:[#allocation3 + $0x6c8] sm:$0xff] %v7772
      %7789 = vst [vmem:[#allocation3 + $0x6d0] sm:$0xff] %v7773
      %7790 = vst [vmem:[#allocation3 + $0x6d8] sm:$0xff] %v7774
      %7791 = vst [vmem:[#allocation3 + $0x6e0] sm:$0xff] %v7775
      %7792 = vst [vmem:[#allocation3 + $0x6e8] sm:$0xff] %v7776
      %7793 = vst [vmem:[#allocation3 + $0x6f0] sm:$0xff] %v7777
      %7794 = vst [vmem:[#allocation3 + $0x6f8] sm:$0xff] %v7778
      %v7795 = vld [vmem:[%s2324] ss:$8 sm:$0xf]
      %v7796 = vld [vmem:[%s2324] ss:$8 sm:$0xf0]
      %v7797 = vor.u32 %v7795, %v7796
      %v7799 = vlaneseq
      %v7800 = vshrl.u32 %v7799, 7
      %v7801 = vsub.s32 0, %v7800
      %v7802 = vrot.slane %v7797, %v7801
      %v7803 = vlaneseq
      %v7804 = vshrl.u32 %v7803, 7
      %v7805 = vsub.s32 1, %v7804
      %v7806 = vrot.slane %v7797, %v7805
      %v7807 = vlaneseq
      %v7808 = vshrl.u32 %v7807, 7
      %v7809 = vsub.s32 2, %v7808
      %v7810 = vrot.slane %v7797, %v7809
      %v7811 = vlaneseq
      %v7812 = vshrl.u32 %v7811, 7
      %v7813 = vsub.s32 3, %v7812
      %v7814 = vrot.slane %v7797, %v7813
      %v7815 = vlaneseq
      %v7816 = vshrl.u32 %v7815, 7
      %v7817 = vsub.s32 4, %v7816
      %v7818 = vrot.slane %v7797, %v7817
      %v7819 = vlaneseq
      %v7820 = vshrl.u32 %v7819, 7
      %v7821 = vsub.s32 5, %v7820
      %v7822 = vrot.slane %v7797, %v7821
      %v7823 = vlaneseq
      %v7824 = vshrl.u32 %v7823, 7
      %v7825 = vsub.s32 6, %v7824
      %v7826 = vrot.slane %v7797, %v7825
      %v7827 = vlaneseq
      %v7828 = vshrl.u32 %v7827, 7
      %v7829 = vsub.s32 7, %v7828
      %v7830 = vrot.slane %v7797, %v7829
      %7831 = vrot.lane.b32.xlu0 %v7802, 1
      %v7832 = vpop.permute.xlu0 %7831
      %7833 = vrot.lane.b32.xlu0 %v7806, 1
      %v7834 = vpop.permute.xlu0 %7833
      %7835 = vrot.lane.b32.xlu0 %v7810, 1
      %v7836 = vpop.permute.xlu0 %7835
      %7837 = vrot.lane.b32.xlu0 %v7814, 1
      %v7838 = vpop.permute.xlu0 %7837
      %7839 = vrot.lane.b32.xlu0 %v7818, 1
      %v7840 = vpop.permute.xlu0 %7839
      %7841 = vrot.lane.b32.xlu0 %v7822, 1
      %v7842 = vpop.permute.xlu0 %7841
      %7843 = vrot.lane.b32.xlu0 %v7826, 1
      %v7844 = vpop.permute.xlu0 %7843
      %7845 = vrot.lane.b32.xlu0 %v7830, 1
      %v7846 = vpop.permute.xlu0 %7845
      %v7847 = vsel %vm2377, %v7832, %v7834
      %v7848 = vsel %vm2377, %v7834, %v7836
      %v7849 = vsel %vm2377, %v7836, %v7838
      %v7850 = vsel %vm2377, %v7838, %v7840
      %v7851 = vsel %vm2377, %v7840, %v7842
      %v7852 = vsel %vm2377, %v7842, %v7844
      %v7853 = vsel %vm2377, %v7844, %v7846
      %v7863 = vmul.f32 %v4834, %v7832
      %v7864 = vmul.f32 %v4835, %v7847
      %v7865 = vmul.f32 %v4836, %v7848
      %v7866 = vmul.f32 %v4837, %v7849
      %v7867 = vmul.f32 %v4838, %v7850
      %v7868 = vmul.f32 %v4839, %v7851
      %v7869 = vmul.f32 %v4840, %v7852
      %v7870 = vmul.f32 %v4841, %v7853
      %v7871 = vmul.f32 %v7846, 0.0
      %v7872 = vmul.f32 %v4842, %v7832
      %v7873 = vmul.f32 %v4843, %v7847
      %v7874 = vmul.f32 %v4844, %v7848
      %v7875 = vmul.f32 %v4845, %v7849
      %v7876 = vmul.f32 %v4846, %v7850
      %v7877 = vmul.f32 %v4847, %v7851
      %v7878 = vmul.f32 %v4848, %v7852
      %v7879 = vmul.f32 %v4849, %v7853
      %v7880 = vmul.f32 %v4850, %v7832
      %v7881 = vmul.f32 %v4851, %v7847
      %v7882 = vmul.f32 %v4852, %v7848
      %v7883 = vmul.f32 %v4853, %v7849
      %v7884 = vmul.f32 %v4854, %v7850
      %v7885 = vmul.f32 %v4855, %v7851
      %v7886 = vmul.f32 %v4856, %v7852
      %v7887 = vmul.f32 %v4857, %v7853
      %v7888 = vmul.f32 %v4858, %v7832
      %v7889 = vmul.f32 %v4859, %v7847
      %v7890 = vmul.f32 %v4860, %v7848
      %v7891 = vmul.f32 %v4861, %v7849
      %v7892 = vmul.f32 %v4862, %v7850
      %v7893 = vmul.f32 %v4863, %v7851
      %v7894 = vmul.f32 %v4864, %v7852
      %v7895 = vmul.f32 %v4865, %v7853
      %v7896 = vpack.c.bf16 %v7872, %v7863
      %v7897 = vpack.c.bf16 %v7873, %v7864
      %v7898 = vpack.c.bf16 %v7874, %v7865
      %v7899 = vpack.c.bf16 %v7875, %v7866
      %v7900 = vpack.c.bf16 %v7876, %v7867
      %v7901 = vpack.c.bf16 %v7877, %v7868
      %v7902 = vpack.c.bf16 %v7878, %v7869
      %v7903 = vpack.c.bf16 %v7879, %v7870
      %v7904 = vpack.c.bf16 %v7871, %v7871
      %v7905 = vpack.c.bf16 %v7888, %v7880
      %v7906 = vpack.c.bf16 %v7889, %v7881
      %v7907 = vpack.c.bf16 %v7890, %v7882
      %v7908 = vpack.c.bf16 %v7891, %v7883
      %v7909 = vpack.c.bf16 %v7892, %v7884
      %v7910 = vpack.c.bf16 %v7893, %v7885
      %v7911 = vpack.c.bf16 %v7894, %v7886
      %v7912 = vpack.c.bf16 %v7895, %v7887
      %7930 = vrot.lane.b32.xlu0 %v7896, 127
      %v7931 = vpop.permute.xlu0 %7930
      %7932 = vrot.lane.b32.xlu0 %v7897, 127
      %v7933 = vpop.permute.xlu0 %7932
      %7934 = vrot.lane.b32.xlu0 %v7898, 127
      %v7935 = vpop.permute.xlu0 %7934
      %7936 = vrot.lane.b32.xlu0 %v7899, 127
      %v7937 = vpop.permute.xlu0 %7936
      %7938 = vrot.lane.b32.xlu0 %v7900, 127
      %v7939 = vpop.permute.xlu0 %7938
      %7940 = vrot.lane.b32.xlu0 %v7901, 127
      %v7941 = vpop.permute.xlu0 %7940
      %7942 = vrot.lane.b32.xlu0 %v7902, 127
      %v7943 = vpop.permute.xlu0 %7942
      %7944 = vrot.lane.b32.xlu0 %v7903, 127
      %v7945 = vpop.permute.xlu0 %7944
      %7946 = vrot.lane.b32.xlu0 %v7904, 127
      %v7947 = vpop.permute.xlu0 %7946
      %7948 = vrot.lane.b32.xlu0 %v7905, 127
      %v7949 = vpop.permute.xlu0 %7948
      %7950 = vrot.lane.b32.xlu0 %v7906, 127
      %v7951 = vpop.permute.xlu0 %7950
      %7952 = vrot.lane.b32.xlu0 %v7907, 127
      %v7953 = vpop.permute.xlu0 %7952
      %7954 = vrot.lane.b32.xlu0 %v7908, 127
      %v7955 = vpop.permute.xlu0 %7954
      %7956 = vrot.lane.b32.xlu0 %v7909, 127
      %v7957 = vpop.permute.xlu0 %7956
      %7958 = vrot.lane.b32.xlu0 %v7910, 127
      %v7959 = vpop.permute.xlu0 %7958
      %7960 = vrot.lane.b32.xlu0 %v7911, 127
      %v7961 = vpop.permute.xlu0 %7960
      %7962 = vrot.lane.b32.xlu0 %v7912, 127
      %v7963 = vpop.permute.xlu0 %7962
      %v7964 = vsel %vm2448, %v7931, %v7933
      %v7965 = vsel %vm2448, %v7933, %v7935
      %v7966 = vsel %vm2448, %v7935, %v7937
      %v7967 = vsel %vm2448, %v7937, %v7939
      %v7968 = vsel %vm2448, %v7939, %v7941
      %v7969 = vsel %vm2448, %v7941, %v7943
      %v7970 = vsel %vm2448, %v7943, %v7945
      %v7971 = vsel %vm2448, %v7945, %v7947
      %v7972 = vsel %vm2448, %v7949, %v7951
      %v7973 = vsel %vm2448, %v7951, %v7953
      %v7974 = vsel %vm2448, %v7953, %v7955
      %v7975 = vsel %vm2448, %v7955, %v7957
      %v7976 = vsel %vm2448, %v7957, %v7959
      %v7977 = vsel %vm2448, %v7959, %v7961
      %v7978 = vsel %vm2448, %v7961, %v7963
      %v7979 = vsel %vm2448, %v7963, %v7947
      %7996 = vst [vmem:[#allocation3 + $0x700] sm:$0xff] %v7964
      %7997 = vst [vmem:[#allocation3 + $0x708] sm:$0xff] %v7965
      %7998 = vst [vmem:[#allocation3 + $0x710] sm:$0xff] %v7966
      %7999 = vst [vmem:[#allocation3 + $0x718] sm:$0xff] %v7967
      %8000 = vst [vmem:[#allocation3 + $0x720] sm:$0xff] %v7968
      %8001 = vst [vmem:[#allocation3 + $0x728] sm:$0xff] %v7969
      %8002 = vst [vmem:[#allocation3 + $0x730] sm:$0xff] %v7970
      %8003 = vst [vmem:[#allocation3 + $0x738] sm:$0xff] %v7971
      %8004 = vst [vmem:[#allocation3 + $0x740] sm:$0xff] %v7972
      %8005 = vst [vmem:[#allocation3 + $0x748] sm:$0xff] %v7973
      %8006 = vst [vmem:[#allocation3 + $0x750] sm:$0xff] %v7974
      %8007 = vst [vmem:[#allocation3 + $0x758] sm:$0xff] %v7975
      %8008 = vst [vmem:[#allocation3 + $0x760] sm:$0xff] %v7976
      %8009 = vst [vmem:[#allocation3 + $0x768] sm:$0xff] %v7977
      %8010 = vst [vmem:[#allocation3 + $0x770] sm:$0xff] %v7978
      %8011 = vst [vmem:[#allocation3 + $0x778] sm:$0xff] %v7979
      %v8012 = vld [vmem:[%s2473] ss:$8 sm:$0xf]
      %v8013 = vld [vmem:[%s2473] ss:$8 sm:$0xf0]
      %v8014 = vor.u32 %v8012, %v8013
      %v8016 = vlaneseq
      %v8017 = vshrl.u32 %v8016, 7
      %v8018 = vsub.s32 0, %v8017
      %v8019 = vrot.slane %v8014, %v8018
      %v8020 = vlaneseq
      %v8021 = vshrl.u32 %v8020, 7
      %v8022 = vsub.s32 1, %v8021
      %v8023 = vrot.slane %v8014, %v8022
      %v8024 = vlaneseq
      %v8025 = vshrl.u32 %v8024, 7
      %v8026 = vsub.s32 2, %v8025
      %v8027 = vrot.slane %v8014, %v8026
      %v8028 = vlaneseq
      %v8029 = vshrl.u32 %v8028, 7
      %v8030 = vsub.s32 3, %v8029
      %v8031 = vrot.slane %v8014, %v8030
      %v8032 = vlaneseq
      %v8033 = vshrl.u32 %v8032, 7
      %v8034 = vsub.s32 4, %v8033
      %v8035 = vrot.slane %v8014, %v8034
      %v8036 = vlaneseq
      %v8037 = vshrl.u32 %v8036, 7
      %v8038 = vsub.s32 5, %v8037
      %v8039 = vrot.slane %v8014, %v8038
      %v8040 = vlaneseq
      %v8041 = vshrl.u32 %v8040, 7
      %v8042 = vsub.s32 6, %v8041
      %v8043 = vrot.slane %v8014, %v8042
      %v8044 = vlaneseq
      %v8045 = vshrl.u32 %v8044, 7
      %v8046 = vsub.s32 7, %v8045
      %v8047 = vrot.slane %v8014, %v8046
      %8048 = vrot.lane.b32.xlu0 %v8019, 7
      %v8049 = vpop.permute.xlu0 %8048
      %8050 = vrot.lane.b32.xlu0 %v8023, 7
      %v8051 = vpop.permute.xlu0 %8050
      %8052 = vrot.lane.b32.xlu0 %v8027, 7
      %v8053 = vpop.permute.xlu0 %8052
      %8054 = vrot.lane.b32.xlu0 %v8031, 7
      %v8055 = vpop.permute.xlu0 %8054
      %8056 = vrot.lane.b32.xlu0 %v8035, 7
      %v8057 = vpop.permute.xlu0 %8056
      %8058 = vrot.lane.b32.xlu0 %v8039, 7
      %v8059 = vpop.permute.xlu0 %8058
      %8060 = vrot.lane.b32.xlu0 %v8043, 7
      %v8061 = vpop.permute.xlu0 %8060
      %8062 = vrot.lane.b32.xlu0 %v8047, 7
      %v8063 = vpop.permute.xlu0 %8062
      %v8064 = vsel %vm2526, %v8049, %v8051
      %v8065 = vsel %vm2526, %v8051, %v8053
      %v8066 = vsel %vm2526, %v8053, %v8055
      %v8067 = vsel %vm2526, %v8055, %v8057
      %v8068 = vsel %vm2526, %v8057, %v8059
      %v8069 = vsel %vm2526, %v8059, %v8061
      %v8070 = vsel %vm2526, %v8061, %v8063
      %v8080 = vmul.f32 %v4834, %v8049
      %v8081 = vmul.f32 %v4835, %v8064
      %v8082 = vmul.f32 %v4836, %v8065
      %v8083 = vmul.f32 %v4837, %v8066
      %v8084 = vmul.f32 %v4838, %v8067
      %v8085 = vmul.f32 %v4839, %v8068
      %v8086 = vmul.f32 %v4840, %v8069
      %v8087 = vmul.f32 %v4841, %v8070
      %v8088 = vmul.f32 %v8063, 0.0
      %v8089 = vmul.f32 %v4842, %v8049
      %v8090 = vmul.f32 %v4843, %v8064
      %v8091 = vmul.f32 %v4844, %v8065
      %v8092 = vmul.f32 %v4845, %v8066
      %v8093 = vmul.f32 %v4846, %v8067
      %v8094 = vmul.f32 %v4847, %v8068
      %v8095 = vmul.f32 %v4848, %v8069
      %v8096 = vmul.f32 %v4849, %v8070
      %v8097 = vmul.f32 %v4850, %v8049
      %v8098 = vmul.f32 %v4851, %v8064
      %v8099 = vmul.f32 %v4852, %v8065
      %v8100 = vmul.f32 %v4853, %v8066
      %v8101 = vmul.f32 %v4854, %v8067
      %v8102 = vmul.f32 %v4855, %v8068
      %v8103 = vmul.f32 %v4856, %v8069
      %v8104 = vmul.f32 %v4857, %v8070
      %v8105 = vmul.f32 %v4858, %v8049
      %v8106 = vmul.f32 %v4859, %v8064
      %v8107 = vmul.f32 %v4860, %v8065
      %v8108 = vmul.f32 %v4861, %v8066
      %v8109 = vmul.f32 %v4862, %v8067
      %v8110 = vmul.f32 %v4863, %v8068
      %v8111 = vmul.f32 %v4864, %v8069
      %v8112 = vmul.f32 %v4865, %v8070
      %v8113 = vpack.c.bf16 %v8089, %v8080
      %v8114 = vpack.c.bf16 %v8090, %v8081
      %v8115 = vpack.c.bf16 %v8091, %v8082
      %v8116 = vpack.c.bf16 %v8092, %v8083
      %v8117 = vpack.c.bf16 %v8093, %v8084
      %v8118 = vpack.c.bf16 %v8094, %v8085
      %v8119 = vpack.c.bf16 %v8095, %v8086
      %v8120 = vpack.c.bf16 %v8096, %v8087
      %v8121 = vpack.c.bf16 %v8088, %v8088
      %v8122 = vpack.c.bf16 %v8105, %v8097
      %v8123 = vpack.c.bf16 %v8106, %v8098
      %v8124 = vpack.c.bf16 %v8107, %v8099
      %v8125 = vpack.c.bf16 %v8108, %v8100
      %v8126 = vpack.c.bf16 %v8109, %v8101
      %v8127 = vpack.c.bf16 %v8110, %v8102
      %v8128 = vpack.c.bf16 %v8111, %v8103
      %v8129 = vpack.c.bf16 %v8112, %v8104
      %8147 = vrot.lane.b32.xlu0 %v8113, 121
      %v8148 = vpop.permute.xlu0 %8147
      %8149 = vrot.lane.b32.xlu0 %v8114, 121
      %v8150 = vpop.permute.xlu0 %8149
      %8151 = vrot.lane.b32.xlu0 %v8115, 121
      %v8152 = vpop.permute.xlu0 %8151
      %8153 = vrot.lane.b32.xlu0 %v8116, 121
      %v8154 = vpop.permute.xlu0 %8153
      %8155 = vrot.lane.b32.xlu0 %v8117, 121
      %v8156 = vpop.permute.xlu0 %8155
      %8157 = vrot.lane.b32.xlu0 %v8118, 121
      %v8158 = vpop.permute.xlu0 %8157
      %8159 = vrot.lane.b32.xlu0 %v8119, 121
      %v8160 = vpop.permute.xlu0 %8159
      %8161 = vrot.lane.b32.xlu0 %v8120, 121
      %v8162 = vpop.permute.xlu0 %8161
      %8163 = vrot.lane.b32.xlu0 %v8121, 121
      %v8164 = vpop.permute.xlu0 %8163
      %8165 = vrot.lane.b32.xlu0 %v8122, 121
      %v8166 = vpop.permute.xlu0 %8165
      %8167 = vrot.lane.b32.xlu0 %v8123, 121
      %v8168 = vpop.permute.xlu0 %8167
      %8169 = vrot.lane.b32.xlu0 %v8124, 121
      %v8170 = vpop.permute.xlu0 %8169
      %8171 = vrot.lane.b32.xlu0 %v8125, 121
      %v8172 = vpop.permute.xlu0 %8171
      %8173 = vrot.lane.b32.xlu0 %v8126, 121
      %v8174 = vpop.permute.xlu0 %8173
      %8175 = vrot.lane.b32.xlu0 %v8127, 121
      %v8176 = vpop.permute.xlu0 %8175
      %8177 = vrot.lane.b32.xlu0 %v8128, 121
      %v8178 = vpop.permute.xlu0 %8177
      %8179 = vrot.lane.b32.xlu0 %v8129, 121
      %v8180 = vpop.permute.xlu0 %8179
      %v8181 = vsel %vm2597, %v8148, %v8150
      %v8182 = vsel %vm2597, %v8150, %v8152
      %v8183 = vsel %vm2597, %v8152, %v8154
      %v8184 = vsel %vm2597, %v8154, %v8156
      %v8185 = vsel %vm2597, %v8156, %v8158
      %v8186 = vsel %vm2597, %v8158, %v8160
      %v8187 = vsel %vm2597, %v8160, %v8162
      %v8188 = vsel %vm2597, %v8162, %v8164
      %v8189 = vsel %vm2597, %v8166, %v8168
      %v8190 = vsel %vm2597, %v8168, %v8170
      %v8191 = vsel %vm2597, %v8170, %v8172
      %v8192 = vsel %vm2597, %v8172, %v8174
      %v8193 = vsel %vm2597, %v8174, %v8176
      %v8194 = vsel %vm2597, %v8176, %v8178
      %v8195 = vsel %vm2597, %v8178, %v8180
      %v8196 = vsel %vm2597, %v8180, %v8164
      %8213 = vst [vmem:[#allocation3 + $0x780] sm:$0xff] %v8181
      %8214 = vst [vmem:[#allocation3 + $0x788] sm:$0xff] %v8182
      %8215 = vst [vmem:[#allocation3 + $0x790] sm:$0xff] %v8183
      %8216 = vst [vmem:[#allocation3 + $0x798] sm:$0xff] %v8184
      %8217 = vst [vmem:[#allocation3 + $0x7a0] sm:$0xff] %v8185
      %8218 = vst [vmem:[#allocation3 + $0x7a8] sm:$0xff] %v8186
      %8219 = vst [vmem:[#allocation3 + $0x7b0] sm:$0xff] %v8187
      %8220 = vst [vmem:[#allocation3 + $0x7b8] sm:$0xff] %v8188
      %8221 = vst [vmem:[#allocation3 + $0x7c0] sm:$0xff] %v8189
      %8222 = vst [vmem:[#allocation3 + $0x7c8] sm:$0xff] %v8190
      %8223 = vst [vmem:[#allocation3 + $0x7d0] sm:$0xff] %v8191
      %8224 = vst [vmem:[#allocation3 + $0x7d8] sm:$0xff] %v8192
      %8225 = vst [vmem:[#allocation3 + $0x7e0] sm:$0xff] %v8193
      %8226 = vst [vmem:[#allocation3 + $0x7e8] sm:$0xff] %v8194
      %8227 = vst [vmem:[#allocation3 + $0x7f0] sm:$0xff] %v8195
      %8228 = vst [vmem:[#allocation3 + $0x7f8] sm:$0xff] %v8196
      %v8229 = vld [vmem:[%s2622] ss:$8 sm:$0xf]
      %v8230 = vld [vmem:[%s2622] ss:$8 sm:$0xf0]
      %v8231 = vor.u32 %v8229, %v8230
      %v8233 = vlaneseq
      %v8234 = vshrl.u32 %v8233, 7
      %v8235 = vsub.s32 0, %v8234
      %v8236 = vrot.slane %v8231, %v8235
      %v8237 = vlaneseq
      %v8238 = vshrl.u32 %v8237, 7
      %v8239 = vsub.s32 1, %v8238
      %v8240 = vrot.slane %v8231, %v8239
      %v8241 = vlaneseq
      %v8242 = vshrl.u32 %v8241, 7
      %v8243 = vsub.s32 2, %v8242
      %v8244 = vrot.slane %v8231, %v8243
      %v8245 = vlaneseq
      %v8246 = vshrl.u32 %v8245, 7
      %v8247 = vsub.s32 3, %v8246
      %v8248 = vrot.slane %v8231, %v8247
      %v8249 = vlaneseq
      %v8250 = vshrl.u32 %v8249, 7
      %v8251 = vsub.s32 4, %v8250
      %v8252 = vrot.slane %v8231, %v8251
      %v8253 = vlaneseq
      %v8254 = vshrl.u32 %v8253, 7
      %v8255 = vsub.s32 5, %v8254
      %v8256 = vrot.slane %v8231, %v8255
      %v8257 = vlaneseq
      %v8258 = vshrl.u32 %v8257, 7
      %v8259 = vsub.s32 6, %v8258
      %v8260 = vrot.slane %v8231, %v8259
      %v8261 = vlaneseq
      %v8262 = vshrl.u32 %v8261, 7
      %v8263 = vsub.s32 7, %v8262
      %v8264 = vrot.slane %v8231, %v8263
      %8265 = vrot.lane.b32.xlu0 %v8236, 8
      %v8266 = vpop.permute.xlu0 %8265
      %8267 = vrot.lane.b32.xlu0 %v8240, 8
      %v8268 = vpop.permute.xlu0 %8267
      %8269 = vrot.lane.b32.xlu0 %v8244, 8
      %v8270 = vpop.permute.xlu0 %8269
      %8271 = vrot.lane.b32.xlu0 %v8248, 8
      %v8272 = vpop.permute.xlu0 %8271
      %8273 = vrot.lane.b32.xlu0 %v8252, 8
      %v8274 = vpop.permute.xlu0 %8273
      %8275 = vrot.lane.b32.xlu0 %v8256, 8
      %v8276 = vpop.permute.xlu0 %8275
      %8277 = vrot.lane.b32.xlu0 %v8260, 8
      %v8278 = vpop.permute.xlu0 %8277
      %8279 = vrot.lane.b32.xlu0 %v8264, 8
      %v8280 = vpop.permute.xlu0 %8279
      %v8281 = vsel %vm2675, %v8266, %v8268
      %v8282 = vsel %vm2675, %v8268, %v8270
      %v8283 = vsel %vm2675, %v8270, %v8272
      %v8284 = vsel %vm2675, %v8272, %v8274
      %v8285 = vsel %vm2675, %v8274, %v8276
      %v8286 = vsel %vm2675, %v8276, %v8278
      %v8287 = vsel %vm2675, %v8278, %v8280
      %v8297 = vmul.f32 %v4834, %v8266
      %v8298 = vmul.f32 %v4835, %v8281
      %v8299 = vmul.f32 %v4836, %v8282
      %v8300 = vmul.f32 %v4837, %v8283
      %v8301 = vmul.f32 %v4838, %v8284
      %v8302 = vmul.f32 %v4839, %v8285
      %v8303 = vmul.f32 %v4840, %v8286
      %v8304 = vmul.f32 %v4841, %v8287
      %v8305 = vmul.f32 %v8280, 0.0
      %v8306 = vmul.f32 %v4842, %v8266
      %v8307 = vmul.f32 %v4843, %v8281
      %v8308 = vmul.f32 %v4844, %v8282
      %v8309 = vmul.f32 %v4845, %v8283
      %v8310 = vmul.f32 %v4846, %v8284
      %v8311 = vmul.f32 %v4847, %v8285
      %v8312 = vmul.f32 %v4848, %v8286
      %v8313 = vmul.f32 %v4849, %v8287
      %v8314 = vmul.f32 %v4850, %v8266
      %v8315 = vmul.f32 %v4851, %v8281
      %v8316 = vmul.f32 %v4852, %v8282
      %v8317 = vmul.f32 %v4853, %v8283
      %v8318 = vmul.f32 %v4854, %v8284
      %v8319 = vmul.f32 %v4855, %v8285
      %v8320 = vmul.f32 %v4856, %v8286
      %v8321 = vmul.f32 %v4857, %v8287
      %v8322 = vmul.f32 %v4858, %v8266
      %v8323 = vmul.f32 %v4859, %v8281
      %v8324 = vmul.f32 %v4860, %v8282
      %v8325 = vmul.f32 %v4861, %v8283
      %v8326 = vmul.f32 %v4862, %v8284
      %v8327 = vmul.f32 %v4863, %v8285
      %v8328 = vmul.f32 %v4864, %v8286
      %v8329 = vmul.f32 %v4865, %v8287
      %v8330 = vpack.c.bf16 %v8306, %v8297
      %v8331 = vpack.c.bf16 %v8307, %v8298
      %v8332 = vpack.c.bf16 %v8308, %v8299
      %v8333 = vpack.c.bf16 %v8309, %v8300
      %v8334 = vpack.c.bf16 %v8310, %v8301
      %v8335 = vpack.c.bf16 %v8311, %v8302
      %v8336 = vpack.c.bf16 %v8312, %v8303
      %v8337 = vpack.c.bf16 %v8313, %v8304
      %v8338 = vpack.c.bf16 %v8305, %v8305
      %v8339 = vpack.c.bf16 %v8322, %v8314
      %v8340 = vpack.c.bf16 %v8323, %v8315
      %v8341 = vpack.c.bf16 %v8324, %v8316
      %v8342 = vpack.c.bf16 %v8325, %v8317
      %v8343 = vpack.c.bf16 %v8326, %v8318
      %v8344 = vpack.c.bf16 %v8327, %v8319
      %v8345 = vpack.c.bf16 %v8328, %v8320
      %v8346 = vpack.c.bf16 %v8329, %v8321
      %8364 = vrot.lane.b32.xlu0 %v8330, 120
      %v8365 = vpop.permute.xlu0 %8364
      %8366 = vrot.lane.b32.xlu0 %v8331, 120
      %v8367 = vpop.permute.xlu0 %8366
      %8368 = vrot.lane.b32.xlu0 %v8332, 120
      %v8369 = vpop.permute.xlu0 %8368
      %8370 = vrot.lane.b32.xlu0 %v8333, 120
      %v8371 = vpop.permute.xlu0 %8370
      %8372 = vrot.lane.b32.xlu0 %v8334, 120
      %v8373 = vpop.permute.xlu0 %8372
      %8374 = vrot.lane.b32.xlu0 %v8335, 120
      %v8375 = vpop.permute.xlu0 %8374
      %8376 = vrot.lane.b32.xlu0 %v8336, 120
      %v8377 = vpop.permute.xlu0 %8376
      %8378 = vrot.lane.b32.xlu0 %v8337, 120
      %v8379 = vpop.permute.xlu0 %8378
      %8380 = vrot.lane.b32.xlu0 %v8338, 120
      %v8381 = vpop.permute.xlu0 %8380
      %8382 = vrot.lane.b32.xlu0 %v8339, 120
      %v8383 = vpop.permute.xlu0 %8382
      %8384 = vrot.lane.b32.xlu0 %v8340, 120
      %v8385 = vpop.permute.xlu0 %8384
      %8386 = vrot.lane.b32.xlu0 %v8341, 120
      %v8387 = vpop.permute.xlu0 %8386
      %8388 = vrot.lane.b32.xlu0 %v8342, 120
      %v8389 = vpop.permute.xlu0 %8388
      %8390 = vrot.lane.b32.xlu0 %v8343, 120
      %v8391 = vpop.permute.xlu0 %8390
      %8392 = vrot.lane.b32.xlu0 %v8344, 120
      %v8393 = vpop.permute.xlu0 %8392
      %8394 = vrot.lane.b32.xlu0 %v8345, 120
      %v8395 = vpop.permute.xlu0 %8394
      %8396 = vrot.lane.b32.xlu0 %v8346, 120
      %v8397 = vpop.permute.xlu0 %8396
      %v8398 = vsel %vm2737, %v8365, %v8367
      %v8399 = vsel %vm2737, %v8367, %v8369
      %v8400 = vsel %vm2737, %v8369, %v8371
      %v8401 = vsel %vm2737, %v8371, %v8373
      %v8402 = vsel %vm2737, %v8373, %v8375
      %v8403 = vsel %vm2737, %v8375, %v8377
      %v8404 = vsel %vm2737, %v8377, %v8379
      %v8405 = vsel %vm2737, %v8379, %v8381
      %v8406 = vsel %vm2737, %v8383, %v8385
      %v8407 = vsel %vm2737, %v8385, %v8387
      %v8408 = vsel %vm2737, %v8387, %v8389
      %v8409 = vsel %vm2737, %v8389, %v8391
      %v8410 = vsel %vm2737, %v8391, %v8393
      %v8411 = vsel %vm2737, %v8393, %v8395
      %v8412 = vsel %vm2737, %v8395, %v8397
      %v8413 = vsel %vm2737, %v8397, %v8381
      %8430 = vst [vmem:[#allocation3 + $0x800] sm:$0xff] %v8398
      %8431 = vst [vmem:[#allocation3 + $0x808] sm:$0xff] %v8399
      %8432 = vst [vmem:[#allocation3 + $0x810] sm:$0xff] %v8400
      %8433 = vst [vmem:[#allocation3 + $0x818] sm:$0xff] %v8401
      %8434 = vst [vmem:[#allocation3 + $0x820] sm:$0xff] %v8402
      %8435 = vst [vmem:[#allocation3 + $0x828] sm:$0xff] %v8403
      %8436 = vst [vmem:[#allocation3 + $0x830] sm:$0xff] %v8404
      %8437 = vst [vmem:[#allocation3 + $0x838] sm:$0xff] %v8405
      %8438 = vst [vmem:[#allocation3 + $0x840] sm:$0xff] %v8406
      %8439 = vst [vmem:[#allocation3 + $0x848] sm:$0xff] %v8407
      %8440 = vst [vmem:[#allocation3 + $0x850] sm:$0xff] %v8408
      %8441 = vst [vmem:[#allocation3 + $0x858] sm:$0xff] %v8409
      %8442 = vst [vmem:[#allocation3 + $0x860] sm:$0xff] %v8410
      %8443 = vst [vmem:[#allocation3 + $0x868] sm:$0xff] %v8411
      %8444 = vst [vmem:[#allocation3 + $0x870] sm:$0xff] %v8412
      %8445 = vst [vmem:[#allocation3 + $0x878] sm:$0xff] %v8413
      %v8446 = vld [vmem:[%s2762] ss:$8 sm:$0xf]
      %v8447 = vld [vmem:[%s2762] ss:$8 sm:$0xf0]
      %v8448 = vor.u32 %v8446, %v8447
      %v8450 = vlaneseq
      %v8451 = vshrl.u32 %v8450, 7
      %v8452 = vsub.s32 0, %v8451
      %v8453 = vrot.slane %v8448, %v8452
      %v8454 = vlaneseq
      %v8455 = vshrl.u32 %v8454, 7
      %v8456 = vsub.s32 1, %v8455
      %v8457 = vrot.slane %v8448, %v8456
      %v8458 = vlaneseq
      %v8459 = vshrl.u32 %v8458, 7
      %v8460 = vsub.s32 2, %v8459
      %v8461 = vrot.slane %v8448, %v8460
      %v8462 = vlaneseq
      %v8463 = vshrl.u32 %v8462, 7
      %v8464 = vsub.s32 3, %v8463
      %v8465 = vrot.slane %v8448, %v8464
      %v8466 = vlaneseq
      %v8467 = vshrl.u32 %v8466, 7
      %v8468 = vsub.s32 4, %v8467
      %v8469 = vrot.slane %v8448, %v8468
      %v8470 = vlaneseq
      %v8471 = vshrl.u32 %v8470, 7
      %v8472 = vsub.s32 5, %v8471
      %v8473 = vrot.slane %v8448, %v8472
      %v8474 = vlaneseq
      %v8475 = vshrl.u32 %v8474, 7
      %v8476 = vsub.s32 6, %v8475
      %v8477 = vrot.slane %v8448, %v8476
      %v8478 = vlaneseq
      %v8479 = vshrl.u32 %v8478, 7
      %v8480 = vsub.s32 7, %v8479
      %v8481 = vrot.slane %v8448, %v8480
      %8482 = vrot.lane.b32.xlu0 %v8453, 9
      %v8483 = vpop.permute.xlu0 %8482
      %8484 = vrot.lane.b32.xlu0 %v8457, 9
      %v8485 = vpop.permute.xlu0 %8484
      %8486 = vrot.lane.b32.xlu0 %v8461, 9
      %v8487 = vpop.permute.xlu0 %8486
      %8488 = vrot.lane.b32.xlu0 %v8465, 9
      %v8489 = vpop.permute.xlu0 %8488
      %8490 = vrot.lane.b32.xlu0 %v8469, 9
      %v8491 = vpop.permute.xlu0 %8490
      %8492 = vrot.lane.b32.xlu0 %v8473, 9
      %v8493 = vpop.permute.xlu0 %8492
      %8494 = vrot.lane.b32.xlu0 %v8477, 9
      %v8495 = vpop.permute.xlu0 %8494
      %8496 = vrot.lane.b32.xlu0 %v8481, 9
      %v8497 = vpop.permute.xlu0 %8496
      %v8498 = vsel %vm2815, %v8483, %v8485
      %v8499 = vsel %vm2815, %v8485, %v8487
      %v8500 = vsel %vm2815, %v8487, %v8489
      %v8501 = vsel %vm2815, %v8489, %v8491
      %v8502 = vsel %vm2815, %v8491, %v8493
      %v8503 = vsel %vm2815, %v8493, %v8495
      %v8504 = vsel %vm2815, %v8495, %v8497
      %v8514 = vmul.f32 %v4834, %v8483
      %v8515 = vmul.f32 %v4835, %v8498
      %v8516 = vmul.f32 %v4836, %v8499
      %v8517 = vmul.f32 %v4837, %v8500
      %v8518 = vmul.f32 %v4838, %v8501
      %v8519 = vmul.f32 %v4839, %v8502
      %v8520 = vmul.f32 %v4840, %v8503
      %v8521 = vmul.f32 %v4841, %v8504
      %v8522 = vmul.f32 %v8497, 0.0
      %v8523 = vmul.f32 %v4842, %v8483
      %v8524 = vmul.f32 %v4843, %v8498
      %v8525 = vmul.f32 %v4844, %v8499
      %v8526 = vmul.f32 %v4845, %v8500
      %v8527 = vmul.f32 %v4846, %v8501
      %v8528 = vmul.f32 %v4847, %v8502
      %v8529 = vmul.f32 %v4848, %v8503
      %v8530 = vmul.f32 %v4849, %v8504
      %v8531 = vmul.f32 %v4850, %v8483
      %v8532 = vmul.f32 %v4851, %v8498
      %v8533 = vmul.f32 %v4852, %v8499
      %v8534 = vmul.f32 %v4853, %v8500
      %v8535 = vmul.f32 %v4854, %v8501
      %v8536 = vmul.f32 %v4855, %v8502
      %v8537 = vmul.f32 %v4856, %v8503
      %v8538 = vmul.f32 %v4857, %v8504
      %v8539 = vmul.f32 %v4858, %v8483
      %v8540 = vmul.f32 %v4859, %v8498
      %v8541 = vmul.f32 %v4860, %v8499
      %v8542 = vmul.f32 %v4861, %v8500
      %v8543 = vmul.f32 %v4862, %v8501
      %v8544 = vmul.f32 %v4863, %v8502
      %v8545 = vmul.f32 %v4864, %v8503
      %v8546 = vmul.f32 %v4865, %v8504
      %v8547 = vpack.c.bf16 %v8523, %v8514
      %v8548 = vpack.c.bf16 %v8524, %v8515
      %v8549 = vpack.c.bf16 %v8525, %v8516
      %v8550 = vpack.c.bf16 %v8526, %v8517
      %v8551 = vpack.c.bf16 %v8527, %v8518
      %v8552 = vpack.c.bf16 %v8528, %v8519
      %v8553 = vpack.c.bf16 %v8529, %v8520
      %v8554 = vpack.c.bf16 %v8530, %v8521
      %v8555 = vpack.c.bf16 %v8522, %v8522
      %v8556 = vpack.c.bf16 %v8539, %v8531
      %v8557 = vpack.c.bf16 %v8540, %v8532
      %v8558 = vpack.c.bf16 %v8541, %v8533
      %v8559 = vpack.c.bf16 %v8542, %v8534
      %v8560 = vpack.c.bf16 %v8543, %v8535
      %v8561 = vpack.c.bf16 %v8544, %v8536
      %v8562 = vpack.c.bf16 %v8545, %v8537
      %v8563 = vpack.c.bf16 %v8546, %v8538
      %8581 = vrot.lane.b32.xlu0 %v8547, 119
      %v8582 = vpop.permute.xlu0 %8581
      %8583 = vrot.lane.b32.xlu0 %v8548, 119
      %v8584 = vpop.permute.xlu0 %8583
      %8585 = vrot.lane.b32.xlu0 %v8549, 119
      %v8586 = vpop.permute.xlu0 %8585
      %8587 = vrot.lane.b32.xlu0 %v8550, 119
      %v8588 = vpop.permute.xlu0 %8587
      %8589 = vrot.lane.b32.xlu0 %v8551, 119
      %v8590 = vpop.permute.xlu0 %8589
      %8591 = vrot.lane.b32.xlu0 %v8552, 119
      %v8592 = vpop.permute.xlu0 %8591
      %8593 = vrot.lane.b32.xlu0 %v8553, 119
      %v8594 = vpop.permute.xlu0 %8593
      %8595 = vrot.lane.b32.xlu0 %v8554, 119
      %v8596 = vpop.permute.xlu0 %8595
      %8597 = vrot.lane.b32.xlu0 %v8555, 119
      %v8598 = vpop.permute.xlu0 %8597
      %8599 = vrot.lane.b32.xlu0 %v8556, 119
      %v8600 = vpop.permute.xlu0 %8599
      %8601 = vrot.lane.b32.xlu0 %v8557, 119
      %v8602 = vpop.permute.xlu0 %8601
      %8603 = vrot.lane.b32.xlu0 %v8558, 119
      %v8604 = vpop.permute.xlu0 %8603
      %8605 = vrot.lane.b32.xlu0 %v8559, 119
      %v8606 = vpop.permute.xlu0 %8605
      %8607 = vrot.lane.b32.xlu0 %v8560, 119
      %v8608 = vpop.permute.xlu0 %8607
      %8609 = vrot.lane.b32.xlu0 %v8561, 119
      %v8610 = vpop.permute.xlu0 %8609
      %8611 = vrot.lane.b32.xlu0 %v8562, 119
      %v8612 = vpop.permute.xlu0 %8611
      %8613 = vrot.lane.b32.xlu0 %v8563, 119
      %v8614 = vpop.permute.xlu0 %8613
      %v8615 = vsel %vm2886, %v8582, %v8584
      %v8616 = vsel %vm2886, %v8584, %v8586
      %v8617 = vsel %vm2886, %v8586, %v8588
      %v8618 = vsel %vm2886, %v8588, %v8590
      %v8619 = vsel %vm2886, %v8590, %v8592
      %v8620 = vsel %vm2886, %v8592, %v8594
      %v8621 = vsel %vm2886, %v8594, %v8596
      %v8622 = vsel %vm2886, %v8596, %v8598
      %v8623 = vsel %vm2886, %v8600, %v8602
      %v8624 = vsel %vm2886, %v8602, %v8604
      %v8625 = vsel %vm2886, %v8604, %v8606
      %v8626 = vsel %vm2886, %v8606, %v8608
      %v8627 = vsel %vm2886, %v8608, %v8610
      %v8628 = vsel %vm2886, %v8610, %v8612
      %v8629 = vsel %vm2886, %v8612, %v8614
      %v8630 = vsel %vm2886, %v8614, %v8598
      %8647 = vst [vmem:[#allocation3 + $0x880] sm:$0xff] %v8615
      %8648 = vst [vmem:[#allocation3 + $0x888] sm:$0xff] %v8616
      %8649 = vst [vmem:[#allocation3 + $0x890] sm:$0xff] %v8617
      %8650 = vst [vmem:[#allocation3 + $0x898] sm:$0xff] %v8618
      %8651 = vst [vmem:[#allocation3 + $0x8a0] sm:$0xff] %v8619
      %8652 = vst [vmem:[#allocation3 + $0x8a8] sm:$0xff] %v8620
      %8653 = vst [vmem:[#allocation3 + $0x8b0] sm:$0xff] %v8621
      %8654 = vst [vmem:[#allocation3 + $0x8b8] sm:$0xff] %v8622
      %8655 = vst [vmem:[#allocation3 + $0x8c0] sm:$0xff] %v8623
      %8656 = vst [vmem:[#allocation3 + $0x8c8] sm:$0xff] %v8624
      %8657 = vst [vmem:[#allocation3 + $0x8d0] sm:$0xff] %v8625
      %8658 = vst [vmem:[#allocation3 + $0x8d8] sm:$0xff] %v8626
      %8659 = vst [vmem:[#allocation3 + $0x8e0] sm:$0xff] %v8627
      %8660 = vst [vmem:[#allocation3 + $0x8e8] sm:$0xff] %v8628
      %8661 = vst [vmem:[#allocation3 + $0x8f0] sm:$0xff] %v8629
      %8662 = vst [vmem:[#allocation3 + $0x8f8] sm:$0xff] %v8630
      %v8663 = vld [vmem:[%s2911] ss:$8 sm:$0xf]
      %v8664 = vld [vmem:[%s2911] ss:$8 sm:$0xf0]
      %v8665 = vor.u32 %v8663, %v8664
      %v8667 = vlaneseq
      %v8668 = vshrl.u32 %v8667, 7
      %v8669 = vsub.s32 0, %v8668
      %v8670 = vrot.slane %v8665, %v8669
      %v8671 = vlaneseq
      %v8672 = vshrl.u32 %v8671, 7
      %v8673 = vsub.s32 1, %v8672
      %v8674 = vrot.slane %v8665, %v8673
      %v8675 = vlaneseq
      %v8676 = vshrl.u32 %v8675, 7
      %v8677 = vsub.s32 2, %v8676
      %v8678 = vrot.slane %v8665, %v8677
      %v8679 = vlaneseq
      %v8680 = vshrl.u32 %v8679, 7
      %v8681 = vsub.s32 3, %v8680
      %v8682 = vrot.slane %v8665, %v8681
      %v8683 = vlaneseq
      %v8684 = vshrl.u32 %v8683, 7
      %v8685 = vsub.s32 4, %v8684
      %v8686 = vrot.slane %v8665, %v8685
      %v8687 = vlaneseq
      %v8688 = vshrl.u32 %v8687, 7
      %v8689 = vsub.s32 5, %v8688
      %v8690 = vrot.slane %v8665, %v8689
      %v8691 = vlaneseq
      %v8692 = vshrl.u32 %v8691, 7
      %v8693 = vsub.s32 6, %v8692
      %v8694 = vrot.slane %v8665, %v8693
      %v8695 = vlaneseq
      %v8696 = vshrl.u32 %v8695, 7
      %v8697 = vsub.s32 7, %v8696
      %v8698 = vrot.slane %v8665, %v8697
      %8699 = vrot.lane.b32.xlu0 %v8670, 55
      %v8700 = vpop.permute.xlu0 %8699
      %8701 = vrot.lane.b32.xlu0 %v8674, 55
      %v8702 = vpop.permute.xlu0 %8701
      %8703 = vrot.lane.b32.xlu0 %v8678, 55
      %v8704 = vpop.permute.xlu0 %8703
      %8705 = vrot.lane.b32.xlu0 %v8682, 55
      %v8706 = vpop.permute.xlu0 %8705
      %8707 = vrot.lane.b32.xlu0 %v8686, 55
      %v8708 = vpop.permute.xlu0 %8707
      %8709 = vrot.lane.b32.xlu0 %v8690, 55
      %v8710 = vpop.permute.xlu0 %8709
      %8711 = vrot.lane.b32.xlu0 %v8694, 55
      %v8712 = vpop.permute.xlu0 %8711
      %8713 = vrot.lane.b32.xlu0 %v8698, 55
      %v8714 = vpop.permute.xlu0 %8713
      %v8715 = vsel %vm383, %v8700, %v8702
      %v8716 = vsel %vm383, %v8702, %v8704
      %v8717 = vsel %vm383, %v8704, %v8706
      %v8718 = vsel %vm383, %v8706, %v8708
      %v8719 = vsel %vm383, %v8708, %v8710
      %v8720 = vsel %vm383, %v8710, %v8712
      %v8721 = vsel %vm383, %v8712, %v8714
      %v8731 = vmul.f32 %v4834, %v8700
      %v8732 = vmul.f32 %v4835, %v8715
      %v8733 = vmul.f32 %v4836, %v8716
      %v8734 = vmul.f32 %v4837, %v8717
      %v8735 = vmul.f32 %v4838, %v8718
      %v8736 = vmul.f32 %v4839, %v8719
      %v8737 = vmul.f32 %v4840, %v8720
      %v8738 = vmul.f32 %v4841, %v8721
      %v8739 = vmul.f32 %v8714, 0.0
      %v8740 = vmul.f32 %v4842, %v8700
      %v8741 = vmul.f32 %v4843, %v8715
      %v8742 = vmul.f32 %v4844, %v8716
      %v8743 = vmul.f32 %v4845, %v8717
      %v8744 = vmul.f32 %v4846, %v8718
      %v8745 = vmul.f32 %v4847, %v8719
      %v8746 = vmul.f32 %v4848, %v8720
      %v8747 = vmul.f32 %v4849, %v8721
      %v8748 = vmul.f32 %v4850, %v8700
      %v8749 = vmul.f32 %v4851, %v8715
      %v8750 = vmul.f32 %v4852, %v8716
      %v8751 = vmul.f32 %v4853, %v8717
      %v8752 = vmul.f32 %v4854, %v8718
      %v8753 = vmul.f32 %v4855, %v8719
      %v8754 = vmul.f32 %v4856, %v8720
      %v8755 = vmul.f32 %v4857, %v8721
      %v8756 = vmul.f32 %v4858, %v8700
      %v8757 = vmul.f32 %v4859, %v8715
      %v8758 = vmul.f32 %v4860, %v8716
      %v8759 = vmul.f32 %v4861, %v8717
      %v8760 = vmul.f32 %v4862, %v8718
      %v8761 = vmul.f32 %v4863, %v8719
      %v8762 = vmul.f32 %v4864, %v8720
      %v8763 = vmul.f32 %v4865, %v8721
      %v8764 = vpack.c.bf16 %v8740, %v8731
      %v8765 = vpack.c.bf16 %v8741, %v8732
      %v8766 = vpack.c.bf16 %v8742, %v8733
      %v8767 = vpack.c.bf16 %v8743, %v8734
      %v8768 = vpack.c.bf16 %v8744, %v8735
      %v8769 = vpack.c.bf16 %v8745, %v8736
      %v8770 = vpack.c.bf16 %v8746, %v8737
      %v8771 = vpack.c.bf16 %v8747, %v8738
      %v8772 = vpack.c.bf16 %v8739, %v8739
      %v8773 = vpack.c.bf16 %v8756, %v8748
      %v8774 = vpack.c.bf16 %v8757, %v8749
      %v8775 = vpack.c.bf16 %v8758, %v8750
      %v8776 = vpack.c.bf16 %v8759, %v8751
      %v8777 = vpack.c.bf16 %v8760, %v8752
      %v8778 = vpack.c.bf16 %v8761, %v8753
      %v8779 = vpack.c.bf16 %v8762, %v8754
      %v8780 = vpack.c.bf16 %v8763, %v8755
      %8798 = vrot.lane.b32.xlu0 %v8764, 73
      %v8799 = vpop.permute.xlu0 %8798
      %8800 = vrot.lane.b32.xlu0 %v8765, 73
      %v8801 = vpop.permute.xlu0 %8800
      %8802 = vrot.lane.b32.xlu0 %v8766, 73
      %v8803 = vpop.permute.xlu0 %8802
      %8804 = vrot.lane.b32.xlu0 %v8767, 73
      %v8805 = vpop.permute.xlu0 %8804
      %8806 = vrot.lane.b32.xlu0 %v8768, 73
      %v8807 = vpop.permute.xlu0 %8806
      %8808 = vrot.lane.b32.xlu0 %v8769, 73
      %v8809 = vpop.permute.xlu0 %8808
      %8810 = vrot.lane.b32.xlu0 %v8770, 73
      %v8811 = vpop.permute.xlu0 %8810
      %8812 = vrot.lane.b32.xlu0 %v8771, 73
      %v8813 = vpop.permute.xlu0 %8812
      %8814 = vrot.lane.b32.xlu0 %v8772, 73
      %v8815 = vpop.permute.xlu0 %8814
      %8816 = vrot.lane.b32.xlu0 %v8773, 73
      %v8817 = vpop.permute.xlu0 %8816
      %8818 = vrot.lane.b32.xlu0 %v8774, 73
      %v8819 = vpop.permute.xlu0 %8818
      %8820 = vrot.lane.b32.xlu0 %v8775, 73
      %v8821 = vpop.permute.xlu0 %8820
      %8822 = vrot.lane.b32.xlu0 %v8776, 73
      %v8823 = vpop.permute.xlu0 %8822
      %8824 = vrot.lane.b32.xlu0 %v8777, 73
      %v8825 = vpop.permute.xlu0 %8824
      %8826 = vrot.lane.b32.xlu0 %v8778, 73
      %v8827 = vpop.permute.xlu0 %8826
      %8828 = vrot.lane.b32.xlu0 %v8779, 73
      %v8829 = vpop.permute.xlu0 %8828
      %8830 = vrot.lane.b32.xlu0 %v8780, 73
      %v8831 = vpop.permute.xlu0 %8830
      %v8832 = vsel %vm445, %v8799, %v8801
      %v8833 = vsel %vm445, %v8801, %v8803
      %v8834 = vsel %vm445, %v8803, %v8805
      %v8835 = vsel %vm445, %v8805, %v8807
      %v8836 = vsel %vm445, %v8807, %v8809
      %v8837 = vsel %vm445, %v8809, %v8811
      %v8838 = vsel %vm445, %v8811, %v8813
      %v8839 = vsel %vm445, %v8813, %v8815
      %v8840 = vsel %vm445, %v8817, %v8819
      %v8841 = vsel %vm445, %v8819, %v8821
      %v8842 = vsel %vm445, %v8821, %v8823
      %v8843 = vsel %vm445, %v8823, %v8825
      %v8844 = vsel %vm445, %v8825, %v8827
      %v8845 = vsel %vm445, %v8827, %v8829
      %v8846 = vsel %vm445, %v8829, %v8831
      %v8847 = vsel %vm445, %v8831, %v8815
      %8864 = vst [vmem:[#allocation3 + $0x900] sm:$0xff] %v8832
      %8865 = vst [vmem:[#allocation3 + $0x908] sm:$0xff] %v8833
      %8866 = vst [vmem:[#allocation3 + $0x910] sm:$0xff] %v8834
      %8867 = vst [vmem:[#allocation3 + $0x918] sm:$0xff] %v8835
      %8868 = vst [vmem:[#allocation3 + $0x920] sm:$0xff] %v8836
      %8869 = vst [vmem:[#allocation3 + $0x928] sm:$0xff] %v8837
      %8870 = vst [vmem:[#allocation3 + $0x930] sm:$0xff] %v8838
      %8871 = vst [vmem:[#allocation3 + $0x938] sm:$0xff] %v8839
      %8872 = vst [vmem:[#allocation3 + $0x940] sm:$0xff] %v8840
      %8873 = vst [vmem:[#allocation3 + $0x948] sm:$0xff] %v8841
      %8874 = vst [vmem:[#allocation3 + $0x950] sm:$0xff] %v8842
      %8875 = vst [vmem:[#allocation3 + $0x958] sm:$0xff] %v8843
      %8876 = vst [vmem:[#allocation3 + $0x960] sm:$0xff] %v8844
      %8877 = vst [vmem:[#allocation3 + $0x968] sm:$0xff] %v8845
      %8878 = vst [vmem:[#allocation3 + $0x970] sm:$0xff] %v8846
      %8879 = vst [vmem:[#allocation3 + $0x978] sm:$0xff] %v8847
      %v8880 = vld [vmem:[%s3058] ss:$8 sm:$0xf]
      %v8881 = vld [vmem:[%s3058] ss:$8 sm:$0xf0]
      %v8882 = vor.u32 %v8880, %v8881
      %v8884 = vlaneseq
      %v8885 = vshrl.u32 %v8884, 7
      %v8886 = vsub.s32 0, %v8885
      %v8887 = vrot.slane %v8882, %v8886
      %v8888 = vlaneseq
      %v8889 = vshrl.u32 %v8888, 7
      %v8890 = vsub.s32 1, %v8889
      %v8891 = vrot.slane %v8882, %v8890
      %v8892 = vlaneseq
      %v8893 = vshrl.u32 %v8892, 7
      %v8894 = vsub.s32 2, %v8893
      %v8895 = vrot.slane %v8882, %v8894
      %v8896 = vlaneseq
      %v8897 = vshrl.u32 %v8896, 7
      %v8898 = vsub.s32 3, %v8897
      %v8899 = vrot.slane %v8882, %v8898
      %v8900 = vlaneseq
      %v8901 = vshrl.u32 %v8900, 7
      %v8902 = vsub.s32 4, %v8901
      %v8903 = vrot.slane %v8882, %v8902
      %v8904 = vlaneseq
      %v8905 = vshrl.u32 %v8904, 7
      %v8906 = vsub.s32 5, %v8905
      %v8907 = vrot.slane %v8882, %v8906
      %v8908 = vlaneseq
      %v8909 = vshrl.u32 %v8908, 7
      %v8910 = vsub.s32 6, %v8909
      %v8911 = vrot.slane %v8882, %v8910
      %v8912 = vlaneseq
      %v8913 = vshrl.u32 %v8912, 7
      %v8914 = vsub.s32 7, %v8913
      %v8915 = vrot.slane %v8882, %v8914
      %8916 = vrot.lane.b32.xlu0 %v8887, 56
      %v8917 = vpop.permute.xlu0 %8916
      %8918 = vrot.lane.b32.xlu0 %v8891, 56
      %v8919 = vpop.permute.xlu0 %8918
      %8920 = vrot.lane.b32.xlu0 %v8895, 56
      %v8921 = vpop.permute.xlu0 %8920
      %8922 = vrot.lane.b32.xlu0 %v8899, 56
      %v8923 = vpop.permute.xlu0 %8922
      %8924 = vrot.lane.b32.xlu0 %v8903, 56
      %v8925 = vpop.permute.xlu0 %8924
      %8926 = vrot.lane.b32.xlu0 %v8907, 56
      %v8927 = vpop.permute.xlu0 %8926
      %8928 = vrot.lane.b32.xlu0 %v8911, 56
      %v8929 = vpop.permute.xlu0 %8928
      %8930 = vrot.lane.b32.xlu0 %v8915, 56
      %v8931 = vpop.permute.xlu0 %8930
      %v8932 = vsel %vm523, %v8917, %v8919
      %v8933 = vsel %vm523, %v8919, %v8921
      %v8934 = vsel %vm523, %v8921, %v8923
      %v8935 = vsel %vm523, %v8923, %v8925
      %v8936 = vsel %vm523, %v8925, %v8927
      %v8937 = vsel %vm523, %v8927, %v8929
      %v8938 = vsel %vm523, %v8929, %v8931
      %v8948 = vmul.f32 %v4834, %v8917
      %v8949 = vmul.f32 %v4835, %v8932
      %v8950 = vmul.f32 %v4836, %v8933
      %v8951 = vmul.f32 %v4837, %v8934
      %v8952 = vmul.f32 %v4838, %v8935
      %v8953 = vmul.f32 %v4839, %v8936
      %v8954 = vmul.f32 %v4840, %v8937
      %v8955 = vmul.f32 %v4841, %v8938
      %v8956 = vmul.f32 %v8931, 0.0
      %v8957 = vmul.f32 %v4842, %v8917
      %v8958 = vmul.f32 %v4843, %v8932
      %v8959 = vmul.f32 %v4844, %v8933
      %v8960 = vmul.f32 %v4845, %v8934
      %v8961 = vmul.f32 %v4846, %v8935
      %v8962 = vmul.f32 %v4847, %v8936
      %v8963 = vmul.f32 %v4848, %v8937
      %v8964 = vmul.f32 %v4849, %v8938
      %v8965 = vmul.f32 %v4850, %v8917
      %v8966 = vmul.f32 %v4851, %v8932
      %v8967 = vmul.f32 %v4852, %v8933
      %v8968 = vmul.f32 %v4853, %v8934
      %v8969 = vmul.f32 %v4854, %v8935
      %v8970 = vmul.f32 %v4855, %v8936
      %v8971 = vmul.f32 %v4856, %v8937
      %v8972 = vmul.f32 %v4857, %v8938
      %v8973 = vmul.f32 %v4858, %v8917
      %v8974 = vmul.f32 %v4859, %v8932
      %v8975 = vmul.f32 %v4860, %v8933
      %v8976 = vmul.f32 %v4861, %v8934
      %v8977 = vmul.f32 %v4862, %v8935
      %v8978 = vmul.f32 %v4863, %v8936
      %v8979 = vmul.f32 %v4864, %v8937
      %v8980 = vmul.f32 %v4865, %v8938
      %v8981 = vpack.c.bf16 %v8957, %v8948
      %v8982 = vpack.c.bf16 %v8958, %v8949
      %v8983 = vpack.c.bf16 %v8959, %v8950
      %v8984 = vpack.c.bf16 %v8960, %v8951
      %v8985 = vpack.c.bf16 %v8961, %v8952
      %v8986 = vpack.c.bf16 %v8962, %v8953
      %v8987 = vpack.c.bf16 %v8963, %v8954
      %v8988 = vpack.c.bf16 %v8964, %v8955
      %v8989 = vpack.c.bf16 %v8956, %v8956
      %v8990 = vpack.c.bf16 %v8973, %v8965
      %v8991 = vpack.c.bf16 %v8974, %v8966
      %v8992 = vpack.c.bf16 %v8975, %v8967
      %v8993 = vpack.c.bf16 %v8976, %v8968
      %v8994 = vpack.c.bf16 %v8977, %v8969
      %v8995 = vpack.c.bf16 %v8978, %v8970
      %v8996 = vpack.c.bf16 %v8979, %v8971
      %v8997 = vpack.c.bf16 %v8980, %v8972
      %9015 = vrot.lane.b32.xlu0 %v8981, 72
      %v9016 = vpop.permute.xlu0 %9015
      %9017 = vrot.lane.b32.xlu0 %v8982, 72
      %v9018 = vpop.permute.xlu0 %9017
      %9019 = vrot.lane.b32.xlu0 %v8983, 72
      %v9020 = vpop.permute.xlu0 %9019
      %9021 = vrot.lane.b32.xlu0 %v8984, 72
      %v9022 = vpop.permute.xlu0 %9021
      %9023 = vrot.lane.b32.xlu0 %v8985, 72
      %v9024 = vpop.permute.xlu0 %9023
      %9025 = vrot.lane.b32.xlu0 %v8986, 72
      %v9026 = vpop.permute.xlu0 %9025
      %9027 = vrot.lane.b32.xlu0 %v8987, 72
      %v9028 = vpop.permute.xlu0 %9027
      %9029 = vrot.lane.b32.xlu0 %v8988, 72
      %v9030 = vpop.permute.xlu0 %9029
      %9031 = vrot.lane.b32.xlu0 %v8989, 72
      %v9032 = vpop.permute.xlu0 %9031
      %9033 = vrot.lane.b32.xlu0 %v8990, 72
      %v9034 = vpop.permute.xlu0 %9033
      %9035 = vrot.lane.b32.xlu0 %v8991, 72
      %v9036 = vpop.permute.xlu0 %9035
      %9037 = vrot.lane.b32.xlu0 %v8992, 72
      %v9038 = vpop.permute.xlu0 %9037
      %9039 = vrot.lane.b32.xlu0 %v8993, 72
      %v9040 = vpop.permute.xlu0 %9039
      %9041 = vrot.lane.b32.xlu0 %v8994, 72
      %v9042 = vpop.permute.xlu0 %9041
      %9043 = vrot.lane.b32.xlu0 %v8995, 72
      %v9044 = vpop.permute.xlu0 %9043
      %9045 = vrot.lane.b32.xlu0 %v8996, 72
      %v9046 = vpop.permute.xlu0 %9045
      %9047 = vrot.lane.b32.xlu0 %v8997, 72
      %v9048 = vpop.permute.xlu0 %9047
      %v9049 = vsel %vm594, %v9016, %v9018
      %v9050 = vsel %vm594, %v9018, %v9020
      %v9051 = vsel %vm594, %v9020, %v9022
      %v9052 = vsel %vm594, %v9022, %v9024
      %v9053 = vsel %vm594, %v9024, %v9026
      %v9054 = vsel %vm594, %v9026, %v9028
      %v9055 = vsel %vm594, %v9028, %v9030
      %v9056 = vsel %vm594, %v9030, %v9032
      %v9057 = vsel %vm594, %v9034, %v9036
      %v9058 = vsel %vm594, %v9036, %v9038
      %v9059 = vsel %vm594, %v9038, %v9040
      %v9060 = vsel %vm594, %v9040, %v9042
      %v9061 = vsel %vm594, %v9042, %v9044
      %v9062 = vsel %vm594, %v9044, %v9046
      %v9063 = vsel %vm594, %v9046, %v9048
      %v9064 = vsel %vm594, %v9048, %v9032
      %9081 = vst [vmem:[#allocation3 + $0x980] sm:$0xff] %v9049
      %9082 = vst [vmem:[#allocation3 + $0x988] sm:$0xff] %v9050
      %9083 = vst [vmem:[#allocation3 + $0x990] sm:$0xff] %v9051
      %9084 = vst [vmem:[#allocation3 + $0x998] sm:$0xff] %v9052
      %9085 = vst [vmem:[#allocation3 + $0x9a0] sm:$0xff] %v9053
      %9086 = vst [vmem:[#allocation3 + $0x9a8] sm:$0xff] %v9054
      %9087 = vst [vmem:[#allocation3 + $0x9b0] sm:$0xff] %v9055
      %9088 = vst [vmem:[#allocation3 + $0x9b8] sm:$0xff] %v9056
      %9089 = vst [vmem:[#allocation3 + $0x9c0] sm:$0xff] %v9057
      %9090 = vst [vmem:[#allocation3 + $0x9c8] sm:$0xff] %v9058
      %9091 = vst [vmem:[#allocation3 + $0x9d0] sm:$0xff] %v9059
      %9092 = vst [vmem:[#allocation3 + $0x9d8] sm:$0xff] %v9060
      %9093 = vst [vmem:[#allocation3 + $0x9e0] sm:$0xff] %v9061
      %9094 = vst [vmem:[#allocation3 + $0x9e8] sm:$0xff] %v9062
      %9095 = vst [vmem:[#allocation3 + $0x9f0] sm:$0xff] %v9063
      %9096 = vst [vmem:[#allocation3 + $0x9f8] sm:$0xff] %v9064
      %v9097 = vld [vmem:[%s3205] ss:$8 sm:$0xf]
      %v9098 = vld [vmem:[%s3205] ss:$8 sm:$0xf0]
      %v9099 = vor.u32 %v9097, %v9098
      %v9101 = vlaneseq
      %v9102 = vshrl.u32 %v9101, 7
      %v9103 = vsub.s32 0, %v9102
      %v9104 = vrot.slane %v9099, %v9103
      %v9105 = vlaneseq
      %v9106 = vshrl.u32 %v9105, 7
      %v9107 = vsub.s32 1, %v9106
      %v9108 = vrot.slane %v9099, %v9107
      %v9109 = vlaneseq
      %v9110 = vshrl.u32 %v9109, 7
      %v9111 = vsub.s32 2, %v9110
      %v9112 = vrot.slane %v9099, %v9111
      %v9113 = vlaneseq
      %v9114 = vshrl.u32 %v9113, 7
      %v9115 = vsub.s32 3, %v9114
      %v9116 = vrot.slane %v9099, %v9115
      %v9117 = vlaneseq
      %v9118 = vshrl.u32 %v9117, 7
      %v9119 = vsub.s32 4, %v9118
      %v9120 = vrot.slane %v9099, %v9119
      %v9121 = vlaneseq
      %v9122 = vshrl.u32 %v9121, 7
      %v9123 = vsub.s32 5, %v9122
      %v9124 = vrot.slane %v9099, %v9123
      %v9125 = vlaneseq
      %v9126 = vshrl.u32 %v9125, 7
      %v9127 = vsub.s32 6, %v9126
      %v9128 = vrot.slane %v9099, %v9127
      %v9129 = vlaneseq
      %v9130 = vshrl.u32 %v9129, 7
      %v9131 = vsub.s32 7, %v9130
      %v9132 = vrot.slane %v9099, %v9131
      %9133 = vrot.lane.b32.xlu0 %v9104, 57
      %v9134 = vpop.permute.xlu0 %9133
      %9135 = vrot.lane.b32.xlu0 %v9108, 57
      %v9136 = vpop.permute.xlu0 %9135
      %9137 = vrot.lane.b32.xlu0 %v9112, 57
      %v9138 = vpop.permute.xlu0 %9137
      %9139 = vrot.lane.b32.xlu0 %v9116, 57
      %v9140 = vpop.permute.xlu0 %9139
      %9141 = vrot.lane.b32.xlu0 %v9120, 57
      %v9142 = vpop.permute.xlu0 %9141
      %9143 = vrot.lane.b32.xlu0 %v9124, 57
      %v9144 = vpop.permute.xlu0 %9143
      %9145 = vrot.lane.b32.xlu0 %v9128, 57
      %v9146 = vpop.permute.xlu0 %9145
      %9147 = vrot.lane.b32.xlu0 %v9132, 57
      %v9148 = vpop.permute.xlu0 %9147
      %v9149 = vsel %vm672, %v9134, %v9136
      %v9150 = vsel %vm672, %v9136, %v9138
      %v9151 = vsel %vm672, %v9138, %v9140
      %v9152 = vsel %vm672, %v9140, %v9142
      %v9153 = vsel %vm672, %v9142, %v9144
      %v9154 = vsel %vm672, %v9144, %v9146
      %v9155 = vsel %vm672, %v9146, %v9148
      %v9165 = vmul.f32 %v4834, %v9134
      %v9166 = vmul.f32 %v4835, %v9149
      %v9167 = vmul.f32 %v4836, %v9150
      %v9168 = vmul.f32 %v4837, %v9151
      %v9169 = vmul.f32 %v4838, %v9152
      %v9170 = vmul.f32 %v4839, %v9153
      %v9171 = vmul.f32 %v4840, %v9154
      %v9172 = vmul.f32 %v4841, %v9155
      %v9173 = vmul.f32 %v9148, 0.0
      %v9174 = vmul.f32 %v4842, %v9134
      %v9175 = vmul.f32 %v4843, %v9149
      %v9176 = vmul.f32 %v4844, %v9150
      %v9177 = vmul.f32 %v4845, %v9151
      %v9178 = vmul.f32 %v4846, %v9152
      %v9179 = vmul.f32 %v4847, %v9153
      %v9180 = vmul.f32 %v4848, %v9154
      %v9181 = vmul.f32 %v4849, %v9155
      %v9182 = vmul.f32 %v4850, %v9134
      %v9183 = vmul.f32 %v4851, %v9149
      %v9184 = vmul.f32 %v4852, %v9150
      %v9185 = vmul.f32 %v4853, %v9151
      %v9186 = vmul.f32 %v4854, %v9152
      %v9187 = vmul.f32 %v4855, %v9153
      %v9188 = vmul.f32 %v4856, %v9154
      %v9189 = vmul.f32 %v4857, %v9155
      %v9190 = vmul.f32 %v4858, %v9134
      %v9191 = vmul.f32 %v4859, %v9149
      %v9192 = vmul.f32 %v4860, %v9150
      %v9193 = vmul.f32 %v4861, %v9151
      %v9194 = vmul.f32 %v4862, %v9152
      %v9195 = vmul.f32 %v4863, %v9153
      %v9196 = vmul.f32 %v4864, %v9154
      %v9197 = vmul.f32 %v4865, %v9155
      %v9198 = vpack.c.bf16 %v9174, %v9165
      %v9199 = vpack.c.bf16 %v9175, %v9166
      %v9200 = vpack.c.bf16 %v9176, %v9167
      %v9201 = vpack.c.bf16 %v9177, %v9168
      %v9202 = vpack.c.bf16 %v9178, %v9169
      %v9203 = vpack.c.bf16 %v9179, %v9170
      %v9204 = vpack.c.bf16 %v9180, %v9171
      %v9205 = vpack.c.bf16 %v9181, %v9172
      %v9206 = vpack.c.bf16 %v9173, %v9173
      %v9207 = vpack.c.bf16 %v9190, %v9182
      %v9208 = vpack.c.bf16 %v9191, %v9183
      %v9209 = vpack.c.bf16 %v9192, %v9184
      %v9210 = vpack.c.bf16 %v9193, %v9185
      %v9211 = vpack.c.bf16 %v9194, %v9186
      %v9212 = vpack.c.bf16 %v9195, %v9187
      %v9213 = vpack.c.bf16 %v9196, %v9188
      %v9214 = vpack.c.bf16 %v9197, %v9189
      %9232 = vrot.lane.b32.xlu0 %v9198, 71
      %v9233 = vpop.permute.xlu0 %9232
      %9234 = vrot.lane.b32.xlu0 %v9199, 71
      %v9235 = vpop.permute.xlu0 %9234
      %9236 = vrot.lane.b32.xlu0 %v9200, 71
      %v9237 = vpop.permute.xlu0 %9236
      %9238 = vrot.lane.b32.xlu0 %v9201, 71
      %v9239 = vpop.permute.xlu0 %9238
      %9240 = vrot.lane.b32.xlu0 %v9202, 71
      %v9241 = vpop.permute.xlu0 %9240
      %9242 = vrot.lane.b32.xlu0 %v9203, 71
      %v9243 = vpop.permute.xlu0 %9242
      %9244 = vrot.lane.b32.xlu0 %v9204, 71
      %v9245 = vpop.permute.xlu0 %9244
      %9246 = vrot.lane.b32.xlu0 %v9205, 71
      %v9247 = vpop.permute.xlu0 %9246
      %9248 = vrot.lane.b32.xlu0 %v9206, 71
      %v9249 = vpop.permute.xlu0 %9248
      %9250 = vrot.lane.b32.xlu0 %v9207, 71
      %v9251 = vpop.permute.xlu0 %9250
      %9252 = vrot.lane.b32.xlu0 %v9208, 71
      %v9253 = vpop.permute.xlu0 %9252
      %9254 = vrot.lane.b32.xlu0 %v9209, 71
      %v9255 = vpop.permute.xlu0 %9254
      %9256 = vrot.lane.b32.xlu0 %v9210, 71
      %v9257 = vpop.permute.xlu0 %9256
      %9258 = vrot.lane.b32.xlu0 %v9211, 71
      %v9259 = vpop.permute.xlu0 %9258
      %9260 = vrot.lane.b32.xlu0 %v9212, 71
      %v9261 = vpop.permute.xlu0 %9260
      %9262 = vrot.lane.b32.xlu0 %v9213, 71
      %v9263 = vpop.permute.xlu0 %9262
      %9264 = vrot.lane.b32.xlu0 %v9214, 71
      %v9265 = vpop.permute.xlu0 %9264
      %v9266 = vsel %vm743, %v9233, %v9235
      %v9267 = vsel %vm743, %v9235, %v9237
      %v9268 = vsel %vm743, %v9237, %v9239
      %v9269 = vsel %vm743, %v9239, %v9241
      %v9270 = vsel %vm743, %v9241, %v9243
      %v9271 = vsel %vm743, %v9243, %v9245
      %v9272 = vsel %vm743, %v9245, %v9247
      %v9273 = vsel %vm743, %v9247, %v9249
      %v9274 = vsel %vm743, %v9251, %v9253
      %v9275 = vsel %vm743, %v9253, %v9255
      %v9276 = vsel %vm743, %v9255, %v9257
      %v9277 = vsel %vm743, %v9257, %v9259
      %v9278 = vsel %vm743, %v9259, %v9261
      %v9279 = vsel %vm743, %v9261, %v9263
      %v9280 = vsel %vm743, %v9263, %v9265
      %v9281 = vsel %vm743, %v9265, %v9249
      %9298 = vst [vmem:[#allocation3 + $0xa00] sm:$0xff] %v9266
      %9299 = vst [vmem:[#allocation3 + $0xa08] sm:$0xff] %v9267
      %9300 = vst [vmem:[#allocation3 + $0xa10] sm:$0xff] %v9268
      %9301 = vst [vmem:[#allocation3 + $0xa18] sm:$0xff] %v9269
      %9302 = vst [vmem:[#allocation3 + $0xa20] sm:$0xff] %v9270
      %9303 = vst [vmem:[#allocation3 + $0xa28] sm:$0xff] %v9271
      %9304 = vst [vmem:[#allocation3 + $0xa30] sm:$0xff] %v9272
      %9305 = vst [vmem:[#allocation3 + $0xa38] sm:$0xff] %v9273
      %9306 = vst [vmem:[#allocation3 + $0xa40] sm:$0xff] %v9274
      %9307 = vst [vmem:[#allocation3 + $0xa48] sm:$0xff] %v9275
      %9308 = vst [vmem:[#allocation3 + $0xa50] sm:$0xff] %v9276
      %9309 = vst [vmem:[#allocation3 + $0xa58] sm:$0xff] %v9277
      %9310 = vst [vmem:[#allocation3 + $0xa60] sm:$0xff] %v9278
      %9311 = vst [vmem:[#allocation3 + $0xa68] sm:$0xff] %v9279
      %9312 = vst [vmem:[#allocation3 + $0xa70] sm:$0xff] %v9280
      %9313 = vst [vmem:[#allocation3 + $0xa78] sm:$0xff] %v9281
      %v9314 = vld [vmem:[%s3343] ss:$8 sm:$0xf]
      %v9315 = vld [vmem:[%s3343] ss:$8 sm:$0xf0]
      %v9316 = vor.u32 %v9314, %v9315
      %v9318 = vlaneseq
      %v9319 = vshrl.u32 %v9318, 7
      %v9320 = vsub.s32 0, %v9319
      %v9321 = vrot.slane %v9316, %v9320
      %v9322 = vlaneseq
      %v9323 = vshrl.u32 %v9322, 7
      %v9324 = vsub.s32 1, %v9323
      %v9325 = vrot.slane %v9316, %v9324
      %v9326 = vlaneseq
      %v9327 = vshrl.u32 %v9326, 7
      %v9328 = vsub.s32 2, %v9327
      %v9329 = vrot.slane %v9316, %v9328
      %v9330 = vlaneseq
      %v9331 = vshrl.u32 %v9330, 7
      %v9332 = vsub.s32 3, %v9331
      %v9333 = vrot.slane %v9316, %v9332
      %v9334 = vlaneseq
      %v9335 = vshrl.u32 %v9334, 7
      %v9336 = vsub.s32 4, %v9335
      %v9337 = vrot.slane %v9316, %v9336
      %v9338 = vlaneseq
      %v9339 = vshrl.u32 %v9338, 7
      %v9340 = vsub.s32 5, %v9339
      %v9341 = vrot.slane %v9316, %v9340
      %v9342 = vlaneseq
      %v9343 = vshrl.u32 %v9342, 7
      %v9344 = vsub.s32 6, %v9343
      %v9345 = vrot.slane %v9316, %v9344
      %v9346 = vlaneseq
      %v9347 = vshrl.u32 %v9346, 7
      %v9348 = vsub.s32 7, %v9347
      %v9349 = vrot.slane %v9316, %v9348
      %9350 = vrot.lane.b32.xlu0 %v9321, 63
      %v9351 = vpop.permute.xlu0 %9350
      %9352 = vrot.lane.b32.xlu0 %v9325, 63
      %v9353 = vpop.permute.xlu0 %9352
      %9354 = vrot.lane.b32.xlu0 %v9329, 63
      %v9355 = vpop.permute.xlu0 %9354
      %9356 = vrot.lane.b32.xlu0 %v9333, 63
      %v9357 = vpop.permute.xlu0 %9356
      %9358 = vrot.lane.b32.xlu0 %v9337, 63
      %v9359 = vpop.permute.xlu0 %9358
      %9360 = vrot.lane.b32.xlu0 %v9341, 63
      %v9361 = vpop.permute.xlu0 %9360
      %9362 = vrot.lane.b32.xlu0 %v9345, 63
      %v9363 = vpop.permute.xlu0 %9362
      %9364 = vrot.lane.b32.xlu0 %v9349, 63
      %v9365 = vpop.permute.xlu0 %9364
      %v9366 = vsel %vm821, %v9351, %v9353
      %v9367 = vsel %vm821, %v9353, %v9355
      %v9368 = vsel %vm821, %v9355, %v9357
      %v9369 = vsel %vm821, %v9357, %v9359
      %v9370 = vsel %vm821, %v9359, %v9361
      %v9371 = vsel %vm821, %v9361, %v9363
      %v9372 = vsel %vm821, %v9363, %v9365
      %v9382 = vmul.f32 %v4834, %v9351
      %v9383 = vmul.f32 %v4835, %v9366
      %v9384 = vmul.f32 %v4836, %v9367
      %v9385 = vmul.f32 %v4837, %v9368
      %v9386 = vmul.f32 %v4838, %v9369
      %v9387 = vmul.f32 %v4839, %v9370
      %v9388 = vmul.f32 %v4840, %v9371
      %v9389 = vmul.f32 %v4841, %v9372
      %v9390 = vmul.f32 %v9365, 0.0
      %v9391 = vmul.f32 %v4842, %v9351
      %v9392 = vmul.f32 %v4843, %v9366
      %v9393 = vmul.f32 %v4844, %v9367
      %v9394 = vmul.f32 %v4845, %v9368
      %v9395 = vmul.f32 %v4846, %v9369
      %v9396 = vmul.f32 %v4847, %v9370
      %v9397 = vmul.f32 %v4848, %v9371
      %v9398 = vmul.f32 %v4849, %v9372
      %v9399 = vmul.f32 %v4850, %v9351
      %v9400 = vmul.f32 %v4851, %v9366
      %v9401 = vmul.f32 %v4852, %v9367
      %v9402 = vmul.f32 %v4853, %v9368
      %v9403 = vmul.f32 %v4854, %v9369
      %v9404 = vmul.f32 %v4855, %v9370
      %v9405 = vmul.f32 %v4856, %v9371
      %v9406 = vmul.f32 %v4857, %v9372
      %v9407 = vmul.f32 %v4858, %v9351
      %v9408 = vmul.f32 %v4859, %v9366
      %v9409 = vmul.f32 %v4860, %v9367
      %v9410 = vmul.f32 %v4861, %v9368
      %v9411 = vmul.f32 %v4862, %v9369
      %v9412 = vmul.f32 %v4863, %v9370
      %v9413 = vmul.f32 %v4864, %v9371
      %v9414 = vmul.f32 %v4865, %v9372
      %v9415 = vpack.c.bf16 %v9391, %v9382
      %v9416 = vpack.c.bf16 %v9392, %v9383
      %v9417 = vpack.c.bf16 %v9393, %v9384
      %v9418 = vpack.c.bf16 %v9394, %v9385
      %v9419 = vpack.c.bf16 %v9395, %v9386
      %v9420 = vpack.c.bf16 %v9396, %v9387
      %v9421 = vpack.c.bf16 %v9397, %v9388
      %v9422 = vpack.c.bf16 %v9398, %v9389
      %v9423 = vpack.c.bf16 %v9390, %v9390
      %v9424 = vpack.c.bf16 %v9407, %v9399
      %v9425 = vpack.c.bf16 %v9408, %v9400
      %v9426 = vpack.c.bf16 %v9409, %v9401
      %v9427 = vpack.c.bf16 %v9410, %v9402
      %v9428 = vpack.c.bf16 %v9411, %v9403
      %v9429 = vpack.c.bf16 %v9412, %v9404
      %v9430 = vpack.c.bf16 %v9413, %v9405
      %v9431 = vpack.c.bf16 %v9414, %v9406
      %9449 = vrot.lane.b32.xlu0 %v9415, 65
      %v9450 = vpop.permute.xlu0 %9449
      %9451 = vrot.lane.b32.xlu0 %v9416, 65
      %v9452 = vpop.permute.xlu0 %9451
      %9453 = vrot.lane.b32.xlu0 %v9417, 65
      %v9454 = vpop.permute.xlu0 %9453
      %9455 = vrot.lane.b32.xlu0 %v9418, 65
      %v9456 = vpop.permute.xlu0 %9455
      %9457 = vrot.lane.b32.xlu0 %v9419, 65
      %v9458 = vpop.permute.xlu0 %9457
      %9459 = vrot.lane.b32.xlu0 %v9420, 65
      %v9460 = vpop.permute.xlu0 %9459
      %9461 = vrot.lane.b32.xlu0 %v9421, 65
      %v9462 = vpop.permute.xlu0 %9461
      %9463 = vrot.lane.b32.xlu0 %v9422, 65
      %v9464 = vpop.permute.xlu0 %9463
      %9465 = vrot.lane.b32.xlu0 %v9423, 65
      %v9466 = vpop.permute.xlu0 %9465
      %9467 = vrot.lane.b32.xlu0 %v9424, 65
      %v9468 = vpop.permute.xlu0 %9467
      %9469 = vrot.lane.b32.xlu0 %v9425, 65
      %v9470 = vpop.permute.xlu0 %9469
      %9471 = vrot.lane.b32.xlu0 %v9426, 65
      %v9472 = vpop.permute.xlu0 %9471
      %9473 = vrot.lane.b32.xlu0 %v9427, 65
      %v9474 = vpop.permute.xlu0 %9473
      %9475 = vrot.lane.b32.xlu0 %v9428, 65
      %v9476 = vpop.permute.xlu0 %9475
      %9477 = vrot.lane.b32.xlu0 %v9429, 65
      %v9478 = vpop.permute.xlu0 %9477
      %9479 = vrot.lane.b32.xlu0 %v9430, 65
      %v9480 = vpop.permute.xlu0 %9479
      %9481 = vrot.lane.b32.xlu0 %v9431, 65
      %v9482 = vpop.permute.xlu0 %9481
      %v9483 = vsel %vm892, %v9450, %v9452
      %v9484 = vsel %vm892, %v9452, %v9454
      %v9485 = vsel %vm892, %v9454, %v9456
      %v9486 = vsel %vm892, %v9456, %v9458
      %v9487 = vsel %vm892, %v9458, %v9460
      %v9488 = vsel %vm892, %v9460, %v9462
      %v9489 = vsel %vm892, %v9462, %v9464
      %v9490 = vsel %vm892, %v9464, %v9466
      %v9491 = vsel %vm892, %v9468, %v9470
      %v9492 = vsel %vm892, %v9470, %v9472
      %v9493 = vsel %vm892, %v9472, %v9474
      %v9494 = vsel %vm892, %v9474, %v9476
      %v9495 = vsel %vm892, %v9476, %v9478
      %v9496 = vsel %vm892, %v9478, %v9480
      %v9497 = vsel %vm892, %v9480, %v9482
      %v9498 = vsel %vm892, %v9482, %v9466
      %9515 = vst [vmem:[#allocation3 + $0xa80] sm:$0xff] %v9483
      %9516 = vst [vmem:[#allocation3 + $0xa88] sm:$0xff] %v9484
      %9517 = vst [vmem:[#allocation3 + $0xa90] sm:$0xff] %v9485
      %9518 = vst [vmem:[#allocation3 + $0xa98] sm:$0xff] %v9486
      %9519 = vst [vmem:[#allocation3 + $0xaa0] sm:$0xff] %v9487
      %9520 = vst [vmem:[#allocation3 + $0xaa8] sm:$0xff] %v9488
      %9521 = vst [vmem:[#allocation3 + $0xab0] sm:$0xff] %v9489
      %9522 = vst [vmem:[#allocation3 + $0xab8] sm:$0xff] %v9490
      %9523 = vst [vmem:[#allocation3 + $0xac0] sm:$0xff] %v9491
      %9524 = vst [vmem:[#allocation3 + $0xac8] sm:$0xff] %v9492
      %9525 = vst [vmem:[#allocation3 + $0xad0] sm:$0xff] %v9493
      %9526 = vst [vmem:[#allocation3 + $0xad8] sm:$0xff] %v9494
      %9527 = vst [vmem:[#allocation3 + $0xae0] sm:$0xff] %v9495
      %9528 = vst [vmem:[#allocation3 + $0xae8] sm:$0xff] %v9496
      %9529 = vst [vmem:[#allocation3 + $0xaf0] sm:$0xff] %v9497
      %9530 = vst [vmem:[#allocation3 + $0xaf8] sm:$0xff] %v9498
      %v9531 = vld [vmem:[%s3490] ss:$8 sm:$0xf]
      %v9532 = vld [vmem:[%s3490] ss:$8 sm:$0xf0]
      %v9533 = vor.u32 %v9531, %v9532
      %v9535 = vlaneseq
      %v9536 = vshrl.u32 %v9535, 7
      %v9537 = vsub.s32 0, %v9536
      %v9538 = vrot.slane %v9533, %v9537
      %v9539 = vlaneseq
      %v9540 = vshrl.u32 %v9539, 7
      %v9541 = vsub.s32 1, %v9540
      %v9542 = vrot.slane %v9533, %v9541
      %v9543 = vlaneseq
      %v9544 = vshrl.u32 %v9543, 7
      %v9545 = vsub.s32 2, %v9544
      %v9546 = vrot.slane %v9533, %v9545
      %v9547 = vlaneseq
      %v9548 = vshrl.u32 %v9547, 7
      %v9549 = vsub.s32 3, %v9548
      %v9550 = vrot.slane %v9533, %v9549
      %v9551 = vlaneseq
      %v9552 = vshrl.u32 %v9551, 7
      %v9553 = vsub.s32 4, %v9552
      %v9554 = vrot.slane %v9533, %v9553
      %v9555 = vlaneseq
      %v9556 = vshrl.u32 %v9555, 7
      %v9557 = vsub.s32 5, %v9556
      %v9558 = vrot.slane %v9533, %v9557
      %v9559 = vlaneseq
      %v9560 = vshrl.u32 %v9559, 7
      %v9561 = vsub.s32 6, %v9560
      %v9562 = vrot.slane %v9533, %v9561
      %v9563 = vlaneseq
      %v9564 = vshrl.u32 %v9563, 7
      %v9565 = vsub.s32 7, %v9564
      %v9566 = vrot.slane %v9533, %v9565
      %9567 = vrot.lane.b32.xlu0 %v9538, 64
      %v9568 = vpop.permute.xlu0 %9567
      %9569 = vrot.lane.b32.xlu0 %v9542, 64
      %v9570 = vpop.permute.xlu0 %9569
      %9571 = vrot.lane.b32.xlu0 %v9546, 64
      %v9572 = vpop.permute.xlu0 %9571
      %9573 = vrot.lane.b32.xlu0 %v9550, 64
      %v9574 = vpop.permute.xlu0 %9573
      %9575 = vrot.lane.b32.xlu0 %v9554, 64
      %v9576 = vpop.permute.xlu0 %9575
      %9577 = vrot.lane.b32.xlu0 %v9558, 64
      %v9578 = vpop.permute.xlu0 %9577
      %9579 = vrot.lane.b32.xlu0 %v9562, 64
      %v9580 = vpop.permute.xlu0 %9579
      %9581 = vrot.lane.b32.xlu0 %v9566, 64
      %v9582 = vpop.permute.xlu0 %9581
      %v9583 = vsel %vm970, %v9568, %v9570
      %v9584 = vsel %vm970, %v9570, %v9572
      %v9585 = vsel %vm970, %v9572, %v9574
      %v9586 = vsel %vm970, %v9574, %v9576
      %v9587 = vsel %vm970, %v9576, %v9578
      %v9588 = vsel %vm970, %v9578, %v9580
      %v9589 = vsel %vm970, %v9580, %v9582
      %v9599 = vmul.f32 %v4834, %v9568
      %v9600 = vmul.f32 %v4835, %v9583
      %v9601 = vmul.f32 %v4836, %v9584
      %v9602 = vmul.f32 %v4837, %v9585
      %v9603 = vmul.f32 %v4838, %v9586
      %v9604 = vmul.f32 %v4839, %v9587
      %v9605 = vmul.f32 %v4840, %v9588
      %v9606 = vmul.f32 %v4841, %v9589
      %v9607 = vmul.f32 %v9582, 0.0
      %v9608 = vmul.f32 %v4842, %v9568
      %v9609 = vmul.f32 %v4843, %v9583
      %v9610 = vmul.f32 %v4844, %v9584
      %v9611 = vmul.f32 %v4845, %v9585
      %v9612 = vmul.f32 %v4846, %v9586
      %v9613 = vmul.f32 %v4847, %v9587
      %v9614 = vmul.f32 %v4848, %v9588
      %v9615 = vmul.f32 %v4849, %v9589
      %v9616 = vmul.f32 %v4850, %v9568
      %v9617 = vmul.f32 %v4851, %v9583
      %v9618 = vmul.f32 %v4852, %v9584
      %v9619 = vmul.f32 %v4853, %v9585
      %v9620 = vmul.f32 %v4854, %v9586
      %v9621 = vmul.f32 %v4855, %v9587
      %v9622 = vmul.f32 %v4856, %v9588
      %v9623 = vmul.f32 %v4857, %v9589
      %v9624 = vmul.f32 %v4858, %v9568
      %v9625 = vmul.f32 %v4859, %v9583
      %v9626 = vmul.f32 %v4860, %v9584
      %v9627 = vmul.f32 %v4861, %v9585
      %v9628 = vmul.f32 %v4862, %v9586
      %v9629 = vmul.f32 %v4863, %v9587
      %v9630 = vmul.f32 %v4864, %v9588
      %v9631 = vmul.f32 %v4865, %v9589
      %v9632 = vpack.c.bf16 %v9608, %v9599
      %v9633 = vpack.c.bf16 %v9609, %v9600
      %v9634 = vpack.c.bf16 %v9610, %v9601
      %v9635 = vpack.c.bf16 %v9611, %v9602
      %v9636 = vpack.c.bf16 %v9612, %v9603
      %v9637 = vpack.c.bf16 %v9613, %v9604
      %v9638 = vpack.c.bf16 %v9614, %v9605
      %v9639 = vpack.c.bf16 %v9615, %v9606
      %v9640 = vpack.c.bf16 %v9607, %v9607
      %v9641 = vpack.c.bf16 %v9624, %v9616
      %v9642 = vpack.c.bf16 %v9625, %v9617
      %v9643 = vpack.c.bf16 %v9626, %v9618
      %v9644 = vpack.c.bf16 %v9627, %v9619
      %v9645 = vpack.c.bf16 %v9628, %v9620
      %v9646 = vpack.c.bf16 %v9629, %v9621
      %v9647 = vpack.c.bf16 %v9630, %v9622
      %v9648 = vpack.c.bf16 %v9631, %v9623
      %9666 = vrot.lane.b32.xlu0 %v9632, 64
      %v9667 = vpop.permute.xlu0 %9666
      %9668 = vrot.lane.b32.xlu0 %v9633, 64
      %v9669 = vpop.permute.xlu0 %9668
      %9670 = vrot.lane.b32.xlu0 %v9634, 64
      %v9671 = vpop.permute.xlu0 %9670
      %9672 = vrot.lane.b32.xlu0 %v9635, 64
      %v9673 = vpop.permute.xlu0 %9672
      %9674 = vrot.lane.b32.xlu0 %v9636, 64
      %v9675 = vpop.permute.xlu0 %9674
      %9676 = vrot.lane.b32.xlu0 %v9637, 64
      %v9677 = vpop.permute.xlu0 %9676
      %9678 = vrot.lane.b32.xlu0 %v9638, 64
      %v9679 = vpop.permute.xlu0 %9678
      %9680 = vrot.lane.b32.xlu0 %v9639, 64
      %v9681 = vpop.permute.xlu0 %9680
      %9682 = vrot.lane.b32.xlu0 %v9640, 64
      %v9683 = vpop.permute.xlu0 %9682
      %9684 = vrot.lane.b32.xlu0 %v9641, 64
      %v9685 = vpop.permute.xlu0 %9684
      %9686 = vrot.lane.b32.xlu0 %v9642, 64
      %v9687 = vpop.permute.xlu0 %9686
      %9688 = vrot.lane.b32.xlu0 %v9643, 64
      %v9689 = vpop.permute.xlu0 %9688
      %9690 = vrot.lane.b32.xlu0 %v9644, 64
      %v9691 = vpop.permute.xlu0 %9690
      %9692 = vrot.lane.b32.xlu0 %v9645, 64
      %v9693 = vpop.permute.xlu0 %9692
      %9694 = vrot.lane.b32.xlu0 %v9646, 64
      %v9695 = vpop.permute.xlu0 %9694
      %9696 = vrot.lane.b32.xlu0 %v9647, 64
      %v9697 = vpop.permute.xlu0 %9696
      %9698 = vrot.lane.b32.xlu0 %v9648, 64
      %v9699 = vpop.permute.xlu0 %9698
      %v9700 = vsel %vm1032, %v9667, %v9669
      %v9701 = vsel %vm1032, %v9669, %v9671
      %v9702 = vsel %vm1032, %v9671, %v9673
      %v9703 = vsel %vm1032, %v9673, %v9675
      %v9704 = vsel %vm1032, %v9675, %v9677
      %v9705 = vsel %vm1032, %v9677, %v9679
      %v9706 = vsel %vm1032, %v9679, %v9681
      %v9707 = vsel %vm1032, %v9681, %v9683
      %v9708 = vsel %vm1032, %v9685, %v9687
      %v9709 = vsel %vm1032, %v9687, %v9689
      %v9710 = vsel %vm1032, %v9689, %v9691
      %v9711 = vsel %vm1032, %v9691, %v9693
      %v9712 = vsel %vm1032, %v9693, %v9695
      %v9713 = vsel %vm1032, %v9695, %v9697
      %v9714 = vsel %vm1032, %v9697, %v9699
      %v9715 = vsel %vm1032, %v9699, %v9683
      %9732 = vst [vmem:[#allocation3 + $0xb00] sm:$0xff] %v9700
      %9733 = vst [vmem:[#allocation3 + $0xb08] sm:$0xff] %v9701
      %9734 = vst [vmem:[#allocation3 + $0xb10] sm:$0xff] %v9702
      %9735 = vst [vmem:[#allocation3 + $0xb18] sm:$0xff] %v9703
      %9736 = vst [vmem:[#allocation3 + $0xb20] sm:$0xff] %v9704
      %9737 = vst [vmem:[#allocation3 + $0xb28] sm:$0xff] %v9705
      %9738 = vst [vmem:[#allocation3 + $0xb30] sm:$0xff] %v9706
      %9739 = vst [vmem:[#allocation3 + $0xb38] sm:$0xff] %v9707
      %9740 = vst [vmem:[#allocation3 + $0xb40] sm:$0xff] %v9708
      %9741 = vst [vmem:[#allocation3 + $0xb48] sm:$0xff] %v9709
      %9742 = vst [vmem:[#allocation3 + $0xb50] sm:$0xff] %v9710
      %9743 = vst [vmem:[#allocation3 + $0xb58] sm:$0xff] %v9711
      %9744 = vst [vmem:[#allocation3 + $0xb60] sm:$0xff] %v9712
      %9745 = vst [vmem:[#allocation3 + $0xb68] sm:$0xff] %v9713
      %9746 = vst [vmem:[#allocation3 + $0xb70] sm:$0xff] %v9714
      %9747 = vst [vmem:[#allocation3 + $0xb78] sm:$0xff] %v9715
      %v9748 = vld [vmem:[%s3637] ss:$8 sm:$0xf]
      %v9749 = vld [vmem:[%s3637] ss:$8 sm:$0xf0]
      %v9750 = vor.u32 %v9748, %v9749
      %v9752 = vlaneseq
      %v9753 = vshrl.u32 %v9752, 7
      %v9754 = vsub.s32 0, %v9753
      %v9755 = vrot.slane %v9750, %v9754
      %v9756 = vlaneseq
      %v9757 = vshrl.u32 %v9756, 7
      %v9758 = vsub.s32 1, %v9757
      %v9759 = vrot.slane %v9750, %v9758
      %v9760 = vlaneseq
      %v9761 = vshrl.u32 %v9760, 7
      %v9762 = vsub.s32 2, %v9761
      %v9763 = vrot.slane %v9750, %v9762
      %v9764 = vlaneseq
      %v9765 = vshrl.u32 %v9764, 7
      %v9766 = vsub.s32 3, %v9765
      %v9767 = vrot.slane %v9750, %v9766
      %v9768 = vlaneseq
      %v9769 = vshrl.u32 %v9768, 7
      %v9770 = vsub.s32 4, %v9769
      %v9771 = vrot.slane %v9750, %v9770
      %v9772 = vlaneseq
      %v9773 = vshrl.u32 %v9772, 7
      %v9774 = vsub.s32 5, %v9773
      %v9775 = vrot.slane %v9750, %v9774
      %v9776 = vlaneseq
      %v9777 = vshrl.u32 %v9776, 7
      %v9778 = vsub.s32 6, %v9777
      %v9779 = vrot.slane %v9750, %v9778
      %v9780 = vlaneseq
      %v9781 = vshrl.u32 %v9780, 7
      %v9782 = vsub.s32 7, %v9781
      %v9783 = vrot.slane %v9750, %v9782
      %9784 = vrot.lane.b32.xlu0 %v9755, 65
      %v9785 = vpop.permute.xlu0 %9784
      %9786 = vrot.lane.b32.xlu0 %v9759, 65
      %v9787 = vpop.permute.xlu0 %9786
      %9788 = vrot.lane.b32.xlu0 %v9763, 65
      %v9789 = vpop.permute.xlu0 %9788
      %9790 = vrot.lane.b32.xlu0 %v9767, 65
      %v9791 = vpop.permute.xlu0 %9790
      %9792 = vrot.lane.b32.xlu0 %v9771, 65
      %v9793 = vpop.permute.xlu0 %9792
      %9794 = vrot.lane.b32.xlu0 %v9775, 65
      %v9795 = vpop.permute.xlu0 %9794
      %9796 = vrot.lane.b32.xlu0 %v9779, 65
      %v9797 = vpop.permute.xlu0 %9796
      %9798 = vrot.lane.b32.xlu0 %v9783, 65
      %v9799 = vpop.permute.xlu0 %9798
      %v9800 = vsel %vm1110, %v9785, %v9787
      %v9801 = vsel %vm1110, %v9787, %v9789
      %v9802 = vsel %vm1110, %v9789, %v9791
      %v9803 = vsel %vm1110, %v9791, %v9793
      %v9804 = vsel %vm1110, %v9793, %v9795
      %v9805 = vsel %vm1110, %v9795, %v9797
      %v9806 = vsel %vm1110, %v9797, %v9799
      %v9816 = vmul.f32 %v4834, %v9785
      %v9817 = vmul.f32 %v4835, %v9800
      %v9818 = vmul.f32 %v4836, %v9801
      %v9819 = vmul.f32 %v4837, %v9802
      %v9820 = vmul.f32 %v4838, %v9803
      %v9821 = vmul.f32 %v4839, %v9804
      %v9822 = vmul.f32 %v4840, %v9805
      %v9823 = vmul.f32 %v4841, %v9806
      %v9824 = vmul.f32 %v9799, 0.0
      %v9825 = vmul.f32 %v4842, %v9785
      %v9826 = vmul.f32 %v4843, %v9800
      %v9827 = vmul.f32 %v4844, %v9801
      %v9828 = vmul.f32 %v4845, %v9802
      %v9829 = vmul.f32 %v4846, %v9803
      %v9830 = vmul.f32 %v4847, %v9804
      %v9831 = vmul.f32 %v4848, %v9805
      %v9832 = vmul.f32 %v4849, %v9806
      %v9833 = vmul.f32 %v4850, %v9785
      %v9834 = vmul.f32 %v4851, %v9800
      %v9835 = vmul.f32 %v4852, %v9801
      %v9836 = vmul.f32 %v4853, %v9802
      %v9837 = vmul.f32 %v4854, %v9803
      %v9838 = vmul.f32 %v4855, %v9804
      %v9839 = vmul.f32 %v4856, %v9805
      %v9840 = vmul.f32 %v4857, %v9806
      %v9841 = vmul.f32 %v4858, %v9785
      %v9842 = vmul.f32 %v4859, %v9800
      %v9843 = vmul.f32 %v4860, %v9801
      %v9844 = vmul.f32 %v4861, %v9802
      %v9845 = vmul.f32 %v4862, %v9803
      %v9846 = vmul.f32 %v4863, %v9804
      %v9847 = vmul.f32 %v4864, %v9805
      %v9848 = vmul.f32 %v4865, %v9806
      %v9849 = vpack.c.bf16 %v9825, %v9816
      %v9850 = vpack.c.bf16 %v9826, %v9817
      %v9851 = vpack.c.bf16 %v9827, %v9818
      %v9852 = vpack.c.bf16 %v9828, %v9819
      %v9853 = vpack.c.bf16 %v9829, %v9820
      %v9854 = vpack.c.bf16 %v9830, %v9821
      %v9855 = vpack.c.bf16 %v9831, %v9822
      %v9856 = vpack.c.bf16 %v9832, %v9823
      %v9857 = vpack.c.bf16 %v9824, %v9824
      %v9858 = vpack.c.bf16 %v9841, %v9833
      %v9859 = vpack.c.bf16 %v9842, %v9834
      %v9860 = vpack.c.bf16 %v9843, %v9835
      %v9861 = vpack.c.bf16 %v9844, %v9836
      %v9862 = vpack.c.bf16 %v9845, %v9837
      %v9863 = vpack.c.bf16 %v9846, %v9838
      %v9864 = vpack.c.bf16 %v9847, %v9839
      %v9865 = vpack.c.bf16 %v9848, %v9840
      %9883 = vrot.lane.b32.xlu0 %v9849, 63
      %v9884 = vpop.permute.xlu0 %9883
      %9885 = vrot.lane.b32.xlu0 %v9850, 63
      %v9886 = vpop.permute.xlu0 %9885
      %9887 = vrot.lane.b32.xlu0 %v9851, 63
      %v9888 = vpop.permute.xlu0 %9887
      %9889 = vrot.lane.b32.xlu0 %v9852, 63
      %v9890 = vpop.permute.xlu0 %9889
      %9891 = vrot.lane.b32.xlu0 %v9853, 63
      %v9892 = vpop.permute.xlu0 %9891
      %9893 = vrot.lane.b32.xlu0 %v9854, 63
      %v9894 = vpop.permute.xlu0 %9893
      %9895 = vrot.lane.b32.xlu0 %v9855, 63
      %v9896 = vpop.permute.xlu0 %9895
      %9897 = vrot.lane.b32.xlu0 %v9856, 63
      %v9898 = vpop.permute.xlu0 %9897
      %9899 = vrot.lane.b32.xlu0 %v9857, 63
      %v9900 = vpop.permute.xlu0 %9899
      %9901 = vrot.lane.b32.xlu0 %v9858, 63
      %v9902 = vpop.permute.xlu0 %9901
      %9903 = vrot.lane.b32.xlu0 %v9859, 63
      %v9904 = vpop.permute.xlu0 %9903
      %9905 = vrot.lane.b32.xlu0 %v9860, 63
      %v9906 = vpop.permute.xlu0 %9905
      %9907 = vrot.lane.b32.xlu0 %v9861, 63
      %v9908 = vpop.permute.xlu0 %9907
      %9909 = vrot.lane.b32.xlu0 %v9862, 63
      %v9910 = vpop.permute.xlu0 %9909
      %9911 = vrot.lane.b32.xlu0 %v9863, 63
      %v9912 = vpop.permute.xlu0 %9911
      %9913 = vrot.lane.b32.xlu0 %v9864, 63
      %v9914 = vpop.permute.xlu0 %9913
      %9915 = vrot.lane.b32.xlu0 %v9865, 63
      %v9916 = vpop.permute.xlu0 %9915
      %v9917 = vsel %vm1181, %v9884, %v9886
      %v9918 = vsel %vm1181, %v9886, %v9888
      %v9919 = vsel %vm1181, %v9888, %v9890
      %v9920 = vsel %vm1181, %v9890, %v9892
      %v9921 = vsel %vm1181, %v9892, %v9894
      %v9922 = vsel %vm1181, %v9894, %v9896
      %v9923 = vsel %vm1181, %v9896, %v9898
      %v9924 = vsel %vm1181, %v9898, %v9900
      %v9925 = vsel %vm1181, %v9902, %v9904
      %v9926 = vsel %vm1181, %v9904, %v9906
      %v9927 = vsel %vm1181, %v9906, %v9908
      %v9928 = vsel %vm1181, %v9908, %v9910
      %v9929 = vsel %vm1181, %v9910, %v9912
      %v9930 = vsel %vm1181, %v9912, %v9914
      %v9931 = vsel %vm1181, %v9914, %v9916
      %v9932 = vsel %vm1181, %v9916, %v9900
      %9949 = vst [vmem:[#allocation3 + $0xb80] sm:$0xff] %v9917
      %9950 = vst [vmem:[#allocation3 + $0xb88] sm:$0xff] %v9918
      %9951 = vst [vmem:[#allocation3 + $0xb90] sm:$0xff] %v9919
      %9952 = vst [vmem:[#allocation3 + $0xb98] sm:$0xff] %v9920
      %9953 = vst [vmem:[#allocation3 + $0xba0] sm:$0xff] %v9921
      %9954 = vst [vmem:[#allocation3 + $0xba8] sm:$0xff] %v9922
      %9955 = vst [vmem:[#allocation3 + $0xbb0] sm:$0xff] %v9923
      %9956 = vst [vmem:[#allocation3 + $0xbb8] sm:$0xff] %v9924
      %9957 = vst [vmem:[#allocation3 + $0xbc0] sm:$0xff] %v9925
      %9958 = vst [vmem:[#allocation3 + $0xbc8] sm:$0xff] %v9926
      %9959 = vst [vmem:[#allocation3 + $0xbd0] sm:$0xff] %v9927
      %9960 = vst [vmem:[#allocation3 + $0xbd8] sm:$0xff] %v9928
      %9961 = vst [vmem:[#allocation3 + $0xbe0] sm:$0xff] %v9929
      %9962 = vst [vmem:[#allocation3 + $0xbe8] sm:$0xff] %v9930
      %9963 = vst [vmem:[#allocation3 + $0xbf0] sm:$0xff] %v9931
      %9964 = vst [vmem:[#allocation3 + $0xbf8] sm:$0xff] %v9932
      %v9965 = vld [vmem:[%s3784] ss:$8 sm:$0xf]
      %v9966 = vld [vmem:[%s3784] ss:$8 sm:$0xf0]
      %v9967 = vor.u32 %v9965, %v9966
      %v9969 = vlaneseq
      %v9970 = vshrl.u32 %v9969, 7
      %v9971 = vsub.s32 0, %v9970
      %v9972 = vrot.slane %v9967, %v9971
      %v9973 = vlaneseq
      %v9974 = vshrl.u32 %v9973, 7
      %v9975 = vsub.s32 1, %v9974
      %v9976 = vrot.slane %v9967, %v9975
      %v9977 = vlaneseq
      %v9978 = vshrl.u32 %v9977, 7
      %v9979 = vsub.s32 2, %v9978
      %v9980 = vrot.slane %v9967, %v9979
      %v9981 = vlaneseq
      %v9982 = vshrl.u32 %v9981, 7
      %v9983 = vsub.s32 3, %v9982
      %v9984 = vrot.slane %v9967, %v9983
      %v9985 = vlaneseq
      %v9986 = vshrl.u32 %v9985, 7
      %v9987 = vsub.s32 4, %v9986
      %v9988 = vrot.slane %v9967, %v9987
      %v9989 = vlaneseq
      %v9990 = vshrl.u32 %v9989, 7
      %v9991 = vsub.s32 5, %v9990
      %v9992 = vrot.slane %v9967, %v9991
      %v9993 = vlaneseq
      %v9994 = vshrl.u32 %v9993, 7
      %v9995 = vsub.s32 6, %v9994
      %v9996 = vrot.slane %v9967, %v9995
      %v9997 = vlaneseq
      %v9998 = vshrl.u32 %v9997, 7
      %v9999 = vsub.s32 7, %v9998
      %v10000 = vrot.slane %v9967, %v9999
      %10001 = vrot.lane.b32.xlu0 %v9972, 71
      %v10002 = vpop.permute.xlu0 %10001
      %10003 = vrot.lane.b32.xlu0 %v9976, 71
      %v10004 = vpop.permute.xlu0 %10003
      %10005 = vrot.lane.b32.xlu0 %v9980, 71
      %v10006 = vpop.permute.xlu0 %10005
      %10007 = vrot.lane.b32.xlu0 %v9984, 71
      %v10008 = vpop.permute.xlu0 %10007
      %10009 = vrot.lane.b32.xlu0 %v9988, 71
      %v10010 = vpop.permute.xlu0 %10009
      %10011 = vrot.lane.b32.xlu0 %v9992, 71
      %v10012 = vpop.permute.xlu0 %10011
      %10013 = vrot.lane.b32.xlu0 %v9996, 71
      %v10014 = vpop.permute.xlu0 %10013
      %10015 = vrot.lane.b32.xlu0 %v10000, 71
      %v10016 = vpop.permute.xlu0 %10015
      %v10017 = vsel %vm1259, %v10002, %v10004
      %v10018 = vsel %vm1259, %v10004, %v10006
      %v10019 = vsel %vm1259, %v10006, %v10008
      %v10020 = vsel %vm1259, %v10008, %v10010
      %v10021 = vsel %vm1259, %v10010, %v10012
      %v10022 = vsel %vm1259, %v10012, %v10014
      %v10023 = vsel %vm1259, %v10014, %v10016
      %v10033 = vmul.f32 %v4834, %v10002
      %v10034 = vmul.f32 %v4835, %v10017
      %v10035 = vmul.f32 %v4836, %v10018
      %v10036 = vmul.f32 %v4837, %v10019
      %v10037 = vmul.f32 %v4838, %v10020
      %v10038 = vmul.f32 %v4839, %v10021
      %v10039 = vmul.f32 %v4840, %v10022
      %v10040 = vmul.f32 %v4841, %v10023
      %v10041 = vmul.f32 %v10016, 0.0
      %v10042 = vmul.f32 %v4842, %v10002
      %v10043 = vmul.f32 %v4843, %v10017
      %v10044 = vmul.f32 %v4844, %v10018
      %v10045 = vmul.f32 %v4845, %v10019
      %v10046 = vmul.f32 %v4846, %v10020
      %v10047 = vmul.f32 %v4847, %v10021
      %v10048 = vmul.f32 %v4848, %v10022
      %v10049 = vmul.f32 %v4849, %v10023
      %v10050 = vmul.f32 %v4850, %v10002
      %v10051 = vmul.f32 %v4851, %v10017
      %v10052 = vmul.f32 %v4852, %v10018
      %v10053 = vmul.f32 %v4853, %v10019
      %v10054 = vmul.f32 %v4854, %v10020
      %v10055 = vmul.f32 %v4855, %v10021
      %v10056 = vmul.f32 %v4856, %v10022
      %v10057 = vmul.f32 %v4857, %v10023
      %v10058 = vmul.f32 %v4858, %v10002
      %v10059 = vmul.f32 %v4859, %v10017
      %v10060 = vmul.f32 %v4860, %v10018
      %v10061 = vmul.f32 %v4861, %v10019
      %v10062 = vmul.f32 %v4862, %v10020
      %v10063 = vmul.f32 %v4863, %v10021
      %v10064 = vmul.f32 %v4864, %v10022
      %v10065 = vmul.f32 %v4865, %v10023
      %v10066 = vpack.c.bf16 %v10042, %v10033
      %v10067 = vpack.c.bf16 %v10043, %v10034
      %v10068 = vpack.c.bf16 %v10044, %v10035
      %v10069 = vpack.c.bf16 %v10045, %v10036
      %v10070 = vpack.c.bf16 %v10046, %v10037
      %v10071 = vpack.c.bf16 %v10047, %v10038
      %v10072 = vpack.c.bf16 %v10048, %v10039
      %v10073 = vpack.c.bf16 %v10049, %v10040
      %v10074 = vpack.c.bf16 %v10041, %v10041
      %v10075 = vpack.c.bf16 %v10058, %v10050
      %v10076 = vpack.c.bf16 %v10059, %v10051
      %v10077 = vpack.c.bf16 %v10060, %v10052
      %v10078 = vpack.c.bf16 %v10061, %v10053
      %v10079 = vpack.c.bf16 %v10062, %v10054
      %v10080 = vpack.c.bf16 %v10063, %v10055
      %v10081 = vpack.c.bf16 %v10064, %v10056
      %v10082 = vpack.c.bf16 %v10065, %v10057
      %10100 = vrot.lane.b32.xlu0 %v10066, 57
      %v10101 = vpop.permute.xlu0 %10100
      %10102 = vrot.lane.b32.xlu0 %v10067, 57
      %v10103 = vpop.permute.xlu0 %10102
      %10104 = vrot.lane.b32.xlu0 %v10068, 57
      %v10105 = vpop.permute.xlu0 %10104
      %10106 = vrot.lane.b32.xlu0 %v10069, 57
      %v10107 = vpop.permute.xlu0 %10106
      %10108 = vrot.lane.b32.xlu0 %v10070, 57
      %v10109 = vpop.permute.xlu0 %10108
      %10110 = vrot.lane.b32.xlu0 %v10071, 57
      %v10111 = vpop.permute.xlu0 %10110
      %10112 = vrot.lane.b32.xlu0 %v10072, 57
      %v10113 = vpop.permute.xlu0 %10112
      %10114 = vrot.lane.b32.xlu0 %v10073, 57
      %v10115 = vpop.permute.xlu0 %10114
      %10116 = vrot.lane.b32.xlu0 %v10074, 57
      %v10117 = vpop.permute.xlu0 %10116
      %10118 = vrot.lane.b32.xlu0 %v10075, 57
      %v10119 = vpop.permute.xlu0 %10118
      %10120 = vrot.lane.b32.xlu0 %v10076, 57
      %v10121 = vpop.permute.xlu0 %10120
      %10122 = vrot.lane.b32.xlu0 %v10077, 57
      %v10123 = vpop.permute.xlu0 %10122
      %10124 = vrot.lane.b32.xlu0 %v10078, 57
      %v10125 = vpop.permute.xlu0 %10124
      %10126 = vrot.lane.b32.xlu0 %v10079, 57
      %v10127 = vpop.permute.xlu0 %10126
      %10128 = vrot.lane.b32.xlu0 %v10080, 57
      %v10129 = vpop.permute.xlu0 %10128
      %10130 = vrot.lane.b32.xlu0 %v10081, 57
      %v10131 = vpop.permute.xlu0 %10130
      %10132 = vrot.lane.b32.xlu0 %v10082, 57
      %v10133 = vpop.permute.xlu0 %10132
      %v10134 = vsel %vm1330, %v10101, %v10103
      %v10135 = vsel %vm1330, %v10103, %v10105
      %v10136 = vsel %vm1330, %v10105, %v10107
      %v10137 = vsel %vm1330, %v10107, %v10109
      %v10138 = vsel %vm1330, %v10109, %v10111
      %v10139 = vsel %vm1330, %v10111, %v10113
      %v10140 = vsel %vm1330, %v10113, %v10115
      %v10141 = vsel %vm1330, %v10115, %v10117
      %v10142 = vsel %vm1330, %v10119, %v10121
      %v10143 = vsel %vm1330, %v10121, %v10123
      %v10144 = vsel %vm1330, %v10123, %v10125
      %v10145 = vsel %vm1330, %v10125, %v10127
      %v10146 = vsel %vm1330, %v10127, %v10129
      %v10147 = vsel %vm1330, %v10129, %v10131
      %v10148 = vsel %vm1330, %v10131, %v10133
      %v10149 = vsel %vm1330, %v10133, %v10117
      %10166 = vst [vmem:[#allocation3 + $0xc00] sm:$0xff] %v10134
      %10167 = vst [vmem:[#allocation3 + $0xc08] sm:$0xff] %v10135
      %10168 = vst [vmem:[#allocation3 + $0xc10] sm:$0xff] %v10136
      %10169 = vst [vmem:[#allocation3 + $0xc18] sm:$0xff] %v10137
      %10170 = vst [vmem:[#allocation3 + $0xc20] sm:$0xff] %v10138
      %10171 = vst [vmem:[#allocation3 + $0xc28] sm:$0xff] %v10139
      %10172 = vst [vmem:[#allocation3 + $0xc30] sm:$0xff] %v10140
      %10173 = vst [vmem:[#allocation3 + $0xc38] sm:$0xff] %v10141
      %10174 = vst [vmem:[#allocation3 + $0xc40] sm:$0xff] %v10142
      %10175 = vst [vmem:[#allocation3 + $0xc48] sm:$0xff] %v10143
      %10176 = vst [vmem:[#allocation3 + $0xc50] sm:$0xff] %v10144
      %10177 = vst [vmem:[#allocation3 + $0xc58] sm:$0xff] %v10145
      %10178 = vst [vmem:[#allocation3 + $0xc60] sm:$0xff] %v10146
      %10179 = vst [vmem:[#allocation3 + $0xc68] sm:$0xff] %v10147
      %10180 = vst [vmem:[#allocation3 + $0xc70] sm:$0xff] %v10148
      %10181 = vst [vmem:[#allocation3 + $0xc78] sm:$0xff] %v10149
      %v10182 = vld [vmem:[%s3922] ss:$8 sm:$0xf]
      %v10183 = vld [vmem:[%s3922] ss:$8 sm:$0xf0]
      %v10184 = vor.u32 %v10182, %v10183
      %v10186 = vlaneseq
      %v10187 = vshrl.u32 %v10186, 7
      %v10188 = vsub.s32 0, %v10187
      %v10189 = vrot.slane %v10184, %v10188
      %v10190 = vlaneseq
      %v10191 = vshrl.u32 %v10190, 7
      %v10192 = vsub.s32 1, %v10191
      %v10193 = vrot.slane %v10184, %v10192
      %v10194 = vlaneseq
      %v10195 = vshrl.u32 %v10194, 7
      %v10196 = vsub.s32 2, %v10195
      %v10197 = vrot.slane %v10184, %v10196
      %v10198 = vlaneseq
      %v10199 = vshrl.u32 %v10198, 7
      %v10200 = vsub.s32 3, %v10199
      %v10201 = vrot.slane %v10184, %v10200
      %v10202 = vlaneseq
      %v10203 = vshrl.u32 %v10202, 7
      %v10204 = vsub.s32 4, %v10203
      %v10205 = vrot.slane %v10184, %v10204
      %v10206 = vlaneseq
      %v10207 = vshrl.u32 %v10206, 7
      %v10208 = vsub.s32 5, %v10207
      %v10209 = vrot.slane %v10184, %v10208
      %v10210 = vlaneseq
      %v10211 = vshrl.u32 %v10210, 7
      %v10212 = vsub.s32 6, %v10211
      %v10213 = vrot.slane %v10184, %v10212
      %v10214 = vlaneseq
      %v10215 = vshrl.u32 %v10214, 7
      %v10216 = vsub.s32 7, %v10215
      %v10217 = vrot.slane %v10184, %v10216
      %10218 = vrot.lane.b32.xlu0 %v10189, 72
      %v10219 = vpop.permute.xlu0 %10218
      %10220 = vrot.lane.b32.xlu0 %v10193, 72
      %v10221 = vpop.permute.xlu0 %10220
      %10222 = vrot.lane.b32.xlu0 %v10197, 72
      %v10223 = vpop.permute.xlu0 %10222
      %10224 = vrot.lane.b32.xlu0 %v10201, 72
      %v10225 = vpop.permute.xlu0 %10224
      %10226 = vrot.lane.b32.xlu0 %v10205, 72
      %v10227 = vpop.permute.xlu0 %10226
      %10228 = vrot.lane.b32.xlu0 %v10209, 72
      %v10229 = vpop.permute.xlu0 %10228
      %10230 = vrot.lane.b32.xlu0 %v10213, 72
      %v10231 = vpop.permute.xlu0 %10230
      %10232 = vrot.lane.b32.xlu0 %v10217, 72
      %v10233 = vpop.permute.xlu0 %10232
      %v10234 = vsel %vm1408, %v10219, %v10221
      %v10235 = vsel %vm1408, %v10221, %v10223
      %v10236 = vsel %vm1408, %v10223, %v10225
      %v10237 = vsel %vm1408, %v10225, %v10227
      %v10238 = vsel %vm1408, %v10227, %v10229
      %v10239 = vsel %vm1408, %v10229, %v10231
      %v10240 = vsel %vm1408, %v10231, %v10233
      %v10250 = vmul.f32 %v4834, %v10219
      %v10251 = vmul.f32 %v4835, %v10234
      %v10252 = vmul.f32 %v4836, %v10235
      %v10253 = vmul.f32 %v4837, %v10236
      %v10254 = vmul.f32 %v4838, %v10237
      %v10255 = vmul.f32 %v4839, %v10238
      %v10256 = vmul.f32 %v4840, %v10239
      %v10257 = vmul.f32 %v4841, %v10240
      %v10258 = vmul.f32 %v10233, 0.0
      %v10259 = vmul.f32 %v4842, %v10219
      %v10260 = vmul.f32 %v4843, %v10234
      %v10261 = vmul.f32 %v4844, %v10235
      %v10262 = vmul.f32 %v4845, %v10236
      %v10263 = vmul.f32 %v4846, %v10237
      %v10264 = vmul.f32 %v4847, %v10238
      %v10265 = vmul.f32 %v4848, %v10239
      %v10266 = vmul.f32 %v4849, %v10240
      %v10267 = vmul.f32 %v4850, %v10219
      %v10268 = vmul.f32 %v4851, %v10234
      %v10269 = vmul.f32 %v4852, %v10235
      %v10270 = vmul.f32 %v4853, %v10236
      %v10271 = vmul.f32 %v4854, %v10237
      %v10272 = vmul.f32 %v4855, %v10238
      %v10273 = vmul.f32 %v4856, %v10239
      %v10274 = vmul.f32 %v4857, %v10240
      %v10275 = vmul.f32 %v4858, %v10219
      %v10276 = vmul.f32 %v4859, %v10234
      %v10277 = vmul.f32 %v4860, %v10235
      %v10278 = vmul.f32 %v4861, %v10236
      %v10279 = vmul.f32 %v4862, %v10237
      %v10280 = vmul.f32 %v4863, %v10238
      %v10281 = vmul.f32 %v4864, %v10239
      %v10282 = vmul.f32 %v4865, %v10240
      %v10283 = vpack.c.bf16 %v10259, %v10250
      %v10284 = vpack.c.bf16 %v10260, %v10251
      %v10285 = vpack.c.bf16 %v10261, %v10252
      %v10286 = vpack.c.bf16 %v10262, %v10253
      %v10287 = vpack.c.bf16 %v10263, %v10254
      %v10288 = vpack.c.bf16 %v10264, %v10255
      %v10289 = vpack.c.bf16 %v10265, %v10256
      %v10290 = vpack.c.bf16 %v10266, %v10257
      %v10291 = vpack.c.bf16 %v10258, %v10258
      %v10292 = vpack.c.bf16 %v10275, %v10267
      %v10293 = vpack.c.bf16 %v10276, %v10268
      %v10294 = vpack.c.bf16 %v10277, %v10269
      %v10295 = vpack.c.bf16 %v10278, %v10270
      %v10296 = vpack.c.bf16 %v10279, %v10271
      %v10297 = vpack.c.bf16 %v10280, %v10272
      %v10298 = vpack.c.bf16 %v10281, %v10273
      %v10299 = vpack.c.bf16 %v10282, %v10274
      %10317 = vrot.lane.b32.xlu0 %v10283, 56
      %v10318 = vpop.permute.xlu0 %10317
      %10319 = vrot.lane.b32.xlu0 %v10284, 56
      %v10320 = vpop.permute.xlu0 %10319
      %10321 = vrot.lane.b32.xlu0 %v10285, 56
      %v10322 = vpop.permute.xlu0 %10321
      %10323 = vrot.lane.b32.xlu0 %v10286, 56
      %v10324 = vpop.permute.xlu0 %10323
      %10325 = vrot.lane.b32.xlu0 %v10287, 56
      %v10326 = vpop.permute.xlu0 %10325
      %10327 = vrot.lane.b32.xlu0 %v10288, 56
      %v10328 = vpop.permute.xlu0 %10327
      %10329 = vrot.lane.b32.xlu0 %v10289, 56
      %v10330 = vpop.permute.xlu0 %10329
      %10331 = vrot.lane.b32.xlu0 %v10290, 56
      %v10332 = vpop.permute.xlu0 %10331
      %10333 = vrot.lane.b32.xlu0 %v10291, 56
      %v10334 = vpop.permute.xlu0 %10333
      %10335 = vrot.lane.b32.xlu0 %v10292, 56
      %v10336 = vpop.permute.xlu0 %10335
      %10337 = vrot.lane.b32.xlu0 %v10293, 56
      %v10338 = vpop.permute.xlu0 %10337
      %10339 = vrot.lane.b32.xlu0 %v10294, 56
      %v10340 = vpop.permute.xlu0 %10339
      %10341 = vrot.lane.b32.xlu0 %v10295, 56
      %v10342 = vpop.permute.xlu0 %10341
      %10343 = vrot.lane.b32.xlu0 %v10296, 56
      %v10344 = vpop.permute.xlu0 %10343
      %10345 = vrot.lane.b32.xlu0 %v10297, 56
      %v10346 = vpop.permute.xlu0 %10345
      %10347 = vrot.lane.b32.xlu0 %v10298, 56
      %v10348 = vpop.permute.xlu0 %10347
      %10349 = vrot.lane.b32.xlu0 %v10299, 56
      %v10350 = vpop.permute.xlu0 %10349
      %v10351 = vsel %vm1479, %v10318, %v10320
      %v10352 = vsel %vm1479, %v10320, %v10322
      %v10353 = vsel %vm1479, %v10322, %v10324
      %v10354 = vsel %vm1479, %v10324, %v10326
      %v10355 = vsel %vm1479, %v10326, %v10328
      %v10356 = vsel %vm1479, %v10328, %v10330
      %v10357 = vsel %vm1479, %v10330, %v10332
      %v10358 = vsel %vm1479, %v10332, %v10334
      %v10359 = vsel %vm1479, %v10336, %v10338
      %v10360 = vsel %vm1479, %v10338, %v10340
      %v10361 = vsel %vm1479, %v10340, %v10342
      %v10362 = vsel %vm1479, %v10342, %v10344
      %v10363 = vsel %vm1479, %v10344, %v10346
      %v10364 = vsel %vm1479, %v10346, %v10348
      %v10365 = vsel %vm1479, %v10348, %v10350
      %v10366 = vsel %vm1479, %v10350, %v10334
      %10383 = vst [vmem:[#allocation3 + $0xc80] sm:$0xff] %v10351
      %10384 = vst [vmem:[#allocation3 + $0xc88] sm:$0xff] %v10352
      %10385 = vst [vmem:[#allocation3 + $0xc90] sm:$0xff] %v10353
      %10386 = vst [vmem:[#allocation3 + $0xc98] sm:$0xff] %v10354
      %10387 = vst [vmem:[#allocation3 + $0xca0] sm:$0xff] %v10355
      %10388 = vst [vmem:[#allocation3 + $0xca8] sm:$0xff] %v10356
      %10389 = vst [vmem:[#allocation3 + $0xcb0] sm:$0xff] %v10357
      %10390 = vst [vmem:[#allocation3 + $0xcb8] sm:$0xff] %v10358
      %10391 = vst [vmem:[#allocation3 + $0xcc0] sm:$0xff] %v10359
      %10392 = vst [vmem:[#allocation3 + $0xcc8] sm:$0xff] %v10360
      %10393 = vst [vmem:[#allocation3 + $0xcd0] sm:$0xff] %v10361
      %10394 = vst [vmem:[#allocation3 + $0xcd8] sm:$0xff] %v10362
      %10395 = vst [vmem:[#allocation3 + $0xce0] sm:$0xff] %v10363
      %10396 = vst [vmem:[#allocation3 + $0xce8] sm:$0xff] %v10364
      %10397 = vst [vmem:[#allocation3 + $0xcf0] sm:$0xff] %v10365
      %10398 = vst [vmem:[#allocation3 + $0xcf8] sm:$0xff] %v10366
      %v10399 = vld [vmem:[%s4069] ss:$8 sm:$0xf]
      %v10400 = vld [vmem:[%s4069] ss:$8 sm:$0xf0]
      %v10401 = vor.u32 %v10399, %v10400
      %v10403 = vlaneseq
      %v10404 = vshrl.u32 %v10403, 7
      %v10405 = vsub.s32 0, %v10404
      %v10406 = vrot.slane %v10401, %v10405
      %v10407 = vlaneseq
      %v10408 = vshrl.u32 %v10407, 7
      %v10409 = vsub.s32 1, %v10408
      %v10410 = vrot.slane %v10401, %v10409
      %v10411 = vlaneseq
      %v10412 = vshrl.u32 %v10411, 7
      %v10413 = vsub.s32 2, %v10412
      %v10414 = vrot.slane %v10401, %v10413
      %v10415 = vlaneseq
      %v10416 = vshrl.u32 %v10415, 7
      %v10417 = vsub.s32 3, %v10416
      %v10418 = vrot.slane %v10401, %v10417
      %v10419 = vlaneseq
      %v10420 = vshrl.u32 %v10419, 7
      %v10421 = vsub.s32 4, %v10420
      %v10422 = vrot.slane %v10401, %v10421
      %v10423 = vlaneseq
      %v10424 = vshrl.u32 %v10423, 7
      %v10425 = vsub.s32 5, %v10424
      %v10426 = vrot.slane %v10401, %v10425
      %v10427 = vlaneseq
      %v10428 = vshrl.u32 %v10427, 7
      %v10429 = vsub.s32 6, %v10428
      %v10430 = vrot.slane %v10401, %v10429
      %v10431 = vlaneseq
      %v10432 = vshrl.u32 %v10431, 7
      %v10433 = vsub.s32 7, %v10432
      %v10434 = vrot.slane %v10401, %v10433
      %10435 = vrot.lane.b32.xlu0 %v10406, 73
      %v10436 = vpop.permute.xlu0 %10435
      %10437 = vrot.lane.b32.xlu0 %v10410, 73
      %v10438 = vpop.permute.xlu0 %10437
      %10439 = vrot.lane.b32.xlu0 %v10414, 73
      %v10440 = vpop.permute.xlu0 %10439
      %10441 = vrot.lane.b32.xlu0 %v10418, 73
      %v10442 = vpop.permute.xlu0 %10441
      %10443 = vrot.lane.b32.xlu0 %v10422, 73
      %v10444 = vpop.permute.xlu0 %10443
      %10445 = vrot.lane.b32.xlu0 %v10426, 73
      %v10446 = vpop.permute.xlu0 %10445
      %10447 = vrot.lane.b32.xlu0 %v10430, 73
      %v10448 = vpop.permute.xlu0 %10447
      %10449 = vrot.lane.b32.xlu0 %v10434, 73
      %v10450 = vpop.permute.xlu0 %10449
      %v10451 = vsel %vm1557, %v10436, %v10438
      %v10452 = vsel %vm1557, %v10438, %v10440
      %v10453 = vsel %vm1557, %v10440, %v10442
      %v10454 = vsel %vm1557, %v10442, %v10444
      %v10455 = vsel %vm1557, %v10444, %v10446
      %v10456 = vsel %vm1557, %v10446, %v10448
      %v10457 = vsel %vm1557, %v10448, %v10450
      %v10467 = vmul.f32 %v4834, %v10436
      %v10468 = vmul.f32 %v4835, %v10451
      %v10469 = vmul.f32 %v4836, %v10452
      %v10470 = vmul.f32 %v4837, %v10453
      %v10471 = vmul.f32 %v4838, %v10454
      %v10472 = vmul.f32 %v4839, %v10455
      %v10473 = vmul.f32 %v4840, %v10456
      %v10474 = vmul.f32 %v4841, %v10457
      %v10475 = vmul.f32 %v10450, 0.0
      %v10476 = vmul.f32 %v4842, %v10436
      %v10477 = vmul.f32 %v4843, %v10451
      %v10478 = vmul.f32 %v4844, %v10452
      %v10479 = vmul.f32 %v4845, %v10453
      %v10480 = vmul.f32 %v4846, %v10454
      %v10481 = vmul.f32 %v4847, %v10455
      %v10482 = vmul.f32 %v4848, %v10456
      %v10483 = vmul.f32 %v4849, %v10457
      %v10484 = vmul.f32 %v4850, %v10436
      %v10485 = vmul.f32 %v4851, %v10451
      %v10486 = vmul.f32 %v4852, %v10452
      %v10487 = vmul.f32 %v4853, %v10453
      %v10488 = vmul.f32 %v4854, %v10454
      %v10489 = vmul.f32 %v4855, %v10455
      %v10490 = vmul.f32 %v4856, %v10456
      %v10491 = vmul.f32 %v4857, %v10457
      %v10492 = vmul.f32 %v4858, %v10436
      %v10493 = vmul.f32 %v4859, %v10451
      %v10494 = vmul.f32 %v4860, %v10452
      %v10495 = vmul.f32 %v4861, %v10453
      %v10496 = vmul.f32 %v4862, %v10454
      %v10497 = vmul.f32 %v4863, %v10455
      %v10498 = vmul.f32 %v4864, %v10456
      %v10499 = vmul.f32 %v4865, %v10457
      %v10500 = vpack.c.bf16 %v10476, %v10467
      %v10501 = vpack.c.bf16 %v10477, %v10468
      %v10502 = vpack.c.bf16 %v10478, %v10469
      %v10503 = vpack.c.bf16 %v10479, %v10470
      %v10504 = vpack.c.bf16 %v10480, %v10471
      %v10505 = vpack.c.bf16 %v10481, %v10472
      %v10506 = vpack.c.bf16 %v10482, %v10473
      %v10507 = vpack.c.bf16 %v10483, %v10474
      %v10508 = vpack.c.bf16 %v10475, %v10475
      %v10509 = vpack.c.bf16 %v10492, %v10484
      %v10510 = vpack.c.bf16 %v10493, %v10485
      %v10511 = vpack.c.bf16 %v10494, %v10486
      %v10512 = vpack.c.bf16 %v10495, %v10487
      %v10513 = vpack.c.bf16 %v10496, %v10488
      %v10514 = vpack.c.bf16 %v10497, %v10489
      %v10515 = vpack.c.bf16 %v10498, %v10490
      %v10516 = vpack.c.bf16 %v10499, %v10491
      %10534 = vrot.lane.b32.xlu0 %v10500, 55
      %v10535 = vpop.permute.xlu0 %10534
      %10536 = vrot.lane.b32.xlu0 %v10501, 55
      %v10537 = vpop.permute.xlu0 %10536
      %10538 = vrot.lane.b32.xlu0 %v10502, 55
      %v10539 = vpop.permute.xlu0 %10538
      %10540 = vrot.lane.b32.xlu0 %v10503, 55
      %v10541 = vpop.permute.xlu0 %10540
      %10542 = vrot.lane.b32.xlu0 %v10504, 55
      %v10543 = vpop.permute.xlu0 %10542
      %10544 = vrot.lane.b32.xlu0 %v10505, 55
      %v10545 = vpop.permute.xlu0 %10544
      %10546 = vrot.lane.b32.xlu0 %v10506, 55
      %v10547 = vpop.permute.xlu0 %10546
      %10548 = vrot.lane.b32.xlu0 %v10507, 55
      %v10549 = vpop.permute.xlu0 %10548
      %10550 = vrot.lane.b32.xlu0 %v10508, 55
      %v10551 = vpop.permute.xlu0 %10550
      %10552 = vrot.lane.b32.xlu0 %v10509, 55
      %v10553 = vpop.permute.xlu0 %10552
      %10554 = vrot.lane.b32.xlu0 %v10510, 55
      %v10555 = vpop.permute.xlu0 %10554
      %10556 = vrot.lane.b32.xlu0 %v10511, 55
      %v10557 = vpop.permute.xlu0 %10556
      %10558 = vrot.lane.b32.xlu0 %v10512, 55
      %v10559 = vpop.permute.xlu0 %10558
      %10560 = vrot.lane.b32.xlu0 %v10513, 55
      %v10561 = vpop.permute.xlu0 %10560
      %10562 = vrot.lane.b32.xlu0 %v10514, 55
      %v10563 = vpop.permute.xlu0 %10562
      %10564 = vrot.lane.b32.xlu0 %v10515, 55
      %v10565 = vpop.permute.xlu0 %10564
      %10566 = vrot.lane.b32.xlu0 %v10516, 55
      %v10567 = vpop.permute.xlu0 %10566
      %v10568 = vsel %vm1619, %v10535, %v10537
      %v10569 = vsel %vm1619, %v10537, %v10539
      %v10570 = vsel %vm1619, %v10539, %v10541
      %v10571 = vsel %vm1619, %v10541, %v10543
      %v10572 = vsel %vm1619, %v10543, %v10545
      %v10573 = vsel %vm1619, %v10545, %v10547
      %v10574 = vsel %vm1619, %v10547, %v10549
      %v10575 = vsel %vm1619, %v10549, %v10551
      %v10576 = vsel %vm1619, %v10553, %v10555
      %v10577 = vsel %vm1619, %v10555, %v10557
      %v10578 = vsel %vm1619, %v10557, %v10559
      %v10579 = vsel %vm1619, %v10559, %v10561
      %v10580 = vsel %vm1619, %v10561, %v10563
      %v10581 = vsel %vm1619, %v10563, %v10565
      %v10582 = vsel %vm1619, %v10565, %v10567
      %v10583 = vsel %vm1619, %v10567, %v10551
      %10600 = vst [vmem:[#allocation3 + $0xd00] sm:$0xff] %v10568
      %10601 = vst [vmem:[#allocation3 + $0xd08] sm:$0xff] %v10569
      %10602 = vst [vmem:[#allocation3 + $0xd10] sm:$0xff] %v10570
      %10603 = vst [vmem:[#allocation3 + $0xd18] sm:$0xff] %v10571
      %10604 = vst [vmem:[#allocation3 + $0xd20] sm:$0xff] %v10572
      %10605 = vst [vmem:[#allocation3 + $0xd28] sm:$0xff] %v10573
      %10606 = vst [vmem:[#allocation3 + $0xd30] sm:$0xff] %v10574
      %10607 = vst [vmem:[#allocation3 + $0xd38] sm:$0xff] %v10575
      %10608 = vst [vmem:[#allocation3 + $0xd40] sm:$0xff] %v10576
      %10609 = vst [vmem:[#allocation3 + $0xd48] sm:$0xff] %v10577
      %10610 = vst [vmem:[#allocation3 + $0xd50] sm:$0xff] %v10578
      %10611 = vst [vmem:[#allocation3 + $0xd58] sm:$0xff] %v10579
      %10612 = vst [vmem:[#allocation3 + $0xd60] sm:$0xff] %v10580
      %10613 = vst [vmem:[#allocation3 + $0xd68] sm:$0xff] %v10581
      %10614 = vst [vmem:[#allocation3 + $0xd70] sm:$0xff] %v10582
      %10615 = vst [vmem:[#allocation3 + $0xd78] sm:$0xff] %v10583
      %v10616 = vld [vmem:[%s5] sm:$0xff]
      %v10617 = vld [vmem:[%s5 + $0x8] sm:$0x3f]
      %v10618 = vld [vmem:[#allocation3] sm:$0xff]
      %v10619 = vld [vmem:[#allocation3 + $0x8] sm:$0xff]
      %v10620 = vld [vmem:[#allocation3 + $0x10] sm:$0xff]
      %v10621 = vld [vmem:[#allocation3 + $0x18] sm:$0xff]
      %v10622 = vld [vmem:[#allocation3 + $0x20] sm:$0xff]
      %v10623 = vld [vmem:[#allocation3 + $0x28] sm:$0xff]
      %v10624 = vld [vmem:[#allocation3 + $0x30] sm:$0xff]
      %v10625 = vld [vmem:[#allocation3 + $0x38] sm:$0xff]
      %v10626 = vld [vmem:[#allocation3 + $0x40] sm:$0xff]
      %v10627 = vld [vmem:[#allocation3 + $0x48] sm:$0xff]
      %v10628 = vld [vmem:[#allocation3 + $0x50] sm:$0xff]
      %v10629 = vld [vmem:[#allocation3 + $0x58] sm:$0xff]
      %v10630 = vld [vmem:[#allocation3 + $0x60] sm:$0xff]
      %v10631 = vld [vmem:[#allocation3 + $0x68] sm:$0xff]
      %v10632 = vld [vmem:[#allocation3 + $0x70] sm:$0xff]
      %v10633 = vld [vmem:[#allocation3 + $0x78] sm:$0xff]
      %v10634 = vld [vmem:[#allocation3 + $0x80] sm:$0xff]
      %v10635 = vld [vmem:[#allocation3 + $0x88] sm:$0xff]
      %v10636 = vld [vmem:[#allocation3 + $0x90] sm:$0xff]
      %v10637 = vld [vmem:[#allocation3 + $0x98] sm:$0xff]
      %v10638 = vld [vmem:[#allocation3 + $0xa0] sm:$0xff]
      %v10639 = vld [vmem:[#allocation3 + $0xa8] sm:$0xff]
      %v10640 = vld [vmem:[#allocation3 + $0xb0] sm:$0xff]
      %v10641 = vld [vmem:[#allocation3 + $0xb8] sm:$0xff]
      %v10642 = vld [vmem:[#allocation3 + $0xc0] sm:$0xff]
      %v10643 = vld [vmem:[#allocation3 + $0xc8] sm:$0xff]
      %v10644 = vld [vmem:[#allocation3 + $0xd0] sm:$0xff]
      %v10645 = vld [vmem:[#allocation3 + $0xd8] sm:$0xff]
      %v10646 = vld [vmem:[#allocation3 + $0xe0] sm:$0xff]
      %v10647 = vld [vmem:[#allocation3 + $0xe8] sm:$0xff]
      %v10648 = vld [vmem:[#allocation3 + $0xf0] sm:$0xff]
      %v10649 = vld [vmem:[#allocation3 + $0xf8] sm:$0xff]
      %v10650 = vld [vmem:[#allocation3 + $0x100] sm:$0xff]
      %v10651 = vld [vmem:[#allocation3 + $0x108] sm:$0xff]
      %v10652 = vld [vmem:[#allocation3 + $0x110] sm:$0xff]
      %v10653 = vld [vmem:[#allocation3 + $0x118] sm:$0xff]
      %v10654 = vld [vmem:[#allocation3 + $0x120] sm:$0xff]
      %v10655 = vld [vmem:[#allocation3 + $0x128] sm:$0xff]
      %v10656 = vld [vmem:[#allocation3 + $0x130] sm:$0xff]
      %v10657 = vld [vmem:[#allocation3 + $0x138] sm:$0xff]
      %v10658 = vld [vmem:[#allocation3 + $0x140] sm:$0xff]
      %v10659 = vld [vmem:[#allocation3 + $0x148] sm:$0xff]
      %v10660 = vld [vmem:[#allocation3 + $0x150] sm:$0xff]
      %v10661 = vld [vmem:[#allocation3 + $0x158] sm:$0xff]
      %v10662 = vld [vmem:[#allocation3 + $0x160] sm:$0xff]
      %v10663 = vld [vmem:[#allocation3 + $0x168] sm:$0xff]
      %v10664 = vld [vmem:[#allocation3 + $0x170] sm:$0xff]
      %v10665 = vld [vmem:[#allocation3 + $0x178] sm:$0xff]
      %v10666 = vld [vmem:[#allocation3 + $0x180] sm:$0xff]
      %v10667 = vld [vmem:[#allocation3 + $0x188] sm:$0xff]
      %v10668 = vld [vmem:[#allocation3 + $0x190] sm:$0xff]
      %v10669 = vld [vmem:[#allocation3 + $0x198] sm:$0xff]
      %v10670 = vld [vmem:[#allocation3 + $0x1a0] sm:$0xff]
      %v10671 = vld [vmem:[#allocation3 + $0x1a8] sm:$0xff]
      %v10672 = vld [vmem:[#allocation3 + $0x1b0] sm:$0xff]
      %v10673 = vld [vmem:[#allocation3 + $0x1b8] sm:$0xff]
      %v10674 = vld [vmem:[#allocation3 + $0x1c0] sm:$0xff]
      %v10675 = vld [vmem:[#allocation3 + $0x1c8] sm:$0xff]
      %v10676 = vld [vmem:[#allocation3 + $0x1d0] sm:$0xff]
      %v10677 = vld [vmem:[#allocation3 + $0x1d8] sm:$0xff]
      %v10678 = vld [vmem:[#allocation3 + $0x1e0] sm:$0xff]
      %v10679 = vld [vmem:[#allocation3 + $0x1e8] sm:$0xff]
      %v10680 = vld [vmem:[#allocation3 + $0x1f0] sm:$0xff]
      %v10681 = vld [vmem:[#allocation3 + $0x1f8] sm:$0xff]
      %v10682 = vld [vmem:[#allocation3 + $0x200] sm:$0xff]
      %v10683 = vld [vmem:[#allocation3 + $0x208] sm:$0xff]
      %v10684 = vld [vmem:[#allocation3 + $0x210] sm:$0xff]
      %v10685 = vld [vmem:[#allocation3 + $0x218] sm:$0xff]
      %v10686 = vld [vmem:[#allocation3 + $0x220] sm:$0xff]
      %v10687 = vld [vmem:[#allocation3 + $0x228] sm:$0xff]
      %v10688 = vld [vmem:[#allocation3 + $0x230] sm:$0xff]
      %v10689 = vld [vmem:[#allocation3 + $0x238] sm:$0xff]
      %v10690 = vld [vmem:[#allocation3 + $0x240] sm:$0xff]
      %v10691 = vld [vmem:[#allocation3 + $0x248] sm:$0xff]
      %v10692 = vld [vmem:[#allocation3 + $0x250] sm:$0xff]
      %v10693 = vld [vmem:[#allocation3 + $0x258] sm:$0xff]
      %v10694 = vld [vmem:[#allocation3 + $0x260] sm:$0xff]
      %v10695 = vld [vmem:[#allocation3 + $0x268] sm:$0xff]
      %v10696 = vld [vmem:[#allocation3 + $0x270] sm:$0xff]
      %v10697 = vld [vmem:[#allocation3 + $0x278] sm:$0xff]
      %v10698 = vld [vmem:[#allocation3 + $0x280] sm:$0xff]
      %v10699 = vld [vmem:[#allocation3 + $0x288] sm:$0xff]
      %v10700 = vld [vmem:[#allocation3 + $0x290] sm:$0xff]
      %v10701 = vld [vmem:[#allocation3 + $0x298] sm:$0xff]
      %v10702 = vld [vmem:[#allocation3 + $0x2a0] sm:$0xff]
      %v10703 = vld [vmem:[#allocation3 + $0x2a8] sm:$0xff]
      %v10704 = vld [vmem:[#allocation3 + $0x2b0] sm:$0xff]
      %v10705 = vld [vmem:[#allocation3 + $0x2b8] sm:$0xff]
      %v10706 = vld [vmem:[#allocation3 + $0x2c0] sm:$0xff]
      %v10707 = vld [vmem:[#allocation3 + $0x2c8] sm:$0xff]
      %v10708 = vld [vmem:[#allocation3 + $0x2d0] sm:$0xff]
      %v10709 = vld [vmem:[#allocation3 + $0x2d8] sm:$0xff]
      %v10710 = vld [vmem:[#allocation3 + $0x2e0] sm:$0xff]
      %v10711 = vld [vmem:[#allocation3 + $0x2e8] sm:$0xff]
      %v10712 = vld [vmem:[#allocation3 + $0x2f0] sm:$0xff]
      %v10713 = vld [vmem:[#allocation3 + $0x2f8] sm:$0xff]
      %v10714 = vld [vmem:[#allocation3 + $0x300] sm:$0xff]
      %v10715 = vld [vmem:[#allocation3 + $0x308] sm:$0xff]
      %v10716 = vld [vmem:[#allocation3 + $0x310] sm:$0xff]
      %v10717 = vld [vmem:[#allocation3 + $0x318] sm:$0xff]
      %v10718 = vld [vmem:[#allocation3 + $0x320] sm:$0xff]
      %v10719 = vld [vmem:[#allocation3 + $0x328] sm:$0xff]
      %v10720 = vld [vmem:[#allocation3 + $0x330] sm:$0xff]
      %v10721 = vld [vmem:[#allocation3 + $0x338] sm:$0xff]
      %v10722 = vld [vmem:[#allocation3 + $0x340] sm:$0xff]
      %v10723 = vld [vmem:[#allocation3 + $0x348] sm:$0xff]
      %v10724 = vld [vmem:[#allocation3 + $0x350] sm:$0xff]
      %v10725 = vld [vmem:[#allocation3 + $0x358] sm:$0xff]
      %v10726 = vld [vmem:[#allocation3 + $0x360] sm:$0xff]
      %v10727 = vld [vmem:[#allocation3 + $0x368] sm:$0xff]
      %v10728 = vld [vmem:[#allocation3 + $0x370] sm:$0xff]
      %v10729 = vld [vmem:[#allocation3 + $0x378] sm:$0xff]
      %v10730 = vld [vmem:[#allocation3 + $0x380] sm:$0xff]
      %v10731 = vld [vmem:[#allocation3 + $0x388] sm:$0xff]
      %v10732 = vld [vmem:[#allocation3 + $0x390] sm:$0xff]
      %v10733 = vld [vmem:[#allocation3 + $0x398] sm:$0xff]
      %v10734 = vld [vmem:[#allocation3 + $0x3a0] sm:$0xff]
      %v10735 = vld [vmem:[#allocation3 + $0x3a8] sm:$0xff]
      %v10736 = vld [vmem:[#allocation3 + $0x3b0] sm:$0xff]
      %v10737 = vld [vmem:[#allocation3 + $0x3b8] sm:$0xff]
      %v10738 = vld [vmem:[#allocation3 + $0x3c0] sm:$0xff]
      %v10739 = vld [vmem:[#allocation3 + $0x3c8] sm:$0xff]
      %v10740 = vld [vmem:[#allocation3 + $0x3d0] sm:$0xff]
      %v10741 = vld [vmem:[#allocation3 + $0x3d8] sm:$0xff]
      %v10742 = vld [vmem:[#allocation3 + $0x3e0] sm:$0xff]
      %v10743 = vld [vmem:[#allocation3 + $0x3e8] sm:$0xff]
      %v10744 = vld [vmem:[#allocation3 + $0x3f0] sm:$0xff]
      %v10745 = vld [vmem:[#allocation3 + $0x3f8] sm:$0xff]
      %v10746 = vld [vmem:[#allocation3 + $0x400] sm:$0xff]
      %v10747 = vld [vmem:[#allocation3 + $0x408] sm:$0xff]
      %v10748 = vld [vmem:[#allocation3 + $0x410] sm:$0xff]
      %v10749 = vld [vmem:[#allocation3 + $0x418] sm:$0xff]
      %v10750 = vld [vmem:[#allocation3 + $0x420] sm:$0xff]
      %v10751 = vld [vmem:[#allocation3 + $0x428] sm:$0xff]
      %v10752 = vld [vmem:[#allocation3 + $0x430] sm:$0xff]
      %v10753 = vld [vmem:[#allocation3 + $0x438] sm:$0xff]
      %v10754 = vld [vmem:[#allocation3 + $0x440] sm:$0xff]
      %v10755 = vld [vmem:[#allocation3 + $0x448] sm:$0xff]
      %v10756 = vld [vmem:[#allocation3 + $0x450] sm:$0xff]
      %v10757 = vld [vmem:[#allocation3 + $0x458] sm:$0xff]
      %v10758 = vld [vmem:[#allocation3 + $0x460] sm:$0xff]
      %v10759 = vld [vmem:[#allocation3 + $0x468] sm:$0xff]
      %v10760 = vld [vmem:[#allocation3 + $0x470] sm:$0xff]
      %v10761 = vld [vmem:[#allocation3 + $0x478] sm:$0xff]
      %v10762 = vld [vmem:[#allocation3 + $0x480] sm:$0xff]
      %v10763 = vld [vmem:[#allocation3 + $0x488] sm:$0xff]
      %v10764 = vld [vmem:[#allocation3 + $0x490] sm:$0xff]
      %v10765 = vld [vmem:[#allocation3 + $0x498] sm:$0xff]
      %v10766 = vld [vmem:[#allocation3 + $0x4a0] sm:$0xff]
      %v10767 = vld [vmem:[#allocation3 + $0x4a8] sm:$0xff]
      %v10768 = vld [vmem:[#allocation3 + $0x4b0] sm:$0xff]
      %v10769 = vld [vmem:[#allocation3 + $0x4b8] sm:$0xff]
      %v10770 = vld [vmem:[#allocation3 + $0x4c0] sm:$0xff]
      %v10771 = vld [vmem:[#allocation3 + $0x4c8] sm:$0xff]
      %v10772 = vld [vmem:[#allocation3 + $0x4d0] sm:$0xff]
      %v10773 = vld [vmem:[#allocation3 + $0x4d8] sm:$0xff]
      %v10774 = vld [vmem:[#allocation3 + $0x4e0] sm:$0xff]
      %v10775 = vld [vmem:[#allocation3 + $0x4e8] sm:$0xff]
      %v10776 = vld [vmem:[#allocation3 + $0x4f0] sm:$0xff]
      %v10777 = vld [vmem:[#allocation3 + $0x4f8] sm:$0xff]
      %v10778 = vld [vmem:[#allocation3 + $0x500] sm:$0xff]
      %v10779 = vld [vmem:[#allocation3 + $0x508] sm:$0xff]
      %v10780 = vld [vmem:[#allocation3 + $0x510] sm:$0xff]
      %v10781 = vld [vmem:[#allocation3 + $0x518] sm:$0xff]
      %v10782 = vld [vmem:[#allocation3 + $0x520] sm:$0xff]
      %v10783 = vld [vmem:[#allocation3 + $0x528] sm:$0xff]
      %v10784 = vld [vmem:[#allocation3 + $0x530] sm:$0xff]
      %v10785 = vld [vmem:[#allocation3 + $0x538] sm:$0xff]
      %v10786 = vld [vmem:[#allocation3 + $0x540] sm:$0xff]
      %v10787 = vld [vmem:[#allocation3 + $0x548] sm:$0xff]
      %v10788 = vld [vmem:[#allocation3 + $0x550] sm:$0xff]
      %v10789 = vld [vmem:[#allocation3 + $0x558] sm:$0xff]
      %v10790 = vld [vmem:[#allocation3 + $0x560] sm:$0xff]
      %v10791 = vld [vmem:[#allocation3 + $0x568] sm:$0xff]
      %v10792 = vld [vmem:[#allocation3 + $0x570] sm:$0xff]
      %v10793 = vld [vmem:[#allocation3 + $0x578] sm:$0xff]
      %v10794 = vld [vmem:[#allocation3 + $0x580] sm:$0xff]
      %v10795 = vld [vmem:[#allocation3 + $0x588] sm:$0xff]
      %v10796 = vld [vmem:[#allocation3 + $0x590] sm:$0xff]
      %v10797 = vld [vmem:[#allocation3 + $0x598] sm:$0xff]
      %v10798 = vld [vmem:[#allocation3 + $0x5a0] sm:$0xff]
      %v10799 = vld [vmem:[#allocation3 + $0x5a8] sm:$0xff]
      %v10800 = vld [vmem:[#allocation3 + $0x5b0] sm:$0xff]
      %v10801 = vld [vmem:[#allocation3 + $0x5b8] sm:$0xff]
      %v10802 = vld [vmem:[#allocation3 + $0x5c0] sm:$0xff]
      %v10803 = vld [vmem:[#allocation3 + $0x5c8] sm:$0xff]
      %v10804 = vld [vmem:[#allocation3 + $0x5d0] sm:$0xff]
      %v10805 = vld [vmem:[#allocation3 + $0x5d8] sm:$0xff]
      %v10806 = vld [vmem:[#allocation3 + $0x5e0] sm:$0xff]
      %v10807 = vld [vmem:[#allocation3 + $0x5e8] sm:$0xff]
      %v10808 = vld [vmem:[#allocation3 + $0x5f0] sm:$0xff]
      %v10809 = vld [vmem:[#allocation3 + $0x5f8] sm:$0xff]
      %v10810 = vld [vmem:[#allocation3 + $0x600] sm:$0xff]
      %v10811 = vld [vmem:[#allocation3 + $0x608] sm:$0xff]
      %v10812 = vld [vmem:[#allocation3 + $0x610] sm:$0xff]
      %v10813 = vld [vmem:[#allocation3 + $0x618] sm:$0xff]
      %v10814 = vld [vmem:[#allocation3 + $0x620] sm:$0xff]
      %v10815 = vld [vmem:[#allocation3 + $0x628] sm:$0xff]
      %v10816 = vld [vmem:[#allocation3 + $0x630] sm:$0xff]
      %v10817 = vld [vmem:[#allocation3 + $0x638] sm:$0xff]
      %v10818 = vld [vmem:[#allocation3 + $0x640] sm:$0xff]
      %v10819 = vld [vmem:[#allocation3 + $0x648] sm:$0xff]
      %v10820 = vld [vmem:[#allocation3 + $0x650] sm:$0xff]
      %v10821 = vld [vmem:[#allocation3 + $0x658] sm:$0xff]
      %v10822 = vld [vmem:[#allocation3 + $0x660] sm:$0xff]
      %v10823 = vld [vmem:[#allocation3 + $0x668] sm:$0xff]
      %v10824 = vld [vmem:[#allocation3 + $0x670] sm:$0xff]
      %v10825 = vld [vmem:[#allocation3 + $0x678] sm:$0xff]
      %v10826 = vld [vmem:[#allocation3 + $0x680] sm:$0xff]
      %v10827 = vld [vmem:[#allocation3 + $0x688] sm:$0xff]
      %v10828 = vld [vmem:[#allocation3 + $0x690] sm:$0xff]
      %v10829 = vld [vmem:[#allocation3 + $0x698] sm:$0xff]
      %v10830 = vld [vmem:[#allocation3 + $0x6a0] sm:$0xff]
      %v10831 = vld [vmem:[#allocation3 + $0x6a8] sm:$0xff]
      %v10832 = vld [vmem:[#allocation3 + $0x6b0] sm:$0xff]
      %v10833 = vld [vmem:[#allocation3 + $0x6b8] sm:$0xff]
      %v10834 = vld [vmem:[#allocation3 + $0x6c0] sm:$0xff]
      %v10835 = vld [vmem:[#allocation3 + $0x6c8] sm:$0xff]
      %v10836 = vld [vmem:[#allocation3 + $0x6d0] sm:$0xff]
      %v10837 = vld [vmem:[#allocation3 + $0x6d8] sm:$0xff]
      %v10838 = vld [vmem:[#allocation3 + $0x6e0] sm:$0xff]
      %v10839 = vld [vmem:[#allocation3 + $0x6e8] sm:$0xff]
      %v10840 = vld [vmem:[#allocation3 + $0x6f0] sm:$0xff]
      %v10841 = vld [vmem:[#allocation3 + $0x6f8] sm:$0xff]
      %v10842 = vld [vmem:[#allocation3 + $0x700] sm:$0xff]
      %v10843 = vld [vmem:[#allocation3 + $0x708] sm:$0xff]
      %v10844 = vld [vmem:[#allocation3 + $0x710] sm:$0xff]
      %v10845 = vld [vmem:[#allocation3 + $0x718] sm:$0xff]
      %v10846 = vld [vmem:[#allocation3 + $0x720] sm:$0xff]
      %v10847 = vld [vmem:[#allocation3 + $0x728] sm:$0xff]
      %v10848 = vld [vmem:[#allocation3 + $0x730] sm:$0xff]
      %v10849 = vld [vmem:[#allocation3 + $0x738] sm:$0xff]
      %v10850 = vld [vmem:[#allocation3 + $0x740] sm:$0xff]
      %v10851 = vld [vmem:[#allocation3 + $0x748] sm:$0xff]
      %v10852 = vld [vmem:[#allocation3 + $0x750] sm:$0xff]
      %v10853 = vld [vmem:[#allocation3 + $0x758] sm:$0xff]
      %v10854 = vld [vmem:[#allocation3 + $0x760] sm:$0xff]
      %v10855 = vld [vmem:[#allocation3 + $0x768] sm:$0xff]
      %v10856 = vld [vmem:[#allocation3 + $0x770] sm:$0xff]
      %v10857 = vld [vmem:[#allocation3 + $0x778] sm:$0xff]
      %v10858 = vld [vmem:[#allocation3 + $0x780] sm:$0xff]
      %v10859 = vld [vmem:[#allocation3 + $0x788] sm:$0xff]
      %v10860 = vld [vmem:[#allocation3 + $0x790] sm:$0xff]
      %v10861 = vld [vmem:[#allocation3 + $0x798] sm:$0xff]
      %v10862 = vld [vmem:[#allocation3 + $0x7a0] sm:$0xff]
      %v10863 = vld [vmem:[#allocation3 + $0x7a8] sm:$0xff]
      %v10864 = vld [vmem:[#allocation3 + $0x7b0] sm:$0xff]
      %v10865 = vld [vmem:[#allocation3 + $0x7b8] sm:$0xff]
      %v10866 = vld [vmem:[#allocation3 + $0x7c0] sm:$0xff]
      %v10867 = vld [vmem:[#allocation3 + $0x7c8] sm:$0xff]
      %v10868 = vld [vmem:[#allocation3 + $0x7d0] sm:$0xff]
      %v10869 = vld [vmem:[#allocation3 + $0x7d8] sm:$0xff]
      %v10870 = vld [vmem:[#allocation3 + $0x7e0] sm:$0xff]
      %v10871 = vld [vmem:[#allocation3 + $0x7e8] sm:$0xff]
      %v10872 = vld [vmem:[#allocation3 + $0x7f0] sm:$0xff]
      %v10873 = vld [vmem:[#allocation3 + $0x7f8] sm:$0xff]
      %v10874 = vld [vmem:[#allocation3 + $0x800] sm:$0xff]
      %v10875 = vld [vmem:[#allocation3 + $0x808] sm:$0xff]
      %v10876 = vld [vmem:[#allocation3 + $0x810] sm:$0xff]
      %v10877 = vld [vmem:[#allocation3 + $0x818] sm:$0xff]
      %v10878 = vld [vmem:[#allocation3 + $0x820] sm:$0xff]
      %v10879 = vld [vmem:[#allocation3 + $0x828] sm:$0xff]
      %v10880 = vld [vmem:[#allocation3 + $0x830] sm:$0xff]
      %v10881 = vld [vmem:[#allocation3 + $0x838] sm:$0xff]
      %v10882 = vld [vmem:[#allocation3 + $0x840] sm:$0xff]
      %v10883 = vld [vmem:[#allocation3 + $0x848] sm:$0xff]
      %v10884 = vld [vmem:[#allocation3 + $0x850] sm:$0xff]
      %v10885 = vld [vmem:[#allocation3 + $0x858] sm:$0xff]
      %v10886 = vld [vmem:[#allocation3 + $0x860] sm:$0xff]
      %v10887 = vld [vmem:[#allocation3 + $0x868] sm:$0xff]
      %v10888 = vld [vmem:[#allocation3 + $0x870] sm:$0xff]
      %v10889 = vld [vmem:[#allocation3 + $0x878] sm:$0xff]
      %v10890 = vld [vmem:[#allocation3 + $0x880] sm:$0xff]
      %v10891 = vld [vmem:[#allocation3 + $0x888] sm:$0xff]
      %v10892 = vld [vmem:[#allocation3 + $0x890] sm:$0xff]
      %v10893 = vld [vmem:[#allocation3 + $0x898] sm:$0xff]
      %v10894 = vld [vmem:[#allocation3 + $0x8a0] sm:$0xff]
      %v10895 = vld [vmem:[#allocation3 + $0x8a8] sm:$0xff]
      %v10896 = vld [vmem:[#allocation3 + $0x8b0] sm:$0xff]
      %v10897 = vld [vmem:[#allocation3 + $0x8b8] sm:$0xff]
      %v10898 = vld [vmem:[#allocation3 + $0x8c0] sm:$0xff]
      %v10899 = vld [vmem:[#allocation3 + $0x8c8] sm:$0xff]
      %v10900 = vld [vmem:[#allocation3 + $0x8d0] sm:$0xff]
      %v10901 = vld [vmem:[#allocation3 + $0x8d8] sm:$0xff]
      %v10902 = vld [vmem:[#allocation3 + $0x8e0] sm:$0xff]
      %v10903 = vld [vmem:[#allocation3 + $0x8e8] sm:$0xff]
      %v10904 = vld [vmem:[#allocation3 + $0x8f0] sm:$0xff]
      %v10905 = vld [vmem:[#allocation3 + $0x8f8] sm:$0xff]
      %v10906 = vld [vmem:[#allocation3 + $0x900] sm:$0xff]
      %v10907 = vld [vmem:[#allocation3 + $0x908] sm:$0xff]
      %v10908 = vld [vmem:[#allocation3 + $0x910] sm:$0xff]
      %v10909 = vld [vmem:[#allocation3 + $0x918] sm:$0xff]
      %v10910 = vld [vmem:[#allocation3 + $0x920] sm:$0xff]
      %v10911 = vld [vmem:[#allocation3 + $0x928] sm:$0xff]
      %v10912 = vld [vmem:[#allocation3 + $0x930] sm:$0xff]
      %v10913 = vld [vmem:[#allocation3 + $0x938] sm:$0xff]
      %v10914 = vld [vmem:[#allocation3 + $0x940] sm:$0xff]
      %v10915 = vld [vmem:[#allocation3 + $0x948] sm:$0xff]
      %v10916 = vld [vmem:[#allocation3 + $0x950] sm:$0xff]
      %v10917 = vld [vmem:[#allocation3 + $0x958] sm:$0xff]
      %v10918 = vld [vmem:[#allocation3 + $0x960] sm:$0xff]
      %v10919 = vld [vmem:[#allocation3 + $0x968] sm:$0xff]
      %v10920 = vld [vmem:[#allocation3 + $0x970] sm:$0xff]
      %v10921 = vld [vmem:[#allocation3 + $0x978] sm:$0xff]
      %v10922 = vld [vmem:[#allocation3 + $0x980] sm:$0xff]
      %v10923 = vld [vmem:[#allocation3 + $0x988] sm:$0xff]
      %v10924 = vld [vmem:[#allocation3 + $0x990] sm:$0xff]
      %v10925 = vld [vmem:[#allocation3 + $0x998] sm:$0xff]
      %v10926 = vld [vmem:[#allocation3 + $0x9a0] sm:$0xff]
      %v10927 = vld [vmem:[#allocation3 + $0x9a8] sm:$0xff]
      %v10928 = vld [vmem:[#allocation3 + $0x9b0] sm:$0xff]
      %v10929 = vld [vmem:[#allocation3 + $0x9b8] sm:$0xff]
      %v10930 = vld [vmem:[#allocation3 + $0x9c0] sm:$0xff]
      %v10931 = vld [vmem:[#allocation3 + $0x9c8] sm:$0xff]
      %v10932 = vld [vmem:[#allocation3 + $0x9d0] sm:$0xff]
      %v10933 = vld [vmem:[#allocation3 + $0x9d8] sm:$0xff]
      %v10934 = vld [vmem:[#allocation3 + $0x9e0] sm:$0xff]
      %v10935 = vld [vmem:[#allocation3 + $0x9e8] sm:$0xff]
      %v10936 = vld [vmem:[#allocation3 + $0x9f0] sm:$0xff]
      %v10937 = vld [vmem:[#allocation3 + $0x9f8] sm:$0xff]
      %v10938 = vld [vmem:[#allocation3 + $0xa00] sm:$0xff]
      %v10939 = vld [vmem:[#allocation3 + $0xa08] sm:$0xff]
      %v10940 = vld [vmem:[#allocation3 + $0xa10] sm:$0xff]
      %v10941 = vld [vmem:[#allocation3 + $0xa18] sm:$0xff]
      %v10942 = vld [vmem:[#allocation3 + $0xa20] sm:$0xff]
      %v10943 = vld [vmem:[#allocation3 + $0xa28] sm:$0xff]
      %v10944 = vld [vmem:[#allocation3 + $0xa30] sm:$0xff]
      %v10945 = vld [vmem:[#allocation3 + $0xa38] sm:$0xff]
      %v10946 = vld [vmem:[#allocation3 + $0xa40] sm:$0xff]
      %v10947 = vld [vmem:[#allocation3 + $0xa48] sm:$0xff]
      %v10948 = vld [vmem:[#allocation3 + $0xa50] sm:$0xff]
      %v10949 = vld [vmem:[#allocation3 + $0xa58] sm:$0xff]
      %v10950 = vld [vmem:[#allocation3 + $0xa60] sm:$0xff]
      %v10951 = vld [vmem:[#allocation3 + $0xa68] sm:$0xff]
      %v10952 = vld [vmem:[#allocation3 + $0xa70] sm:$0xff]
      %v10953 = vld [vmem:[#allocation3 + $0xa78] sm:$0xff]
      %v10954 = vld [vmem:[#allocation3 + $0xa80] sm:$0xff]
      %v10955 = vld [vmem:[#allocation3 + $0xa88] sm:$0xff]
      %v10956 = vld [vmem:[#allocation3 + $0xa90] sm:$0xff]
      %v10957 = vld [vmem:[#allocation3 + $0xa98] sm:$0xff]
      %v10958 = vld [vmem:[#allocation3 + $0xaa0] sm:$0xff]
      %v10959 = vld [vmem:[#allocation3 + $0xaa8] sm:$0xff]
      %v10960 = vld [vmem:[#allocation3 + $0xab0] sm:$0xff]
      %v10961 = vld [vmem:[#allocation3 + $0xab8] sm:$0xff]
      %v10962 = vld [vmem:[#allocation3 + $0xac0] sm:$0xff]
      %v10963 = vld [vmem:[#allocation3 + $0xac8] sm:$0xff]
      %v10964 = vld [vmem:[#allocation3 + $0xad0] sm:$0xff]
      %v10965 = vld [vmem:[#allocation3 + $0xad8] sm:$0xff]
      %v10966 = vld [vmem:[#allocation3 + $0xae0] sm:$0xff]
      %v10967 = vld [vmem:[#allocation3 + $0xae8] sm:$0xff]
      %v10968 = vld [vmem:[#allocation3 + $0xaf0] sm:$0xff]
      %v10969 = vld [vmem:[#allocation3 + $0xaf8] sm:$0xff]
      %v10970 = vld [vmem:[#allocation3 + $0xb00] sm:$0xff]
      %v10971 = vld [vmem:[#allocation3 + $0xb08] sm:$0xff]
      %v10972 = vld [vmem:[#allocation3 + $0xb10] sm:$0xff]
      %v10973 = vld [vmem:[#allocation3 + $0xb18] sm:$0xff]
      %v10974 = vld [vmem:[#allocation3 + $0xb20] sm:$0xff]
      %v10975 = vld [vmem:[#allocation3 + $0xb28] sm:$0xff]
      %v10976 = vld [vmem:[#allocation3 + $0xb30] sm:$0xff]
      %v10977 = vld [vmem:[#allocation3 + $0xb38] sm:$0xff]
      %v10978 = vld [vmem:[#allocation3 + $0xb40] sm:$0xff]
      %v10979 = vld [vmem:[#allocation3 + $0xb48] sm:$0xff]
      %v10980 = vld [vmem:[#allocation3 + $0xb50] sm:$0xff]
      %v10981 = vld [vmem:[#allocation3 + $0xb58] sm:$0xff]
      %v10982 = vld [vmem:[#allocation3 + $0xb60] sm:$0xff]
      %v10983 = vld [vmem:[#allocation3 + $0xb68] sm:$0xff]
      %v10984 = vld [vmem:[#allocation3 + $0xb70] sm:$0xff]
      %v10985 = vld [vmem:[#allocation3 + $0xb78] sm:$0xff]
      %v10986 = vld [vmem:[#allocation3 + $0xb80] sm:$0xff]
      %v10987 = vld [vmem:[#allocation3 + $0xb88] sm:$0xff]
      %v10988 = vld [vmem:[#allocation3 + $0xb90] sm:$0xff]
      %v10989 = vld [vmem:[#allocation3 + $0xb98] sm:$0xff]
      %v10990 = vld [vmem:[#allocation3 + $0xba0] sm:$0xff]
      %v10991 = vld [vmem:[#allocation3 + $0xba8] sm:$0xff]
      %v10992 = vld [vmem:[#allocation3 + $0xbb0] sm:$0xff]
      %v10993 = vld [vmem:[#allocation3 + $0xbb8] sm:$0xff]
      %v10994 = vld [vmem:[#allocation3 + $0xbc0] sm:$0xff]
      %v10995 = vld [vmem:[#allocation3 + $0xbc8] sm:$0xff]
      %v10996 = vld [vmem:[#allocation3 + $0xbd0] sm:$0xff]
      %v10997 = vld [vmem:[#allocation3 + $0xbd8] sm:$0xff]
      %v10998 = vld [vmem:[#allocation3 + $0xbe0] sm:$0xff]
      %v10999 = vld [vmem:[#allocation3 + $0xbe8] sm:$0xff]
      %v11000 = vld [vmem:[#allocation3 + $0xbf0] sm:$0xff]
      %v11001 = vld [vmem:[#allocation3 + $0xbf8] sm:$0xff]
      %v11002 = vld [vmem:[#allocation3 + $0xc00] sm:$0xff]
      %v11003 = vld [vmem:[#allocation3 + $0xc08] sm:$0xff]
      %v11004 = vld [vmem:[#allocation3 + $0xc10] sm:$0xff]
      %v11005 = vld [vmem:[#allocation3 + $0xc18] sm:$0xff]
      %v11006 = vld [vmem:[#allocation3 + $0xc20] sm:$0xff]
      %v11007 = vld [vmem:[#allocation3 + $0xc28] sm:$0xff]
      %v11008 = vld [vmem:[#allocation3 + $0xc30] sm:$0xff]
      %v11009 = vld [vmem:[#allocation3 + $0xc38] sm:$0xff]
      %v11010 = vld [vmem:[#allocation3 + $0xc40] sm:$0xff]
      %v11011 = vld [vmem:[#allocation3 + $0xc48] sm:$0xff]
      %v11012 = vld [vmem:[#allocation3 + $0xc50] sm:$0xff]
      %v11013 = vld [vmem:[#allocation3 + $0xc58] sm:$0xff]
      %v11014 = vld [vmem:[#allocation3 + $0xc60] sm:$0xff]
      %v11015 = vld [vmem:[#allocation3 + $0xc68] sm:$0xff]
      %v11016 = vld [vmem:[#allocation3 + $0xc70] sm:$0xff]
      %v11017 = vld [vmem:[#allocation3 + $0xc78] sm:$0xff]
      %v11018 = vld [vmem:[#allocation3 + $0xc80] sm:$0xff]
      %v11019 = vld [vmem:[#allocation3 + $0xc88] sm:$0xff]
      %v11020 = vld [vmem:[#allocation3 + $0xc90] sm:$0xff]
      %v11021 = vld [vmem:[#allocation3 + $0xc98] sm:$0xff]
      %v11022 = vld [vmem:[#allocation3 + $0xca0] sm:$0xff]
      %v11023 = vld [vmem:[#allocation3 + $0xca8] sm:$0xff]
      %v11024 = vld [vmem:[#allocation3 + $0xcb0] sm:$0xff]
      %v11025 = vld [vmem:[#allocation3 + $0xcb8] sm:$0xff]
      %v11026 = vld [vmem:[#allocation3 + $0xcc0] sm:$0xff]
      %v11027 = vld [vmem:[#allocation3 + $0xcc8] sm:$0xff]
      %v11028 = vld [vmem:[#allocation3 + $0xcd0] sm:$0xff]
      %v11029 = vld [vmem:[#allocation3 + $0xcd8] sm:$0xff]
      %v11030 = vld [vmem:[#allocation3 + $0xce0] sm:$0xff]
      %v11031 = vld [vmem:[#allocation3 + $0xce8] sm:$0xff]
      %v11032 = vld [vmem:[#allocation3 + $0xcf0] sm:$0xff]
      %v11033 = vld [vmem:[#allocation3 + $0xcf8] sm:$0xff]
      %v11034 = vld [vmem:[#allocation3 + $0xd00] sm:$0xff]
      %v11035 = vld [vmem:[#allocation3 + $0xd08] sm:$0xff]
      %v11036 = vld [vmem:[#allocation3 + $0xd10] sm:$0xff]
      %v11037 = vld [vmem:[#allocation3 + $0xd18] sm:$0xff]
      %v11038 = vld [vmem:[#allocation3 + $0xd20] sm:$0xff]
      %v11039 = vld [vmem:[#allocation3 + $0xd28] sm:$0xff]
      %v11040 = vld [vmem:[#allocation3 + $0xd30] sm:$0xff]
      %v11041 = vld [vmem:[#allocation3 + $0xd38] sm:$0xff]
      %v11042 = vld [vmem:[#allocation3 + $0xd40] sm:$0xff]
      %v11043 = vld [vmem:[#allocation3 + $0xd48] sm:$0xff]
      %v11044 = vld [vmem:[#allocation3 + $0xd50] sm:$0xff]
      %v11045 = vld [vmem:[#allocation3 + $0xd58] sm:$0xff]
      %v11046 = vld [vmem:[#allocation3 + $0xd60] sm:$0xff]
      %v11047 = vld [vmem:[#allocation3 + $0xd68] sm:$0xff]
      %v11048 = vld [vmem:[#allocation3 + $0xd70] sm:$0xff]
      %v11049 = vld [vmem:[#allocation3 + $0xd78] sm:$0xff]
      %v11050 = vld [vmem:[%s6] sm:$0xf]
      %11052 = vset.pattern.permute.xlu0 0
      %11053 = vperm.xlu0 %11052, %v11050
      %v11054 = vpop.permute.xlu0 %11053
      %v11058 = vcombine.high %v10616, %v10616
      %v11060 = vunpack.c.l.s4 1983009808
      %v11061 = vunpack.c.0.s8 %v11060
      %v11062 = vlaneseq
      %v11063 = vshrl.u32 %v11062, 7
      %v11064 = vsub.s32 %v11061, %v11063
      %v11065 = vrot.slane %v10616, %v11064
      %v11067 = vunpack.c.l.s4 1983009808
      %v11068 = vunpack.c.0.s8 %v11067
      %v11069 = vlaneseq
      %v11070 = vshrl.u32 %v11069, 7
      %v11071 = vsub.s32 %v11068, %v11070
      %v11072 = vrot.slane %v11058, %v11071
      %v11073 = vcombine.high %v11065, %v11065
      %v11074 = vcombine.high %v11072, %v11072
      %v11075 = vcombine.high %v10617, %v10617
      %v11077 = vunpack.c.l.s4 1983009808
      %v11078 = vunpack.c.0.s8 %v11077
      %v11079 = vlaneseq
      %v11080 = vshrl.u32 %v11079, 7
      %v11081 = vsub.s32 %v11078, %v11080
      %v11082 = vrot.slane %v10617, %v11081
      %v11084 = vunpack.c.l.s4 1983009808
      %v11085 = vunpack.c.0.s8 %v11084
      %v11086 = vlaneseq
      %v11087 = vshrl.u32 %v11086, 7
      %v11088 = vsub.s32 %v11085, %v11087
      %v11089 = vrot.slane %v11075, %v11088
      %v11090 = vcombine.high %v11082, %v11082
      %vm11097 = vcmask 785408
      %v11099 = vsel %vm11097, %v11089, 0
      %11101 = vmatprep.subr.bf16.mxu0 %v10619
      %11102 = vmatpush1.bf16.msra.mxu0 %v10618
      %11103 = vmatprep.subr.bf16.mxu0 %v10627
      %11104 = vmatpush1.bf16.msra.mxu0 %v10626
      %11105 = vmatprep.subr.bf16.mxu0 %v10635
      %11106 = vmatpush1.bf16.msra.mxu0 %v10634
      %11107 = vmatprep.subr.bf16.mxu0 %v10643
      %11108 = vmatpush1.bf16.msra.mxu0 %v10642
      %11109 = vmatprep.subr.bf16.mxu0 %v10651
      %11110 = vmatpush1.bf16.msra.mxu0 %v10650
      %11111 = vmatprep.subr.bf16.mxu0 %v10659
      %11112 = vmatpush1.bf16.msra.mxu0 %v10658
      %11113 = vmatprep.subr.bf16.mxu0 %v10667
      %11114 = vmatpush1.bf16.msra.mxu0 %v10666
      %11115 = vmatprep.subr.bf16.mxu0 %v10675
      %11116 = vmatpush1.bf16.msra.mxu0 %v10674
      %11117 = vmatprep.subr.bf16.mxu0 %v10683
      %11118 = vmatpush1.bf16.msra.mxu0 %v10682
      %11119 = vmatprep.subr.bf16.mxu0 %v10691
      %11120 = vmatpush1.bf16.msra.mxu0 %v10690
      %11121 = vmatprep.subr.bf16.mxu0 %v10699
      %11122 = vmatpush1.bf16.msra.mxu0 %v10698
      %11123 = vmatprep.subr.bf16.mxu0 %v10707
      %11124 = vmatpush1.bf16.msra.mxu0 %v10706
      %11125 = vmatprep.subr.bf16.mxu0 %v10715
      %11126 = vmatpush1.bf16.msra.mxu0 %v10714
      %11127 = vmatprep.subr.bf16.mxu0 %v10723
      %11128 = vmatpush1.bf16.msra.mxu0 %v10722
      %11129 = vmatprep.subr.bf16.mxu0 %v10731
      %11130 = vmatpush1.bf16.msra.mxu0 %v10730
      %11131 = vmatprep.subr.bf16.mxu0 %v10739
      %11132 = vmatpush1.bf16.msra.mxu0 %v10738
      %11133 = vmatprep.mubr.bf16.mxu0 %v11073
      %11134 = vmatmul.mubr.bf16.gmra.mrb[0].mxu0 %v11065
      %v11135 = vpop.f32.mrb[0].mxu0
      %v11136 = vadd.f32 %v11054, %v11135
      %v11137 = vpop.f32.mrb[0].mxu0
      %v11138 = vadd.f32 %v11054, %v11137
      %v11139 = vpop.f32.mrb[0].mxu0
      %v11140 = vpop.f32.mrb[0].mxu0
      %11141 = vdwg.mxu0
      %11142 = vmatprep.subr.bf16.mxu0 %v10747
      %11143 = vmatpush1.bf16.msra.mxu0 %v10746
      %11144 = vmatprep.subr.bf16.mxu0 %v10755
      %11145 = vmatpush1.bf16.msra.mxu0 %v10754
      %11146 = vmatprep.subr.bf16.mxu0 %v10763
      %11147 = vmatpush1.bf16.msra.mxu0 %v10762
      %11148 = vmatprep.subr.bf16.mxu0 %v10771
      %11149 = vmatpush1.bf16.msra.mxu0 %v10770
      %11150 = vmatprep.subr.bf16.mxu0 %v10779
      %11151 = vmatpush1.bf16.msra.mxu0 %v10778
      %11152 = vmatprep.subr.bf16.mxu0 %v10787
      %11153 = vmatpush1.bf16.msra.mxu0 %v10786
      %11154 = vmatprep.subr.bf16.mxu0 %v10795
      %11155 = vmatpush1.bf16.msra.mxu0 %v10794
      %11156 = vmatprep.subr.bf16.mxu0 %v10803
      %11157 = vmatpush1.bf16.msra.mxu0 %v10802
      %11158 = vmatprep.subr.bf16.mxu0 %v10811
      %11159 = vmatpush1.bf16.msra.mxu0 %v10810
      %11160 = vmatprep.subr.bf16.mxu0 %v10819
      %11161 = vmatpush1.bf16.msra.mxu0 %v10818
      %11162 = vmatprep.subr.bf16.mxu0 %v10827
      %11163 = vmatpush1.bf16.msra.mxu0 %v10826
      %11164 = vmatprep.subr.bf16.mxu0 %v10835
      %11165 = vmatpush1.bf16.msra.mxu0 %v10834
      %11166 = vmatprep.subr.bf16.mxu0 %v10843
      %11167 = vmatpush1.bf16.msra.mxu0 %v10842
      %11168 = vmatprep.subr.bf16.mxu0 %v10851
      %11169 = vmatpush1.bf16.msra.mxu0 %v10850
      %11170 = vmatprep.subr.bf16.mxu0 %v10859
      %11171 = vmatpush1.bf16.msra.mxu0 %v10858
      %11172 = vmatprep.subr.bf16.mxu0 %v10867
      %11173 = vmatpush1.bf16.msra.mxu0 %v10866
      %11174 = vmatprep.mubr.bf16.mxu0 %v11074
      %11175 = vmatmul.mubr.bf16.gmra.mrb[0].mxu0 %v11072
      %v11176 = vpop.f32.mrb[0].mxu0
      %v11177 = vadd.f32 %v11136, %v11176
      %v11178 = vpop.f32.mrb[0].mxu0
      %v11179 = vadd.f32 %v11138, %v11178
      %v11180 = vpop.f32.mrb[0].mxu0
      %v11181 = vpop.f32.mrb[0].mxu0
      %11182 = vdwg.mxu0
      %11183 = vmatprep.subr.bf16.mxu0 %v10875
      %11184 = vmatpush1.bf16.msra.mxu0 %v10874
      %11185 = vmatprep.subr.bf16.mxu0 %v10883
      %11186 = vmatpush1.bf16.msra.mxu0 %v10882
      %11187 = vmatprep.subr.bf16.mxu0 %v10891
      %11188 = vmatpush1.bf16.msra.mxu0 %v10890
      %11189 = vmatprep.subr.bf16.mxu0 %v10899
      %11190 = vmatpush1.bf16.msra.mxu0 %v10898
      %11191 = vmatprep.subr.bf16.mxu0 %v10907
      %11192 = vmatpush1.bf16.msra.mxu0 %v10906
      %11193 = vmatprep.subr.bf16.mxu0 %v10915
      %11194 = vmatpush1.bf16.msra.mxu0 %v10914
      %11195 = vmatprep.subr.bf16.mxu0 %v10923
      %11196 = vmatpush1.bf16.msra.mxu0 %v10922
      %11197 = vmatprep.subr.bf16.mxu0 %v10931
      %11198 = vmatpush1.bf16.msra.mxu0 %v10930
      %11199 = vmatprep.subr.bf16.mxu0 %v10939
      %11200 = vmatpush1.bf16.msra.mxu0 %v10938
      %11201 = vmatprep.subr.bf16.mxu0 %v10947
      %11202 = vmatpush1.bf16.msra.mxu0 %v10946
      %11203 = vmatprep.subr.bf16.mxu0 %v10955
      %11204 = vmatpush1.bf16.msra.mxu0 %v10954
      %11205 = vmatprep.subr.bf16.mxu0 %v10963
      %11206 = vmatpush1.bf16.msra.mxu0 %v10962
      %11207 = vmatprep.subr.bf16.mxu0 %v10971
      %11208 = vmatpush1.bf16.msra.mxu0 %v10970
      %11209 = vmatprep.subr.bf16.mxu0 %v10979
      %11210 = vmatpush1.bf16.msra.mxu0 %v10978
      %11211 = vmatprep.subr.bf16.mxu0 %v10987
      %11212 = vmatpush1.bf16.msra.mxu0 %v10986
      %11213 = vmatprep.subr.bf16.mxu0 %v10995
      %11214 = vmatpush1.bf16.msra.mxu0 %v10994
      %11215 = vmatprep.mubr.bf16.mxu0 %v11090
      %11216 = vmatmul.mubr.bf16.gmra.mrb[0].mxu0 %v11082
      %v11217 = vpop.f32.mrb[0].mxu0
      %v11218 = vadd.f32 %v11177, %v11217
      %v11219 = vpop.f32.mrb[0].mxu0
      %v11220 = vadd.f32 %v11179, %v11219
      %v11221 = vpop.f32.mrb[0].mxu0
      %v11222 = vpop.f32.mrb[0].mxu0
      %11223 = vdwg.mxu0
      %11224 = vmatprep.subr.bf16.mxu0 %v11003
      %11225 = vmatpush1.bf16.msra.mxu0 %v11002
      %11226 = vmatprep.subr.bf16.mxu0 %v11011
      %11227 = vmatpush1.bf16.msra.mxu0 %v11010
      %11228 = vmatprep.subr.bf16.mxu0 %v11019
      %11229 = vmatpush1.bf16.msra.mxu0 %v11018
      %11230 = vmatprep.subr.bf16.mxu0 %v11027
      %11231 = vmatpush1.bf16.msra.mxu0 %v11026
      %11232 = vmatprep.subr.bf16.mxu0 %v11035
      %11233 = vmatpush1.bf16.msra.mxu0 %v11034
      %11234 = vmatprep.subr.bf16.mxu0 %v11043
      %11235 = vmatpush1.bf16.msra.mxu0 %v11042
      %11236 = vmatprep.subr.bf16.mxu0 0
      %11237 = vmatpush1.bf16.msra.mxu0 0
      %11238 = vmatprep.subr.bf16.mxu0 0
      %11239 = vmatpush1.bf16.msra.mxu0 0
      %11240 = vmatprep.subr.bf16.mxu0 0
      %11241 = vmatpush1.bf16.msra.mxu0 0
      %11242 = vmatprep.subr.bf16.mxu0 0
      %11243 = vmatpush1.bf16.msra.mxu0 0
      %11244 = vmatprep.subr.bf16.mxu0 0
      %11245 = vmatpush1.bf16.msra.mxu0 0
      %11246 = vmatprep.subr.bf16.mxu0 0
      %11247 = vmatpush1.bf16.msra.mxu0 0
      %11248 = vmatprep.subr.bf16.mxu0 0
      %11249 = vmatpush1.bf16.msra.mxu0 0
      %11250 = vmatprep.subr.bf16.mxu0 0
      %11251 = vmatpush1.bf16.msra.mxu0 0
      %11252 = vmatprep.subr.bf16.mxu0 0
      %11253 = vmatpush1.bf16.msra.mxu0 0
      %11254 = vmatprep.subr.bf16.mxu0 0
      %11255 = vmatpush1.bf16.msra.mxu0 0
      %11256 = vmatprep.mubr.bf16.mxu0 0
      %11257 = vmatmul.mubr.bf16.gmra.mrb[0].mxu0 %v11099
      %v11258 = vpop.f32.mrb[0].mxu0
      %v11259 = vadd.f32 %v11218, %v11258
      %v11260 = vpop.f32.mrb[0].mxu0
      %v11261 = vadd.f32 %v11220, %v11260
      %v11262 = vpop.f32.mrb[0].mxu0
      %v11263 = vpop.f32.mrb[0].mxu0
      %11264 = vdwg.mxu0
      %11265 = vmatprep.subr.bf16.mxu0 %v10621
      %11266 = vmatpush1.bf16.msra.mxu0 %v10620
      %11267 = vmatprep.subr.bf16.mxu0 %v10629
      %11268 = vmatpush1.bf16.msra.mxu0 %v10628
      %11269 = vmatprep.subr.bf16.mxu0 %v10637
      %11270 = vmatpush1.bf16.msra.mxu0 %v10636
      %11271 = vmatprep.subr.bf16.mxu0 %v10645
      %11272 = vmatpush1.bf16.msra.mxu0 %v10644
      %11273 = vmatprep.subr.bf16.mxu0 %v10653
      %11274 = vmatpush1.bf16.msra.mxu0 %v10652
      %11275 = vmatprep.subr.bf16.mxu0 %v10661
      %11276 = vmatpush1.bf16.msra.mxu0 %v10660
      %11277 = vmatprep.subr.bf16.mxu0 %v10669
      %11278 = vmatpush1.bf16.msra.mxu0 %v10668
      %11279 = vmatprep.subr.bf16.mxu0 %v10677
      %11280 = vmatpush1.bf16.msra.mxu0 %v10676
      %11281 = vmatprep.subr.bf16.mxu0 %v10685
      %11282 = vmatpush1.bf16.msra.mxu0 %v10684
      %11283 = vmatprep.subr.bf16.mxu0 %v10693
      %11284 = vmatpush1.bf16.msra.mxu0 %v10692
      %11285 = vmatprep.subr.bf16.mxu0 %v10701
      %11286 = vmatpush1.bf16.msra.mxu0 %v10700
      %11287 = vmatprep.subr.bf16.mxu0 %v10709
      %11288 = vmatpush1.bf16.msra.mxu0 %v10708
      %11289 = vmatprep.subr.bf16.mxu0 %v10717
      %11290 = vmatpush1.bf16.msra.mxu0 %v10716
      %11291 = vmatprep.subr.bf16.mxu0 %v10725
      %11292 = vmatpush1.bf16.msra.mxu0 %v10724
      %11293 = vmatprep.subr.bf16.mxu0 %v10733
      %11294 = vmatpush1.bf16.msra.mxu0 %v10732
      %11295 = vmatprep.subr.bf16.mxu0 %v10741
      %11296 = vmatpush1.bf16.msra.mxu0 %v10740
      %11297 = vmatprep.mubr.bf16.mxu0 %v11073
      %11298 = vmatmul.mubr.bf16.gmra.mrb[0].mxu0 %v11065
      %v11299 = vpop.f32.mrb[0].mxu0
      %v11300 = vadd.f32 %v11054, %v11299
      %v11301 = vpop.f32.mrb[0].mxu0
      %v11302 = vadd.f32 %v11054, %v11301
      %v11303 = vpop.f32.mrb[0].mxu0
      %v11304 = vpop.f32.mrb[0].mxu0
      %11305 = vdwg.mxu0
      %11306 = vmatprep.subr.bf16.mxu0 %v10749
      %11307 = vmatpush1.bf16.msra.mxu0 %v10748
      %11308 = vmatprep.subr.bf16.mxu0 %v10757
      %11309 = vmatpush1.bf16.msra.mxu0 %v10756
      %11310 = vmatprep.subr.bf16.mxu0 %v10765
      %11311 = vmatpush1.bf16.msra.mxu0 %v10764
      %11312 = vmatprep.subr.bf16.mxu0 %v10773
      %11313 = vmatpush1.bf16.msra.mxu0 %v10772
      %11314 = vmatprep.subr.bf16.mxu0 %v10781
      %11315 = vmatpush1.bf16.msra.mxu0 %v10780
      %11316 = vmatprep.subr.bf16.mxu0 %v10789
      %11317 = vmatpush1.bf16.msra.mxu0 %v10788
      %11318 = vmatprep.subr.bf16.mxu0 %v10797
      %11319 = vmatpush1.bf16.msra.mxu0 %v10796
      %11320 = vmatprep.subr.bf16.mxu0 %v10805
      %11321 = vmatpush1.bf16.msra.mxu0 %v10804
      %11322 = vmatprep.subr.bf16.mxu0 %v10813
      %11323 = vmatpush1.bf16.msra.mxu0 %v10812
      %11324 = vmatprep.subr.bf16.mxu0 %v10821
      %11325 = vmatpush1.bf16.msra.mxu0 %v10820
      %11326 = vmatprep.subr.bf16.mxu0 %v10829
      %11327 = vmatpush1.bf16.msra.mxu0 %v10828
      %11328 = vmatprep.subr.bf16.mxu0 %v10837
      %11329 = vmatpush1.bf16.msra.mxu0 %v10836
      %11330 = vmatprep.subr.bf16.mxu0 %v10845
      %11331 = vmatpush1.bf16.msra.mxu0 %v10844
      %11332 = vmatprep.subr.bf16.mxu0 %v10853
      %11333 = vmatpush1.bf16.msra.mxu0 %v10852
      %11334 = vmatprep.subr.bf16.mxu0 %v10861
      %11335 = vmatpush1.bf16.msra.mxu0 %v10860
      %11336 = vmatprep.subr.bf16.mxu0 %v10869
      %11337 = vmatpush1.bf16.msra.mxu0 %v10868
      %11338 = vmatprep.mubr.bf16.mxu0 %v11074
      %11339 = vmatmul.mubr.bf16.gmra.mrb[0].mxu0 %v11072
      %v11340 = vpop.f32.mrb[0].mxu0
      %v11341 = vadd.f32 %v11300, %v11340
      %v11342 = vpop.f32.mrb[0].mxu0
      %v11343 = vadd.f32 %v11302, %v11342
      %v11344 = vpop.f32.mrb[0].mxu0
      %v11345 = vpop.f32.mrb[0].mxu0
      %11346 = vdwg.mxu0
      %11347 = vmatprep.subr.bf16.mxu0 %v10877
      %11348 = vmatpush1.bf16.msra.mxu0 %v10876
      %11349 = vmatprep.subr.bf16.mxu0 %v10885
      %11350 = vmatpush1.bf16.msra.mxu0 %v10884
      %11351 = vmatprep.subr.bf16.mxu0 %v10893
      %11352 = vmatpush1.bf16.msra.mxu0 %v10892
      %11353 = vmatprep.subr.bf16.mxu0 %v10901
      %11354 = vmatpush1.bf16.msra.mxu0 %v10900
      %11355 = vmatprep.subr.bf16.mxu0 %v10909
      %11356 = vmatpush1.bf16.msra.mxu0 %v10908
      %11357 = vmatprep.subr.bf16.mxu0 %v10917
      %11358 = vmatpush1.bf16.msra.mxu0 %v10916
      %11359 = vmatprep.subr.bf16.mxu0 %v10925
      %11360 = vmatpush1.bf16.msra.mxu0 %v10924
      %11361 = vmatprep.subr.bf16.mxu0 %v10933
      %11362 = vmatpush1.bf16.msra.mxu0 %v10932
      %11363 = vmatprep.subr.bf16.mxu0 %v10941
      %11364 = vmatpush1.bf16.msra.mxu0 %v10940
      %11365 = vmatprep.subr.bf16.mxu0 %v10949
      %11366 = vmatpush1.bf16.msra.mxu0 %v10948
      %11367 = vmatprep.subr.bf16.mxu0 %v10957
      %11368 = vmatpush1.bf16.msra.mxu0 %v10956
      %11369 = vmatprep.subr.bf16.mxu0 %v10965
      %11370 = vmatpush1.bf16.msra.mxu0 %v10964
      %11371 = vmatprep.subr.bf16.mxu0 %v10973
      %11372 = vmatpush1.bf16.msra.mxu0 %v10972
      %11373 = vmatprep.subr.bf16.mxu0 %v10981
      %11374 = vmatpush1.bf16.msra.mxu0 %v10980
      %11375 = vmatprep.subr.bf16.mxu0 %v10989
      %11376 = vmatpush1.bf16.msra.mxu0 %v10988
      %11377 = vmatprep.subr.bf16.mxu0 %v10997
      %11378 = vmatpush1.bf16.msra.mxu0 %v10996
      %11379 = vmatprep.mubr.bf16.mxu0 %v11090
      %11380 = vmatmul.mubr.bf16.gmra.mrb[0].mxu0 %v11082
      %v11381 = vpop.f32.mrb[0].mxu0
      %v11382 = vadd.f32 %v11341, %v11381
      %v11383 = vpop.f32.mrb[0].mxu0
      %v11384 = vadd.f32 %v11343, %v11383
      %v11385 = vpop.f32.mrb[0].mxu0
      %v11386 = vpop.f32.mrb[0].mxu0
      %11387 = vdwg.mxu0
      %11388 = vmatprep.subr.bf16.mxu0 %v11005
      %11389 = vmatpush1.bf16.msra.mxu0 %v11004
      %11390 = vmatprep.subr.bf16.mxu0 %v11013
      %11391 = vmatpush1.bf16.msra.mxu0 %v11012
      %11392 = vmatprep.subr.bf16.mxu0 %v11021
      %11393 = vmatpush1.bf16.msra.mxu0 %v11020
      %11394 = vmatprep.subr.bf16.mxu0 %v11029
      %11395 = vmatpush1.bf16.msra.mxu0 %v11028
      %11396 = vmatprep.subr.bf16.mxu0 %v11037
      %11397 = vmatpush1.bf16.msra.mxu0 %v11036
      %11398 = vmatprep.subr.bf16.mxu0 %v11045
      %11399 = vmatpush1.bf16.msra.mxu0 %v11044
      %11400 = vmatprep.subr.bf16.mxu0 0
      %11401 = vmatpush1.bf16.msra.mxu0 0
      %11402 = vmatprep.subr.bf16.mxu0 0
      %11403 = vmatpush1.bf16.msra.mxu0 0
      %11404 = vmatprep.subr.bf16.mxu0 0
      %11405 = vmatpush1.bf16.msra.mxu0 0
      %11406 = vmatprep.subr.bf16.mxu0 0
      %11407 = vmatpush1.bf16.msra.mxu0 0
      %11408 = vmatprep.subr.bf16.mxu0 0
      %11409 = vmatpush1.bf16.msra.mxu0 0
      %11410 = vmatprep.subr.bf16.mxu0 0
      %11411 = vmatpush1.bf16.msra.mxu0 0
      %11412 = vmatprep.subr.bf16.mxu0 0
      %11413 = vmatpush1.bf16.msra.mxu0 0
      %11414 = vmatprep.subr.bf16.mxu0 0
      %11415 = vmatpush1.bf16.msra.mxu0 0
      %11416 = vmatprep.subr.bf16.mxu0 0
      %11417 = vmatpush1.bf16.msra.mxu0 0
      %11418 = vmatprep.subr.bf16.mxu0 0
      %11419 = vmatpush1.bf16.msra.mxu0 0
      %11420 = vmatprep.mubr.bf16.mxu0 0
      %11421 = vmatmul.mubr.bf16.gmra.mrb[0].mxu0 %v11099
      %v11422 = vpop.f32.mrb[0].mxu0
      %v11423 = vadd.f32 %v11382, %v11422
      %v11424 = vpop.f32.mrb[0].mxu0
      %v11425 = vadd.f32 %v11384, %v11424
      %v11426 = vpop.f32.mrb[0].mxu0
      %v11427 = vpop.f32.mrb[0].mxu0
      %11428 = vdwg.mxu0
      %11429 = vmatprep.subr.bf16.mxu0 %v10623
      %11430 = vmatpush1.bf16.msra.mxu0 %v10622
      %11431 = vmatprep.subr.bf16.mxu0 %v10631
      %11432 = vmatpush1.bf16.msra.mxu0 %v10630
      %11433 = vmatprep.subr.bf16.mxu0 %v10639
      %11434 = vmatpush1.bf16.msra.mxu0 %v10638
      %11435 = vmatprep.subr.bf16.mxu0 %v10647
      %11436 = vmatpush1.bf16.msra.mxu0 %v10646
      %11437 = vmatprep.subr.bf16.mxu0 %v10655
      %11438 = vmatpush1.bf16.msra.mxu0 %v10654
      %11439 = vmatprep.subr.bf16.mxu0 %v10663
      %11440 = vmatpush1.bf16.msra.mxu0 %v10662
      %11441 = vmatprep.subr.bf16.mxu0 %v10671
      %11442 = vmatpush1.bf16.msra.mxu0 %v10670
      %11443 = vmatprep.subr.bf16.mxu0 %v10679
      %11444 = vmatpush1.bf16.msra.mxu0 %v10678
      %11445 = vmatprep.subr.bf16.mxu0 %v10687
      %11446 = vmatpush1.bf16.msra.mxu0 %v10686
      %11447 = vmatprep.subr.bf16.mxu0 %v10695
      %11448 = vmatpush1.bf16.msra.mxu0 %v10694
      %11449 = vmatprep.subr.bf16.mxu0 %v10703
      %11450 = vmatpush1.bf16.msra.mxu0 %v10702
      %11451 = vmatprep.subr.bf16.mxu0 %v10711
      %11452 = vmatpush1.bf16.msra.mxu0 %v10710
      %11453 = vmatprep.subr.bf16.mxu0 %v10719
      %11454 = vmatpush1.bf16.msra.mxu0 %v10718
      %11455 = vmatprep.subr.bf16.mxu0 %v10727
      %11456 = vmatpush1.bf16.msra.mxu0 %v10726
      %11457 = vmatprep.subr.bf16.mxu0 %v10735
      %11458 = vmatpush1.bf16.msra.mxu0 %v10734
      %11459 = vmatprep.subr.bf16.mxu0 %v10743
      %11460 = vmatpush1.bf16.msra.mxu0 %v10742
      %11461 = vmatprep.mubr.bf16.mxu0 %v11073
      %11462 = vmatmul.mubr.bf16.gmra.mrb[0].mxu0 %v11065
      %v11463 = vpop.f32.mrb[0].mxu0
      %v11464 = vadd.f32 %v11054, %v11463
      %v11465 = vpop.f32.mrb[0].mxu0
      %v11466 = vadd.f32 %v11054, %v11465
      %v11467 = vpop.f32.mrb[0].mxu0
      %v11468 = vpop.f32.mrb[0].mxu0
      %11469 = vdwg.mxu0
      %11470 = vmatprep.subr.bf16.mxu0 %v10751
      %11471 = vmatpush1.bf16.msra.mxu0 %v10750
      %11472 = vmatprep.subr.bf16.mxu0 %v10759
      %11473 = vmatpush1.bf16.msra.mxu0 %v10758
      %11474 = vmatprep.subr.bf16.mxu0 %v10767
      %11475 = vmatpush1.bf16.msra.mxu0 %v10766
      %11476 = vmatprep.subr.bf16.mxu0 %v10775
      %11477 = vmatpush1.bf16.msra.mxu0 %v10774
      %11478 = vmatprep.subr.bf16.mxu0 %v10783
      %11479 = vmatpush1.bf16.msra.mxu0 %v10782
      %11480 = vmatprep.subr.bf16.mxu0 %v10791
      %11481 = vmatpush1.bf16.msra.mxu0 %v10790
      %11482 = vmatprep.subr.bf16.mxu0 %v10799
      %11483 = vmatpush1.bf16.msra.mxu0 %v10798
      %11484 = vmatprep.subr.bf16.mxu0 %v10807
      %11485 = vmatpush1.bf16.msra.mxu0 %v10806
      %11486 = vmatprep.subr.bf16.mxu0 %v10815
      %11487 = vmatpush1.bf16.msra.mxu0 %v10814
      %11488 = vmatprep.subr.bf16.mxu0 %v10823
      %11489 = vmatpush1.bf16.msra.mxu0 %v10822
      %11490 = vmatprep.subr.bf16.mxu0 %v10831
      %11491 = vmatpush1.bf16.msra.mxu0 %v10830
      %11492 = vmatprep.subr.bf16.mxu0 %v10839
      %11493 = vmatpush1.bf16.msra.mxu0 %v10838
      %11494 = vmatprep.subr.bf16.mxu0 %v10847
      %11495 = vmatpush1.bf16.msra.mxu0 %v10846
      %11496 = vmatprep.subr.bf16.mxu0 %v10855
      %11497 = vmatpush1.bf16.msra.mxu0 %v10854
      %11498 = vmatprep.subr.bf16.mxu0 %v10863
      %11499 = vmatpush1.bf16.msra.mxu0 %v10862
      %11500 = vmatprep.subr.bf16.mxu0 %v10871
      %11501 = vmatpush1.bf16.msra.mxu0 %v10870
      %11502 = vmatprep.mubr.bf16.mxu0 %v11074
      %11503 = vmatmul.mubr.bf16.gmra.mrb[0].mxu0 %v11072
      %v11504 = vpop.f32.mrb[0].mxu0
      %v11505 = vadd.f32 %v11464, %v11504
      %v11506 = vpop.f32.mrb[0].mxu0
      %v11507 = vadd.f32 %v11466, %v11506
      %v11508 = vpop.f32.mrb[0].mxu0
      %v11509 = vpop.f32.mrb[0].mxu0
      %11510 = vdwg.mxu0
      %11511 = vmatprep.subr.bf16.mxu0 %v10879
      %11512 = vmatpush1.bf16.msra.mxu0 %v10878
      %11513 = vmatprep.subr.bf16.mxu0 %v10887
      %11514 = vmatpush1.bf16.msra.mxu0 %v10886
      %11515 = vmatprep.subr.bf16.mxu0 %v10895
      %11516 = vmatpush1.bf16.msra.mxu0 %v10894
      %11517 = vmatprep.subr.bf16.mxu0 %v10903
      %11518 = vmatpush1.bf16.msra.mxu0 %v10902
      %11519 = vmatprep.subr.bf16.mxu0 %v10911
      %11520 = vmatpush1.bf16.msra.mxu0 %v10910
      %11521 = vmatprep.subr.bf16.mxu0 %v10919
      %11522 = vmatpush1.bf16.msra.mxu0 %v10918
      %11523 = vmatprep.subr.bf16.mxu0 %v10927
      %11524 = vmatpush1.bf16.msra.mxu0 %v10926
      %11525 = vmatprep.subr.bf16.mxu0 %v10935
      %11526 = vmatpush1.bf16.msra.mxu0 %v10934
      %11527 = vmatprep.subr.bf16.mxu0 %v10943
      %11528 = vmatpush1.bf16.msra.mxu0 %v10942
      %11529 = vmatprep.subr.bf16.mxu0 %v10951
      %11530 = vmatpush1.bf16.msra.mxu0 %v10950
      %11531 = vmatprep.subr.bf16.mxu0 %v10959
      %11532 = vmatpush1.bf16.msra.mxu0 %v10958
      %11533 = vmatprep.subr.bf16.mxu0 %v10967
      %11534 = vmatpush1.bf16.msra.mxu0 %v10966
      %11535 = vmatprep.subr.bf16.mxu0 %v10975
      %11536 = vmatpush1.bf16.msra.mxu0 %v10974
      %11537 = vmatprep.subr.bf16.mxu0 %v10983
      %11538 = vmatpush1.bf16.msra.mxu0 %v10982
      %11539 = vmatprep.subr.bf16.mxu0 %v10991
      %11540 = vmatpush1.bf16.msra.mxu0 %v10990
      %11541 = vmatprep.subr.bf16.mxu0 %v10999
      %11542 = vmatpush1.bf16.msra.mxu0 %v10998
      %11543 = vmatprep.mubr.bf16.mxu0 %v11090
      %11544 = vmatmul.mubr.bf16.gmra.mrb[0].mxu0 %v11082
      %v11545 = vpop.f32.mrb[0].mxu0
      %v11546 = vadd.f32 %v11505, %v11545
      %v11547 = vpop.f32.mrb[0].mxu0
      %v11548 = vadd.f32 %v11507, %v11547
      %v11549 = vpop.f32.mrb[0].mxu0
      %v11550 = vpop.f32.mrb[0].mxu0
      %11551 = vdwg.mxu0
      %11552 = vmatprep.subr.bf16.mxu0 %v11007
      %11553 = vmatpush1.bf16.msra.mxu0 %v11006
      %11554 = vmatprep.subr.bf16.mxu0 %v11015
      %11555 = vmatpush1.bf16.msra.mxu0 %v11014
      %11556 = vmatprep.subr.bf16.mxu0 %v11023
      %11557 = vmatpush1.bf16.msra.mxu0 %v11022
      %11558 = vmatprep.subr.bf16.mxu0 %v11031
      %11559 = vmatpush1.bf16.msra.mxu0 %v11030
      %11560 = vmatprep.subr.bf16.mxu0 %v11039
      %11561 = vmatpush1.bf16.msra.mxu0 %v11038
      %11562 = vmatprep.subr.bf16.mxu0 %v11047
      %11563 = vmatpush1.bf16.msra.mxu0 %v11046
      %11564 = vmatprep.subr.bf16.mxu0 0
      %11565 = vmatpush1.bf16.msra.mxu0 0
      %11566 = vmatprep.subr.bf16.mxu0 0
      %11567 = vmatpush1.bf16.msra.mxu0 0
      %11568 = vmatprep.subr.bf16.mxu0 0
      %11569 = vmatpush1.bf16.msra.mxu0 0
      %11570 = vmatprep.subr.bf16.mxu0 0
      %11571 = vmatpush1.bf16.msra.mxu0 0
      %11572 = vmatprep.subr.bf16.mxu0 0
      %11573 = vmatpush1.bf16.msra.mxu0 0
      %11574 = vmatprep.subr.bf16.mxu0 0
      %11575 = vmatpush1.bf16.msra.mxu0 0
      %11576 = vmatprep.subr.bf16.mxu0 0
      %11577 = vmatpush1.bf16.msra.mxu0 0
      %11578 = vmatprep.subr.bf16.mxu0 0
      %11579 = vmatpush1.bf16.msra.mxu0 0
      %11580 = vmatprep.subr.bf16.mxu0 0
      %11581 = vmatpush1.bf16.msra.mxu0 0
      %11582 = vmatprep.subr.bf16.mxu0 0
      %11583 = vmatpush1.bf16.msra.mxu0 0
      %11584 = vmatprep.mubr.bf16.mxu0 0
      %11585 = vmatmul.mubr.bf16.gmra.mrb[0].mxu0 %v11099
      %v11586 = vpop.f32.mrb[0].mxu0
      %v11587 = vadd.f32 %v11546, %v11586
      %v11588 = vpop.f32.mrb[0].mxu0
      %v11589 = vadd.f32 %v11548, %v11588
      %v11590 = vpop.f32.mrb[0].mxu0
      %v11591 = vpop.f32.mrb[0].mxu0
      %11592 = vdwg.mxu0
      %11593 = vmatprep.subr.bf16.mxu0 %v10625
      %11594 = vmatpush1.bf16.msra.mxu0 %v10624
      %11595 = vmatprep.subr.bf16.mxu0 %v10633
      %11596 = vmatpush1.bf16.msra.mxu0 %v10632
      %11597 = vmatprep.subr.bf16.mxu0 %v10641
      %11598 = vmatpush1.bf16.msra.mxu0 %v10640
      %11599 = vmatprep.subr.bf16.mxu0 %v10649
      %11600 = vmatpush1.bf16.msra.mxu0 %v10648
      %11601 = vmatprep.subr.bf16.mxu0 %v10657
      %11602 = vmatpush1.bf16.msra.mxu0 %v10656
      %11603 = vmatprep.subr.bf16.mxu0 %v10665
      %11604 = vmatpush1.bf16.msra.mxu0 %v10664
      %11605 = vmatprep.subr.bf16.mxu0 %v10673
      %11606 = vmatpush1.bf16.msra.mxu0 %v10672
      %11607 = vmatprep.subr.bf16.mxu0 %v10681
      %11608 = vmatpush1.bf16.msra.mxu0 %v10680
      %11609 = vmatprep.subr.bf16.mxu0 %v10689
      %11610 = vmatpush1.bf16.msra.mxu0 %v10688
      %11611 = vmatprep.subr.bf16.mxu0 %v10697
      %11612 = vmatpush1.bf16.msra.mxu0 %v10696
      %11613 = vmatprep.subr.bf16.mxu0 %v10705
      %11614 = vmatpush1.bf16.msra.mxu0 %v10704
      %11615 = vmatprep.subr.bf16.mxu0 %v10713
      %11616 = vmatpush1.bf16.msra.mxu0 %v10712
      %11617 = vmatprep.subr.bf16.mxu0 %v10721
      %11618 = vmatpush1.bf16.msra.mxu0 %v10720
      %11619 = vmatprep.subr.bf16.mxu0 %v10729
      %11620 = vmatpush1.bf16.msra.mxu0 %v10728
      %11621 = vmatprep.subr.bf16.mxu0 %v10737
      %11622 = vmatpush1.bf16.msra.mxu0 %v10736
      %11623 = vmatprep.subr.bf16.mxu0 %v10745
      %11624 = vmatpush1.bf16.msra.mxu0 %v10744
      %11625 = vmatprep.mubr.bf16.mxu0 %v11073
      %11626 = vmatmul.mubr.bf16.gmra.mrb[0].mxu0 %v11065
      %v11627 = vpop.f32.mrb[0].mxu0
      %v11628 = vadd.f32 %v11054, %v11627
      %v11629 = vpop.f32.mrb[0].mxu0
      %v11630 = vadd.f32 %v11054, %v11629
      %v11631 = vpop.f32.mrb[0].mxu0
      %v11632 = vpop.f32.mrb[0].mxu0
      %11633 = vdwg.mxu0
      %11634 = vmatprep.subr.bf16.mxu0 %v10753
      %11635 = vmatpush1.bf16.msra.mxu0 %v10752
      %11636 = vmatprep.subr.bf16.mxu0 %v10761
      %11637 = vmatpush1.bf16.msra.mxu0 %v10760
      %11638 = vmatprep.subr.bf16.mxu0 %v10769
      %11639 = vmatpush1.bf16.msra.mxu0 %v10768
      %11640 = vmatprep.subr.bf16.mxu0 %v10777
      %11641 = vmatpush1.bf16.msra.mxu0 %v10776
      %11642 = vmatprep.subr.bf16.mxu0 %v10785
      %11643 = vmatpush1.bf16.msra.mxu0 %v10784
      %11644 = vmatprep.subr.bf16.mxu0 %v10793
      %11645 = vmatpush1.bf16.msra.mxu0 %v10792
      %11646 = vmatprep.subr.bf16.mxu0 %v10801
      %11647 = vmatpush1.bf16.msra.mxu0 %v10800
      %11648 = vmatprep.subr.bf16.mxu0 %v10809
      %11649 = vmatpush1.bf16.msra.mxu0 %v10808
      %11650 = vmatprep.subr.bf16.mxu0 %v10817
      %11651 = vmatpush1.bf16.msra.mxu0 %v10816
      %11652 = vmatprep.subr.bf16.mxu0 %v10825
      %11653 = vmatpush1.bf16.msra.mxu0 %v10824
      %11654 = vmatprep.subr.bf16.mxu0 %v10833
      %11655 = vmatpush1.bf16.msra.mxu0 %v10832
      %11656 = vmatprep.subr.bf16.mxu0 %v10841
      %11657 = vmatpush1.bf16.msra.mxu0 %v10840
      %11658 = vmatprep.subr.bf16.mxu0 %v10849
      %11659 = vmatpush1.bf16.msra.mxu0 %v10848
      %11660 = vmatprep.subr.bf16.mxu0 %v10857
      %11661 = vmatpush1.bf16.msra.mxu0 %v10856
      %11662 = vmatprep.subr.bf16.mxu0 %v10865
      %11663 = vmatpush1.bf16.msra.mxu0 %v10864
      %11664 = vmatprep.subr.bf16.mxu0 %v10873
      %11665 = vmatpush1.bf16.msra.mxu0 %v10872
      %11666 = vmatprep.mubr.bf16.mxu0 %v11074
      %11667 = vmatmul.mubr.bf16.gmra.mrb[0].mxu0 %v11072
      %v11668 = vpop.f32.mrb[0].mxu0
      %v11669 = vadd.f32 %v11628, %v11668
      %v11670 = vpop.f32.mrb[0].mxu0
      %v11671 = vadd.f32 %v11630, %v11670
      %v11672 = vpop.f32.mrb[0].mxu0
      %v11673 = vpop.f32.mrb[0].mxu0
      %11674 = vdwg.mxu0
      %11675 = vmatprep.subr.bf16.mxu0 %v10881
      %11676 = vmatpush1.bf16.msra.mxu0 %v10880
      %11677 = vmatprep.subr.bf16.mxu0 %v10889
      %11678 = vmatpush1.bf16.msra.mxu0 %v10888
      %11679 = vmatprep.subr.bf16.mxu0 %v10897
      %11680 = vmatpush1.bf16.msra.mxu0 %v10896
      %11681 = vmatprep.subr.bf16.mxu0 %v10905
      %11682 = vmatpush1.bf16.msra.mxu0 %v10904
      %11683 = vmatprep.subr.bf16.mxu0 %v10913
      %11684 = vmatpush1.bf16.msra.mxu0 %v10912
      %11685 = vmatprep.subr.bf16.mxu0 %v10921
      %11686 = vmatpush1.bf16.msra.mxu0 %v10920
      %11687 = vmatprep.subr.bf16.mxu0 %v10929
      %11688 = vmatpush1.bf16.msra.mxu0 %v10928
      %11689 = vmatprep.subr.bf16.mxu0 %v10937
      %11690 = vmatpush1.bf16.msra.mxu0 %v10936
      %11691 = vmatprep.subr.bf16.mxu0 %v10945
      %11692 = vmatpush1.bf16.msra.mxu0 %v10944
      %11693 = vmatprep.subr.bf16.mxu0 %v10953
      %11694 = vmatpush1.bf16.msra.mxu0 %v10952
      %11695 = vmatprep.subr.bf16.mxu0 %v10961
      %11696 = vmatpush1.bf16.msra.mxu0 %v10960
      %11697 = vmatprep.subr.bf16.mxu0 %v10969
      %11698 = vmatpush1.bf16.msra.mxu0 %v10968
      %11699 = vmatprep.subr.bf16.mxu0 %v10977
      %11700 = vmatpush1.bf16.msra.mxu0 %v10976
      %11701 = vmatprep.subr.bf16.mxu0 %v10985
      %11702 = vmatpush1.bf16.msra.mxu0 %v10984
      %11703 = vmatprep.subr.bf16.mxu0 %v10993
      %11704 = vmatpush1.bf16.msra.mxu0 %v10992
      %11705 = vmatprep.subr.bf16.mxu0 %v11001
      %11706 = vmatpush1.bf16.msra.mxu0 %v11000
      %11707 = vmatprep.mubr.bf16.mxu0 %v11090
      %11708 = vmatmul.mubr.bf16.gmra.mrb[0].mxu0 %v11082
      %v11709 = vpop.f32.mrb[0].mxu0
      %v11710 = vadd.f32 %v11669, %v11709
      %v11711 = vpop.f32.mrb[0].mxu0
      %v11712 = vadd.f32 %v11671, %v11711
      %v11713 = vpop.f32.mrb[0].mxu0
      %v11714 = vpop.f32.mrb[0].mxu0
      %11715 = vdwg.mxu0
      %11716 = vmatprep.subr.bf16.mxu0 %v11009
      %11717 = vmatpush1.bf16.msra.mxu0 %v11008
      %11718 = vmatprep.subr.bf16.mxu0 %v11017
      %11719 = vmatpush1.bf16.msra.mxu0 %v11016
      %11720 = vmatprep.subr.bf16.mxu0 %v11025
      %11721 = vmatpush1.bf16.msra.mxu0 %v11024
      %11722 = vmatprep.subr.bf16.mxu0 %v11033
      %11723 = vmatpush1.bf16.msra.mxu0 %v11032
      %11724 = vmatprep.subr.bf16.mxu0 %v11041
      %11725 = vmatpush1.bf16.msra.mxu0 %v11040
      %11726 = vmatprep.subr.bf16.mxu0 %v11049
      %11727 = vmatpush1.bf16.msra.mxu0 %v11048
      %11728 = vmatprep.subr.bf16.mxu0 0
      %11729 = vmatpush1.bf16.msra.mxu0 0
      %11730 = vmatprep.subr.bf16.mxu0 0
      %11731 = vmatpush1.bf16.msra.mxu0 0
      %11732 = vmatprep.subr.bf16.mxu0 0
      %11733 = vmatpush1.bf16.msra.mxu0 0
      %11734 = vmatprep.subr.bf16.mxu0 0
      %11735 = vmatpush1.bf16.msra.mxu0 0
      %11736 = vmatprep.subr.bf16.mxu0 0
      %11737 = vmatpush1.bf16.msra.mxu0 0
      %11738 = vmatprep.subr.bf16.mxu0 0
      %11739 = vmatpush1.bf16.msra.mxu0 0
      %11740 = vmatprep.subr.bf16.mxu0 0
      %11741 = vmatpush1.bf16.msra.mxu0 0
      %11742 = vmatprep.subr.bf16.mxu0 0
      %11743 = vmatpush1.bf16.msra.mxu0 0
      %11744 = vmatprep.subr.bf16.mxu0 0
      %11745 = vmatpush1.bf16.msra.mxu0 0
      %11746 = vmatprep.subr.bf16.mxu0 0
      %11747 = vmatpush1.bf16.msra.mxu0 0
      %11748 = vmatprep.mubr.bf16.mxu0 0
      %11749 = vmatmul.mubr.bf16.gmra.mrb[0].mxu0 %v11099
      %v11750 = vpop.f32.mrb[0].mxu0
      %v11751 = vadd.f32 %v11710, %v11750
      %v11752 = vpop.f32.mrb[0].mxu0
      %v11753 = vadd.f32 %v11712, %v11752
      %v11754 = vpop.f32.mrb[0].mxu0
      %v11755 = vpop.f32.mrb[0].mxu0
      %11756 = vdwg.mxu0
      %v11765 = vcombine.low %v11259, %v11261
      %v11766 = vcombine.low %v11423, %v11425
      %v11767 = vcombine.low %v11587, %v11589
      %v11768 = vcombine.low %v11751, %v11753
      %11773 = vst [vmem:[%s305] sm:$0xff] %v11765
      %11774 = vst [vmem:[%s305 + $0x8] sm:$0xff] %v11766
      %11775 = vst [vmem:[%s305 + $0x10] sm:$0xff] %v11767
      %11776 = vst [vmem:[%s305 + $0x18] sm:$0xff] %v11768
      %p11777 = scmp.lt.s32.totalorder %s19, 1
      %s11778 = scalar_select %p11777, %s19, 1
      %s11779 = smul.addr %s11778, 8
      %s11780 = smul.addr %s11779, 4
      %s11781 = scalar_lea.vmem %s8, %s11780
      // Predicated region
      $region53: #{convnet_forward.1} parent=51 // pred_check
        %p11782 = pneg %p210
      $region54: #{convnet_forward.1} parent=51 // pred_check_branch
        %11784 = sbr.rel (%p11782) target = $region56
      $region55: #{convnet_forward.1} parent=51 // pred_region
        _
      $region56: #{convnet_forward.1} parent=51 // pred_fallthru
        _
    $region52: #{convnet_forward.1} parent=5 // pred_fallthru
      _
    %p11785 = scmp.le.s32.totalorder 2, %s14
    // Predicated region
    $region57: #{convnet_forward.1} parent=5 // pred_check
      %p11786 = pneg %p11785
    $region58: #{convnet_forward.1} parent=5 // pred_check_branch
      %11788 = sbr.rel (%p11786) target = $region60
    $region59: #{convnet_forward.1} parent=5 // pred_region
      %s11789 = ssub.s32 %s14, 2
      // Predicated region
      $region61: #{convnet_forward.1} parent=59 // pred_check
        %p11790 = pneg %p216
      $region62: #{convnet_forward.1} parent=59 // pred_check_branch
        %11792 = sbr.rel (%p11790) target = $region64
      $region63: #{convnet_forward.1} parent=59 // pred_region
        %p11793 = scmp.lt.s32.totalorder %s20, 1
        %s11794 = scalar_select %p11793, %s20, 1
        %s11795 = smul.addr %s11794, 8
        %s11796 = smul.addr %s11795, 4
        %s11797 = scalar_lea.vmem %s8, %s11796
      $region64: #{convnet_forward.1} parent=59 // pred_fallthru
        _
    $region60: #{convnet_forward.1} parent=5 // pred_fallthru
      _
  $region6: #{convnet_forward.1} parent=0 // loop_footer
    %s18 = sadd.s32 1, %s14
  $region7: #{convnet_forward.1} parent=0 // loop_footer_branch
    %13 = sbr.rel target = $region3
  $region8: #{convnet_forward.1} parent=0 // loop_exit
    _

</llo_original>
